<compile_context>
chip_gen: v5e
topology: v5e:2x2
jax: 0.10.0
libtpu: 0.0.40
codegen_flags: <defaults>
</compile_context>

<pallas_src>
import functools

import jax
import jax.numpy as jnp
from jax.experimental import pallas as pl
from jax.experimental.pallas import tpu as pltpu


_CPARAMS = pltpu.CompilerParams(
    dimension_semantics=("arbitrary",),
    vmem_limit_bytes=32 * 1024 * 1024,   # explicit: v5e default scoped VMEM is 16 MiB
)


def _round_up(n, m):
    return ((n + m - 1) // m) * m


# ---------------------------------------------------------------------------
# Inertial signal -> RGB "Mul2Image" encoding (plain-JAX glue; a few KB only)
# ---------------------------------------------------------------------------
def inertial_image(x):
    """x: (B, S, W, 6) -> (B, S, W, 3), globally min-max normalized."""
    acc = x[..., 0:3]
    gyro = x[..., 3:6]
    nrm = jnp.sqrt(jnp.sum(acc * acc, axis=-1, keepdims=True))
    acc_n = acc / jnp.maximum(nrm, 1e-12)            # torch F.normalize(p=2)
    rgb = acc_n * gyro
    mn = jnp.min(rgb)
    mx = jnp.max(rgb)
    return (rgb - mn) / jnp.maximum(mx - mn, 1e-12)  # eps guard


# ---------------------------------------------------------------------------
# Parameter preparation (host side, once): fold BN into convs and lower each
# conv to a banded dense (H_in*Cin, H_out*Cout) matrix.
# ---------------------------------------------------------------------------
def bn_fold(bn, eps=1e-5):
    gamma, beta, mean, var = bn
    scale = gamma / jnp.sqrt(var + eps)
    return scale, beta - mean * scale


def banded_conv(w4, scale, h_in, stride, pad):
    """w4: PyTorch (Cout, Cin, kh, kw).  Image width is 1 and pad_w == kw//2, so
    only the centre kw column ever touches real data.  Returns f32 banded matrix
    W[(hi,ci),(ho,co)] and h_out."""
    c_out, c_in, kh, kw = w4.shape
    w_eff = w4[:, :, :, kw // 2] * scale[:, None, None]        # (Cout, Cin, kh)
    h_out = (h_in + 2 * pad - kh) // stride + 1
    assert h_out >= 1
    wf = jnp.zeros((h_in * c_in, h_out * c_out), jnp.float32)
    for ho in range(h_out):
        for dh in range(kh):
            hi = ho * stride + dh - pad
            if 0 <= hi < h_in:
                wf = wf.at[hi * c_in:(hi + 1) * c_in,
                           ho * c_out:(ho + 1) * c_out].set(w_eff[:, :, dh].T)
    return wf, h_out


def prepare_params(params, window, i_f_len, w_dtype=jnp.bfloat16):
    k_pad = _round_up(window * 3, 128)        # lane-dense stem input
    out_pad = _round_up(i_f_len, 128)         # lane-dense fc output

    # ---- stem: conv1(7,s2,p3) + folded BN; maxpool(3,s2,p1) bookkeeping ----
    s_scale, s_bias = bn_fold(params["bn1"])
    w_st, h_conv = banded_conv(params["conv1"], s_scale, window, 2, 3)
    w_st = jnp.zeros((k_pad, w_st.shape[1]), jnp.float32).at[:w_st.shape[0]].set(w_st)
    h_pool = (h_conv + 2 * 1 - 3) // 2 + 1
    stem = {"w": w_st.astype(w_dtype),
            "b": jnp.tile(s_bias, h_conv).reshape(1, -1).astype(jnp.float32),
            "h_conv": h_conv, "h_pool": h_pool, "c": params["conv1"].shape[0]}

    # ---- BasicBlocks --------------------------------------------------------
    blocks = []
    h = h_pool
    strides = [1, 2, 2, 2]
    for li, layer_blocks in enumerate(params["layers"]):
        for bi, blk in enumerate(layer_blocks):
            stride = strides[li] if bi == 0 else 1
            c_out = blk["conv1"].shape[0]
            sc1, b1 = bn_fold(blk["bn1"])
            w1, h1 = banded_conv(blk["conv1"], sc1, h, stride, 1)
            sc2, b2 = bn_fold(blk["bn2"])
            w2, h2 = banded_conv(blk["conv2"], sc2, h1, 1, 1)
            pb = {"w1": w1.astype(w_dtype),
                  "b1": jnp.tile(b1, h1).reshape(1, -1).astype(jnp.float32),
                  "w2": w2.astype(w_dtype),
                  "b2": jnp.tile(b2, h2).reshape(1, -1).astype(jnp.float32),
                  "h_out": h2, "c_out": c_out}
            if blk["down"] is not None:
                dw, dbn = blk["down"]
                dsc, db = bn_fold(dbn)
                wd, hd = banded_conv(dw, dsc, h, stride, 0)
                assert hd == h2
                pb["wd"] = wd.astype(w_dtype)
                pb["bd"] = jnp.tile(db, hd).reshape(1, -1).astype(jnp.float32)
            blocks.append(pb)
            h = h2

    # ---- fuse adaptive-avgpool + fc into the last block (head), lane-padded -
    wf = jnp.zeros((512, out_pad), jnp.float32).at[:, :i_f_len].set(params["fc_w"])
    bf = jnp.zeros((1, out_pad), jnp.float32).at[:, :i_f_len].set(
        params["fc_b"].reshape(1, -1))
    blocks[-1]["wf"] = wf.astype(w_dtype)
    blocks[-1]["bf"] = bf

    return {"stem": stem, "blocks": blocks, "window": window,
            "k_pad": k_pad, "out_pad": out_pad, "i_f_len": i_f_len}


# ---------------------------------------------------------------------------
# ONE fused Pallas kernel: stem + all BasicBlocks + avgpool + fc.
# Activations never leave VMEM; big weights are streamed HBM -> VMEM scratch
# with manual async copies, prefetching stage i+1 while stage i computes.
# ---------------------------------------------------------------------------
def fused_resnet_forward(feat, prep):
    n, k_pad = feat.shape
    assert k_pad == prep["k_pad"]
    out_pad = prep["out_pad"]
    stem, blocks = prep["stem"], prep["blocks"]

    big_w = []     # large bf16 matmul weights -> HBM (pl.ANY), manual DMA
    biases = []    # small f32 bias rows       -> regular VMEM BlockSpec
    stages = []    # static per-stage metadata (drives trace-time codegen)

    def add_w(a):
        big_w.append(a)
        return len(big_w) - 1

    def add_b(a):
        biases.append(a)
        return len(biases) - 1

    stages.append({"kind": "stem", "w": add_w(stem["w"]), "b": add_b(stem["b"]),
                   "h_conv": stem["h_conv"], "h_pool": stem["h_pool"],
                   "c": stem["c"]})
    for blk in blocks:
        st = {"kind": "block",
              "w1": add_w(blk["w1"]), "b1": add_b(blk["b1"]),
              "w2": add_w(blk["w2"]), "b2": add_b(blk["b2"]),
              "h_out": blk["h_out"], "c_out": blk["c_out"],
              "wd": None, "wf": None}
        if "wd" in blk:
            st["wd"] = add_w(blk["wd"])
            st["bd"] = add_b(blk["bd"])
        if "wf" in blk:
            st["wf"] = add_w(blk["wf"])
            st["bf"] = add_b(blk["bf"])
        stages.append(st)

    nw, nb = len(big_w), len(biases)
    w_keys = ("w", "w1", "w2", "wd", "wf")

    def kernel(*refs):
        x_ref = refs[0]
        b_refs = refs[1:1 + nb]
        w_hbm = refs[1 + nb:1 + nb + nw]
        o_ref = refs[1 + nb + nw]
        w_vmem = refs[2 + nb + nw:2 + nb + 2 * nw]
        sem = refs[2 + nb + 2 * nw]

        def start_stage(si):
            for key in w_keys:
                i = stages[si].get(key)
                if i is not None:
                    pltpu.make_async_copy(w_hbm[i], w_vmem[i], sem.at[i]).start()

        def wait_stage(si):
            for key in w_keys:
                i = stages[si].get(key)
                if i is not None:
                    pltpu.make_async_copy(w_hbm[i], w_vmem[i], sem.at[i]).wait()

        start_stage(0)
        act = None                                   # running f32 activation
        for si, st in enumerate(stages):
            if si + 1 < len(stages):
                start_stage(si + 1)                  # prefetch next stage's weights
            wait_stage(si)
            if st["kind"] == "stem":
                y = jnp.dot(x_ref[...], w_vmem[st["w"]][...],
                            preferred_element_type=jnp.float32)
                y = jnp.maximum(y + b_refs[st["b"]][...], 0.0)
                c, h_conv, h_pool = st["c"], st["h_conv"], st["h_pool"]
                chunks = []
                for ho in range(h_pool):             # maxpool(3, s2, p1) over H
                    taps = [hi for hi in range(2 * ho - 1, 2 * ho + 2)
                            if 0 <= hi < h_conv]
                    if not taps:
                        raise ValueError("maxpool window with no valid taps")
                    m = y[:, taps[0] * c:(taps[0] + 1) * c]
                    for hi in taps[1:]:
                        m = jnp.maximum(m, y[:, hi * c:(hi + 1) * c])
                    chunks.append(m)
                act = jnp.concatenate(chunks, axis=-1)        # lane-dense value
            else:
                xb = act.astype(jnp.bfloat16)
                if st["wd"] is not None:             # 1x1 downsample + folded BN
                    identity = jnp.dot(xb, w_vmem[st["wd"]][...],
                                       preferred_element_type=jnp.float32)
                    identity = identity + b_refs[st["bd"]][...]
                else:
                    identity = act
                hmid = jnp.dot(xb, w_vmem[st["w1"]][...],
                               preferred_element_type=jnp.float32) + b_refs[st["b1"]][...]
                hmid = jnp.maximum(hmid, 0.0)
                y = jnp.dot(hmid.astype(jnp.bfloat16), w_vmem[st["w2"]][...],
                            preferred_element_type=jnp.float32) + b_refs[st["b2"]][...]
                y = jnp.maximum(y + identity, 0.0)
                if st["wf"] is not None:             # adaptive avgpool over H + fc
                    h_out, c_out = st["h_out"], st["c_out"]
                    pooled = y[:, 0:c_out]
                    for hh in range(1, h_out):
                        pooled = pooled + y[:, hh * c_out:(hh + 1) * c_out]
                    pooled = pooled * (1.0 / h_out)
                    o_ref[...] = (jnp.dot(pooled.astype(jnp.bfloat16),
                                          w_vmem[st["wf"]][...],
                                          preferred_element_type=jnp.float32)
                                  + b_refs[st["bf"]][...])
                else:
                    act = y

    in_specs = ([pl.BlockSpec((n, k_pad), lambda i: (0, 0))]
                + [pl.BlockSpec(b.shape, lambda i: (0, 0)) for b in biases]
                + [pl.BlockSpec(memory_space=pl.ANY) for _ in big_w])
    scratch = [pltpu.VMEM(w.shape, w.dtype) for w in big_w]
    scratch.append(pltpu.SemaphoreType.DMA((nw,)))

    flops = 2 * n * sum(int(w.shape[0]) * int(w.shape[1]) for w in big_w)
    bytes_accessed = (n * k_pad * 2 + n * out_pad * 4
                      + sum(int(w.size) * 2 for w in big_w)
                      + sum(int(b.size) * 4 for b in biases))
    cost = pl.CostEstimate(flops=flops, transcendentals=0,
                           bytes_accessed=bytes_accessed)

    return pl.pallas_call(
        kernel,
        out_shape=jax.ShapeDtypeStruct((n, out_pad), jnp.float32),
        grid=(1,),
        in_specs=in_specs,
        out_specs=pl.BlockSpec((n, out_pad), lambda i: (0, 0)),
        scratch_shapes=scratch,
        compiler_params=_CPARAMS,
        cost_estimate=cost,
    )(feat, *biases, *big_w)


# ---------------------------------------------------------------------------
# Forward pass
# ---------------------------------------------------------------------------
def image_inertial_encoder_forward(prep, x):
    B, S, W, _ = x.shape
    assert W == prep["window"]
    # per-sample flat layout: row = (b,s) sample, lanes = (h, c) with c minor
    feat = inertial_image(x).reshape(B * S, W * 3)
    feat = jnp.pad(feat, ((0, 0), (0, prep["k_pad"] - W * 3)))
    feat = feat.astype(jnp.bfloat16)               # bf16 into the MXU, halves DMA
    out = fused_resnet_forward(feat, prep)         # (B*S, out_pad) f32
    return out[:, :prep["i_f_len"]].reshape(B, S, prep["i_f_len"])


# ---------------------------------------------------------------------------
# Deterministic synthetic parameter init (ResNet-18 shapes, fc -> i_f_len)
# ---------------------------------------------------------------------------
def _init_conv(key, cout, cin, kh, kw):
    fan_in = cin * kh * kw
    return jax.random.normal(key, (cout, cin, kh, kw), jnp.float32) * (2.0 / fan_in) ** 0.5


def _init_bn(key, c):
    k1, k2, k3 = jax.random.split(key, 3)
    return (1.0 + 0.1 * jax.random.normal(k1, (c,), jnp.float32),
            0.1 * jax.random.normal(k2, (c,), jnp.float32),
            0.1 * jax.random.normal(k3, (c,), jnp.float32),
            jnp.ones((c,), jnp.float32))


def init_params(key, i_f_len):
    keys = iter(jax.random.split(key, 80))
    params = {"conv1": _init_conv(next(keys), 64, 3, 7, 7),
              "bn1": _init_bn(next(keys), 64)}
    layers = []
    cin = 64
    for cout, stride in [(64, 1), (128, 2), (256, 2), (512, 2)]:
        blocks = []
        for b in range(2):
            s = stride if b == 0 else 1
            c_in_blk = cin if b == 0 else cout
            blk = {"conv1": _init_conv(next(keys), cout, c_in_blk, 3, 3),
                   "bn1": _init_bn(next(keys), cout),
                   "conv2": _init_conv(next(keys), cout, cout, 3, 3),
                   "bn2": _init_bn(next(keys), cout),
                   "down": None}
            if b == 0 and (s != 1 or cin != cout):
                blk["down"] = (_init_conv(next(keys), cout, cin, 1, 1),
                               _init_bn(next(keys), cout))
            blocks.append(blk)
        layers.append(blocks)
        cin = cout
    params["layers"] = layers
    params["fc_w"] = jax.random.normal(next(keys), (512, i_f_len), jnp.float32) * (1.0 / 512) ** 0.5
    params["fc_b"] = 0.1 * jax.random.normal(next(keys), (i_f_len,), jnp.float32)
    return params


if __name__ == "__main__":
    B, S, WINDOW, I_F_LEN = 2, 8, 16, 32
    key = jax.random.PRNGKey(0)
    kx, kp = jax.random.split(key)
    x = jax.random.normal(kx, (B, S, WINDOW, 6), jnp.float32)
    params = init_params(kp, I_F_LEN)
    prep = prepare_params(params, WINDOW, I_F_LEN)

    fwd = jax.jit(functools.partial(image_inertial_encoder_forward, prep))
    out = fwd(x)
    jax.block_until_ready(out)
    assert out.shape == (B, S, I_F_LEN), out.shape
    assert out.dtype == jnp.float32
    print("KERNEL_OK")
</pallas_src>

<mosaic_0001>
module attributes {stable_mosaic.version = 11 : i64} {
  func.func @kernel(%arg0: i32, %arg1: memref<16x128xbf16, #tpu.memory_space<vmem>>, %arg2: memref<1x512xf32, #tpu.memory_space<vmem>>, %arg3: memref<1x256xf32, #tpu.memory_space<vmem>>, %arg4: memref<1x256xf32, #tpu.memory_space<vmem>>, %arg5: memref<1x256xf32, #tpu.memory_space<vmem>>, %arg6: memref<1x256xf32, #tpu.memory_space<vmem>>, %arg7: memref<1x256xf32, #tpu.memory_space<vmem>>, %arg8: memref<1x256xf32, #tpu.memory_space<vmem>>, %arg9: memref<1x256xf32, #tpu.memory_space<vmem>>, %arg10: memref<1x256xf32, #tpu.memory_space<vmem>>, %arg11: memref<1x256xf32, #tpu.memory_space<vmem>>, %arg12: memref<1x256xf32, #tpu.memory_space<vmem>>, %arg13: memref<1x256xf32, #tpu.memory_space<vmem>>, %arg14: memref<1x256xf32, #tpu.memory_space<vmem>>, %arg15: memref<1x256xf32, #tpu.memory_space<vmem>>, %arg16: memref<1x256xf32, #tpu.memory_space<vmem>>, %arg17: memref<1x512xf32, #tpu.memory_space<vmem>>, %arg18: memref<1x512xf32, #tpu.memory_space<vmem>>, %arg19: memref<1x512xf32, #tpu.memory_space<vmem>>, %arg20: memref<1x512xf32, #tpu.memory_space<vmem>>, %arg21: memref<1x512xf32, #tpu.memory_space<vmem>>, %arg22: memref<1x128xf32, #tpu.memory_space<vmem>>, %arg23: memref<128x512xbf16, #tpu.memory_space<any>>, %arg24: memref<256x256xbf16, #tpu.memory_space<any>>, %arg25: memref<256x256xbf16, #tpu.memory_space<any>>, %arg26: memref<256x256xbf16, #tpu.memory_space<any>>, %arg27: memref<256x256xbf16, #tpu.memory_space<any>>, %arg28: memref<256x256xbf16, #tpu.memory_space<any>>, %arg29: memref<256x256xbf16, #tpu.memory_space<any>>, %arg30: memref<256x256xbf16, #tpu.memory_space<any>>, %arg31: memref<256x256xbf16, #tpu.memory_space<any>>, %arg32: memref<256x256xbf16, #tpu.memory_space<any>>, %arg33: memref<256x256xbf16, #tpu.memory_space<any>>, %arg34: memref<256x256xbf16, #tpu.memory_space<any>>, %arg35: memref<256x256xbf16, #tpu.memory_space<any>>, %arg36: memref<256x256xbf16, #tpu.memory_space<any>>, %arg37: memref<256x256xbf16, #tpu.memory_space<any>>, %arg38: memref<256x512xbf16, #tpu.memory_space<any>>, %arg39: memref<512x512xbf16, #tpu.memory_space<any>>, %arg40: memref<256x512xbf16, #tpu.memory_space<any>>, %arg41: memref<512x512xbf16, #tpu.memory_space<any>>, %arg42: memref<512x512xbf16, #tpu.memory_space<any>>, %arg43: memref<512x128xbf16, #tpu.memory_space<any>>, %arg44: memref<16x128xf32, #tpu.memory_space<vmem>>, %arg45: memref<128x512xbf16, #tpu.memory_space<vmem>>, %arg46: memref<256x256xbf16, #tpu.memory_space<vmem>>, %arg47: memref<256x256xbf16, #tpu.memory_space<vmem>>, %arg48: memref<256x256xbf16, #tpu.memory_space<vmem>>, %arg49: memref<256x256xbf16, #tpu.memory_space<vmem>>, %arg50: memref<256x256xbf16, #tpu.memory_space<vmem>>, %arg51: memref<256x256xbf16, #tpu.memory_space<vmem>>, %arg52: memref<256x256xbf16, #tpu.memory_space<vmem>>, %arg53: memref<256x256xbf16, #tpu.memory_space<vmem>>, %arg54: memref<256x256xbf16, #tpu.memory_space<vmem>>, %arg55: memref<256x256xbf16, #tpu.memory_space<vmem>>, %arg56: memref<256x256xbf16, #tpu.memory_space<vmem>>, %arg57: memref<256x256xbf16, #tpu.memory_space<vmem>>, %arg58: memref<256x256xbf16, #tpu.memory_space<vmem>>, %arg59: memref<256x256xbf16, #tpu.memory_space<vmem>>, %arg60: memref<256x512xbf16, #tpu.memory_space<vmem>>, %arg61: memref<512x512xbf16, #tpu.memory_space<vmem>>, %arg62: memref<256x512xbf16, #tpu.memory_space<vmem>>, %arg63: memref<512x512xbf16, #tpu.memory_space<vmem>>, %arg64: memref<512x512xbf16, #tpu.memory_space<vmem>>, %arg65: memref<512x128xbf16, #tpu.memory_space<vmem>>, %arg66: memref<21x!tpu.dma_semaphore, #tpu.memory_space<semaphore_mem>>) attributes {dimension_semantics = [#tpu.dimension_semantics<arbitrary>], iteration_bounds = array<i64: 1>, scalar_prefetch = 0 : i64, scratch_operands = 22 : i64, tpu.core_type = #tpu.core_type<tc>, window_params = [{pipeline_mode = #tpu.pipeline_mode<synchronous>, transform_indices = @transform_0, window_bounds = array<i64: 16, 128>}, {pipeline_mode = #tpu.pipeline_mode<synchronous>, transform_indices = @transform_1, window_bounds = array<i64: 1, 512>}, {pipeline_mode = #tpu.pipeline_mode<synchronous>, transform_indices = @transform_2, window_bounds = array<i64: 1, 256>}, {pipeline_mode = #tpu.pipeline_mode<synchronous>, transform_indices = @transform_3, window_bounds = array<i64: 1, 256>}, {pipeline_mode = #tpu.pipeline_mode<synchronous>, transform_indices = @transform_4, window_bounds = array<i64: 1, 256>}, {pipeline_mode = #tpu.pipeline_mode<synchronous>, transform_indices = @transform_5, window_bounds = array<i64: 1, 256>}, {pipeline_mode = #tpu.pipeline_mode<synchronous>, transform_indices = @transform_6, window_bounds = array<i64: 1, 256>}, {pipeline_mode = #tpu.pipeline_mode<synchronous>, transform_indices = @transform_7, window_bounds = array<i64: 1, 256>}, {pipeline_mode = #tpu.pipeline_mode<synchronous>, transform_indices = @transform_8, window_bounds = array<i64: 1, 256>}, {pipeline_mode = #tpu.pipeline_mode<synchronous>, transform_indices = @transform_9, window_bounds = array<i64: 1, 256>}, {pipeline_mode = #tpu.pipeline_mode<synchronous>, transform_indices = @transform_10, window_bounds = array<i64: 1, 256>}, {pipeline_mode = #tpu.pipeline_mode<synchronous>, transform_indices = @transform_11, window_bounds = array<i64: 1, 256>}, {pipeline_mode = #tpu.pipeline_mode<synchronous>, transform_indices = @transform_12, window_bounds = array<i64: 1, 256>}, {pipeline_mode = #tpu.pipeline_mode<synchronous>, transform_indices = @transform_13, window_bounds = array<i64: 1, 256>}, {pipeline_mode = #tpu.pipeline_mode<synchronous>, transform_indices = @transform_14, window_bounds = array<i64: 1, 256>}, {pipeline_mode = #tpu.pipeline_mode<synchronous>, transform_indices = @transform_15, window_bounds = array<i64: 1, 256>}, {pipeline_mode = #tpu.pipeline_mode<synchronous>, transform_indices = @transform_16, window_bounds = array<i64: 1, 512>}, {pipeline_mode = #tpu.pipeline_mode<synchronous>, transform_indices = @transform_17, window_bounds = array<i64: 1, 512>}, {pipeline_mode = #tpu.pipeline_mode<synchronous>, transform_indices = @transform_18, window_bounds = array<i64: 1, 512>}, {pipeline_mode = #tpu.pipeline_mode<synchronous>, transform_indices = @transform_19, window_bounds = array<i64: 1, 512>}, {pipeline_mode = #tpu.pipeline_mode<synchronous>, transform_indices = @transform_20, window_bounds = array<i64: 1, 512>}, {pipeline_mode = #tpu.pipeline_mode<synchronous>, transform_indices = @transform_21, window_bounds = array<i64: 1, 128>}, {}, {}, {}, {}, {}, {}, {}, {}, {}, {}, {}, {}, {}, {}, {}, {}, {}, {}, {}, {}, {}, {pipeline_mode = #tpu.pipeline_mode<synchronous>, transform_indices = @transform_43, window_bounds = array<i64: 16, 128>}]} {
    %c0_i32 = arith.constant 0 : i32
    %0 = tpu.memref_slice %arg66[%c0_i32] : memref<21x!tpu.dma_semaphore, #tpu.memory_space<semaphore_mem>> -> memref<1x!tpu.dma_semaphore, #tpu.memory_space<semaphore_mem>>
    %1 = tpu.memref_squeeze %0 : memref<1x!tpu.dma_semaphore, #tpu.memory_space<semaphore_mem>> -> memref<!tpu.dma_semaphore, #tpu.memory_space<semaphore_mem>>
    tpu.enqueue_dma source(%arg23 : memref<128x512xbf16, #tpu.memory_space<any>>) target(%arg45 : memref<128x512xbf16, #tpu.memory_space<vmem>>) target_semaphore(%1 : memref<!tpu.dma_semaphore, #tpu.memory_space<semaphore_mem>>)
    %c1_i32 = arith.constant 1 : i32
    %2 = tpu.memref_slice %arg66[%c1_i32] : memref<21x!tpu.dma_semaphore, #tpu.memory_space<semaphore_mem>> -> memref<1x!tpu.dma_semaphore, #tpu.memory_space<semaphore_mem>>
    %3 = tpu.memref_squeeze %2 : memref<1x!tpu.dma_semaphore, #tpu.memory_space<semaphore_mem>> -> memref<!tpu.dma_semaphore, #tpu.memory_space<semaphore_mem>>
    tpu.enqueue_dma source(%arg24 : memref<256x256xbf16, #tpu.memory_space<any>>) target(%arg46 : memref<256x256xbf16, #tpu.memory_space<vmem>>) target_semaphore(%3 : memref<!tpu.dma_semaphore, #tpu.memory_space<semaphore_mem>>)
    %c2_i32 = arith.constant 2 : i32
    %4 = tpu.memref_slice %arg66[%c2_i32] : memref<21x!tpu.dma_semaphore, #tpu.memory_space<semaphore_mem>> -> memref<1x!tpu.dma_semaphore, #tpu.memory_space<semaphore_mem>>
    %5 = tpu.memref_squeeze %4 : memref<1x!tpu.dma_semaphore, #tpu.memory_space<semaphore_mem>> -> memref<!tpu.dma_semaphore, #tpu.memory_space<semaphore_mem>>
    tpu.enqueue_dma source(%arg25 : memref<256x256xbf16, #tpu.memory_space<any>>) target(%arg47 : memref<256x256xbf16, #tpu.memory_space<vmem>>) target_semaphore(%5 : memref<!tpu.dma_semaphore, #tpu.memory_space<semaphore_mem>>)
    %c0_i32_0 = arith.constant 0 : i32
    %6 = tpu.memref_slice %arg66[%c0_i32_0] : memref<21x!tpu.dma_semaphore, #tpu.memory_space<semaphore_mem>> -> memref<1x!tpu.dma_semaphore, #tpu.memory_space<semaphore_mem>>
    %7 = tpu.memref_squeeze %6 : memref<1x!tpu.dma_semaphore, #tpu.memory_space<semaphore_mem>> -> memref<!tpu.dma_semaphore, #tpu.memory_space<semaphore_mem>>
    tpu.wait_dma2 semaphore(%7 : memref<!tpu.dma_semaphore, #tpu.memory_space<semaphore_mem>>) src(%arg23 : memref<128x512xbf16, #tpu.memory_space<any>>) dst(%arg45 : memref<128x512xbf16, #tpu.memory_space<vmem>>)
    %c0 = arith.constant 0 : index
    %c0_1 = arith.constant 0 : index
    %8 = vector.load %arg1[%c0, %c0_1] : memref<16x128xbf16, #tpu.memory_space<vmem>>, vector<16x128xbf16>
    %c0_2 = arith.constant 0 : index
    %c0_3 = arith.constant 0 : index
    %9 = vector.load %arg45[%c0_2, %c0_3] : memref<128x512xbf16, #tpu.memory_space<vmem>>, vector<128x512xbf16>
    %cst = arith.constant dense<0.000000e+00> : vector<16x512xf32>
    %10 = tpu.matmul %8, %9, %cst {dimension_numbers = #tpu.dot_dimension_numbers<[1], [0], [0], [1], [0, 0, 1, 1], [], []>} : vector<16x128xbf16>, vector<128x512xbf16>, vector<16x512xf32> -> vector<16x512xf32>
    %c0_4 = arith.constant 0 : index
    %c0_5 = arith.constant 0 : index
    %11 = vector.load %arg2[%c0_4, %c0_5] : memref<1x512xf32, #tpu.memory_space<vmem>>, vector<1x512xf32>
    %12 = vector.broadcast %11 : vector<1x512xf32> to vector<16x512xf32>
    %13 = arith.addf %10, %12 : vector<16x512xf32>
    %cst_6 = arith.constant 0.000000e+00 : f32
    %14 = vector.broadcast %cst_6 : f32 to vector<16x512xf32>
    %15 = arith.maximumf %13, %14 : vector<16x512xf32>
    %16 = vector.extract_strided_slice %15 {offsets = [0, 0], sizes = [16, 64], strides = [1, 1]} : vector<16x512xf32> to vector<16x64xf32>
    %17 = vector.extract_strided_slice %15 {offsets = [0, 64], sizes = [16, 64], strides = [1, 1]} : vector<16x512xf32> to vector<16x64xf32>
    %18 = arith.maximumf %16, %17 : vector<16x64xf32>
    %19 = vector.extract_strided_slice %15 {offsets = [0, 64], sizes = [16, 64], strides = [1, 1]} : vector<16x512xf32> to vector<16x64xf32>
    %20 = vector.extract_strided_slice %15 {offsets = [0, 128], sizes = [16, 64], strides = [1, 1]} : vector<16x512xf32> to vector<16x64xf32>
    %21 = arith.maximumf %19, %20 : vector<16x64xf32>
    %22 = vector.extract_strided_slice %15 {offsets = [0, 192], sizes = [16, 64], strides = [1, 1]} : vector<16x512xf32> to vector<16x64xf32>
    %23 = arith.maximumf %21, %22 : vector<16x64xf32>
    %24 = vector.extract_strided_slice %15 {offsets = [0, 192], sizes = [16, 64], strides = [1, 1]} : vector<16x512xf32> to vector<16x64xf32>
    %25 = vector.extract_strided_slice %15 {offsets = [0, 256], sizes = [16, 64], strides = [1, 1]} : vector<16x512xf32> to vector<16x64xf32>
    %26 = arith.maximumf %24, %25 : vector<16x64xf32>
    %27 = vector.extract_strided_slice %15 {offsets = [0, 320], sizes = [16, 64], strides = [1, 1]} : vector<16x512xf32> to vector<16x64xf32>
    %28 = arith.maximumf %26, %27 : vector<16x64xf32>
    %29 = vector.extract_strided_slice %15 {offsets = [0, 320], sizes = [16, 64], strides = [1, 1]} : vector<16x512xf32> to vector<16x64xf32>
    %30 = vector.extract_strided_slice %15 {offsets = [0, 384], sizes = [16, 64], strides = [1, 1]} : vector<16x512xf32> to vector<16x64xf32>
    %31 = arith.maximumf %29, %30 : vector<16x64xf32>
    %32 = vector.extract_strided_slice %15 {offsets = [0, 448], sizes = [16, 64], strides = [1, 1]} : vector<16x512xf32> to vector<16x64xf32>
    %33 = arith.maximumf %31, %32 : vector<16x64xf32>
    %34 = tpu.concatenate %18, %23, %28, %33 in 1 : vector<16x64xf32>, vector<16x64xf32>, vector<16x64xf32>, vector<16x64xf32> -> vector<16x256xf32>
    %c3_i32 = arith.constant 3 : i32
    %35 = tpu.memref_slice %arg66[%c3_i32] : memref<21x!tpu.dma_semaphore, #tpu.memory_space<semaphore_mem>> -> memref<1x!tpu.dma_semaphore, #tpu.memory_space<semaphore_mem>>
    %36 = tpu.memref_squeeze %35 : memref<1x!tpu.dma_semaphore, #tpu.memory_space<semaphore_mem>> -> memref<!tpu.dma_semaphore, #tpu.memory_space<semaphore_mem>>
    tpu.enqueue_dma source(%arg26 : memref<256x256xbf16, #tpu.memory_space<any>>) target(%arg48 : memref<256x256xbf16, #tpu.memory_space<vmem>>) target_semaphore(%36 : memref<!tpu.dma_semaphore, #tpu.memory_space<semaphore_mem>>)
    %c4_i32 = arith.constant 4 : i32
    %37 = tpu.memref_slice %arg66[%c4_i32] : memref<21x!tpu.dma_semaphore, #tpu.memory_space<semaphore_mem>> -> memref<1x!tpu.dma_semaphore, #tpu.memory_space<semaphore_mem>>
    %38 = tpu.memref_squeeze %37 : memref<1x!tpu.dma_semaphore, #tpu.memory_space<semaphore_mem>> -> memref<!tpu.dma_semaphore, #tpu.memory_space<semaphore_mem>>
    tpu.enqueue_dma source(%arg27 : memref<256x256xbf16, #tpu.memory_space<any>>) target(%arg49 : memref<256x256xbf16, #tpu.memory_space<vmem>>) target_semaphore(%38 : memref<!tpu.dma_semaphore, #tpu.memory_space<semaphore_mem>>)
    %c1_i32_7 = arith.constant 1 : i32
    %39 = tpu.memref_slice %arg66[%c1_i32_7] : memref<21x!tpu.dma_semaphore, #tpu.memory_space<semaphore_mem>> -> memref<1x!tpu.dma_semaphore, #tpu.memory_space<semaphore_mem>>
    %40 = tpu.memref_squeeze %39 : memref<1x!tpu.dma_semaphore, #tpu.memory_space<semaphore_mem>> -> memref<!tpu.dma_semaphore, #tpu.memory_space<semaphore_mem>>
    tpu.wait_dma2 semaphore(%40 : memref<!tpu.dma_semaphore, #tpu.memory_space<semaphore_mem>>) src(%arg24 : memref<256x256xbf16, #tpu.memory_space<any>>) dst(%arg46 : memref<256x256xbf16, #tpu.memory_space<vmem>>)
    %c2_i32_8 = arith.constant 2 : i32
    %41 = tpu.memref_slice %arg66[%c2_i32_8] : memref<21x!tpu.dma_semaphore, #tpu.memory_space<semaphore_mem>> -> memref<1x!tpu.dma_semaphore, #tpu.memory_space<semaphore_mem>>
    %42 = tpu.memref_squeeze %41 : memref<1x!tpu.dma_semaphore, #tpu.memory_space<semaphore_mem>> -> memref<!tpu.dma_semaphore, #tpu.memory_space<semaphore_mem>>
    tpu.wait_dma2 semaphore(%42 : memref<!tpu.dma_semaphore, #tpu.memory_space<semaphore_mem>>) src(%arg25 : memref<256x256xbf16, #tpu.memory_space<any>>) dst(%arg47 : memref<256x256xbf16, #tpu.memory_space<vmem>>)
    %43 = arith.truncf %34 : vector<16x256xf32> to vector<16x256xbf16>
    %c0_9 = arith.constant 0 : index
    %c0_10 = arith.constant 0 : index
    %44 = vector.load %arg46[%c0_9, %c0_10] : memref<256x256xbf16, #tpu.memory_space<vmem>>, vector<256x256xbf16>
    %cst_11 = arith.constant dense<0.000000e+00> : vector<16x256xf32>
    %45 = tpu.matmul %43, %44, %cst_11 {dimension_numbers = #tpu.dot_dimension_numbers<[1], [0], [0], [1], [0, 0, 1, 1], [], []>} : vector<16x256xbf16>, vector<256x256xbf16>, vector<16x256xf32> -> vector<16x256xf32>
    %c0_12 = arith.constant 0 : index
    %c0_13 = arith.constant 0 : index
    %46 = vector.load %arg3[%c0_12, %c0_13] : memref<1x256xf32, #tpu.memory_space<vmem>>, vector<1x256xf32>
    %47 = vector.broadcast %46 : vector<1x256xf32> to vector<16x256xf32>
    %48 = arith.addf %45, %47 : vector<16x256xf32>
    %cst_14 = arith.constant 0.000000e+00 : f32
    %49 = vector.broadcast %cst_14 : f32 to vector<16x256xf32>
    %50 = arith.maximumf %48, %49 : vector<16x256xf32>
    %51 = arith.truncf %50 : vector<16x256xf32> to vector<16x256xbf16>
    %c0_15 = arith.constant 0 : index
    %c0_16 = arith.constant 0 : index
    %52 = vector.load %arg47[%c0_15, %c0_16] : memref<256x256xbf16, #tpu.memory_space<vmem>>, vector<256x256xbf16>
    %cst_17 = arith.constant dense<0.000000e+00> : vector<16x256xf32>
    %53 = tpu.matmul %51, %52, %cst_17 {dimension_numbers = #tpu.dot_dimension_numbers<[1], [0], [0], [1], [0, 0, 1, 1], [], []>} : vector<16x256xbf16>, vector<256x256xbf16>, vector<16x256xf32> -> vector<16x256xf32>
    %c0_18 = arith.constant 0 : index
    %c0_19 = arith.constant 0 : index
    %54 = vector.load %arg4[%c0_18, %c0_19] : memref<1x256xf32, #tpu.memory_space<vmem>>, vector<1x256xf32>
    %55 = vector.broadcast %54 : vector<1x256xf32> to vector<16x256xf32>
    %56 = arith.addf %53, %55 : vector<16x256xf32>
    %57 = arith.addf %56, %34 : vector<16x256xf32>
    %cst_20 = arith.constant 0.000000e+00 : f32
    %58 = vector.broadcast %cst_20 : f32 to vector<16x256xf32>
    %59 = arith.maximumf %57, %58 : vector<16x256xf32>
    %c5_i32 = arith.constant 5 : i32
    %60 = tpu.memref_slice %arg66[%c5_i32] : memref<21x!tpu.dma_semaphore, #tpu.memory_space<semaphore_mem>> -> memref<1x!tpu.dma_semaphore, #tpu.memory_space<semaphore_mem>>
    %61 = tpu.memref_squeeze %60 : memref<1x!tpu.dma_semaphore, #tpu.memory_space<semaphore_mem>> -> memref<!tpu.dma_semaphore, #tpu.memory_space<semaphore_mem>>
    tpu.enqueue_dma source(%arg28 : memref<256x256xbf16, #tpu.memory_space<any>>) target(%arg50 : memref<256x256xbf16, #tpu.memory_space<vmem>>) target_semaphore(%61 : memref<!tpu.dma_semaphore, #tpu.memory_space<semaphore_mem>>)
    %c6_i32 = arith.constant 6 : i32
    %62 = tpu.memref_slice %arg66[%c6_i32] : memref<21x!tpu.dma_semaphore, #tpu.memory_space<semaphore_mem>> -> memref<1x!tpu.dma_semaphore, #tpu.memory_space<semaphore_mem>>
    %63 = tpu.memref_squeeze %62 : memref<1x!tpu.dma_semaphore, #tpu.memory_space<semaphore_mem>> -> memref<!tpu.dma_semaphore, #tpu.memory_space<semaphore_mem>>
    tpu.enqueue_dma source(%arg29 : memref<256x256xbf16, #tpu.memory_space<any>>) target(%arg51 : memref<256x256xbf16, #tpu.memory_space<vmem>>) target_semaphore(%63 : memref<!tpu.dma_semaphore, #tpu.memory_space<semaphore_mem>>)
    %c7_i32 = arith.constant 7 : i32
    %64 = tpu.memref_slice %arg66[%c7_i32] : memref<21x!tpu.dma_semaphore, #tpu.memory_space<semaphore_mem>> -> memref<1x!tpu.dma_semaphore, #tpu.memory_space<semaphore_mem>>
    %65 = tpu.memref_squeeze %64 : memref<1x!tpu.dma_semaphore, #tpu.memory_space<semaphore_mem>> -> memref<!tpu.dma_semaphore, #tpu.memory_space<semaphore_mem>>
    tpu.enqueue_dma source(%arg30 : memref<256x256xbf16, #tpu.memory_space<any>>) target(%arg52 : memref<256x256xbf16, #tpu.memory_space<vmem>>) target_semaphore(%65 : memref<!tpu.dma_semaphore, #tpu.memory_space<semaphore_mem>>)
    %c3_i32_21 = arith.constant 3 : i32
    %66 = tpu.memref_slice %arg66[%c3_i32_21] : memref<21x!tpu.dma_semaphore, #tpu.memory_space<semaphore_mem>> -> memref<1x!tpu.dma_semaphore, #tpu.memory_space<semaphore_mem>>
    %67 = tpu.memref_squeeze %66 : memref<1x!tpu.dma_semaphore, #tpu.memory_space<semaphore_mem>> -> memref<!tpu.dma_semaphore, #tpu.memory_space<semaphore_mem>>
    tpu.wait_dma2 semaphore(%67 : memref<!tpu.dma_semaphore, #tpu.memory_space<semaphore_mem>>) src(%arg26 : memref<256x256xbf16, #tpu.memory_space<any>>) dst(%arg48 : memref<256x256xbf16, #tpu.memory_space<vmem>>)
    %c4_i32_22 = arith.constant 4 : i32
    %68 = tpu.memref_slice %arg66[%c4_i32_22] : memref<21x!tpu.dma_semaphore, #tpu.memory_space<semaphore_mem>> -> memref<1x!tpu.dma_semaphore, #tpu.memory_space<semaphore_mem>>
    %69 = tpu.memref_squeeze %68 : memref<1x!tpu.dma_semaphore, #tpu.memory_space<semaphore_mem>> -> memref<!tpu.dma_semaphore, #tpu.memory_space<semaphore_mem>>
    tpu.wait_dma2 semaphore(%69 : memref<!tpu.dma_semaphore, #tpu.memory_space<semaphore_mem>>) src(%arg27 : memref<256x256xbf16, #tpu.memory_space<any>>) dst(%arg49 : memref<256x256xbf16, #tpu.memory_space<vmem>>)
    %70 = arith.truncf %59 : vector<16x256xf32> to vector<16x256xbf16>
    %c0_23 = arith.constant 0 : index
    %c0_24 = arith.constant 0 : index
    %71 = vector.load %arg48[%c0_23, %c0_24] : memref<256x256xbf16, #tpu.memory_space<vmem>>, vector<256x256xbf16>
    %cst_25 = arith.constant dense<0.000000e+00> : vector<16x256xf32>
    %72 = tpu.matmul %70, %71, %cst_25 {dimension_numbers = #tpu.dot_dimension_numbers<[1], [0], [0], [1], [0, 0, 1, 1], [], []>} : vector<16x256xbf16>, vector<256x256xbf16>, vector<16x256xf32> -> vector<16x256xf32>
    %c0_26 = arith.constant 0 : index
    %c0_27 = arith.constant 0 : index
    %73 = vector.load %arg5[%c0_26, %c0_27] : memref<1x256xf32, #tpu.memory_space<vmem>>, vector<1x256xf32>
    %74 = vector.broadcast %73 : vector<1x256xf32> to vector<16x256xf32>
    %75 = arith.addf %72, %74 : vector<16x256xf32>
    %cst_28 = arith.constant 0.000000e+00 : f32
    %76 = vector.broadcast %cst_28 : f32 to vector<16x256xf32>
    %77 = arith.maximumf %75, %76 : vector<16x256xf32>
    %78 = arith.truncf %77 : vector<16x256xf32> to vector<16x256xbf16>
    %c0_29 = arith.constant 0 : index
    %c0_30 = arith.constant 0 : index
    %79 = vector.load %arg49[%c0_29, %c0_30] : memref<256x256xbf16, #tpu.memory_space<vmem>>, vector<256x256xbf16>
    %cst_31 = arith.constant dense<0.000000e+00> : vector<16x256xf32>
    %80 = tpu.matmul %78, %79, %cst_31 {dimension_numbers = #tpu.dot_dimension_numbers<[1], [0], [0], [1], [0, 0, 1, 1], [], []>} : vector<16x256xbf16>, vector<256x256xbf16>, vector<16x256xf32> -> vector<16x256xf32>
    %c0_32 = arith.constant 0 : index
    %c0_33 = arith.constant 0 : index
    %81 = vector.load %arg6[%c0_32, %c0_33] : memref<1x256xf32, #tpu.memory_space<vmem>>, vector<1x256xf32>
    %82 = vector.broadcast %81 : vector<1x256xf32> to vector<16x256xf32>
    %83 = arith.addf %80, %82 : vector<16x256xf32>
    %84 = arith.addf %83, %59 : vector<16x256xf32>
    %cst_34 = arith.constant 0.000000e+00 : f32
    %85 = vector.broadcast %cst_34 : f32 to vector<16x256xf32>
    %86 = arith.maximumf %84, %85 : vector<16x256xf32>
    %c8_i32 = arith.constant 8 : i32
    %87 = tpu.memref_slice %arg66[%c8_i32] : memref<21x!tpu.dma_semaphore, #tpu.memory_space<semaphore_mem>> -> memref<1x!tpu.dma_semaphore, #tpu.memory_space<semaphore_mem>>
    %88 = tpu.memref_squeeze %87 : memref<1x!tpu.dma_semaphore, #tpu.memory_space<semaphore_mem>> -> memref<!tpu.dma_semaphore, #tpu.memory_space<semaphore_mem>>
    tpu.enqueue_dma source(%arg31 : memref<256x256xbf16, #tpu.memory_space<any>>) target(%arg53 : memref<256x256xbf16, #tpu.memory_space<vmem>>) target_semaphore(%88 : memref<!tpu.dma_semaphore, #tpu.memory_space<semaphore_mem>>)
    %c9_i32 = arith.constant 9 : i32
    %89 = tpu.memref_slice %arg66[%c9_i32] : memref<21x!tpu.dma_semaphore, #tpu.memory_space<semaphore_mem>> -> memref<1x!tpu.dma_semaphore, #tpu.memory_space<semaphore_mem>>
    %90 = tpu.memref_squeeze %89 : memref<1x!tpu.dma_semaphore, #tpu.memory_space<semaphore_mem>> -> memref<!tpu.dma_semaphore, #tpu.memory_space<semaphore_mem>>
    tpu.enqueue_dma source(%arg32 : memref<256x256xbf16, #tpu.memory_space<any>>) target(%arg54 : memref<256x256xbf16, #tpu.memory_space<vmem>>) target_semaphore(%90 : memref<!tpu.dma_semaphore, #tpu.memory_space<semaphore_mem>>)
    %c5_i32_35 = arith.constant 5 : i32
    %91 = tpu.memref_slice %arg66[%c5_i32_35] : memref<21x!tpu.dma_semaphore, #tpu.memory_space<semaphore_mem>> -> memref<1x!tpu.dma_semaphore, #tpu.memory_space<semaphore_mem>>
    %92 = tpu.memref_squeeze %91 : memref<1x!tpu.dma_semaphore, #tpu.memory_space<semaphore_mem>> -> memref<!tpu.dma_semaphore, #tpu.memory_space<semaphore_mem>>
    tpu.wait_dma2 semaphore(%92 : memref<!tpu.dma_semaphore, #tpu.memory_space<semaphore_mem>>) src(%arg28 : memref<256x256xbf16, #tpu.memory_space<any>>) dst(%arg50 : memref<256x256xbf16, #tpu.memory_space<vmem>>)
    %c6_i32_36 = arith.constant 6 : i32
    %93 = tpu.memref_slice %arg66[%c6_i32_36] : memref<21x!tpu.dma_semaphore, #tpu.memory_space<semaphore_mem>> -> memref<1x!tpu.dma_semaphore, #tpu.memory_space<semaphore_mem>>
    %94 = tpu.memref_squeeze %93 : memref<1x!tpu.dma_semaphore, #tpu.memory_space<semaphore_mem>> -> memref<!tpu.dma_semaphore, #tpu.memory_space<semaphore_mem>>
    tpu.wait_dma2 semaphore(%94 : memref<!tpu.dma_semaphore, #tpu.memory_space<semaphore_mem>>) src(%arg29 : memref<256x256xbf16, #tpu.memory_space<any>>) dst(%arg51 : memref<256x256xbf16, #tpu.memory_space<vmem>>)
    %c7_i32_37 = arith.constant 7 : i32
    %95 = tpu.memref_slice %arg66[%c7_i32_37] : memref<21x!tpu.dma_semaphore, #tpu.memory_space<semaphore_mem>> -> memref<1x!tpu.dma_semaphore, #tpu.memory_space<semaphore_mem>>
    %96 = tpu.memref_squeeze %95 : memref<1x!tpu.dma_semaphore, #tpu.memory_space<semaphore_mem>> -> memref<!tpu.dma_semaphore, #tpu.memory_space<semaphore_mem>>
    tpu.wait_dma2 semaphore(%96 : memref<!tpu.dma_semaphore, #tpu.memory_space<semaphore_mem>>) src(%arg30 : memref<256x256xbf16, #tpu.memory_space<any>>) dst(%arg52 : memref<256x256xbf16, #tpu.memory_space<vmem>>)
    %97 = arith.truncf %86 : vector<16x256xf32> to vector<16x256xbf16>
    %c0_38 = arith.constant 0 : index
    %c0_39 = arith.constant 0 : index
    %98 = vector.load %arg52[%c0_38, %c0_39] : memref<256x256xbf16, #tpu.memory_space<vmem>>, vector<256x256xbf16>
    %cst_40 = arith.constant dense<0.000000e+00> : vector<16x256xf32>
    %99 = tpu.matmul %97, %98, %cst_40 {dimension_numbers = #tpu.dot_dimension_numbers<[1], [0], [0], [1], [0, 0, 1, 1], [], []>} : vector<16x256xbf16>, vector<256x256xbf16>, vector<16x256xf32> -> vector<16x256xf32>
    %c0_41 = arith.constant 0 : index
    %c0_42 = arith.constant 0 : index
    %100 = vector.load %arg9[%c0_41, %c0_42] : memref<1x256xf32, #tpu.memory_space<vmem>>, vector<1x256xf32>
    %101 = vector.broadcast %100 : vector<1x256xf32> to vector<16x256xf32>
    %102 = arith.addf %99, %101 : vector<16x256xf32>
    %c0_43 = arith.constant 0 : index
    %c0_44 = arith.constant 0 : index
    %103 = vector.load %arg50[%c0_43, %c0_44] : memref<256x256xbf16, #tpu.memory_space<vmem>>, vector<256x256xbf16>
    %cst_45 = arith.constant dense<0.000000e+00> : vector<16x256xf32>
    %104 = tpu.matmul %97, %103, %cst_45 {dimension_numbers = #tpu.dot_dimension_numbers<[1], [0], [0], [1], [0, 0, 1, 1], [], []>} : vector<16x256xbf16>, vector<256x256xbf16>, vector<16x256xf32> -> vector<16x256xf32>
    %c0_46 = arith.constant 0 : index
    %c0_47 = arith.constant 0 : index
    %105 = vector.load %arg7[%c0_46, %c0_47] : memref<1x256xf32, #tpu.memory_space<vmem>>, vector<1x256xf32>
    %106 = vector.broadcast %105 : vector<1x256xf32> to vector<16x256xf32>
    %107 = arith.addf %104, %106 : vector<16x256xf32>
    %cst_48 = arith.constant 0.000000e+00 : f32
    %108 = vector.broadcast %cst_48 : f32 to vector<16x256xf32>
    %109 = arith.maximumf %107, %108 : vector<16x256xf32>
    %110 = arith.truncf %109 : vector<16x256xf32> to vector<16x256xbf16>
    %c0_49 = arith.constant 0 : index
    %c0_50 = arith.constant 0 : index
    %111 = vector.load %arg51[%c0_49, %c0_50] : memref<256x256xbf16, #tpu.memory_space<vmem>>, vector<256x256xbf16>
    %cst_51 = arith.constant dense<0.000000e+00> : vector<16x256xf32>
    %112 = tpu.matmul %110, %111, %cst_51 {dimension_numbers = #tpu.dot_dimension_numbers<[1], [0], [0], [1], [0, 0, 1, 1], [], []>} : vector<16x256xbf16>, vector<256x256xbf16>, vector<16x256xf32> -> vector<16x256xf32>
    %c0_52 = arith.constant 0 : index
    %c0_53 = arith.constant 0 : index
    %113 = vector.load %arg8[%c0_52, %c0_53] : memref<1x256xf32, #tpu.memory_space<vmem>>, vector<1x256xf32>
    %114 = vector.broadcast %113 : vector<1x256xf32> to vector<16x256xf32>
    %115 = arith.addf %112, %114 : vector<16x256xf32>
    %116 = arith.addf %115, %102 : vector<16x256xf32>
    %cst_54 = arith.constant 0.000000e+00 : f32
    %117 = vector.broadcast %cst_54 : f32 to vector<16x256xf32>
    %118 = arith.maximumf %116, %117 : vector<16x256xf32>
    %c10_i32 = arith.constant 10 : i32
    %119 = tpu.memref_slice %arg66[%c10_i32] : memref<21x!tpu.dma_semaphore, #tpu.memory_space<semaphore_mem>> -> memref<1x!tpu.dma_semaphore, #tpu.memory_space<semaphore_mem>>
    %120 = tpu.memref_squeeze %119 : memref<1x!tpu.dma_semaphore, #tpu.memory_space<semaphore_mem>> -> memref<!tpu.dma_semaphore, #tpu.memory_space<semaphore_mem>>
    tpu.enqueue_dma source(%arg33 : memref<256x256xbf16, #tpu.memory_space<any>>) target(%arg55 : memref<256x256xbf16, #tpu.memory_space<vmem>>) target_semaphore(%120 : memref<!tpu.dma_semaphore, #tpu.memory_space<semaphore_mem>>)
    %c11_i32 = arith.constant 11 : i32
    %121 = tpu.memref_slice %arg66[%c11_i32] : memref<21x!tpu.dma_semaphore, #tpu.memory_space<semaphore_mem>> -> memref<1x!tpu.dma_semaphore, #tpu.memory_space<semaphore_mem>>
    %122 = tpu.memref_squeeze %121 : memref<1x!tpu.dma_semaphore, #tpu.memory_space<semaphore_mem>> -> memref<!tpu.dma_semaphore, #tpu.memory_space<semaphore_mem>>
    tpu.enqueue_dma source(%arg34 : memref<256x256xbf16, #tpu.memory_space<any>>) target(%arg56 : memref<256x256xbf16, #tpu.memory_space<vmem>>) target_semaphore(%122 : memref<!tpu.dma_semaphore, #tpu.memory_space<semaphore_mem>>)
    %c12_i32 = arith.constant 12 : i32
    %123 = tpu.memref_slice %arg66[%c12_i32] : memref<21x!tpu.dma_semaphore, #tpu.memory_space<semaphore_mem>> -> memref<1x!tpu.dma_semaphore, #tpu.memory_space<semaphore_mem>>
    %124 = tpu.memref_squeeze %123 : memref<1x!tpu.dma_semaphore, #tpu.memory_space<semaphore_mem>> -> memref<!tpu.dma_semaphore, #tpu.memory_space<semaphore_mem>>
    tpu.enqueue_dma source(%arg35 : memref<256x256xbf16, #tpu.memory_space<any>>) target(%arg57 : memref<256x256xbf16, #tpu.memory_space<vmem>>) target_semaphore(%124 : memref<!tpu.dma_semaphore, #tpu.memory_space<semaphore_mem>>)
    %c8_i32_55 = arith.constant 8 : i32
    %125 = tpu.memref_slice %arg66[%c8_i32_55] : memref<21x!tpu.dma_semaphore, #tpu.memory_space<semaphore_mem>> -> memref<1x!tpu.dma_semaphore, #tpu.memory_space<semaphore_mem>>
    %126 = tpu.memref_squeeze %125 : memref<1x!tpu.dma_semaphore, #tpu.memory_space<semaphore_mem>> -> memref<!tpu.dma_semaphore, #tpu.memory_space<semaphore_mem>>
    tpu.wait_dma2 semaphore(%126 : memref<!tpu.dma_semaphore, #tpu.memory_space<semaphore_mem>>) src(%arg31 : memref<256x256xbf16, #tpu.memory_space<any>>) dst(%arg53 : memref<256x256xbf16, #tpu.memory_space<vmem>>)
    %c9_i32_56 = arith.constant 9 : i32
    %127 = tpu.memref_slice %arg66[%c9_i32_56] : memref<21x!tpu.dma_semaphore, #tpu.memory_space<semaphore_mem>> -> memref<1x!tpu.dma_semaphore, #tpu.memory_space<semaphore_mem>>
    %128 = tpu.memref_squeeze %127 : memref<1x!tpu.dma_semaphore, #tpu.memory_space<semaphore_mem>> -> memref<!tpu.dma_semaphore, #tpu.memory_space<semaphore_mem>>
    tpu.wait_dma2 semaphore(%128 : memref<!tpu.dma_semaphore, #tpu.memory_space<semaphore_mem>>) src(%arg32 : memref<256x256xbf16, #tpu.memory_space<any>>) dst(%arg54 : memref<256x256xbf16, #tpu.memory_space<vmem>>)
    %129 = arith.truncf %118 : vector<16x256xf32> to vector<16x256xbf16>
    %c0_57 = arith.constant 0 : index
    %c0_58 = arith.constant 0 : index
    %130 = vector.load %arg53[%c0_57, %c0_58] : memref<256x256xbf16, #tpu.memory_space<vmem>>, vector<256x256xbf16>
    %cst_59 = arith.constant dense<0.000000e+00> : vector<16x256xf32>
    %131 = tpu.matmul %129, %130, %cst_59 {dimension_numbers = #tpu.dot_dimension_numbers<[1], [0], [0], [1], [0, 0, 1, 1], [], []>} : vector<16x256xbf16>, vector<256x256xbf16>, vector<16x256xf32> -> vector<16x256xf32>
    %c0_60 = arith.constant 0 : index
    %c0_61 = arith.constant 0 : index
    %132 = vector.load %arg10[%c0_60, %c0_61] : memref<1x256xf32, #tpu.memory_space<vmem>>, vector<1x256xf32>
    %133 = vector.broadcast %132 : vector<1x256xf32> to vector<16x256xf32>
    %134 = arith.addf %131, %133 : vector<16x256xf32>
    %cst_62 = arith.constant 0.000000e+00 : f32
    %135 = vector.broadcast %cst_62 : f32 to vector<16x256xf32>
    %136 = arith.maximumf %134, %135 : vector<16x256xf32>
    %137 = arith.truncf %136 : vector<16x256xf32> to vector<16x256xbf16>
    %c0_63 = arith.constant 0 : index
    %c0_64 = arith.constant 0 : index
    %138 = vector.load %arg54[%c0_63, %c0_64] : memref<256x256xbf16, #tpu.memory_space<vmem>>, vector<256x256xbf16>
    %cst_65 = arith.constant dense<0.000000e+00> : vector<16x256xf32>
    %139 = tpu.matmul %137, %138, %cst_65 {dimension_numbers = #tpu.dot_dimension_numbers<[1], [0], [0], [1], [0, 0, 1, 1], [], []>} : vector<16x256xbf16>, vector<256x256xbf16>, vector<16x256xf32> -> vector<16x256xf32>
    %c0_66 = arith.constant 0 : index
    %c0_67 = arith.constant 0 : index
    %140 = vector.load %arg11[%c0_66, %c0_67] : memref<1x256xf32, #tpu.memory_space<vmem>>, vector<1x256xf32>
    %141 = vector.broadcast %140 : vector<1x256xf32> to vector<16x256xf32>
    %142 = arith.addf %139, %141 : vector<16x256xf32>
    %143 = arith.addf %142, %118 : vector<16x256xf32>
    %cst_68 = arith.constant 0.000000e+00 : f32
    %144 = vector.broadcast %cst_68 : f32 to vector<16x256xf32>
    %145 = arith.maximumf %143, %144 : vector<16x256xf32>
    %c13_i32 = arith.constant 13 : i32
    %146 = tpu.memref_slice %arg66[%c13_i32] : memref<21x!tpu.dma_semaphore, #tpu.memory_space<semaphore_mem>> -> memref<1x!tpu.dma_semaphore, #tpu.memory_space<semaphore_mem>>
    %147 = tpu.memref_squeeze %146 : memref<1x!tpu.dma_semaphore, #tpu.memory_space<semaphore_mem>> -> memref<!tpu.dma_semaphore, #tpu.memory_space<semaphore_mem>>
    tpu.enqueue_dma source(%arg36 : memref<256x256xbf16, #tpu.memory_space<any>>) target(%arg58 : memref<256x256xbf16, #tpu.memory_space<vmem>>) target_semaphore(%147 : memref<!tpu.dma_semaphore, #tpu.memory_space<semaphore_mem>>)
    %c14_i32 = arith.constant 14 : i32
    %148 = tpu.memref_slice %arg66[%c14_i32] : memref<21x!tpu.dma_semaphore, #tpu.memory_space<semaphore_mem>> -> memref<1x!tpu.dma_semaphore, #tpu.memory_space<semaphore_mem>>
    %149 = tpu.memref_squeeze %148 : memref<1x!tpu.dma_semaphore, #tpu.memory_space<semaphore_mem>> -> memref<!tpu.dma_semaphore, #tpu.memory_space<semaphore_mem>>
    tpu.enqueue_dma source(%arg37 : memref<256x256xbf16, #tpu.memory_space<any>>) target(%arg59 : memref<256x256xbf16, #tpu.memory_space<vmem>>) target_semaphore(%149 : memref<!tpu.dma_semaphore, #tpu.memory_space<semaphore_mem>>)
    %c10_i32_69 = arith.constant 10 : i32
    %150 = tpu.memref_slice %arg66[%c10_i32_69] : memref<21x!tpu.dma_semaphore, #tpu.memory_space<semaphore_mem>> -> memref<1x!tpu.dma_semaphore, #tpu.memory_space<semaphore_mem>>
    %151 = tpu.memref_squeeze %150 : memref<1x!tpu.dma_semaphore, #tpu.memory_space<semaphore_mem>> -> memref<!tpu.dma_semaphore, #tpu.memory_space<semaphore_mem>>
    tpu.wait_dma2 semaphore(%151 : memref<!tpu.dma_semaphore, #tpu.memory_space<semaphore_mem>>) src(%arg33 : memref<256x256xbf16, #tpu.memory_space<any>>) dst(%arg55 : memref<256x256xbf16, #tpu.memory_space<vmem>>)
    %c11_i32_70 = arith.constant 11 : i32
    %152 = tpu.memref_slice %arg66[%c11_i32_70] : memref<21x!tpu.dma_semaphore, #tpu.memory_space<semaphore_mem>> -> memref<1x!tpu.dma_semaphore, #tpu.memory_space<semaphore_mem>>
    %153 = tpu.memref_squeeze %152 : memref<1x!tpu.dma_semaphore, #tpu.memory_space<semaphore_mem>> -> memref<!tpu.dma_semaphore, #tpu.memory_space<semaphore_mem>>
    tpu.wait_dma2 semaphore(%153 : memref<!tpu.dma_semaphore, #tpu.memory_space<semaphore_mem>>) src(%arg34 : memref<256x256xbf16, #tpu.memory_space<any>>) dst(%arg56 : memref<256x256xbf16, #tpu.memory_space<vmem>>)
    %c12_i32_71 = arith.constant 12 : i32
    %154 = tpu.memref_slice %arg66[%c12_i32_71] : memref<21x!tpu.dma_semaphore, #tpu.memory_space<semaphore_mem>> -> memref<1x!tpu.dma_semaphore, #tpu.memory_space<semaphore_mem>>
    %155 = tpu.memref_squeeze %154 : memref<1x!tpu.dma_semaphore, #tpu.memory_space<semaphore_mem>> -> memref<!tpu.dma_semaphore, #tpu.memory_space<semaphore_mem>>
    tpu.wait_dma2 semaphore(%155 : memref<!tpu.dma_semaphore, #tpu.memory_space<semaphore_mem>>) src(%arg35 : memref<256x256xbf16, #tpu.memory_space<any>>) dst(%arg57 : memref<256x256xbf16, #tpu.memory_space<vmem>>)
    %156 = arith.truncf %145 : vector<16x256xf32> to vector<16x256xbf16>
    %c0_72 = arith.constant 0 : index
    %c0_73 = arith.constant 0 : index
    %157 = vector.load %arg57[%c0_72, %c0_73] : memref<256x256xbf16, #tpu.memory_space<vmem>>, vector<256x256xbf16>
    %cst_74 = arith.constant dense<0.000000e+00> : vector<16x256xf32>
    %158 = tpu.matmul %156, %157, %cst_74 {dimension_numbers = #tpu.dot_dimension_numbers<[1], [0], [0], [1], [0, 0, 1, 1], [], []>} : vector<16x256xbf16>, vector<256x256xbf16>, vector<16x256xf32> -> vector<16x256xf32>
    %c0_75 = arith.constant 0 : index
    %c0_76 = arith.constant 0 : index
    %159 = vector.load %arg14[%c0_75, %c0_76] : memref<1x256xf32, #tpu.memory_space<vmem>>, vector<1x256xf32>
    %160 = vector.broadcast %159 : vector<1x256xf32> to vector<16x256xf32>
    %161 = arith.addf %158, %160 : vector<16x256xf32>
    %c0_77 = arith.constant 0 : index
    %c0_78 = arith.constant 0 : index
    %162 = vector.load %arg55[%c0_77, %c0_78] : memref<256x256xbf16, #tpu.memory_space<vmem>>, vector<256x256xbf16>
    %cst_79 = arith.constant dense<0.000000e+00> : vector<16x256xf32>
    %163 = tpu.matmul %156, %162, %cst_79 {dimension_numbers = #tpu.dot_dimension_numbers<[1], [0], [0], [1], [0, 0, 1, 1], [], []>} : vector<16x256xbf16>, vector<256x256xbf16>, vector<16x256xf32> -> vector<16x256xf32>
    %c0_80 = arith.constant 0 : index
    %c0_81 = arith.constant 0 : index
    %164 = vector.load %arg12[%c0_80, %c0_81] : memref<1x256xf32, #tpu.memory_space<vmem>>, vector<1x256xf32>
    %165 = vector.broadcast %164 : vector<1x256xf32> to vector<16x256xf32>
    %166 = arith.addf %163, %165 : vector<16x256xf32>
    %cst_82 = arith.constant 0.000000e+00 : f32
    %167 = vector.broadcast %cst_82 : f32 to vector<16x256xf32>
    %168 = arith.maximumf %166, %167 : vector<16x256xf32>
    %169 = arith.truncf %168 : vector<16x256xf32> to vector<16x256xbf16>
    %c0_83 = arith.constant 0 : index
    %c0_84 = arith.constant 0 : index
    %170 = vector.load %arg56[%c0_83, %c0_84] : memref<256x256xbf16, #tpu.memory_space<vmem>>, vector<256x256xbf16>
    %cst_85 = arith.constant dense<0.000000e+00> : vector<16x256xf32>
    %171 = tpu.matmul %169, %170, %cst_85 {dimension_numbers = #tpu.dot_dimension_numbers<[1], [0], [0], [1], [0, 0, 1, 1], [], []>} : vector<16x256xbf16>, vector<256x256xbf16>, vector<16x256xf32> -> vector<16x256xf32>
    %c0_86 = arith.constant 0 : index
    %c0_87 = arith.constant 0 : index
    %172 = vector.load %arg13[%c0_86, %c0_87] : memref<1x256xf32, #tpu.memory_space<vmem>>, vector<1x256xf32>
    %173 = vector.broadcast %172 : vector<1x256xf32> to vector<16x256xf32>
    %174 = arith.addf %171, %173 : vector<16x256xf32>
    %175 = arith.addf %174, %161 : vector<16x256xf32>
    %cst_88 = arith.constant 0.000000e+00 : f32
    %176 = vector.broadcast %cst_88 : f32 to vector<16x256xf32>
    %177 = arith.maximumf %175, %176 : vector<16x256xf32>
    %c15_i32 = arith.constant 15 : i32
    %178 = tpu.memref_slice %arg66[%c15_i32] : memref<21x!tpu.dma_semaphore, #tpu.memory_space<semaphore_mem>> -> memref<1x!tpu.dma_semaphore, #tpu.memory_space<semaphore_mem>>
    %179 = tpu.memref_squeeze %178 : memref<1x!tpu.dma_semaphore, #tpu.memory_space<semaphore_mem>> -> memref<!tpu.dma_semaphore, #tpu.memory_space<semaphore_mem>>
    tpu.enqueue_dma source(%arg38 : memref<256x512xbf16, #tpu.memory_space<any>>) target(%arg60 : memref<256x512xbf16, #tpu.memory_space<vmem>>) target_semaphore(%179 : memref<!tpu.dma_semaphore, #tpu.memory_space<semaphore_mem>>)
    %c16_i32 = arith.constant 16 : i32
    %180 = tpu.memref_slice %arg66[%c16_i32] : memref<21x!tpu.dma_semaphore, #tpu.memory_space<semaphore_mem>> -> memref<1x!tpu.dma_semaphore, #tpu.memory_space<semaphore_mem>>
    %181 = tpu.memref_squeeze %180 : memref<1x!tpu.dma_semaphore, #tpu.memory_space<semaphore_mem>> -> memref<!tpu.dma_semaphore, #tpu.memory_space<semaphore_mem>>
    tpu.enqueue_dma source(%arg39 : memref<512x512xbf16, #tpu.memory_space<any>>) target(%arg61 : memref<512x512xbf16, #tpu.memory_space<vmem>>) target_semaphore(%181 : memref<!tpu.dma_semaphore, #tpu.memory_space<semaphore_mem>>)
    %c17_i32 = arith.constant 17 : i32
    %182 = tpu.memref_slice %arg66[%c17_i32] : memref<21x!tpu.dma_semaphore, #tpu.memory_space<semaphore_mem>> -> memref<1x!tpu.dma_semaphore, #tpu.memory_space<semaphore_mem>>
    %183 = tpu.memref_squeeze %182 : memref<1x!tpu.dma_semaphore, #tpu.memory_space<semaphore_mem>> -> memref<!tpu.dma_semaphore, #tpu.memory_space<semaphore_mem>>
    tpu.enqueue_dma source(%arg40 : memref<256x512xbf16, #tpu.memory_space<any>>) target(%arg62 : memref<256x512xbf16, #tpu.memory_space<vmem>>) target_semaphore(%183 : memref<!tpu.dma_semaphore, #tpu.memory_space<semaphore_mem>>)
    %c13_i32_89 = arith.constant 13 : i32
    %184 = tpu.memref_slice %arg66[%c13_i32_89] : memref<21x!tpu.dma_semaphore, #tpu.memory_space<semaphore_mem>> -> memref<1x!tpu.dma_semaphore, #tpu.memory_space<semaphore_mem>>
    %185 = tpu.memref_squeeze %184 : memref<1x!tpu.dma_semaphore, #tpu.memory_space<semaphore_mem>> -> memref<!tpu.dma_semaphore, #tpu.memory_space<semaphore_mem>>
    tpu.wait_dma2 semaphore(%185 : memref<!tpu.dma_semaphore, #tpu.memory_space<semaphore_mem>>) src(%arg36 : memref<256x256xbf16, #tpu.memory_space<any>>) dst(%arg58 : memref<256x256xbf16, #tpu.memory_space<vmem>>)
    %c14_i32_90 = arith.constant 14 : i32
    %186 = tpu.memref_slice %arg66[%c14_i32_90] : memref<21x!tpu.dma_semaphore, #tpu.memory_space<semaphore_mem>> -> memref<1x!tpu.dma_semaphore, #tpu.memory_space<semaphore_mem>>
    %187 = tpu.memref_squeeze %186 : memref<1x!tpu.dma_semaphore, #tpu.memory_space<semaphore_mem>> -> memref<!tpu.dma_semaphore, #tpu.memory_space<semaphore_mem>>
    tpu.wait_dma2 semaphore(%187 : memref<!tpu.dma_semaphore, #tpu.memory_space<semaphore_mem>>) src(%arg37 : memref<256x256xbf16, #tpu.memory_space<any>>) dst(%arg59 : memref<256x256xbf16, #tpu.memory_space<vmem>>)
    %188 = arith.truncf %177 : vector<16x256xf32> to vector<16x256xbf16>
    %c0_91 = arith.constant 0 : index
    %c0_92 = arith.constant 0 : index
    %189 = vector.load %arg58[%c0_91, %c0_92] : memref<256x256xbf16, #tpu.memory_space<vmem>>, vector<256x256xbf16>
    %cst_93 = arith.constant dense<0.000000e+00> : vector<16x256xf32>
    %190 = tpu.matmul %188, %189, %cst_93 {dimension_numbers = #tpu.dot_dimension_numbers<[1], [0], [0], [1], [0, 0, 1, 1], [], []>} : vector<16x256xbf16>, vector<256x256xbf16>, vector<16x256xf32> -> vector<16x256xf32>
    %c0_94 = arith.constant 0 : index
    %c0_95 = arith.constant 0 : index
    %191 = vector.load %arg15[%c0_94, %c0_95] : memref<1x256xf32, #tpu.memory_space<vmem>>, vector<1x256xf32>
    %192 = vector.broadcast %191 : vector<1x256xf32> to vector<16x256xf32>
    %193 = arith.addf %190, %192 : vector<16x256xf32>
    %cst_96 = arith.constant 0.000000e+00 : f32
    %194 = vector.broadcast %cst_96 : f32 to vector<16x256xf32>
    %195 = arith.maximumf %193, %194 : vector<16x256xf32>
    %196 = arith.truncf %195 : vector<16x256xf32> to vector<16x256xbf16>
    %c0_97 = arith.constant 0 : index
    %c0_98 = arith.constant 0 : index
    %197 = vector.load %arg59[%c0_97, %c0_98] : memref<256x256xbf16, #tpu.memory_space<vmem>>, vector<256x256xbf16>
    %cst_99 = arith.constant dense<0.000000e+00> : vector<16x256xf32>
    %198 = tpu.matmul %196, %197, %cst_99 {dimension_numbers = #tpu.dot_dimension_numbers<[1], [0], [0], [1], [0, 0, 1, 1], [], []>} : vector<16x256xbf16>, vector<256x256xbf16>, vector<16x256xf32> -> vector<16x256xf32>
    %c0_100 = arith.constant 0 : index
    %c0_101 = arith.constant 0 : index
    %199 = vector.load %arg16[%c0_100, %c0_101] : memref<1x256xf32, #tpu.memory_space<vmem>>, vector<1x256xf32>
    %200 = vector.broadcast %199 : vector<1x256xf32> to vector<16x256xf32>
    %201 = arith.addf %198, %200 : vector<16x256xf32>
    %202 = arith.addf %201, %177 : vector<16x256xf32>
    %cst_102 = arith.constant 0.000000e+00 : f32
    %203 = vector.broadcast %cst_102 : f32 to vector<16x256xf32>
    %204 = arith.maximumf %202, %203 : vector<16x256xf32>
    %c18_i32 = arith.constant 18 : i32
    %205 = tpu.memref_slice %arg66[%c18_i32] : memref<21x!tpu.dma_semaphore, #tpu.memory_space<semaphore_mem>> -> memref<1x!tpu.dma_semaphore, #tpu.memory_space<semaphore_mem>>
    %206 = tpu.memref_squeeze %205 : memref<1x!tpu.dma_semaphore, #tpu.memory_space<semaphore_mem>> -> memref<!tpu.dma_semaphore, #tpu.memory_space<semaphore_mem>>
    tpu.enqueue_dma source(%arg41 : memref<512x512xbf16, #tpu.memory_space<any>>) target(%arg63 : memref<512x512xbf16, #tpu.memory_space<vmem>>) target_semaphore(%206 : memref<!tpu.dma_semaphore, #tpu.memory_space<semaphore_mem>>)
    %c19_i32 = arith.constant 19 : i32
    %207 = tpu.memref_slice %arg66[%c19_i32] : memref<21x!tpu.dma_semaphore, #tpu.memory_space<semaphore_mem>> -> memref<1x!tpu.dma_semaphore, #tpu.memory_space<semaphore_mem>>
    %208 = tpu.memref_squeeze %207 : memref<1x!tpu.dma_semaphore, #tpu.memory_space<semaphore_mem>> -> memref<!tpu.dma_semaphore, #tpu.memory_space<semaphore_mem>>
    tpu.enqueue_dma source(%arg42 : memref<512x512xbf16, #tpu.memory_space<any>>) target(%arg64 : memref<512x512xbf16, #tpu.memory_space<vmem>>) target_semaphore(%208 : memref<!tpu.dma_semaphore, #tpu.memory_space<semaphore_mem>>)
    %c20_i32 = arith.constant 20 : i32
    %209 = tpu.memref_slice %arg66[%c20_i32] : memref<21x!tpu.dma_semaphore, #tpu.memory_space<semaphore_mem>> -> memref<1x!tpu.dma_semaphore, #tpu.memory_space<semaphore_mem>>
    %210 = tpu.memref_squeeze %209 : memref<1x!tpu.dma_semaphore, #tpu.memory_space<semaphore_mem>> -> memref<!tpu.dma_semaphore, #tpu.memory_space<semaphore_mem>>
    tpu.enqueue_dma source(%arg43 : memref<512x128xbf16, #tpu.memory_space<any>>) target(%arg65 : memref<512x128xbf16, #tpu.memory_space<vmem>>) target_semaphore(%210 : memref<!tpu.dma_semaphore, #tpu.memory_space<semaphore_mem>>)
    %c15_i32_103 = arith.constant 15 : i32
    %211 = tpu.memref_slice %arg66[%c15_i32_103] : memref<21x!tpu.dma_semaphore, #tpu.memory_space<semaphore_mem>> -> memref<1x!tpu.dma_semaphore, #tpu.memory_space<semaphore_mem>>
    %212 = tpu.memref_squeeze %211 : memref<1x!tpu.dma_semaphore, #tpu.memory_space<semaphore_mem>> -> memref<!tpu.dma_semaphore, #tpu.memory_space<semaphore_mem>>
    tpu.wait_dma2 semaphore(%212 : memref<!tpu.dma_semaphore, #tpu.memory_space<semaphore_mem>>) src(%arg38 : memref<256x512xbf16, #tpu.memory_space<any>>) dst(%arg60 : memref<256x512xbf16, #tpu.memory_space<vmem>>)
    %c16_i32_104 = arith.constant 16 : i32
    %213 = tpu.memref_slice %arg66[%c16_i32_104] : memref<21x!tpu.dma_semaphore, #tpu.memory_space<semaphore_mem>> -> memref<1x!tpu.dma_semaphore, #tpu.memory_space<semaphore_mem>>
    %214 = tpu.memref_squeeze %213 : memref<1x!tpu.dma_semaphore, #tpu.memory_space<semaphore_mem>> -> memref<!tpu.dma_semaphore, #tpu.memory_space<semaphore_mem>>
    tpu.wait_dma2 semaphore(%214 : memref<!tpu.dma_semaphore, #tpu.memory_space<semaphore_mem>>) src(%arg39 : memref<512x512xbf16, #tpu.memory_space<any>>) dst(%arg61 : memref<512x512xbf16, #tpu.memory_space<vmem>>)
    %c17_i32_105 = arith.constant 17 : i32
    %215 = tpu.memref_slice %arg66[%c17_i32_105] : memref<21x!tpu.dma_semaphore, #tpu.memory_space<semaphore_mem>> -> memref<1x!tpu.dma_semaphore, #tpu.memory_space<semaphore_mem>>
    %216 = tpu.memref_squeeze %215 : memref<1x!tpu.dma_semaphore, #tpu.memory_space<semaphore_mem>> -> memref<!tpu.dma_semaphore, #tpu.memory_space<semaphore_mem>>
    tpu.wait_dma2 semaphore(%216 : memref<!tpu.dma_semaphore, #tpu.memory_space<semaphore_mem>>) src(%arg40 : memref<256x512xbf16, #tpu.memory_space<any>>) dst(%arg62 : memref<256x512xbf16, #tpu.memory_space<vmem>>)
    %217 = arith.truncf %204 : vector<16x256xf32> to vector<16x256xbf16>
    %c0_106 = arith.constant 0 : index
    %c0_107 = arith.constant 0 : index
    %218 = vector.load %arg62[%c0_106, %c0_107] : memref<256x512xbf16, #tpu.memory_space<vmem>>, vector<256x512xbf16>
    %cst_108 = arith.constant dense<0.000000e+00> : vector<16x512xf32>
    %219 = tpu.matmul %217, %218, %cst_108 {dimension_numbers = #tpu.dot_dimension_numbers<[1], [0], [0], [1], [0, 0, 1, 1], [], []>} : vector<16x256xbf16>, vector<256x512xbf16>, vector<16x512xf32> -> vector<16x512xf32>
    %c0_109 = arith.constant 0 : index
    %c0_110 = arith.constant 0 : index
    %220 = vector.load %arg19[%c0_109, %c0_110] : memref<1x512xf32, #tpu.memory_space<vmem>>, vector<1x512xf32>
    %221 = vector.broadcast %220 : vector<1x512xf32> to vector<16x512xf32>
    %222 = arith.addf %219, %221 : vector<16x512xf32>
    %c0_111 = arith.constant 0 : index
    %c0_112 = arith.constant 0 : index
    %223 = vector.load %arg60[%c0_111, %c0_112] : memref<256x512xbf16, #tpu.memory_space<vmem>>, vector<256x512xbf16>
    %cst_113 = arith.constant dense<0.000000e+00> : vector<16x512xf32>
    %224 = tpu.matmul %217, %223, %cst_113 {dimension_numbers = #tpu.dot_dimension_numbers<[1], [0], [0], [1], [0, 0, 1, 1], [], []>} : vector<16x256xbf16>, vector<256x512xbf16>, vector<16x512xf32> -> vector<16x512xf32>
    %c0_114 = arith.constant 0 : index
    %c0_115 = arith.constant 0 : index
    %225 = vector.load %arg17[%c0_114, %c0_115] : memref<1x512xf32, #tpu.memory_space<vmem>>, vector<1x512xf32>
    %226 = vector.broadcast %225 : vector<1x512xf32> to vector<16x512xf32>
    %227 = arith.addf %224, %226 : vector<16x512xf32>
    %cst_116 = arith.constant 0.000000e+00 : f32
    %228 = vector.broadcast %cst_116 : f32 to vector<16x512xf32>
    %229 = arith.maximumf %227, %228 : vector<16x512xf32>
    %230 = arith.truncf %229 : vector<16x512xf32> to vector<16x512xbf16>
    %c0_117 = arith.constant 0 : index
    %c0_118 = arith.constant 0 : index
    %231 = vector.load %arg61[%c0_117, %c0_118] : memref<512x512xbf16, #tpu.memory_space<vmem>>, vector<512x512xbf16>
    %cst_119 = arith.constant dense<0.000000e+00> : vector<16x512xf32>
    %232 = tpu.matmul %230, %231, %cst_119 {dimension_numbers = #tpu.dot_dimension_numbers<[1], [0], [0], [1], [0, 0, 1, 1], [], []>} : vector<16x512xbf16>, vector<512x512xbf16>, vector<16x512xf32> -> vector<16x512xf32>
    %c0_120 = arith.constant 0 : index
    %c0_121 = arith.constant 0 : index
    %233 = vector.load %arg18[%c0_120, %c0_121] : memref<1x512xf32, #tpu.memory_space<vmem>>, vector<1x512xf32>
    %234 = vector.broadcast %233 : vector<1x512xf32> to vector<16x512xf32>
    %235 = arith.addf %232, %234 : vector<16x512xf32>
    %236 = arith.addf %235, %222 : vector<16x512xf32>
    %cst_122 = arith.constant 0.000000e+00 : f32
    %237 = vector.broadcast %cst_122 : f32 to vector<16x512xf32>
    %238 = arith.maximumf %236, %237 : vector<16x512xf32>
    %c18_i32_123 = arith.constant 18 : i32
    %239 = tpu.memref_slice %arg66[%c18_i32_123] : memref<21x!tpu.dma_semaphore, #tpu.memory_space<semaphore_mem>> -> memref<1x!tpu.dma_semaphore, #tpu.memory_space<semaphore_mem>>
    %240 = tpu.memref_squeeze %239 : memref<1x!tpu.dma_semaphore, #tpu.memory_space<semaphore_mem>> -> memref<!tpu.dma_semaphore, #tpu.memory_space<semaphore_mem>>
    tpu.wait_dma2 semaphore(%240 : memref<!tpu.dma_semaphore, #tpu.memory_space<semaphore_mem>>) src(%arg41 : memref<512x512xbf16, #tpu.memory_space<any>>) dst(%arg63 : memref<512x512xbf16, #tpu.memory_space<vmem>>)
    %c19_i32_124 = arith.constant 19 : i32
    %241 = tpu.memref_slice %arg66[%c19_i32_124] : memref<21x!tpu.dma_semaphore, #tpu.memory_space<semaphore_mem>> -> memref<1x!tpu.dma_semaphore, #tpu.memory_space<semaphore_mem>>
    %242 = tpu.memref_squeeze %241 : memref<1x!tpu.dma_semaphore, #tpu.memory_space<semaphore_mem>> -> memref<!tpu.dma_semaphore, #tpu.memory_space<semaphore_mem>>
    tpu.wait_dma2 semaphore(%242 : memref<!tpu.dma_semaphore, #tpu.memory_space<semaphore_mem>>) src(%arg42 : memref<512x512xbf16, #tpu.memory_space<any>>) dst(%arg64 : memref<512x512xbf16, #tpu.memory_space<vmem>>)
    %c20_i32_125 = arith.constant 20 : i32
    %243 = tpu.memref_slice %arg66[%c20_i32_125] : memref<21x!tpu.dma_semaphore, #tpu.memory_space<semaphore_mem>> -> memref<1x!tpu.dma_semaphore, #tpu.memory_space<semaphore_mem>>
    %244 = tpu.memref_squeeze %243 : memref<1x!tpu.dma_semaphore, #tpu.memory_space<semaphore_mem>> -> memref<!tpu.dma_semaphore, #tpu.memory_space<semaphore_mem>>
    tpu.wait_dma2 semaphore(%244 : memref<!tpu.dma_semaphore, #tpu.memory_space<semaphore_mem>>) src(%arg43 : memref<512x128xbf16, #tpu.memory_space<any>>) dst(%arg65 : memref<512x128xbf16, #tpu.memory_space<vmem>>)
    %245 = arith.truncf %238 : vector<16x512xf32> to vector<16x512xbf16>
    %c0_126 = arith.constant 0 : index
    %c0_127 = arith.constant 0 : index
    %246 = vector.load %arg63[%c0_126, %c0_127] : memref<512x512xbf16, #tpu.memory_space<vmem>>, vector<512x512xbf16>
    %cst_128 = arith.constant dense<0.000000e+00> : vector<16x512xf32>
    %247 = tpu.matmul %245, %246, %cst_128 {dimension_numbers = #tpu.dot_dimension_numbers<[1], [0], [0], [1], [0, 0, 1, 1], [], []>} : vector<16x512xbf16>, vector<512x512xbf16>, vector<16x512xf32> -> vector<16x512xf32>
    %c0_129 = arith.constant 0 : index
    %c0_130 = arith.constant 0 : index
    %248 = vector.load %arg20[%c0_129, %c0_130] : memref<1x512xf32, #tpu.memory_space<vmem>>, vector<1x512xf32>
    %249 = vector.broadcast %248 : vector<1x512xf32> to vector<16x512xf32>
    %250 = arith.addf %247, %249 : vector<16x512xf32>
    %cst_131 = arith.constant 0.000000e+00 : f32
    %251 = vector.broadcast %cst_131 : f32 to vector<16x512xf32>
    %252 = arith.maximumf %250, %251 : vector<16x512xf32>
    %253 = arith.truncf %252 : vector<16x512xf32> to vector<16x512xbf16>
    %c0_132 = arith.constant 0 : index
    %c0_133 = arith.constant 0 : index
    %254 = vector.load %arg64[%c0_132, %c0_133] : memref<512x512xbf16, #tpu.memory_space<vmem>>, vector<512x512xbf16>
    %cst_134 = arith.constant dense<0.000000e+00> : vector<16x512xf32>
    %255 = tpu.matmul %253, %254, %cst_134 {dimension_numbers = #tpu.dot_dimension_numbers<[1], [0], [0], [1], [0, 0, 1, 1], [], []>} : vector<16x512xbf16>, vector<512x512xbf16>, vector<16x512xf32> -> vector<16x512xf32>
    %c0_135 = arith.constant 0 : index
    %c0_136 = arith.constant 0 : index
    %256 = vector.load %arg21[%c0_135, %c0_136] : memref<1x512xf32, #tpu.memory_space<vmem>>, vector<1x512xf32>
    %257 = vector.broadcast %256 : vector<1x512xf32> to vector<16x512xf32>
    %258 = arith.addf %255, %257 : vector<16x512xf32>
    %259 = arith.addf %258, %238 : vector<16x512xf32>
    %cst_137 = arith.constant 0.000000e+00 : f32
    %260 = vector.broadcast %cst_137 : f32 to vector<16x512xf32>
    %261 = arith.maximumf %259, %260 : vector<16x512xf32>
    %cst_138 = arith.constant 1.000000e+00 : f32
    %262 = vector.broadcast %cst_138 : f32 to vector<16x512xf32>
    %263 = arith.mulf %261, %262 : vector<16x512xf32>
    %264 = arith.truncf %263 : vector<16x512xf32> to vector<16x512xbf16>
    %c0_139 = arith.constant 0 : index
    %c0_140 = arith.constant 0 : index
    %265 = vector.load %arg65[%c0_139, %c0_140] : memref<512x128xbf16, #tpu.memory_space<vmem>>, vector<512x128xbf16>
    %cst_141 = arith.constant dense<0.000000e+00> : vector<16x128xf32>
    %266 = tpu.matmul %264, %265, %cst_141 {dimension_numbers = #tpu.dot_dimension_numbers<[1], [0], [0], [1], [0, 0, 1, 1], [], []>} : vector<16x512xbf16>, vector<512x128xbf16>, vector<16x128xf32> -> vector<16x128xf32>
    %c0_142 = arith.constant 0 : index
    %c0_143 = arith.constant 0 : index
    %267 = vector.load %arg22[%c0_142, %c0_143] : memref<1x128xf32, #tpu.memory_space<vmem>>, vector<1x128xf32>
    %268 = vector.broadcast %267 : vector<1x128xf32> to vector<16x128xf32>
    %269 = arith.addf %266, %268 : vector<16x128xf32>
    %c0_144 = arith.constant 0 : index
    %c0_145 = arith.constant 0 : index
    %270 = vector.load %arg44[%c0_144, %c0_145] : memref<16x128xf32, #tpu.memory_space<vmem>>, vector<16x128xf32>
    tpu.vector_store %arg44[%c0_144, %c0_145], %269 {strides = array<i32>} : memref<16x128xf32, #tpu.memory_space<vmem>>, vector<16x128xf32>,
    return
  }
  func.func @transform_0(%arg0: i32) -> (i32, i32) {
    %c0_i32 = arith.constant 0 : i32
    %c0_i32_0 = arith.constant 0 : i32
    %c0_i32_1 = arith.constant 0 : i32
    return %c0_i32, %c0_i32_0 : i32, i32
  }
  func.func @transform_1(%arg0: i32) -> (i32, i32) {
    %c0_i32 = arith.constant 0 : i32
    %c0_i32_0 = arith.constant 0 : i32
    %c0_i32_1 = arith.constant 0 : i32
    return %c0_i32, %c0_i32_0 : i32, i32
  }
  func.func @transform_2(%arg0: i32) -> (i32, i32) {
    %c0_i32 = arith.constant 0 : i32
    %c0_i32_0 = arith.constant 0 : i32
    %c0_i32_1 = arith.constant 0 : i32
    return %c0_i32, %c0_i32_0 : i32, i32
  }
  func.func @transform_3(%arg0: i32) -> (i32, i32) {
    %c0_i32 = arith.constant 0 : i32
    %c0_i32_0 = arith.constant 0 : i32
    %c0_i32_1 = arith.constant 0 : i32
    return %c0_i32, %c0_i32_0 : i32, i32
  }
  func.func @transform_4(%arg0: i32) -> (i32, i32) {
    %c0_i32 = arith.constant 0 : i32
    %c0_i32_0 = arith.constant 0 : i32
    %c0_i32_1 = arith.constant 0 : i32
    return %c0_i32, %c0_i32_0 : i32, i32
  }
  func.func @transform_5(%arg0: i32) -> (i32, i32) {
    %c0_i32 = arith.constant 0 : i32
    %c0_i32_0 = arith.constant 0 : i32
    %c0_i32_1 = arith.constant 0 : i32
    return %c0_i32, %c0_i32_0 : i32, i32
  }
  func.func @transform_6(%arg0: i32) -> (i32, i32) {
    %c0_i32 = arith.constant 0 : i32
    %c0_i32_0 = arith.constant 0 : i32
    %c0_i32_1 = arith.constant 0 : i32
    return %c0_i32, %c0_i32_0 : i32, i32
  }
  func.func @transform_7(%arg0: i32) -> (i32, i32) {
    %c0_i32 = arith.constant 0 : i32
    %c0_i32_0 = arith.constant 0 : i32
    %c0_i32_1 = arith.constant 0 : i32
    return %c0_i32, %c0_i32_0 : i32, i32
  }
  func.func @transform_8(%arg0: i32) -> (i32, i32) {
    %c0_i32 = arith.constant 0 : i32
    %c0_i32_0 = arith.constant 0 : i32
    %c0_i32_1 = arith.constant 0 : i32
    return %c0_i32, %c0_i32_0 : i32, i32
  }
  func.func @transform_9(%arg0: i32) -> (i32, i32) {
    %c0_i32 = arith.constant 0 : i32
    %c0_i32_0 = arith.constant 0 : i32
    %c0_i32_1 = arith.constant 0 : i32
    return %c0_i32, %c0_i32_0 : i32, i32
  }
  func.func @transform_10(%arg0: i32) -> (i32, i32) {
    %c0_i32 = arith.constant 0 : i32
    %c0_i32_0 = arith.constant 0 : i32
    %c0_i32_1 = arith.constant 0 : i32
    return %c0_i32, %c0_i32_0 : i32, i32
  }
  func.func @transform_11(%arg0: i32) -> (i32, i32) {
    %c0_i32 = arith.constant 0 : i32
    %c0_i32_0 = arith.constant 0 : i32
    %c0_i32_1 = arith.constant 0 : i32
    return %c0_i32, %c0_i32_0 : i32, i32
  }
  func.func @transform_12(%arg0: i32) -> (i32, i32) {
    %c0_i32 = arith.constant 0 : i32
    %c0_i32_0 = arith.constant 0 : i32
    %c0_i32_1 = arith.constant 0 : i32
    return %c0_i32, %c0_i32_0 : i32, i32
  }
  func.func @transform_13(%arg0: i32) -> (i32, i32) {
    %c0_i32 = arith.constant 0 : i32
    %c0_i32_0 = arith.constant 0 : i32
    %c0_i32_1 = arith.constant 0 : i32
    return %c0_i32, %c0_i32_0 : i32, i32
  }
  func.func @transform_14(%arg0: i32) -> (i32, i32) {
    %c0_i32 = arith.constant 0 : i32
    %c0_i32_0 = arith.constant 0 : i32
    %c0_i32_1 = arith.constant 0 : i32
    return %c0_i32, %c0_i32_0 : i32, i32
  }
  func.func @transform_15(%arg0: i32) -> (i32, i32) {
    %c0_i32 = arith.constant 0 : i32
    %c0_i32_0 = arith.constant 0 : i32
    %c0_i32_1 = arith.constant 0 : i32
    return %c0_i32, %c0_i32_0 : i32, i32
  }
  func.func @transform_16(%arg0: i32) -> (i32, i32) {
    %c0_i32 = arith.constant 0 : i32
    %c0_i32_0 = arith.constant 0 : i32
    %c0_i32_1 = arith.constant 0 : i32
    return %c0_i32, %c0_i32_0 : i32, i32
  }
  func.func @transform_17(%arg0: i32) -> (i32, i32) {
    %c0_i32 = arith.constant 0 : i32
    %c0_i32_0 = arith.constant 0 : i32
    %c0_i32_1 = arith.constant 0 : i32
    return %c0_i32, %c0_i32_0 : i32, i32
  }
  func.func @transform_18(%arg0: i32) -> (i32, i32) {
    %c0_i32 = arith.constant 0 : i32
    %c0_i32_0 = arith.constant 0 : i32
    %c0_i32_1 = arith.constant 0 : i32
    return %c0_i32, %c0_i32_0 : i32, i32
  }
  func.func @transform_19(%arg0: i32) -> (i32, i32) {
    %c0_i32 = arith.constant 0 : i32
    %c0_i32_0 = arith.constant 0 : i32
    %c0_i32_1 = arith.constant 0 : i32
    return %c0_i32, %c0_i32_0 : i32, i32
  }
  func.func @transform_20(%arg0: i32) -> (i32, i32) {
    %c0_i32 = arith.constant 0 : i32
    %c0_i32_0 = arith.constant 0 : i32
    %c0_i32_1 = arith.constant 0 : i32
    return %c0_i32, %c0_i32_0 : i32, i32
  }
  func.func @transform_21(%arg0: i32) -> (i32, i32) {
    %c0_i32 = arith.constant 0 : i32
    %c0_i32_0 = arith.constant 0 : i32
    %c0_i32_1 = arith.constant 0 : i32
    return %c0_i32, %c0_i32_0 : i32, i32
  }
  func.func @transform_43(%arg0: i32) -> (i32, i32) {
    %c0_i32 = arith.constant 0 : i32
    %c0_i32_0 = arith.constant 0 : i32
    %c0_i32_1 = arith.constant 0 : i32
    return %c0_i32, %c0_i32_0 : i32, i32
  }
}

</mosaic_0001>

<llo_original>
// kernel: image_inertial_encoder_forward.1
$region0: #{image_inertial_encoder_forward.1}
  #allocation0 [shape = 'u32[]', space=smem, size = 0x4, offset = 0x4, fixed_abs, tag = 'smem constant byte address 0x4 - core index']
  #allocation1 [shape = 'u32[72,128]{1,0:T(1,128)}', space=vmem, size = 0x9000, scoped, tag = 'internal scratch']
  #allocation2 [shape = 'bf16[128,512]{1,0:T(8,128)(2,1)}', space=vmem, size = 0x20000, scoped, tag = 'scratch operand']
  #allocation3 [shape = 'bf16[256,256]{1,0:T(8,128)(2,1)}', space=vmem, size = 0x20000, scoped, tag = 'scratch operand']
  #allocation4 [shape = 'bf16[256,256]{1,0:T(8,128)(2,1)}', space=vmem, size = 0x20000, scoped, tag = 'scratch operand']
  #allocation5 [shape = 'bf16[256,256]{1,0:T(8,128)(2,1)}', space=vmem, size = 0x20000, scoped, tag = 'scratch operand']
  #allocation6 [shape = 'bf16[256,256]{1,0:T(8,128)(2,1)}', space=vmem, size = 0x20000, scoped, tag = 'scratch operand']
  #allocation7 [shape = 'bf16[256,256]{1,0:T(8,128)(2,1)}', space=vmem, size = 0x20000, scoped, tag = 'scratch operand']
  #allocation8 [shape = 'bf16[256,256]{1,0:T(8,128)(2,1)}', space=vmem, size = 0x20000, scoped, tag = 'scratch operand']
  #allocation9 [shape = 'bf16[256,256]{1,0:T(8,128)(2,1)}', space=vmem, size = 0x20000, scoped, tag = 'scratch operand']
  #allocation10 [shape = 'bf16[256,256]{1,0:T(8,128)(2,1)}', space=vmem, size = 0x20000, scoped, tag = 'scratch operand']
  #allocation11 [shape = 'bf16[256,256]{1,0:T(8,128)(2,1)}', space=vmem, size = 0x20000, scoped, tag = 'scratch operand']
  #allocation12 [shape = 'bf16[256,256]{1,0:T(8,128)(2,1)}', space=vmem, size = 0x20000, scoped, tag = 'scratch operand']
  #allocation13 [shape = 'bf16[256,256]{1,0:T(8,128)(2,1)}', space=vmem, size = 0x20000, scoped, tag = 'scratch operand']
  #allocation14 [shape = 'bf16[256,256]{1,0:T(8,128)(2,1)}', space=vmem, size = 0x20000, scoped, tag = 'scratch operand']
  #allocation15 [shape = 'bf16[256,256]{1,0:T(8,128)(2,1)}', space=vmem, size = 0x20000, scoped, tag = 'scratch operand']
  #allocation16 [shape = 'bf16[256,256]{1,0:T(8,128)(2,1)}', space=vmem, size = 0x20000, scoped, tag = 'scratch operand']
  #allocation17 [shape = 'bf16[256,512]{1,0:T(8,128)(2,1)}', space=vmem, size = 0x40000, scoped, tag = 'scratch operand']
  #allocation18 [shape = 'bf16[512,512]{1,0:T(8,128)(2,1)}', space=vmem, size = 0x80000, scoped, tag = 'scratch operand']
  #allocation19 [shape = 'bf16[256,512]{1,0:T(8,128)(2,1)}', space=vmem, size = 0x40000, scoped, tag = 'scratch operand']
  #allocation20 [shape = 'bf16[512,512]{1,0:T(8,128)(2,1)}', space=vmem, size = 0x80000, scoped, tag = 'scratch operand']
  #allocation21 [shape = 'bf16[512,512]{1,0:T(8,128)(2,1)}', space=vmem, size = 0x80000, scoped, tag = 'scratch operand']
  #allocation22 [shape = 'bf16[512,128]{1,0:T(8,128)(2,1)}', space=vmem, size = 0x20000, scoped, tag = 'scratch operand']
  #allocation23 [shape = 's32[21]{0}', space=sflag, size = 0x54, scoped, tag = 'scratch operand']
  #allocation24 [shape = 's32[]', space=sflag, size = 0x4, offset = 0, fixed_abs, tag = 'sflag constant byte address 0x0 - dummy sync flag']
  #allocation25 [shape = 's32[]', space=sflag, size = 0x4, offset = 0, fixed_abs, tag = 'sflag constant byte address 0x0 - dummy sync flag']
  #allocation26 [shape = 'u32[]', space=smem, size = 0x4, offset = 0x44, fixed_abs, tag = 'smem constant byte address 0x44 - assertion arg 0']
  #allocation27 [shape = 'u32[]', space=smem, size = 0x4, offset = 0x48, fixed_abs, tag = 'smem constant byte address 0x48 - assertion arg 1']
  #allocation28 [shape = 's32[]', space=sflag, size = 0x4, offset = 0, fixed_abs, tag = 'sflag constant byte address 0x0 - dummy sync flag']
  #allocation29 [shape = 's32[]', space=sflag, size = 0x4, offset = 0, fixed_abs, tag = 'sflag constant byte address 0x0 - dummy sync flag']
  #allocation30 [shape = 's32[]', space=sflag, size = 0x4, offset = 0, fixed_abs, tag = 'sflag constant byte address 0x0 - dummy sync flag']
  #allocation31 [shape = 's32[]', space=sflag, size = 0x4, offset = 0, fixed_abs, tag = 'sflag constant byte address 0x0 - dummy sync flag']
  #allocation32 [shape = 's32[]', space=sflag, size = 0x4, offset = 0, fixed_abs, tag = 'sflag constant byte address 0x0 - dummy sync flag']
  #allocation33 [shape = 's32[]', space=sflag, size = 0x4, offset = 0, fixed_abs, tag = 'sflag constant byte address 0x0 - dummy sync flag']
  #allocation34 [shape = 's32[]', space=sflag, size = 0x4, offset = 0, fixed_abs, tag = 'sflag constant byte address 0x0 - dummy sync flag']
  #allocation35 [shape = 's32[]', space=sflag, size = 0x4, offset = 0, fixed_abs, tag = 'sflag constant byte address 0x0 - dummy sync flag']
  #allocation36 [shape = 's32[]', space=sflag, size = 0x4, offset = 0, fixed_abs, tag = 'sflag constant byte address 0x0 - dummy sync flag']
  #allocation37 [shape = 's32[]', space=sflag, size = 0x4, offset = 0, fixed_abs, tag = 'sflag constant byte address 0x0 - dummy sync flag']
  #allocation38 [shape = 's32[]', space=sflag, size = 0x4, offset = 0, fixed_abs, tag = 'sflag constant byte address 0x0 - dummy sync flag']
  #allocation39 [shape = 's32[]', space=sflag, size = 0x4, offset = 0, fixed_abs, tag = 'sflag constant byte address 0x0 - dummy sync flag']
  #allocation40 [shape = 's32[]', space=sflag, size = 0x4, offset = 0, fixed_abs, tag = 'sflag constant byte address 0x0 - dummy sync flag']
  #allocation41 [shape = 's32[]', space=sflag, size = 0x4, offset = 0, fixed_abs, tag = 'sflag constant byte address 0x0 - dummy sync flag']
  #allocation42 [shape = 's32[]', space=sflag, size = 0x4, offset = 0, fixed_abs, tag = 'sflag constant byte address 0x0 - dummy sync flag']
  #allocation43 [shape = 's32[]', space=sflag, size = 0x4, offset = 0, fixed_abs, tag = 'sflag constant byte address 0x0 - dummy sync flag']
  #allocation44 [shape = 's32[]', space=sflag, size = 0x4, offset = 0, fixed_abs, tag = 'sflag constant byte address 0x0 - dummy sync flag']
  #allocation45 [shape = 's32[]', space=sflag, size = 0x4, offset = 0, fixed_abs, tag = 'sflag constant byte address 0x0 - dummy sync flag']
  #allocation46 [shape = 's32[]', space=sflag, size = 0x4, offset = 0, fixed_abs, tag = 'sflag constant byte address 0x0 - dummy sync flag']
  #allocation47 [shape = 's32[]', space=sflag, size = 0x4, offset = 0, fixed_abs, tag = 'sflag constant byte address 0x0 - dummy sync flag']
  #allocation48 [shape = 's32[]', space=sflag, size = 0x4, offset = 0, fixed_abs, tag = 'sflag constant byte address 0x0 - dummy sync flag']
  #allocation49 [shape = 's32[]', space=sflag, size = 0x4, offset = 0, fixed_abs, tag = 'sflag constant byte address 0x0 - dummy sync flag']
  #allocation50 [shape = 's32[]', space=sflag, size = 0x4, offset = 0, fixed_abs, tag = 'sflag constant byte address 0x0 - dummy sync flag']
  #allocation51 [shape = 's32[]', space=sflag, size = 0x4, offset = 0, fixed_abs, tag = 'sflag constant byte address 0x0 - dummy sync flag']
  #allocation52 [shape = 's32[]', space=sflag, size = 0x4, offset = 0, fixed_abs, tag = 'sflag constant byte address 0x0 - dummy sync flag']
  #allocation53 [shape = 's32[]', space=sflag, size = 0x4, offset = 0, fixed_abs, tag = 'sflag constant byte address 0x0 - dummy sync flag']
  #allocation54 [shape = 's32[]', space=sflag, size = 0x4, offset = 0, fixed_abs, tag = 'sflag constant byte address 0x0 - dummy sync flag']
  #allocation55 [shape = 's32[]', space=sflag, size = 0x4, offset = 0, fixed_abs, tag = 'sflag constant byte address 0x0 - dummy sync flag']
  #allocation56 [shape = 's32[]', space=sflag, size = 0x4, offset = 0, fixed_abs, tag = 'sflag constant byte address 0x0 - dummy sync flag']
  #allocation57 [shape = 's32[]', space=sflag, size = 0x4, offset = 0, fixed_abs, tag = 'sflag constant byte address 0x0 - dummy sync flag']
  #allocation58 [shape = 's32[]', space=sflag, size = 0x4, offset = 0, fixed_abs, tag = 'sflag constant byte address 0x0 - dummy sync flag']
  #allocation59 [shape = 's32[]', space=sflag, size = 0x4, offset = 0, fixed_abs, tag = 'sflag constant byte address 0x0 - dummy sync flag']
  #allocation60 [shape = 's32[]', space=sflag, size = 0x4, offset = 0, fixed_abs, tag = 'sflag constant byte address 0x0 - dummy sync flag']
  #allocation61 [shape = 's32[]', space=sflag, size = 0x4, offset = 0, fixed_abs, tag = 'sflag constant byte address 0x0 - dummy sync flag']
  #allocation62 [shape = 's32[]', space=sflag, size = 0x4, offset = 0, fixed_abs, tag = 'sflag constant byte address 0x0 - dummy sync flag']
  #allocation63 [shape = 's32[]', space=sflag, size = 0x4, offset = 0, fixed_abs, tag = 'sflag constant byte address 0x0 - dummy sync flag']
  #allocation64 [shape = 's32[]', space=sflag, size = 0x4, offset = 0, fixed_abs, tag = 'sflag constant byte address 0x0 - dummy sync flag']
  #allocation65 [shape = 's32[]', space=sflag, size = 0x4, offset = 0, fixed_abs, tag = 'sflag constant byte address 0x0 - dummy sync flag']
  #allocation66 [shape = 's32[]', space=sflag, size = 0x4, offset = 0, fixed_abs, tag = 'sflag constant byte address 0x0 - dummy sync flag']
  %s0 = inlined_call_operand.smem [shape: u32[44], index: -1, kind: input, shape index: {}]
  %s1 = sld [smem:[%s0]]
  %s2 = scalar_lea.smem %s0, 1
  %s3 = sld [smem:[%s2]]
  %s4 = scalar_lea.smem %s0, 2
  %s5 = sld [smem:[%s4]]
  %s6 = scalar_lea.smem %s0, 3
  %s7 = sld [smem:[%s6]]
  %s8 = scalar_lea.smem %s0, 4
  %s9 = sld [smem:[%s8]]
  %s10 = scalar_lea.smem %s0, 5
  %s11 = sld [smem:[%s10]]
  %s12 = scalar_lea.smem %s0, 6
  %s13 = sld [smem:[%s12]]
  %s14 = scalar_lea.smem %s0, 7
  %s15 = sld [smem:[%s14]]
  %s16 = scalar_lea.smem %s0, 8
  %s17 = sld [smem:[%s16]]
  %s18 = scalar_lea.smem %s0, 9
  %s19 = sld [smem:[%s18]]
  %s20 = scalar_lea.smem %s0, 10
  %s21 = sld [smem:[%s20]]
  %s22 = scalar_lea.smem %s0, 11
  %s23 = sld [smem:[%s22]]
  %s24 = scalar_lea.smem %s0, 12
  %s25 = sld [smem:[%s24]]
  %s26 = scalar_lea.smem %s0, 13
  %s27 = sld [smem:[%s26]]
  %s28 = scalar_lea.smem %s0, 14
  %s29 = sld [smem:[%s28]]
  %s30 = scalar_lea.smem %s0, 15
  %s31 = sld [smem:[%s30]]
  %s32 = scalar_lea.smem %s0, 16
  %s33 = sld [smem:[%s32]]
  %s34 = scalar_lea.smem %s0, 17
  %s35 = sld [smem:[%s34]]
  %s36 = scalar_lea.smem %s0, 18
  %s37 = sld [smem:[%s36]]
  %s38 = scalar_lea.smem %s0, 19
  %s39 = sld [smem:[%s38]]
  %s40 = scalar_lea.smem %s0, 20
  %s41 = sld [smem:[%s40]]
  %s42 = scalar_lea.smem %s0, 21
  %s43 = sld [smem:[%s42]]
  %s44 = scalar_lea.smem %s0, 22
  %s45 = sld [smem:[%s44]]
  %s46 = scalar_lea.smem %s0, 23
  %s47 = sld [smem:[%s46]]
  %s48 = scalar_lea.smem %s0, 24
  %s49 = sld [smem:[%s48]]
  %s50 = scalar_lea.smem %s0, 25
  %s51 = sld [smem:[%s50]]
  %s52 = scalar_lea.smem %s0, 26
  %s53 = sld [smem:[%s52]]
  %s54 = scalar_lea.smem %s0, 27
  %s55 = sld [smem:[%s54]]
  %s56 = scalar_lea.smem %s0, 28
  %s57 = sld [smem:[%s56]]
  %s58 = scalar_lea.smem %s0, 29
  %s59 = sld [smem:[%s58]]
  %s60 = scalar_lea.smem %s0, 30
  %s61 = sld [smem:[%s60]]
  %s62 = scalar_lea.smem %s0, 31
  %s63 = sld [smem:[%s62]]
  %s64 = scalar_lea.smem %s0, 32
  %s65 = sld [smem:[%s64]]
  %s66 = scalar_lea.smem %s0, 33
  %s67 = sld [smem:[%s66]]
  %s68 = scalar_lea.smem %s0, 34
  %s69 = sld [smem:[%s68]]
  %s70 = scalar_lea.smem %s0, 35
  %s71 = sld [smem:[%s70]]
  %s72 = scalar_lea.smem %s0, 36
  %s73 = sld [smem:[%s72]]
  %s74 = scalar_lea.smem %s0, 37
  %s75 = sld [smem:[%s74]]
  %s76 = scalar_lea.smem %s0, 38
  %s77 = sld [smem:[%s76]]
  %s78 = scalar_lea.smem %s0, 39
  %s79 = sld [smem:[%s78]]
  %s80 = scalar_lea.smem %s0, 40
  %s81 = sld [smem:[%s80]]
  %s82 = scalar_lea.smem %s0, 41
  %s83 = sld [smem:[%s82]]
  %s84 = scalar_lea.smem %s0, 42
  %s85 = sld [smem:[%s84]]
  %s86 = scalar_lea.smem %s0, 43
  %s87 = sld [smem:[%s86]]
  %s88 = sld [smem:[#allocation0]]
  $region197: #{image_inertial_encoder_forward.1} parent=0
    _
  %s90 = ssub.s32 1, %s88
  %s91 = scalar_select 0, %s90, %s88
  // Predicated region
  $region2: #{image_inertial_encoder_forward.1} parent=0 // pred_check
    _
  $region3: #{image_inertial_encoder_forward.1} parent=0 // pred_check_branch
    %93 = sbr.rel (0) target = $region5
  $region4: #{image_inertial_encoder_forward.1} parent=0 // pred_region
    _
  $region5: #{image_inertial_encoder_forward.1} parent=0 // pred_fallthru
    _
  // Predicated region
  $region6: #{image_inertial_encoder_forward.1} parent=0 // pred_check
    _
  $region7: #{image_inertial_encoder_forward.1} parent=0 // pred_check_branch
    %95 = sbr.rel (0) target = $region9
  $region8: #{image_inertial_encoder_forward.1} parent=0 // pred_region
    _
  $region9: #{image_inertial_encoder_forward.1} parent=0 // pred_fallthru
    _
  // Predicated region
  $region10: #{image_inertial_encoder_forward.1} parent=0 // pred_check
    _
  $region11: #{image_inertial_encoder_forward.1} parent=0 // pred_check_branch
    %97 = sbr.rel (0) target = $region13
  $region12: #{image_inertial_encoder_forward.1} parent=0 // pred_region
    _
  $region13: #{image_inertial_encoder_forward.1} parent=0 // pred_fallthru
    _
  // Predicated region
  $region14: #{image_inertial_encoder_forward.1} parent=0 // pred_check
    _
  $region15: #{image_inertial_encoder_forward.1} parent=0 // pred_check_branch
    %99 = sbr.rel (0) target = $region17
  $region16: #{image_inertial_encoder_forward.1} parent=0 // pred_region
    _
  $region17: #{image_inertial_encoder_forward.1} parent=0 // pred_fallthru
    _
  // Predicated region
  $region18: #{image_inertial_encoder_forward.1} parent=0 // pred_check
    _
  $region19: #{image_inertial_encoder_forward.1} parent=0 // pred_check_branch
    %101 = sbr.rel (0) target = $region21
  $region20: #{image_inertial_encoder_forward.1} parent=0 // pred_region
    _
  $region21: #{image_inertial_encoder_forward.1} parent=0 // pred_fallthru
    _
  // Predicated region
  $region22: #{image_inertial_encoder_forward.1} parent=0 // pred_check
    _
  $region23: #{image_inertial_encoder_forward.1} parent=0 // pred_check_branch
    %103 = sbr.rel (0) target = $region25
  $region24: #{image_inertial_encoder_forward.1} parent=0 // pred_region
    _
  $region25: #{image_inertial_encoder_forward.1} parent=0 // pred_fallthru
    _
  // Predicated region
  $region26: #{image_inertial_encoder_forward.1} parent=0 // pred_check
    _
  $region27: #{image_inertial_encoder_forward.1} parent=0 // pred_check_branch
    %105 = sbr.rel (0) target = $region29
  $region28: #{image_inertial_encoder_forward.1} parent=0 // pred_region
    _
  $region29: #{image_inertial_encoder_forward.1} parent=0 // pred_fallthru
    _
  // Predicated region
  $region30: #{image_inertial_encoder_forward.1} parent=0 // pred_check
    _
  $region31: #{image_inertial_encoder_forward.1} parent=0 // pred_check_branch
    %107 = sbr.rel (0) target = $region33
  $region32: #{image_inertial_encoder_forward.1} parent=0 // pred_region
    _
  $region33: #{image_inertial_encoder_forward.1} parent=0 // pred_fallthru
    _
  // Predicated region
  $region34: #{image_inertial_encoder_forward.1} parent=0 // pred_check
    _
  $region35: #{image_inertial_encoder_forward.1} parent=0 // pred_check_branch
    %109 = sbr.rel (0) target = $region37
  $region36: #{image_inertial_encoder_forward.1} parent=0 // pred_region
    _
  $region37: #{image_inertial_encoder_forward.1} parent=0 // pred_fallthru
    _
  // Predicated region
  $region38: #{image_inertial_encoder_forward.1} parent=0 // pred_check
    _
  $region39: #{image_inertial_encoder_forward.1} parent=0 // pred_check_branch
    %111 = sbr.rel (0) target = $region41
  $region40: #{image_inertial_encoder_forward.1} parent=0 // pred_region
    _
  $region41: #{image_inertial_encoder_forward.1} parent=0 // pred_fallthru
    _
  // Predicated region
  $region42: #{image_inertial_encoder_forward.1} parent=0 // pred_check
    _
  $region43: #{image_inertial_encoder_forward.1} parent=0 // pred_check_branch
    %113 = sbr.rel (0) target = $region45
  $region44: #{image_inertial_encoder_forward.1} parent=0 // pred_region
    _
  $region45: #{image_inertial_encoder_forward.1} parent=0 // pred_fallthru
    _
  // Predicated region
  $region46: #{image_inertial_encoder_forward.1} parent=0 // pred_check
    _
  $region47: #{image_inertial_encoder_forward.1} parent=0 // pred_check_branch
    %115 = sbr.rel (0) target = $region49
  $region48: #{image_inertial_encoder_forward.1} parent=0 // pred_region
    _
  $region49: #{image_inertial_encoder_forward.1} parent=0 // pred_fallthru
    _
  // Predicated region
  $region50: #{image_inertial_encoder_forward.1} parent=0 // pred_check
    _
  $region51: #{image_inertial_encoder_forward.1} parent=0 // pred_check_branch
    %117 = sbr.rel (0) target = $region53
  $region52: #{image_inertial_encoder_forward.1} parent=0 // pred_region
    _
  $region53: #{image_inertial_encoder_forward.1} parent=0 // pred_fallthru
    _
  // Predicated region
  $region54: #{image_inertial_encoder_forward.1} parent=0 // pred_check
    _
  $region55: #{image_inertial_encoder_forward.1} parent=0 // pred_check_branch
    %119 = sbr.rel (0) target = $region57
  $region56: #{image_inertial_encoder_forward.1} parent=0 // pred_region
    _
  $region57: #{image_inertial_encoder_forward.1} parent=0 // pred_fallthru
    _
  // Predicated region
  $region58: #{image_inertial_encoder_forward.1} parent=0 // pred_check
    _
  $region59: #{image_inertial_encoder_forward.1} parent=0 // pred_check_branch
    %121 = sbr.rel (0) target = $region61
  $region60: #{image_inertial_encoder_forward.1} parent=0 // pred_region
    _
  $region61: #{image_inertial_encoder_forward.1} parent=0 // pred_fallthru
    _
  // Predicated region
  $region62: #{image_inertial_encoder_forward.1} parent=0 // pred_check
    _
  $region63: #{image_inertial_encoder_forward.1} parent=0 // pred_check_branch
    %123 = sbr.rel (0) target = $region65
  $region64: #{image_inertial_encoder_forward.1} parent=0 // pred_region
    _
  $region65: #{image_inertial_encoder_forward.1} parent=0 // pred_fallthru
    _
  // Predicated region
  $region66: #{image_inertial_encoder_forward.1} parent=0 // pred_check
    _
  $region67: #{image_inertial_encoder_forward.1} parent=0 // pred_check_branch
    %125 = sbr.rel (0) target = $region69
  $region68: #{image_inertial_encoder_forward.1} parent=0 // pred_region
    _
  $region69: #{image_inertial_encoder_forward.1} parent=0 // pred_fallthru
    _
  // Predicated region
  $region70: #{image_inertial_encoder_forward.1} parent=0 // pred_check
    _
  $region71: #{image_inertial_encoder_forward.1} parent=0 // pred_check_branch
    %127 = sbr.rel (0) target = $region73
  $region72: #{image_inertial_encoder_forward.1} parent=0 // pred_region
    _
  $region73: #{image_inertial_encoder_forward.1} parent=0 // pred_fallthru
    _
  // Predicated region
  $region74: #{image_inertial_encoder_forward.1} parent=0 // pred_check
    _
  $region75: #{image_inertial_encoder_forward.1} parent=0 // pred_check_branch
    %129 = sbr.rel (0) target = $region77
  $region76: #{image_inertial_encoder_forward.1} parent=0 // pred_region
    _
  $region77: #{image_inertial_encoder_forward.1} parent=0 // pred_fallthru
    _
  // Predicated region
  $region78: #{image_inertial_encoder_forward.1} parent=0 // pred_check
    _
  $region79: #{image_inertial_encoder_forward.1} parent=0 // pred_check_branch
    %131 = sbr.rel (0) target = $region81
  $region80: #{image_inertial_encoder_forward.1} parent=0 // pred_region
    _
  $region81: #{image_inertial_encoder_forward.1} parent=0 // pred_fallthru
    _
  // Predicated region
  $region82: #{image_inertial_encoder_forward.1} parent=0 // pred_check
    _
  $region83: #{image_inertial_encoder_forward.1} parent=0 // pred_check_branch
    %133 = sbr.rel (0) target = $region85
  $region84: #{image_inertial_encoder_forward.1} parent=0 // pred_region
    _
  $region85: #{image_inertial_encoder_forward.1} parent=0 // pred_fallthru
    _
  // Predicated region
  $region86: #{image_inertial_encoder_forward.1} parent=0 // pred_check
    _
  $region87: #{image_inertial_encoder_forward.1} parent=0 // pred_check_branch
    %135 = sbr.rel (0) target = $region89
  $region88: #{image_inertial_encoder_forward.1} parent=0 // pred_region
    _
  $region89: #{image_inertial_encoder_forward.1} parent=0 // pred_fallthru
    _
  // Predicated region
  $region90: #{image_inertial_encoder_forward.1} parent=0 // pred_check
    _
  $region91: #{image_inertial_encoder_forward.1} parent=0 // pred_check_branch
    %137 = sbr.rel target = $region93
  $region92: #{image_inertial_encoder_forward.1} parent=0 // pred_region
    %138 = sst [smem:[#allocation26]] [#allocation25]
    %139 = sst [smem:[#allocation27]] [#allocation24]
  $region93: #{image_inertial_encoder_forward.1} parent=0 // pred_fallthru
    _
  %141 = shalt.err (0)
  %s143 = sshll.u32 %s45, 4
  %s144 = int_to_ptr.hbm [resolvable:$true] %s143
  %s145 = sshll.u32 [#allocation2], 4
  %s146 = int_to_ptr.vmem [resolvable:$true] %s145
  %148 = dma.hbm_to_vmem [thread:$0]  %s144, 4096, %s146, [#allocation23]
  %s149 = scalar_lea.sflag [#allocation23], 1
  // Predicated region
  $region94: #{image_inertial_encoder_forward.1} parent=0 // pred_check
    _
  $region95: #{image_inertial_encoder_forward.1} parent=0 // pred_check_branch
    %151 = sbr.rel target = $region97
  $region96: #{image_inertial_encoder_forward.1} parent=0 // pred_region
    %152 = sst [smem:[#allocation26]] [#allocation29]
    %153 = sst [smem:[#allocation27]] [#allocation28]
  $region97: #{image_inertial_encoder_forward.1} parent=0 // pred_fallthru
    _
  %155 = shalt.err (0)
  %s157 = sshll.u32 %s47, 4
  %s158 = int_to_ptr.hbm [resolvable:$true] %s157
  %s159 = sshll.u32 [#allocation3], 4
  %s160 = int_to_ptr.vmem [resolvable:$true] %s159
  %162 = dma.hbm_to_vmem [thread:$0]  %s158, 4096, %s160, %s149
  %s163 = scalar_lea.sflag [#allocation23], 2
  // Predicated region
  $region98: #{image_inertial_encoder_forward.1} parent=0 // pred_check
    _
  $region99: #{image_inertial_encoder_forward.1} parent=0 // pred_check_branch
    %165 = sbr.rel target = $region101
  $region100: #{image_inertial_encoder_forward.1} parent=0 // pred_region
    %166 = sst [smem:[#allocation26]] [#allocation31]
    %167 = sst [smem:[#allocation27]] [#allocation30]
  $region101: #{image_inertial_encoder_forward.1} parent=0 // pred_fallthru
    _
  %169 = shalt.err (0)
  %s171 = sshll.u32 %s49, 4
  %s172 = int_to_ptr.hbm [resolvable:$true] %s171
  %s173 = sshll.u32 [#allocation4], 4
  %s174 = int_to_ptr.vmem [resolvable:$true] %s173
  %176 = dma.hbm_to_vmem [thread:$0]  %s172, 4096, %s174, %s163
  %s177 = smul.u32 4, 16
  %s178 = smul.u32 %s177, 4
  %s179 = sshll.u32 %s178, 4
  %180 = dma.done [#allocation23], %s179
  %v181 = vld [vmem:[%s1] sm:$0xf]
  %v182 = vld [vmem:[%s1 + $0x4] sm:$0xf]
  %v183 = vld [vmem:[#allocation2] sm:$0xff]
  %v184 = vld [vmem:[#allocation2 + $0x8] sm:$0xff]
  %v185 = vld [vmem:[#allocation2 + $0x10] sm:$0xff]
  %v186 = vld [vmem:[#allocation2 + $0x18] sm:$0xff]
  %v187 = vld [vmem:[#allocation2 + $0x20] sm:$0xff]
  %v188 = vld [vmem:[#allocation2 + $0x28] sm:$0xff]
  %v189 = vld [vmem:[#allocation2 + $0x30] sm:$0xff]
  %v190 = vld [vmem:[#allocation2 + $0x38] sm:$0xff]
  %v191 = vld [vmem:[#allocation2 + $0x40] sm:$0xff]
  %v192 = vld [vmem:[#allocation2 + $0x48] sm:$0xff]
  %v193 = vld [vmem:[#allocation2 + $0x50] sm:$0xff]
  %v194 = vld [vmem:[#allocation2 + $0x58] sm:$0xff]
  %v195 = vld [vmem:[#allocation2 + $0x60] sm:$0xff]
  %v196 = vld [vmem:[#allocation2 + $0x68] sm:$0xff]
  %v197 = vld [vmem:[#allocation2 + $0x70] sm:$0xff]
  %v198 = vld [vmem:[#allocation2 + $0x78] sm:$0xff]
  %v199 = vld [vmem:[#allocation2 + $0x80] sm:$0xff]
  %v200 = vld [vmem:[#allocation2 + $0x88] sm:$0xff]
  %v201 = vld [vmem:[#allocation2 + $0x90] sm:$0xff]
  %v202 = vld [vmem:[#allocation2 + $0x98] sm:$0xff]
  %v203 = vld [vmem:[#allocation2 + $0xa0] sm:$0xff]
  %v204 = vld [vmem:[#allocation2 + $0xa8] sm:$0xff]
  %v205 = vld [vmem:[#allocation2 + $0xb0] sm:$0xff]
  %v206 = vld [vmem:[#allocation2 + $0xb8] sm:$0xff]
  %v207 = vld [vmem:[#allocation2 + $0xc0] sm:$0xff]
  %v208 = vld [vmem:[#allocation2 + $0xc8] sm:$0xff]
  %v209 = vld [vmem:[#allocation2 + $0xd0] sm:$0xff]
  %v210 = vld [vmem:[#allocation2 + $0xd8] sm:$0xff]
  %v211 = vld [vmem:[#allocation2 + $0xe0] sm:$0xff]
  %v212 = vld [vmem:[#allocation2 + $0xe8] sm:$0xff]
  %v213 = vld [vmem:[#allocation2 + $0xf0] sm:$0xff]
  %v214 = vld [vmem:[#allocation2 + $0xf8] sm:$0xff]
  %v215 = vld [vmem:[%s3] sm:$0xf]
  %v217 = vperm.slane %v215, 0
  %v218 = vperm.slane %v215, 1
  %v219 = vperm.slane %v215, 2
  %v220 = vperm.slane %v215, 3
  %v227 = vunpack.c.l.b16 %v181
  %v228 = vunpack.c.l.b16 %v182
  %v229 = vpack.c.b16 %v228, %v227
  %v263 = vunpack.c.l.b16 %v183
  %v264 = vunpack.c.h.b16 %v183
  %v265 = vunpack.c.l.b16 %v184
  %v266 = vunpack.c.h.b16 %v184
  %v267 = vunpack.c.l.b16 %v185
  %v268 = vunpack.c.h.b16 %v185
  %v269 = vunpack.c.l.b16 %v186
  %v270 = vunpack.c.h.b16 %v186
  %v271 = vunpack.c.l.b16 %v187
  %v272 = vunpack.c.h.b16 %v187
  %v273 = vunpack.c.l.b16 %v188
  %v274 = vunpack.c.h.b16 %v188
  %v275 = vunpack.c.l.b16 %v189
  %v276 = vunpack.c.h.b16 %v189
  %v277 = vunpack.c.l.b16 %v190
  %v278 = vunpack.c.h.b16 %v190
  %v279 = vunpack.c.l.b16 %v191
  %v280 = vunpack.c.h.b16 %v191
  %v281 = vunpack.c.l.b16 %v192
  %v282 = vunpack.c.h.b16 %v192
  %v283 = vunpack.c.l.b16 %v193
  %v284 = vunpack.c.h.b16 %v193
  %v285 = vunpack.c.l.b16 %v194
  %v286 = vunpack.c.h.b16 %v194
  %v287 = vunpack.c.l.b16 %v195
  %v288 = vunpack.c.h.b16 %v195
  %v289 = vunpack.c.l.b16 %v196
  %v290 = vunpack.c.h.b16 %v196
  %v291 = vunpack.c.l.b16 %v197
  %v292 = vunpack.c.h.b16 %v197
  %v293 = vunpack.c.l.b16 %v198
  %v294 = vunpack.c.h.b16 %v198
  %v295 = vunpack.c.l.b16 %v199
  %v296 = vunpack.c.h.b16 %v199
  %v297 = vunpack.c.l.b16 %v200
  %v298 = vunpack.c.h.b16 %v200
  %v299 = vunpack.c.l.b16 %v201
  %v300 = vunpack.c.h.b16 %v201
  %v301 = vunpack.c.l.b16 %v202
  %v302 = vunpack.c.h.b16 %v202
  %v303 = vunpack.c.l.b16 %v203
  %v304 = vunpack.c.h.b16 %v203
  %v305 = vunpack.c.l.b16 %v204
  %v306 = vunpack.c.h.b16 %v204
  %v307 = vunpack.c.l.b16 %v205
  %v308 = vunpack.c.h.b16 %v205
  %v309 = vunpack.c.l.b16 %v206
  %v310 = vunpack.c.h.b16 %v206
  %v311 = vunpack.c.l.b16 %v207
  %v312 = vunpack.c.h.b16 %v207
  %v313 = vunpack.c.l.b16 %v208
  %v314 = vunpack.c.h.b16 %v208
  %v315 = vunpack.c.l.b16 %v209
  %v316 = vunpack.c.h.b16 %v209
  %v317 = vunpack.c.l.b16 %v210
  %v318 = vunpack.c.h.b16 %v210
  %v319 = vunpack.c.l.b16 %v211
  %v320 = vunpack.c.h.b16 %v211
  %v321 = vunpack.c.l.b16 %v212
  %v322 = vunpack.c.h.b16 %v212
  %v323 = vunpack.c.l.b16 %v213
  %v324 = vunpack.c.h.b16 %v213
  %v325 = vunpack.c.l.b16 %v214
  %v326 = vunpack.c.h.b16 %v214
  %v327 = vpack.c.b16 %v267, %v263
  %v328 = vpack.c.b16 %v268, %v264
  %v329 = vpack.c.b16 %v269, %v265
  %v330 = vpack.c.b16 %v270, %v266
  %v331 = vpack.c.b16 %v275, %v271
  %v332 = vpack.c.b16 %v276, %v272
  %v333 = vpack.c.b16 %v277, %v273
  %v334 = vpack.c.b16 %v278, %v274
  %v335 = vpack.c.b16 %v283, %v279
  %v336 = vpack.c.b16 %v284, %v280
  %v337 = vpack.c.b16 %v285, %v281
  %v338 = vpack.c.b16 %v286, %v282
  %v339 = vpack.c.b16 %v291, %v287
  %v340 = vpack.c.b16 %v292, %v288
  %v341 = vpack.c.b16 %v293, %v289
  %v342 = vpack.c.b16 %v294, %v290
  %v343 = vpack.c.b16 %v299, %v295
  %v344 = vpack.c.b16 %v300, %v296
  %v345 = vpack.c.b16 %v301, %v297
  %v346 = vpack.c.b16 %v302, %v298
  %v347 = vpack.c.b16 %v307, %v303
  %v348 = vpack.c.b16 %v308, %v304
  %v349 = vpack.c.b16 %v309, %v305
  %v350 = vpack.c.b16 %v310, %v306
  %v351 = vpack.c.b16 %v315, %v311
  %v352 = vpack.c.b16 %v316, %v312
  %v353 = vpack.c.b16 %v317, %v313
  %v354 = vpack.c.b16 %v318, %v314
  %v355 = vpack.c.b16 %v323, %v319
  %v356 = vpack.c.b16 %v324, %v320
  %v357 = vpack.c.b16 %v325, %v321
  %v358 = vpack.c.b16 %v326, %v322
  %391 = vmatpush.bf16.msra.mxu0 %v355
  %392 = vmatpush.bf16.msra.mxu0 %v351
  %393 = vmatpush.bf16.msra.mxu0 %v347
  %394 = vmatpush.bf16.msra.mxu0 %v343
  %395 = vmatpush.bf16.msra.mxu0 %v339
  %396 = vmatpush.bf16.msra.mxu0 %v335
  %397 = vmatpush.bf16.msra.mxu0 %v331
  %398 = vmatpush.bf16.msra.mxu0 %v327
  %399 = vmatmul.bf16.gmra.mxu0 %v229
  %v400 = vpop.f32.mrf.mxu0
  %v401 = vadd.f32 %v217, %v400
  %v402 = vpop.f32.mrf.mxu0
  %v403 = vadd.f32 %v217, %v402
  %404 = vdwg.mxu0
  %405 = vmatpush.bf16.msra.mxu0 %v356
  %406 = vmatpush.bf16.msra.mxu0 %v352
  %407 = vmatpush.bf16.msra.mxu0 %v348
  %408 = vmatpush.bf16.msra.mxu0 %v344
  %409 = vmatpush.bf16.msra.mxu0 %v340
  %410 = vmatpush.bf16.msra.mxu0 %v336
  %411 = vmatpush.bf16.msra.mxu0 %v332
  %412 = vmatpush.bf16.msra.mxu0 %v328
  %413 = vmatmul.bf16.gmra.mxu0 %v229
  %v414 = vpop.f32.mrf.mxu0
  %v415 = vadd.f32 %v218, %v414
  %v416 = vpop.f32.mrf.mxu0
  %v417 = vadd.f32 %v218, %v416
  %418 = vdwg.mxu0
  %419 = vmatpush.bf16.msra.mxu0 %v357
  %420 = vmatpush.bf16.msra.mxu0 %v353
  %421 = vmatpush.bf16.msra.mxu0 %v349
  %422 = vmatpush.bf16.msra.mxu0 %v345
  %423 = vmatpush.bf16.msra.mxu0 %v341
  %424 = vmatpush.bf16.msra.mxu0 %v337
  %425 = vmatpush.bf16.msra.mxu0 %v333
  %426 = vmatpush.bf16.msra.mxu0 %v329
  %427 = vmatmul.bf16.gmra.mxu0 %v229
  %v428 = vpop.f32.mrf.mxu0
  %v429 = vadd.f32 %v219, %v428
  %v430 = vpop.f32.mrf.mxu0
  %v431 = vadd.f32 %v219, %v430
  %432 = vdwg.mxu0
  %433 = vmatpush.bf16.msra.mxu0 %v358
  %434 = vmatpush.bf16.msra.mxu0 %v354
  %435 = vmatpush.bf16.msra.mxu0 %v350
  %436 = vmatpush.bf16.msra.mxu0 %v346
  %437 = vmatpush.bf16.msra.mxu0 %v342
  %438 = vmatpush.bf16.msra.mxu0 %v338
  %439 = vmatpush.bf16.msra.mxu0 %v334
  %440 = vmatpush.bf16.msra.mxu0 %v330
  %441 = vmatmul.bf16.gmra.mxu0 %v229
  %v442 = vpop.f32.mrf.mxu0
  %v443 = vadd.f32 %v220, %v442
  %v444 = vpop.f32.mrf.mxu0
  %v445 = vadd.f32 %v220, %v444
  %446 = vdwg.mxu0
  %v447 = vmax.f32 %v401, 0.0
  %v448 = vmax.f32 %v415, 0.0
  %v449 = vmax.f32 %v429, 0.0
  %v450 = vmax.f32 %v443, 0.0
  %v451 = vmax.f32 %v403, 0.0
  %v452 = vmax.f32 %v417, 0.0
  %v453 = vmax.f32 %v431, 0.0
  %v454 = vmax.f32 %v445, 0.0
  %457 = vrot.lane.b32.xlu0 %v447, 64
  %v458 = vpop.permute.xlu0 %457
  %459 = vrot.lane.b32.xlu0 %v451, 64
  %v460 = vpop.permute.xlu0 %459
  %v463 = vmax.f32 %v447, %v458
  %v464 = vmax.f32 %v451, %v460
  %467 = vrot.lane.b32.xlu0 %v448, 64
  %v468 = vpop.permute.xlu0 %467
  %469 = vrot.lane.b32.xlu0 %v452, 64
  %v470 = vpop.permute.xlu0 %469
  %v473 = vmax.f32 %v447, %v468
  %v474 = vmax.f32 %v451, %v470
  %v475 = vmax.f32 %v473, %v448
  %v476 = vmax.f32 %v474, %v452
  %479 = vrot.lane.b32.xlu0 %v449, 64
  %v480 = vpop.permute.xlu0 %479
  %481 = vrot.lane.b32.xlu0 %v453, 64
  %v482 = vpop.permute.xlu0 %481
  %v485 = vmax.f32 %v448, %v480
  %v486 = vmax.f32 %v452, %v482
  %v487 = vmax.f32 %v485, %v449
  %v488 = vmax.f32 %v486, %v453
  %491 = vrot.lane.b32.xlu0 %v450, 64
  %v492 = vpop.permute.xlu0 %491
  %493 = vrot.lane.b32.xlu0 %v454, 64
  %v494 = vpop.permute.xlu0 %493
  %v497 = vmax.f32 %v449, %v492
  %v498 = vmax.f32 %v453, %v494
  %v499 = vmax.f32 %v497, %v450
  %v500 = vmax.f32 %v498, %v454
  %503 = vrot.lane.b32.xlu0 %v487, 64
  %v504 = vpop.permute.xlu0 %503
  %505 = vrot.lane.b32.xlu0 %v488, 64
  %v506 = vpop.permute.xlu0 %505
  %vm509 = vcmask 523264
  %v510 = vsel %vm509, %v463, %v475
  %v511 = vsel %vm509, %v464, %v476
  %v512 = vsel %vm509, %v504, %v499
  %v513 = vsel %vm509, %v506, %v500
  %s514 = scalar_lea.sflag [#allocation23], 3
  // Predicated region
  $region102: #{image_inertial_encoder_forward.1} parent=0 // pred_check
    _
  $region103: #{image_inertial_encoder_forward.1} parent=0 // pred_check_branch
    %516 = sbr.rel target = $region105
  $region104: #{image_inertial_encoder_forward.1} parent=0 // pred_region
    %517 = sst [smem:[#allocation26]] [#allocation33]
    %518 = sst [smem:[#allocation27]] [#allocation32]
  $region105: #{image_inertial_encoder_forward.1} parent=0 // pred_fallthru
    _
  %520 = shalt.err (0)
  %s522 = sshll.u32 %s51, 4
  %s523 = int_to_ptr.hbm [resolvable:$true] %s522
  %s524 = sshll.u32 [#allocation5], 4
  %s525 = int_to_ptr.vmem [resolvable:$true] %s524
  %527 = dma.hbm_to_vmem [thread:$0]  %s523, 4096, %s525, %s514
  %s528 = scalar_lea.sflag [#allocation23], 4
  // Predicated region
  $region106: #{image_inertial_encoder_forward.1} parent=0 // pred_check
    _
  $region107: #{image_inertial_encoder_forward.1} parent=0 // pred_check_branch
    %530 = sbr.rel target = $region109
  $region108: #{image_inertial_encoder_forward.1} parent=0 // pred_region
    %531 = sst [smem:[#allocation26]] [#allocation35]
    %532 = sst [smem:[#allocation27]] [#allocation34]
  $region109: #{image_inertial_encoder_forward.1} parent=0 // pred_fallthru
    _
  %534 = shalt.err (0)
  %s536 = sshll.u32 %s53, 4
  %s537 = int_to_ptr.hbm [resolvable:$true] %s536
  %s538 = sshll.u32 [#allocation6], 4
  %s539 = int_to_ptr.vmem [resolvable:$true] %s538
  %541 = dma.hbm_to_vmem [thread:$0]  %s537, 4096, %s539, %s528
  %s542 = smul.u32 4, 32
  %s543 = smul.u32 %s542, 2
  %s544 = sshll.u32 %s543, 4
  %545 = dma.done %s149, %s544
  %s546 = sshll.u32 %s543, 4
  %547 = dma.done %s163, %s546
  %v548 = vpack.c.bf16 %v511, %v510
  %v549 = vpack.c.bf16 %v513, %v512
  %v550 = vld [vmem:[#allocation3] sm:$0xff]
  %v551 = vld [vmem:[#allocation3 + $0x8] sm:$0xff]
  %v552 = vld [vmem:[#allocation3 + $0x10] sm:$0xff]
  %v553 = vld [vmem:[#allocation3 + $0x18] sm:$0xff]
  %v554 = vld [vmem:[#allocation3 + $0x20] sm:$0xff]
  %v555 = vld [vmem:[#allocation3 + $0x28] sm:$0xff]
  %v556 = vld [vmem:[#allocation3 + $0x30] sm:$0xff]
  %v557 = vld [vmem:[#allocation3 + $0x38] sm:$0xff]
  %v558 = vld [vmem:[#allocation3 + $0x40] sm:$0xff]
  %v559 = vld [vmem:[#allocation3 + $0x48] sm:$0xff]
  %v560 = vld [vmem:[#allocation3 + $0x50] sm:$0xff]
  %v561 = vld [vmem:[#allocation3 + $0x58] sm:$0xff]
  %v562 = vld [vmem:[#allocation3 + $0x60] sm:$0xff]
  %v563 = vld [vmem:[#allocation3 + $0x68] sm:$0xff]
  %v564 = vld [vmem:[#allocation3 + $0x70] sm:$0xff]
  %v565 = vld [vmem:[#allocation3 + $0x78] sm:$0xff]
  %v566 = vld [vmem:[#allocation3 + $0x80] sm:$0xff]
  %v567 = vld [vmem:[#allocation3 + $0x88] sm:$0xff]
  %v568 = vld [vmem:[#allocation3 + $0x90] sm:$0xff]
  %v569 = vld [vmem:[#allocation3 + $0x98] sm:$0xff]
  %v570 = vld [vmem:[#allocation3 + $0xa0] sm:$0xff]
  %v571 = vld [vmem:[#allocation3 + $0xa8] sm:$0xff]
  %v572 = vld [vmem:[#allocation3 + $0xb0] sm:$0xff]
  %v573 = vld [vmem:[#allocation3 + $0xb8] sm:$0xff]
  %v574 = vld [vmem:[#allocation3 + $0xc0] sm:$0xff]
  %v575 = vld [vmem:[#allocation3 + $0xc8] sm:$0xff]
  %v576 = vld [vmem:[#allocation3 + $0xd0] sm:$0xff]
  %v577 = vld [vmem:[#allocation3 + $0xd8] sm:$0xff]
  %v578 = vld [vmem:[#allocation3 + $0xe0] sm:$0xff]
  %v579 = vld [vmem:[#allocation3 + $0xe8] sm:$0xff]
  %v580 = vld [vmem:[#allocation3 + $0xf0] sm:$0xff]
  %v581 = vld [vmem:[#allocation3 + $0xf8] sm:$0xff]
  %v582 = vld [vmem:[%s5] sm:$0x3]
  %v584 = vperm.slane %v582, 0
  %v585 = vperm.slane %v582, 1
  %v620 = vunpack.c.l.b16 %v550
  %v621 = vunpack.c.h.b16 %v550
  %v622 = vunpack.c.l.b16 %v551
  %v623 = vunpack.c.h.b16 %v551
  %v624 = vunpack.c.l.b16 %v552
  %v625 = vunpack.c.h.b16 %v552
  %v626 = vunpack.c.l.b16 %v553
  %v627 = vunpack.c.h.b16 %v553
  %v628 = vunpack.c.l.b16 %v554
  %v629 = vunpack.c.h.b16 %v554
  %v630 = vunpack.c.l.b16 %v555
  %v631 = vunpack.c.h.b16 %v555
  %v632 = vunpack.c.l.b16 %v556
  %v633 = vunpack.c.h.b16 %v556
  %v634 = vunpack.c.l.b16 %v557
  %v635 = vunpack.c.h.b16 %v557
  %v636 = vunpack.c.l.b16 %v558
  %v637 = vunpack.c.h.b16 %v558
  %v638 = vunpack.c.l.b16 %v559
  %v639 = vunpack.c.h.b16 %v559
  %v640 = vunpack.c.l.b16 %v560
  %v641 = vunpack.c.h.b16 %v560
  %v642 = vunpack.c.l.b16 %v561
  %v643 = vunpack.c.h.b16 %v561
  %v644 = vunpack.c.l.b16 %v562
  %v645 = vunpack.c.h.b16 %v562
  %v646 = vunpack.c.l.b16 %v563
  %v647 = vunpack.c.h.b16 %v563
  %v648 = vunpack.c.l.b16 %v564
  %v649 = vunpack.c.h.b16 %v564
  %v650 = vunpack.c.l.b16 %v565
  %v651 = vunpack.c.h.b16 %v565
  %v652 = vunpack.c.l.b16 %v566
  %v653 = vunpack.c.h.b16 %v566
  %v654 = vunpack.c.l.b16 %v567
  %v655 = vunpack.c.h.b16 %v567
  %v656 = vunpack.c.l.b16 %v568
  %v657 = vunpack.c.h.b16 %v568
  %v658 = vunpack.c.l.b16 %v569
  %v659 = vunpack.c.h.b16 %v569
  %v660 = vunpack.c.l.b16 %v570
  %v661 = vunpack.c.h.b16 %v570
  %v662 = vunpack.c.l.b16 %v571
  %v663 = vunpack.c.h.b16 %v571
  %v664 = vunpack.c.l.b16 %v572
  %v665 = vunpack.c.h.b16 %v572
  %v666 = vunpack.c.l.b16 %v573
  %v667 = vunpack.c.h.b16 %v573
  %v668 = vunpack.c.l.b16 %v574
  %v669 = vunpack.c.h.b16 %v574
  %v670 = vunpack.c.l.b16 %v575
  %v671 = vunpack.c.h.b16 %v575
  %v672 = vunpack.c.l.b16 %v576
  %v673 = vunpack.c.h.b16 %v576
  %v674 = vunpack.c.l.b16 %v577
  %v675 = vunpack.c.h.b16 %v577
  %v676 = vunpack.c.l.b16 %v578
  %v677 = vunpack.c.h.b16 %v578
  %v678 = vunpack.c.l.b16 %v579
  %v679 = vunpack.c.h.b16 %v579
  %v680 = vunpack.c.l.b16 %v580
  %v681 = vunpack.c.h.b16 %v580
  %v682 = vunpack.c.l.b16 %v581
  %v683 = vunpack.c.h.b16 %v581
  %v684 = vpack.c.b16 %v622, %v620
  %v685 = vpack.c.b16 %v623, %v621
  %v686 = vpack.c.b16 %v626, %v624
  %v687 = vpack.c.b16 %v627, %v625
  %v688 = vpack.c.b16 %v630, %v628
  %v689 = vpack.c.b16 %v631, %v629
  %v690 = vpack.c.b16 %v634, %v632
  %v691 = vpack.c.b16 %v635, %v633
  %v692 = vpack.c.b16 %v638, %v636
  %v693 = vpack.c.b16 %v639, %v637
  %v694 = vpack.c.b16 %v642, %v640
  %v695 = vpack.c.b16 %v643, %v641
  %v696 = vpack.c.b16 %v646, %v644
  %v697 = vpack.c.b16 %v647, %v645
  %v698 = vpack.c.b16 %v650, %v648
  %v699 = vpack.c.b16 %v651, %v649
  %v700 = vpack.c.b16 %v654, %v652
  %v701 = vpack.c.b16 %v655, %v653
  %v702 = vpack.c.b16 %v658, %v656
  %v703 = vpack.c.b16 %v659, %v657
  %v704 = vpack.c.b16 %v662, %v660
  %v705 = vpack.c.b16 %v663, %v661
  %v706 = vpack.c.b16 %v666, %v664
  %v707 = vpack.c.b16 %v667, %v665
  %v708 = vpack.c.b16 %v670, %v668
  %v709 = vpack.c.b16 %v671, %v669
  %v710 = vpack.c.b16 %v674, %v672
  %v711 = vpack.c.b16 %v675, %v673
  %v712 = vpack.c.b16 %v678, %v676
  %v713 = vpack.c.b16 %v679, %v677
  %v714 = vpack.c.b16 %v682, %v680
  %v715 = vpack.c.b16 %v683, %v681
  %748 = vmatpush.bf16.msra.mxu0 %v698
  %749 = vmatpush.bf16.msra.mxu0 %v696
  %750 = vmatpush.bf16.msra.mxu0 %v694
  %751 = vmatpush.bf16.msra.mxu0 %v692
  %752 = vmatpush.bf16.msra.mxu0 %v690
  %753 = vmatpush.bf16.msra.mxu0 %v688
  %754 = vmatpush.bf16.msra.mxu0 %v686
  %755 = vmatpush.bf16.msra.mxu0 %v684
  %756 = vmatmul.bf16.gmra.mxu0 %v548
  %v757 = vpop.f32.mrf.mxu0
  %v758 = vadd.f32 %v584, %v757
  %v759 = vpop.f32.mrf.mxu0
  %v760 = vadd.f32 %v584, %v759
  %761 = vdwg.mxu0
  %762 = vmatpush.bf16.msra.mxu0 %v714
  %763 = vmatpush.bf16.msra.mxu0 %v712
  %764 = vmatpush.bf16.msra.mxu0 %v710
  %765 = vmatpush.bf16.msra.mxu0 %v708
  %766 = vmatpush.bf16.msra.mxu0 %v706
  %767 = vmatpush.bf16.msra.mxu0 %v704
  %768 = vmatpush.bf16.msra.mxu0 %v702
  %769 = vmatpush.bf16.msra.mxu0 %v700
  %770 = vmatmul.bf16.gmra.mxu0 %v549
  %v771 = vpop.f32.mrf.mxu0
  %v772 = vadd.f32 %v758, %v771
  %v773 = vpop.f32.mrf.mxu0
  %v774 = vadd.f32 %v760, %v773
  %775 = vdwg.mxu0
  %776 = vmatpush.bf16.msra.mxu0 %v699
  %777 = vmatpush.bf16.msra.mxu0 %v697
  %778 = vmatpush.bf16.msra.mxu0 %v695
  %779 = vmatpush.bf16.msra.mxu0 %v693
  %780 = vmatpush.bf16.msra.mxu0 %v691
  %781 = vmatpush.bf16.msra.mxu0 %v689
  %782 = vmatpush.bf16.msra.mxu0 %v687
  %783 = vmatpush.bf16.msra.mxu0 %v685
  %784 = vmatmul.bf16.gmra.mxu0 %v548
  %v785 = vpop.f32.mrf.mxu0
  %v786 = vadd.f32 %v585, %v785
  %v787 = vpop.f32.mrf.mxu0
  %v788 = vadd.f32 %v585, %v787
  %789 = vdwg.mxu0
  %790 = vmatpush.bf16.msra.mxu0 %v715
  %791 = vmatpush.bf16.msra.mxu0 %v713
  %792 = vmatpush.bf16.msra.mxu0 %v711
  %793 = vmatpush.bf16.msra.mxu0 %v709
  %794 = vmatpush.bf16.msra.mxu0 %v707
  %795 = vmatpush.bf16.msra.mxu0 %v705
  %796 = vmatpush.bf16.msra.mxu0 %v703
  %797 = vmatpush.bf16.msra.mxu0 %v701
  %798 = vmatmul.bf16.gmra.mxu0 %v549
  %v799 = vpop.f32.mrf.mxu0
  %v800 = vadd.f32 %v786, %v799
  %v801 = vpop.f32.mrf.mxu0
  %v802 = vadd.f32 %v788, %v801
  %803 = vdwg.mxu0
  %v804 = vmax.f32 %v772, 0.0
  %v805 = vmax.f32 %v800, 0.0
  %v806 = vmax.f32 %v774, 0.0
  %v807 = vmax.f32 %v802, 0.0
  %v808 = vpack.c.bf16 %v806, %v804
  %v809 = vpack.c.bf16 %v807, %v805
  %v810 = vld [vmem:[#allocation4] sm:$0xff]
  %v811 = vld [vmem:[#allocation4 + $0x8] sm:$0xff]
  %v812 = vld [vmem:[#allocation4 + $0x10] sm:$0xff]
  %v813 = vld [vmem:[#allocation4 + $0x18] sm:$0xff]
  %v814 = vld [vmem:[#allocation4 + $0x20] sm:$0xff]
  %v815 = vld [vmem:[#allocation4 + $0x28] sm:$0xff]
  %v816 = vld [vmem:[#allocation4 + $0x30] sm:$0xff]
  %v817 = vld [vmem:[#allocation4 + $0x38] sm:$0xff]
  %v818 = vld [vmem:[#allocation4 + $0x40] sm:$0xff]
  %v819 = vld [vmem:[#allocation4 + $0x48] sm:$0xff]
  %v820 = vld [vmem:[#allocation4 + $0x50] sm:$0xff]
  %v821 = vld [vmem:[#allocation4 + $0x58] sm:$0xff]
  %v822 = vld [vmem:[#allocation4 + $0x60] sm:$0xff]
  %v823 = vld [vmem:[#allocation4 + $0x68] sm:$0xff]
  %v824 = vld [vmem:[#allocation4 + $0x70] sm:$0xff]
  %v825 = vld [vmem:[#allocation4 + $0x78] sm:$0xff]
  %v826 = vld [vmem:[#allocation4 + $0x80] sm:$0xff]
  %v827 = vld [vmem:[#allocation4 + $0x88] sm:$0xff]
  %v828 = vld [vmem:[#allocation4 + $0x90] sm:$0xff]
  %v829 = vld [vmem:[#allocation4 + $0x98] sm:$0xff]
  %v830 = vld [vmem:[#allocation4 + $0xa0] sm:$0xff]
  %v831 = vld [vmem:[#allocation4 + $0xa8] sm:$0xff]
  %v832 = vld [vmem:[#allocation4 + $0xb0] sm:$0xff]
  %v833 = vld [vmem:[#allocation4 + $0xb8] sm:$0xff]
  %v834 = vld [vmem:[#allocation4 + $0xc0] sm:$0xff]
  %v835 = vld [vmem:[#allocation4 + $0xc8] sm:$0xff]
  %v836 = vld [vmem:[#allocation4 + $0xd0] sm:$0xff]
  %v837 = vld [vmem:[#allocation4 + $0xd8] sm:$0xff]
  %v838 = vld [vmem:[#allocation4 + $0xe0] sm:$0xff]
  %v839 = vld [vmem:[#allocation4 + $0xe8] sm:$0xff]
  %v840 = vld [vmem:[#allocation4 + $0xf0] sm:$0xff]
  %v841 = vld [vmem:[#allocation4 + $0xf8] sm:$0xff]
  %v842 = vld [vmem:[%s7] sm:$0x3]
  %v844 = vperm.slane %v842, 0
  %v845 = vperm.slane %v842, 1
  %v880 = vunpack.c.l.b16 %v810
  %v881 = vunpack.c.h.b16 %v810
  %v882 = vunpack.c.l.b16 %v811
  %v883 = vunpack.c.h.b16 %v811
  %v884 = vunpack.c.l.b16 %v812
  %v885 = vunpack.c.h.b16 %v812
  %v886 = vunpack.c.l.b16 %v813
  %v887 = vunpack.c.h.b16 %v813
  %v888 = vunpack.c.l.b16 %v814
  %v889 = vunpack.c.h.b16 %v814
  %v890 = vunpack.c.l.b16 %v815
  %v891 = vunpack.c.h.b16 %v815
  %v892 = vunpack.c.l.b16 %v816
  %v893 = vunpack.c.h.b16 %v816
  %v894 = vunpack.c.l.b16 %v817
  %v895 = vunpack.c.h.b16 %v817
  %v896 = vunpack.c.l.b16 %v818
  %v897 = vunpack.c.h.b16 %v818
  %v898 = vunpack.c.l.b16 %v819
  %v899 = vunpack.c.h.b16 %v819
  %v900 = vunpack.c.l.b16 %v820
  %v901 = vunpack.c.h.b16 %v820
  %v902 = vunpack.c.l.b16 %v821
  %v903 = vunpack.c.h.b16 %v821
  %v904 = vunpack.c.l.b16 %v822
  %v905 = vunpack.c.h.b16 %v822
  %v906 = vunpack.c.l.b16 %v823
  %v907 = vunpack.c.h.b16 %v823
  %v908 = vunpack.c.l.b16 %v824
  %v909 = vunpack.c.h.b16 %v824
  %v910 = vunpack.c.l.b16 %v825
  %v911 = vunpack.c.h.b16 %v825
  %v912 = vunpack.c.l.b16 %v826
  %v913 = vunpack.c.h.b16 %v826
  %v914 = vunpack.c.l.b16 %v827
  %v915 = vunpack.c.h.b16 %v827
  %v916 = vunpack.c.l.b16 %v828
  %v917 = vunpack.c.h.b16 %v828
  %v918 = vunpack.c.l.b16 %v829
  %v919 = vunpack.c.h.b16 %v829
  %v920 = vunpack.c.l.b16 %v830
  %v921 = vunpack.c.h.b16 %v830
  %v922 = vunpack.c.l.b16 %v831
  %v923 = vunpack.c.h.b16 %v831
  %v924 = vunpack.c.l.b16 %v832
  %v925 = vunpack.c.h.b16 %v832
  %v926 = vunpack.c.l.b16 %v833
  %v927 = vunpack.c.h.b16 %v833
  %v928 = vunpack.c.l.b16 %v834
  %v929 = vunpack.c.h.b16 %v834
  %v930 = vunpack.c.l.b16 %v835
  %v931 = vunpack.c.h.b16 %v835
  %v932 = vunpack.c.l.b16 %v836
  %v933 = vunpack.c.h.b16 %v836
  %v934 = vunpack.c.l.b16 %v837
  %v935 = vunpack.c.h.b16 %v837
  %v936 = vunpack.c.l.b16 %v838
  %v937 = vunpack.c.h.b16 %v838
  %v938 = vunpack.c.l.b16 %v839
  %v939 = vunpack.c.h.b16 %v839
  %v940 = vunpack.c.l.b16 %v840
  %v941 = vunpack.c.h.b16 %v840
  %v942 = vunpack.c.l.b16 %v841
  %v943 = vunpack.c.h.b16 %v841
  %v944 = vpack.c.b16 %v882, %v880
  %v945 = vpack.c.b16 %v883, %v881
  %v946 = vpack.c.b16 %v886, %v884
  %v947 = vpack.c.b16 %v887, %v885
  %v948 = vpack.c.b16 %v890, %v888
  %v949 = vpack.c.b16 %v891, %v889
  %v950 = vpack.c.b16 %v894, %v892
  %v951 = vpack.c.b16 %v895, %v893
  %v952 = vpack.c.b16 %v898, %v896
  %v953 = vpack.c.b16 %v899, %v897
  %v954 = vpack.c.b16 %v902, %v900
  %v955 = vpack.c.b16 %v903, %v901
  %v956 = vpack.c.b16 %v906, %v904
  %v957 = vpack.c.b16 %v907, %v905
  %v958 = vpack.c.b16 %v910, %v908
  %v959 = vpack.c.b16 %v911, %v909
  %v960 = vpack.c.b16 %v914, %v912
  %v961 = vpack.c.b16 %v915, %v913
  %v962 = vpack.c.b16 %v918, %v916
  %v963 = vpack.c.b16 %v919, %v917
  %v964 = vpack.c.b16 %v922, %v920
  %v965 = vpack.c.b16 %v923, %v921
  %v966 = vpack.c.b16 %v926, %v924
  %v967 = vpack.c.b16 %v927, %v925
  %v968 = vpack.c.b16 %v930, %v928
  %v969 = vpack.c.b16 %v931, %v929
  %v970 = vpack.c.b16 %v934, %v932
  %v971 = vpack.c.b16 %v935, %v933
  %v972 = vpack.c.b16 %v938, %v936
  %v973 = vpack.c.b16 %v939, %v937
  %v974 = vpack.c.b16 %v942, %v940
  %v975 = vpack.c.b16 %v943, %v941
  %1008 = vmatpush.bf16.msra.mxu0 %v958
  %1009 = vmatpush.bf16.msra.mxu0 %v956
  %1010 = vmatpush.bf16.msra.mxu0 %v954
  %1011 = vmatpush.bf16.msra.mxu0 %v952
  %1012 = vmatpush.bf16.msra.mxu0 %v950
  %1013 = vmatpush.bf16.msra.mxu0 %v948
  %1014 = vmatpush.bf16.msra.mxu0 %v946
  %1015 = vmatpush.bf16.msra.mxu0 %v944
  %1016 = vmatmul.bf16.gmra.mxu0 %v808
  %v1017 = vpop.f32.mrf.mxu0
  %v1018 = vadd.f32 %v844, %v1017
  %v1019 = vpop.f32.mrf.mxu0
  %v1020 = vadd.f32 %v844, %v1019
  %1021 = vdwg.mxu0
  %1022 = vmatpush.bf16.msra.mxu0 %v974
  %1023 = vmatpush.bf16.msra.mxu0 %v972
  %1024 = vmatpush.bf16.msra.mxu0 %v970
  %1025 = vmatpush.bf16.msra.mxu0 %v968
  %1026 = vmatpush.bf16.msra.mxu0 %v966
  %1027 = vmatpush.bf16.msra.mxu0 %v964
  %1028 = vmatpush.bf16.msra.mxu0 %v962
  %1029 = vmatpush.bf16.msra.mxu0 %v960
  %1030 = vmatmul.bf16.gmra.mxu0 %v809
  %v1031 = vpop.f32.mrf.mxu0
  %v1032 = vadd.f32 %v1018, %v1031
  %v1033 = vpop.f32.mrf.mxu0
  %v1034 = vadd.f32 %v1020, %v1033
  %1035 = vdwg.mxu0
  %1036 = vmatpush.bf16.msra.mxu0 %v959
  %1037 = vmatpush.bf16.msra.mxu0 %v957
  %1038 = vmatpush.bf16.msra.mxu0 %v955
  %1039 = vmatpush.bf16.msra.mxu0 %v953
  %1040 = vmatpush.bf16.msra.mxu0 %v951
  %1041 = vmatpush.bf16.msra.mxu0 %v949
  %1042 = vmatpush.bf16.msra.mxu0 %v947
  %1043 = vmatpush.bf16.msra.mxu0 %v945
  %1044 = vmatmul.bf16.gmra.mxu0 %v808
  %v1045 = vpop.f32.mrf.mxu0
  %v1046 = vadd.f32 %v845, %v1045
  %v1047 = vpop.f32.mrf.mxu0
  %v1048 = vadd.f32 %v845, %v1047
  %1049 = vdwg.mxu0
  %1050 = vmatpush.bf16.msra.mxu0 %v975
  %1051 = vmatpush.bf16.msra.mxu0 %v973
  %1052 = vmatpush.bf16.msra.mxu0 %v971
  %1053 = vmatpush.bf16.msra.mxu0 %v969
  %1054 = vmatpush.bf16.msra.mxu0 %v967
  %1055 = vmatpush.bf16.msra.mxu0 %v965
  %1056 = vmatpush.bf16.msra.mxu0 %v963
  %1057 = vmatpush.bf16.msra.mxu0 %v961
  %1058 = vmatmul.bf16.gmra.mxu0 %v809
  %v1059 = vpop.f32.mrf.mxu0
  %v1060 = vadd.f32 %v1046, %v1059
  %v1061 = vpop.f32.mrf.mxu0
  %v1062 = vadd.f32 %v1048, %v1061
  %1063 = vdwg.mxu0
  %v1064 = vadd.f32 %v1032, %v510
  %v1065 = vadd.f32 %v1060, %v512
  %v1066 = vadd.f32 %v1034, %v511
  %v1067 = vadd.f32 %v1062, %v513
  %v1068 = vmax.f32 %v1064, 0.0
  %v1069 = vmax.f32 %v1065, 0.0
  %v1070 = vmax.f32 %v1066, 0.0
  %v1071 = vmax.f32 %v1067, 0.0
  %s1072 = scalar_lea.sflag [#allocation23], 5
  // Predicated region
  $region110: #{image_inertial_encoder_forward.1} parent=0 // pred_check
    _
  $region111: #{image_inertial_encoder_forward.1} parent=0 // pred_check_branch
    %1074 = sbr.rel target = $region113
  $region112: #{image_inertial_encoder_forward.1} parent=0 // pred_region
    %1075 = sst [smem:[#allocation26]] [#allocation37]
    %1076 = sst [smem:[#allocation27]] [#allocation36]
  $region113: #{image_inertial_encoder_forward.1} parent=0 // pred_fallthru
    _
  %1078 = shalt.err (0)
  %s1080 = sshll.u32 %s55, 4
  %s1081 = int_to_ptr.hbm [resolvable:$true] %s1080
  %s1082 = sshll.u32 [#allocation7], 4
  %s1083 = int_to_ptr.vmem [resolvable:$true] %s1082
  %1085 = dma.hbm_to_vmem [thread:$0]  %s1081, 4096, %s1083, %s1072
  %s1086 = scalar_lea.sflag [#allocation23], 6
  // Predicated region
  $region114: #{image_inertial_encoder_forward.1} parent=0 // pred_check
    _
  $region115: #{image_inertial_encoder_forward.1} parent=0 // pred_check_branch
    %1088 = sbr.rel target = $region117
  $region116: #{image_inertial_encoder_forward.1} parent=0 // pred_region
    %1089 = sst [smem:[#allocation26]] [#allocation39]
    %1090 = sst [smem:[#allocation27]] [#allocation38]
  $region117: #{image_inertial_encoder_forward.1} parent=0 // pred_fallthru
    _
  %1092 = shalt.err (0)
  %s1094 = sshll.u32 %s57, 4
  %s1095 = int_to_ptr.hbm [resolvable:$true] %s1094
  %s1096 = sshll.u32 [#allocation8], 4
  %s1097 = int_to_ptr.vmem [resolvable:$true] %s1096
  %1099 = dma.hbm_to_vmem [thread:$0]  %s1095, 4096, %s1097, %s1086
  %s1100 = scalar_lea.sflag [#allocation23], 7
  // Predicated region
  $region118: #{image_inertial_encoder_forward.1} parent=0 // pred_check
    _
  $region119: #{image_inertial_encoder_forward.1} parent=0 // pred_check_branch
    %1102 = sbr.rel target = $region121
  $region120: #{image_inertial_encoder_forward.1} parent=0 // pred_region
    %1103 = sst [smem:[#allocation26]] [#allocation41]
    %1104 = sst [smem:[#allocation27]] [#allocation40]
  $region121: #{image_inertial_encoder_forward.1} parent=0 // pred_fallthru
    _
  %1106 = shalt.err (0)
  %s1108 = sshll.u32 %s59, 4
  %s1109 = int_to_ptr.hbm [resolvable:$true] %s1108
  %s1110 = sshll.u32 [#allocation9], 4
  %s1111 = int_to_ptr.vmem [resolvable:$true] %s1110
  %1113 = dma.hbm_to_vmem [thread:$0]  %s1109, 4096, %s1111, %s1100
  %s1114 = sshll.u32 %s543, 4
  %1115 = dma.done %s514, %s1114
  %s1116 = sshll.u32 %s543, 4
  %1117 = dma.done %s528, %s1116
  %v1118 = vpack.c.bf16 %v1070, %v1068
  %v1119 = vpack.c.bf16 %v1071, %v1069
  %v1120 = vld [vmem:[#allocation5] sm:$0xff]
  %v1121 = vld [vmem:[#allocation5 + $0x8] sm:$0xff]
  %v1122 = vld [vmem:[#allocation5 + $0x10] sm:$0xff]
  %v1123 = vld [vmem:[#allocation5 + $0x18] sm:$0xff]
  %v1124 = vld [vmem:[#allocation5 + $0x20] sm:$0xff]
  %v1125 = vld [vmem:[#allocation5 + $0x28] sm:$0xff]
  %v1126 = vld [vmem:[#allocation5 + $0x30] sm:$0xff]
  %v1127 = vld [vmem:[#allocation5 + $0x38] sm:$0xff]
  %v1128 = vld [vmem:[#allocation5 + $0x40] sm:$0xff]
  %v1129 = vld [vmem:[#allocation5 + $0x48] sm:$0xff]
  %v1130 = vld [vmem:[#allocation5 + $0x50] sm:$0xff]
  %v1131 = vld [vmem:[#allocation5 + $0x58] sm:$0xff]
  %v1132 = vld [vmem:[#allocation5 + $0x60] sm:$0xff]
  %v1133 = vld [vmem:[#allocation5 + $0x68] sm:$0xff]
  %v1134 = vld [vmem:[#allocation5 + $0x70] sm:$0xff]
  %v1135 = vld [vmem:[#allocation5 + $0x78] sm:$0xff]
  %v1136 = vld [vmem:[#allocation5 + $0x80] sm:$0xff]
  %v1137 = vld [vmem:[#allocation5 + $0x88] sm:$0xff]
  %v1138 = vld [vmem:[#allocation5 + $0x90] sm:$0xff]
  %v1139 = vld [vmem:[#allocation5 + $0x98] sm:$0xff]
  %v1140 = vld [vmem:[#allocation5 + $0xa0] sm:$0xff]
  %v1141 = vld [vmem:[#allocation5 + $0xa8] sm:$0xff]
  %v1142 = vld [vmem:[#allocation5 + $0xb0] sm:$0xff]
  %v1143 = vld [vmem:[#allocation5 + $0xb8] sm:$0xff]
  %v1144 = vld [vmem:[#allocation5 + $0xc0] sm:$0xff]
  %v1145 = vld [vmem:[#allocation5 + $0xc8] sm:$0xff]
  %v1146 = vld [vmem:[#allocation5 + $0xd0] sm:$0xff]
  %v1147 = vld [vmem:[#allocation5 + $0xd8] sm:$0xff]
  %v1148 = vld [vmem:[#allocation5 + $0xe0] sm:$0xff]
  %v1149 = vld [vmem:[#allocation5 + $0xe8] sm:$0xff]
  %v1150 = vld [vmem:[#allocation5 + $0xf0] sm:$0xff]
  %v1151 = vld [vmem:[#allocation5 + $0xf8] sm:$0xff]
  %v1152 = vld [vmem:[%s9] sm:$0x3]
  %v1154 = vperm.slane %v1152, 0
  %v1155 = vperm.slane %v1152, 1
  %v1190 = vunpack.c.l.b16 %v1120
  %v1191 = vunpack.c.h.b16 %v1120
  %v1192 = vunpack.c.l.b16 %v1121
  %v1193 = vunpack.c.h.b16 %v1121
  %v1194 = vunpack.c.l.b16 %v1122
  %v1195 = vunpack.c.h.b16 %v1122
  %v1196 = vunpack.c.l.b16 %v1123
  %v1197 = vunpack.c.h.b16 %v1123
  %v1198 = vunpack.c.l.b16 %v1124
  %v1199 = vunpack.c.h.b16 %v1124
  %v1200 = vunpack.c.l.b16 %v1125
  %v1201 = vunpack.c.h.b16 %v1125
  %v1202 = vunpack.c.l.b16 %v1126
  %v1203 = vunpack.c.h.b16 %v1126
  %v1204 = vunpack.c.l.b16 %v1127
  %v1205 = vunpack.c.h.b16 %v1127
  %v1206 = vunpack.c.l.b16 %v1128
  %v1207 = vunpack.c.h.b16 %v1128
  %v1208 = vunpack.c.l.b16 %v1129
  %v1209 = vunpack.c.h.b16 %v1129
  %v1210 = vunpack.c.l.b16 %v1130
  %v1211 = vunpack.c.h.b16 %v1130
  %v1212 = vunpack.c.l.b16 %v1131
  %v1213 = vunpack.c.h.b16 %v1131
  %v1214 = vunpack.c.l.b16 %v1132
  %v1215 = vunpack.c.h.b16 %v1132
  %v1216 = vunpack.c.l.b16 %v1133
  %v1217 = vunpack.c.h.b16 %v1133
  %v1218 = vunpack.c.l.b16 %v1134
  %v1219 = vunpack.c.h.b16 %v1134
  %v1220 = vunpack.c.l.b16 %v1135
  %v1221 = vunpack.c.h.b16 %v1135
  %v1222 = vunpack.c.l.b16 %v1136
  %v1223 = vunpack.c.h.b16 %v1136
  %v1224 = vunpack.c.l.b16 %v1137
  %v1225 = vunpack.c.h.b16 %v1137
  %v1226 = vunpack.c.l.b16 %v1138
  %v1227 = vunpack.c.h.b16 %v1138
  %v1228 = vunpack.c.l.b16 %v1139
  %v1229 = vunpack.c.h.b16 %v1139
  %v1230 = vunpack.c.l.b16 %v1140
  %v1231 = vunpack.c.h.b16 %v1140
  %v1232 = vunpack.c.l.b16 %v1141
  %v1233 = vunpack.c.h.b16 %v1141
  %v1234 = vunpack.c.l.b16 %v1142
  %v1235 = vunpack.c.h.b16 %v1142
  %v1236 = vunpack.c.l.b16 %v1143
  %v1237 = vunpack.c.h.b16 %v1143
  %v1238 = vunpack.c.l.b16 %v1144
  %v1239 = vunpack.c.h.b16 %v1144
  %v1240 = vunpack.c.l.b16 %v1145
  %v1241 = vunpack.c.h.b16 %v1145
  %v1242 = vunpack.c.l.b16 %v1146
  %v1243 = vunpack.c.h.b16 %v1146
  %v1244 = vunpack.c.l.b16 %v1147
  %v1245 = vunpack.c.h.b16 %v1147
  %v1246 = vunpack.c.l.b16 %v1148
  %v1247 = vunpack.c.h.b16 %v1148
  %v1248 = vunpack.c.l.b16 %v1149
  %v1249 = vunpack.c.h.b16 %v1149
  %v1250 = vunpack.c.l.b16 %v1150
  %v1251 = vunpack.c.h.b16 %v1150
  %v1252 = vunpack.c.l.b16 %v1151
  %v1253 = vunpack.c.h.b16 %v1151
  %v1254 = vpack.c.b16 %v1192, %v1190
  %v1255 = vpack.c.b16 %v1193, %v1191
  %v1256 = vpack.c.b16 %v1196, %v1194
  %v1257 = vpack.c.b16 %v1197, %v1195
  %v1258 = vpack.c.b16 %v1200, %v1198
  %v1259 = vpack.c.b16 %v1201, %v1199
  %v1260 = vpack.c.b16 %v1204, %v1202
  %v1261 = vpack.c.b16 %v1205, %v1203
  %v1262 = vpack.c.b16 %v1208, %v1206
  %v1263 = vpack.c.b16 %v1209, %v1207
  %v1264 = vpack.c.b16 %v1212, %v1210
  %v1265 = vpack.c.b16 %v1213, %v1211
  %v1266 = vpack.c.b16 %v1216, %v1214
  %v1267 = vpack.c.b16 %v1217, %v1215
  %v1268 = vpack.c.b16 %v1220, %v1218
  %v1269 = vpack.c.b16 %v1221, %v1219
  %v1270 = vpack.c.b16 %v1224, %v1222
  %v1271 = vpack.c.b16 %v1225, %v1223
  %v1272 = vpack.c.b16 %v1228, %v1226
  %v1273 = vpack.c.b16 %v1229, %v1227
  %v1274 = vpack.c.b16 %v1232, %v1230
  %v1275 = vpack.c.b16 %v1233, %v1231
  %v1276 = vpack.c.b16 %v1236, %v1234
  %v1277 = vpack.c.b16 %v1237, %v1235
  %v1278 = vpack.c.b16 %v1240, %v1238
  %v1279 = vpack.c.b16 %v1241, %v1239
  %v1280 = vpack.c.b16 %v1244, %v1242
  %v1281 = vpack.c.b16 %v1245, %v1243
  %v1282 = vpack.c.b16 %v1248, %v1246
  %v1283 = vpack.c.b16 %v1249, %v1247
  %v1284 = vpack.c.b16 %v1252, %v1250
  %v1285 = vpack.c.b16 %v1253, %v1251
  %1318 = vmatpush.bf16.msra.mxu0 %v1268
  %1319 = vmatpush.bf16.msra.mxu0 %v1266
  %1320 = vmatpush.bf16.msra.mxu0 %v1264
  %1321 = vmatpush.bf16.msra.mxu0 %v1262
  %1322 = vmatpush.bf16.msra.mxu0 %v1260
  %1323 = vmatpush.bf16.msra.mxu0 %v1258
  %1324 = vmatpush.bf16.msra.mxu0 %v1256
  %1325 = vmatpush.bf16.msra.mxu0 %v1254
  %1326 = vmatmul.bf16.gmra.mxu0 %v1118
  %v1327 = vpop.f32.mrf.mxu0
  %v1328 = vadd.f32 %v1154, %v1327
  %v1329 = vpop.f32.mrf.mxu0
  %v1330 = vadd.f32 %v1154, %v1329
  %1331 = vdwg.mxu0
  %1332 = vmatpush.bf16.msra.mxu0 %v1284
  %1333 = vmatpush.bf16.msra.mxu0 %v1282
  %1334 = vmatpush.bf16.msra.mxu0 %v1280
  %1335 = vmatpush.bf16.msra.mxu0 %v1278
  %1336 = vmatpush.bf16.msra.mxu0 %v1276
  %1337 = vmatpush.bf16.msra.mxu0 %v1274
  %1338 = vmatpush.bf16.msra.mxu0 %v1272
  %1339 = vmatpush.bf16.msra.mxu0 %v1270
  %1340 = vmatmul.bf16.gmra.mxu0 %v1119
  %v1341 = vpop.f32.mrf.mxu0
  %v1342 = vadd.f32 %v1328, %v1341
  %v1343 = vpop.f32.mrf.mxu0
  %v1344 = vadd.f32 %v1330, %v1343
  %1345 = vdwg.mxu0
  %1346 = vmatpush.bf16.msra.mxu0 %v1269
  %1347 = vmatpush.bf16.msra.mxu0 %v1267
  %1348 = vmatpush.bf16.msra.mxu0 %v1265
  %1349 = vmatpush.bf16.msra.mxu0 %v1263
  %1350 = vmatpush.bf16.msra.mxu0 %v1261
  %1351 = vmatpush.bf16.msra.mxu0 %v1259
  %1352 = vmatpush.bf16.msra.mxu0 %v1257
  %1353 = vmatpush.bf16.msra.mxu0 %v1255
  %1354 = vmatmul.bf16.gmra.mxu0 %v1118
  %v1355 = vpop.f32.mrf.mxu0
  %v1356 = vadd.f32 %v1155, %v1355
  %v1357 = vpop.f32.mrf.mxu0
  %v1358 = vadd.f32 %v1155, %v1357
  %1359 = vdwg.mxu0
  %1360 = vmatpush.bf16.msra.mxu0 %v1285
  %1361 = vmatpush.bf16.msra.mxu0 %v1283
  %1362 = vmatpush.bf16.msra.mxu0 %v1281
  %1363 = vmatpush.bf16.msra.mxu0 %v1279
  %1364 = vmatpush.bf16.msra.mxu0 %v1277
  %1365 = vmatpush.bf16.msra.mxu0 %v1275
  %1366 = vmatpush.bf16.msra.mxu0 %v1273
  %1367 = vmatpush.bf16.msra.mxu0 %v1271
  %1368 = vmatmul.bf16.gmra.mxu0 %v1119
  %v1369 = vpop.f32.mrf.mxu0
  %v1370 = vadd.f32 %v1356, %v1369
  %v1371 = vpop.f32.mrf.mxu0
  %v1372 = vadd.f32 %v1358, %v1371
  %1373 = vdwg.mxu0
  %v1374 = vmax.f32 %v1342, 0.0
  %v1375 = vmax.f32 %v1370, 0.0
  %v1376 = vmax.f32 %v1344, 0.0
  %v1377 = vmax.f32 %v1372, 0.0
  %v1378 = vpack.c.bf16 %v1376, %v1374
  %v1379 = vpack.c.bf16 %v1377, %v1375
  %v1380 = vld [vmem:[#allocation6] sm:$0xff]
  %v1381 = vld [vmem:[#allocation6 + $0x8] sm:$0xff]
  %v1382 = vld [vmem:[#allocation6 + $0x10] sm:$0xff]
  %v1383 = vld [vmem:[#allocation6 + $0x18] sm:$0xff]
  %v1384 = vld [vmem:[#allocation6 + $0x20] sm:$0xff]
  %v1385 = vld [vmem:[#allocation6 + $0x28] sm:$0xff]
  %v1386 = vld [vmem:[#allocation6 + $0x30] sm:$0xff]
  %v1387 = vld [vmem:[#allocation6 + $0x38] sm:$0xff]
  %v1388 = vld [vmem:[#allocation6 + $0x40] sm:$0xff]
  %v1389 = vld [vmem:[#allocation6 + $0x48] sm:$0xff]
  %v1390 = vld [vmem:[#allocation6 + $0x50] sm:$0xff]
  %v1391 = vld [vmem:[#allocation6 + $0x58] sm:$0xff]
  %v1392 = vld [vmem:[#allocation6 + $0x60] sm:$0xff]
  %v1393 = vld [vmem:[#allocation6 + $0x68] sm:$0xff]
  %v1394 = vld [vmem:[#allocation6 + $0x70] sm:$0xff]
  %v1395 = vld [vmem:[#allocation6 + $0x78] sm:$0xff]
  %v1396 = vld [vmem:[#allocation6 + $0x80] sm:$0xff]
  %v1397 = vld [vmem:[#allocation6 + $0x88] sm:$0xff]
  %v1398 = vld [vmem:[#allocation6 + $0x90] sm:$0xff]
  %v1399 = vld [vmem:[#allocation6 + $0x98] sm:$0xff]
  %v1400 = vld [vmem:[#allocation6 + $0xa0] sm:$0xff]
  %v1401 = vld [vmem:[#allocation6 + $0xa8] sm:$0xff]
  %v1402 = vld [vmem:[#allocation6 + $0xb0] sm:$0xff]
  %v1403 = vld [vmem:[#allocation6 + $0xb8] sm:$0xff]
  %v1404 = vld [vmem:[#allocation6 + $0xc0] sm:$0xff]
  %v1405 = vld [vmem:[#allocation6 + $0xc8] sm:$0xff]
  %v1406 = vld [vmem:[#allocation6 + $0xd0] sm:$0xff]
  %v1407 = vld [vmem:[#allocation6 + $0xd8] sm:$0xff]
  %v1408 = vld [vmem:[#allocation6 + $0xe0] sm:$0xff]
  %v1409 = vld [vmem:[#allocation6 + $0xe8] sm:$0xff]
  %v1410 = vld [vmem:[#allocation6 + $0xf0] sm:$0xff]
  %v1411 = vld [vmem:[#allocation6 + $0xf8] sm:$0xff]
  %v1412 = vld [vmem:[%s11] sm:$0x3]
  %v1414 = vperm.slane %v1412, 0
  %v1415 = vperm.slane %v1412, 1
  %v1450 = vunpack.c.l.b16 %v1380
  %v1451 = vunpack.c.h.b16 %v1380
  %v1452 = vunpack.c.l.b16 %v1381
  %v1453 = vunpack.c.h.b16 %v1381
  %v1454 = vunpack.c.l.b16 %v1382
  %v1455 = vunpack.c.h.b16 %v1382
  %v1456 = vunpack.c.l.b16 %v1383
  %v1457 = vunpack.c.h.b16 %v1383
  %v1458 = vunpack.c.l.b16 %v1384
  %v1459 = vunpack.c.h.b16 %v1384
  %v1460 = vunpack.c.l.b16 %v1385
  %v1461 = vunpack.c.h.b16 %v1385
  %v1462 = vunpack.c.l.b16 %v1386
  %v1463 = vunpack.c.h.b16 %v1386
  %v1464 = vunpack.c.l.b16 %v1387
  %v1465 = vunpack.c.h.b16 %v1387
  %v1466 = vunpack.c.l.b16 %v1388
  %v1467 = vunpack.c.h.b16 %v1388
  %v1468 = vunpack.c.l.b16 %v1389
  %v1469 = vunpack.c.h.b16 %v1389
  %v1470 = vunpack.c.l.b16 %v1390
  %v1471 = vunpack.c.h.b16 %v1390
  %v1472 = vunpack.c.l.b16 %v1391
  %v1473 = vunpack.c.h.b16 %v1391
  %v1474 = vunpack.c.l.b16 %v1392
  %v1475 = vunpack.c.h.b16 %v1392
  %v1476 = vunpack.c.l.b16 %v1393
  %v1477 = vunpack.c.h.b16 %v1393
  %v1478 = vunpack.c.l.b16 %v1394
  %v1479 = vunpack.c.h.b16 %v1394
  %v1480 = vunpack.c.l.b16 %v1395
  %v1481 = vunpack.c.h.b16 %v1395
  %v1482 = vunpack.c.l.b16 %v1396
  %v1483 = vunpack.c.h.b16 %v1396
  %v1484 = vunpack.c.l.b16 %v1397
  %v1485 = vunpack.c.h.b16 %v1397
  %v1486 = vunpack.c.l.b16 %v1398
  %v1487 = vunpack.c.h.b16 %v1398
  %v1488 = vunpack.c.l.b16 %v1399
  %v1489 = vunpack.c.h.b16 %v1399
  %v1490 = vunpack.c.l.b16 %v1400
  %v1491 = vunpack.c.h.b16 %v1400
  %v1492 = vunpack.c.l.b16 %v1401
  %v1493 = vunpack.c.h.b16 %v1401
  %v1494 = vunpack.c.l.b16 %v1402
  %v1495 = vunpack.c.h.b16 %v1402
  %v1496 = vunpack.c.l.b16 %v1403
  %v1497 = vunpack.c.h.b16 %v1403
  %v1498 = vunpack.c.l.b16 %v1404
  %v1499 = vunpack.c.h.b16 %v1404
  %v1500 = vunpack.c.l.b16 %v1405
  %v1501 = vunpack.c.h.b16 %v1405
  %v1502 = vunpack.c.l.b16 %v1406
  %v1503 = vunpack.c.h.b16 %v1406
  %v1504 = vunpack.c.l.b16 %v1407
  %v1505 = vunpack.c.h.b16 %v1407
  %v1506 = vunpack.c.l.b16 %v1408
  %v1507 = vunpack.c.h.b16 %v1408
  %v1508 = vunpack.c.l.b16 %v1409
  %v1509 = vunpack.c.h.b16 %v1409
  %v1510 = vunpack.c.l.b16 %v1410
  %v1511 = vunpack.c.h.b16 %v1410
  %v1512 = vunpack.c.l.b16 %v1411
  %v1513 = vunpack.c.h.b16 %v1411
  %v1514 = vpack.c.b16 %v1452, %v1450
  %v1515 = vpack.c.b16 %v1453, %v1451
  %v1516 = vpack.c.b16 %v1456, %v1454
  %v1517 = vpack.c.b16 %v1457, %v1455
  %v1518 = vpack.c.b16 %v1460, %v1458
  %v1519 = vpack.c.b16 %v1461, %v1459
  %v1520 = vpack.c.b16 %v1464, %v1462
  %v1521 = vpack.c.b16 %v1465, %v1463
  %v1522 = vpack.c.b16 %v1468, %v1466
  %v1523 = vpack.c.b16 %v1469, %v1467
  %v1524 = vpack.c.b16 %v1472, %v1470
  %v1525 = vpack.c.b16 %v1473, %v1471
  %v1526 = vpack.c.b16 %v1476, %v1474
  %v1527 = vpack.c.b16 %v1477, %v1475
  %v1528 = vpack.c.b16 %v1480, %v1478
  %v1529 = vpack.c.b16 %v1481, %v1479
  %v1530 = vpack.c.b16 %v1484, %v1482
  %v1531 = vpack.c.b16 %v1485, %v1483
  %v1532 = vpack.c.b16 %v1488, %v1486
  %v1533 = vpack.c.b16 %v1489, %v1487
  %v1534 = vpack.c.b16 %v1492, %v1490
  %v1535 = vpack.c.b16 %v1493, %v1491
  %v1536 = vpack.c.b16 %v1496, %v1494
  %v1537 = vpack.c.b16 %v1497, %v1495
  %v1538 = vpack.c.b16 %v1500, %v1498
  %v1539 = vpack.c.b16 %v1501, %v1499
  %v1540 = vpack.c.b16 %v1504, %v1502
  %v1541 = vpack.c.b16 %v1505, %v1503
  %v1542 = vpack.c.b16 %v1508, %v1506
  %v1543 = vpack.c.b16 %v1509, %v1507
  %v1544 = vpack.c.b16 %v1512, %v1510
  %v1545 = vpack.c.b16 %v1513, %v1511
  %1578 = vmatpush.bf16.msra.mxu0 %v1528
  %1579 = vmatpush.bf16.msra.mxu0 %v1526
  %1580 = vmatpush.bf16.msra.mxu0 %v1524
  %1581 = vmatpush.bf16.msra.mxu0 %v1522
  %1582 = vmatpush.bf16.msra.mxu0 %v1520
  %1583 = vmatpush.bf16.msra.mxu0 %v1518
  %1584 = vmatpush.bf16.msra.mxu0 %v1516
  %1585 = vmatpush.bf16.msra.mxu0 %v1514
  %1586 = vmatmul.bf16.gmra.mxu0 %v1378
  %v1587 = vpop.f32.mrf.mxu0
  %v1588 = vadd.f32 %v1414, %v1587
  %v1589 = vpop.f32.mrf.mxu0
  %v1590 = vadd.f32 %v1414, %v1589
  %1591 = vdwg.mxu0
  %1592 = vmatpush.bf16.msra.mxu0 %v1544
  %1593 = vmatpush.bf16.msra.mxu0 %v1542
  %1594 = vmatpush.bf16.msra.mxu0 %v1540
  %1595 = vmatpush.bf16.msra.mxu0 %v1538
  %1596 = vmatpush.bf16.msra.mxu0 %v1536
  %1597 = vmatpush.bf16.msra.mxu0 %v1534
  %1598 = vmatpush.bf16.msra.mxu0 %v1532
  %1599 = vmatpush.bf16.msra.mxu0 %v1530
  %1600 = vmatmul.bf16.gmra.mxu0 %v1379
  %v1601 = vpop.f32.mrf.mxu0
  %v1602 = vadd.f32 %v1588, %v1601
  %v1603 = vpop.f32.mrf.mxu0
  %v1604 = vadd.f32 %v1590, %v1603
  %1605 = vdwg.mxu0
  %1606 = vmatpush.bf16.msra.mxu0 %v1529
  %1607 = vmatpush.bf16.msra.mxu0 %v1527
  %1608 = vmatpush.bf16.msra.mxu0 %v1525
  %1609 = vmatpush.bf16.msra.mxu0 %v1523
  %1610 = vmatpush.bf16.msra.mxu0 %v1521
  %1611 = vmatpush.bf16.msra.mxu0 %v1519
  %1612 = vmatpush.bf16.msra.mxu0 %v1517
  %1613 = vmatpush.bf16.msra.mxu0 %v1515
  %1614 = vmatmul.bf16.gmra.mxu0 %v1378
  %v1615 = vpop.f32.mrf.mxu0
  %v1616 = vadd.f32 %v1415, %v1615
  %v1617 = vpop.f32.mrf.mxu0
  %v1618 = vadd.f32 %v1415, %v1617
  %1619 = vdwg.mxu0
  %1620 = vmatpush.bf16.msra.mxu0 %v1545
  %1621 = vmatpush.bf16.msra.mxu0 %v1543
  %1622 = vmatpush.bf16.msra.mxu0 %v1541
  %1623 = vmatpush.bf16.msra.mxu0 %v1539
  %1624 = vmatpush.bf16.msra.mxu0 %v1537
  %1625 = vmatpush.bf16.msra.mxu0 %v1535
  %1626 = vmatpush.bf16.msra.mxu0 %v1533
  %1627 = vmatpush.bf16.msra.mxu0 %v1531
  %1628 = vmatmul.bf16.gmra.mxu0 %v1379
  %v1629 = vpop.f32.mrf.mxu0
  %v1630 = vadd.f32 %v1616, %v1629
  %v1631 = vpop.f32.mrf.mxu0
  %v1632 = vadd.f32 %v1618, %v1631
  %1633 = vdwg.mxu0
  %v1634 = vadd.f32 %v1602, %v1068
  %v1635 = vadd.f32 %v1630, %v1069
  %v1636 = vadd.f32 %v1604, %v1070
  %v1637 = vadd.f32 %v1632, %v1071
  %v1638 = vmax.f32 %v1634, 0.0
  %v1639 = vmax.f32 %v1635, 0.0
  %v1640 = vmax.f32 %v1636, 0.0
  %v1641 = vmax.f32 %v1637, 0.0
  %s1642 = scalar_lea.sflag [#allocation23], 8
  // Predicated region
  $region122: #{image_inertial_encoder_forward.1} parent=0 // pred_check
    _
  $region123: #{image_inertial_encoder_forward.1} parent=0 // pred_check_branch
    %1644 = sbr.rel target = $region125
  $region124: #{image_inertial_encoder_forward.1} parent=0 // pred_region
    %1645 = sst [smem:[#allocation26]] [#allocation43]
    %1646 = sst [smem:[#allocation27]] [#allocation42]
  $region125: #{image_inertial_encoder_forward.1} parent=0 // pred_fallthru
    _
  %1648 = shalt.err (0)
  %s1650 = sshll.u32 %s61, 4
  %s1651 = int_to_ptr.hbm [resolvable:$true] %s1650
  %s1652 = sshll.u32 [#allocation10], 4
  %s1653 = int_to_ptr.vmem [resolvable:$true] %s1652
  %1655 = dma.hbm_to_vmem [thread:$0]  %s1651, 4096, %s1653, %s1642
  %s1656 = scalar_lea.sflag [#allocation23], 9
  // Predicated region
  $region126: #{image_inertial_encoder_forward.1} parent=0 // pred_check
    _
  $region127: #{image_inertial_encoder_forward.1} parent=0 // pred_check_branch
    %1658 = sbr.rel target = $region129
  $region128: #{image_inertial_encoder_forward.1} parent=0 // pred_region
    %1659 = sst [smem:[#allocation26]] [#allocation45]
    %1660 = sst [smem:[#allocation27]] [#allocation44]
  $region129: #{image_inertial_encoder_forward.1} parent=0 // pred_fallthru
    _
  %1662 = shalt.err (0)
  %s1664 = sshll.u32 %s63, 4
  %s1665 = int_to_ptr.hbm [resolvable:$true] %s1664
  %s1666 = sshll.u32 [#allocation11], 4
  %s1667 = int_to_ptr.vmem [resolvable:$true] %s1666
  %1669 = dma.hbm_to_vmem [thread:$0]  %s1665, 4096, %s1667, %s1656
  %s1670 = sshll.u32 %s543, 4
  %1671 = dma.done %s1072, %s1670
  %s1672 = sshll.u32 %s543, 4
  %1673 = dma.done %s1086, %s1672
  %s1674 = sshll.u32 %s543, 4
  %1675 = dma.done %s1100, %s1674
  %v1676 = vpack.c.bf16 %v1640, %v1638
  %v1677 = vpack.c.bf16 %v1641, %v1639
  %v1678 = vld [vmem:[#allocation9] sm:$0xff]
  %v1679 = vld [vmem:[#allocation9 + $0x8] sm:$0xff]
  %v1680 = vld [vmem:[#allocation9 + $0x10] sm:$0xff]
  %v1681 = vld [vmem:[#allocation9 + $0x18] sm:$0xff]
  %v1682 = vld [vmem:[#allocation9 + $0x20] sm:$0xff]
  %v1683 = vld [vmem:[#allocation9 + $0x28] sm:$0xff]
  %v1684 = vld [vmem:[#allocation9 + $0x30] sm:$0xff]
  %v1685 = vld [vmem:[#allocation9 + $0x38] sm:$0xff]
  %v1686 = vld [vmem:[#allocation9 + $0x40] sm:$0xff]
  %v1687 = vld [vmem:[#allocation9 + $0x48] sm:$0xff]
  %v1688 = vld [vmem:[#allocation9 + $0x50] sm:$0xff]
  %v1689 = vld [vmem:[#allocation9 + $0x58] sm:$0xff]
  %v1690 = vld [vmem:[#allocation9 + $0x60] sm:$0xff]
  %v1691 = vld [vmem:[#allocation9 + $0x68] sm:$0xff]
  %v1692 = vld [vmem:[#allocation9 + $0x70] sm:$0xff]
  %v1693 = vld [vmem:[#allocation9 + $0x78] sm:$0xff]
  %v1694 = vld [vmem:[#allocation9 + $0x80] sm:$0xff]
  %v1695 = vld [vmem:[#allocation9 + $0x88] sm:$0xff]
  %v1696 = vld [vmem:[#allocation9 + $0x90] sm:$0xff]
  %v1697 = vld [vmem:[#allocation9 + $0x98] sm:$0xff]
  %v1698 = vld [vmem:[#allocation9 + $0xa0] sm:$0xff]
  %v1699 = vld [vmem:[#allocation9 + $0xa8] sm:$0xff]
  %v1700 = vld [vmem:[#allocation9 + $0xb0] sm:$0xff]
  %v1701 = vld [vmem:[#allocation9 + $0xb8] sm:$0xff]
  %v1702 = vld [vmem:[#allocation9 + $0xc0] sm:$0xff]
  %v1703 = vld [vmem:[#allocation9 + $0xc8] sm:$0xff]
  %v1704 = vld [vmem:[#allocation9 + $0xd0] sm:$0xff]
  %v1705 = vld [vmem:[#allocation9 + $0xd8] sm:$0xff]
  %v1706 = vld [vmem:[#allocation9 + $0xe0] sm:$0xff]
  %v1707 = vld [vmem:[#allocation9 + $0xe8] sm:$0xff]
  %v1708 = vld [vmem:[#allocation9 + $0xf0] sm:$0xff]
  %v1709 = vld [vmem:[#allocation9 + $0xf8] sm:$0xff]
  %v1710 = vld [vmem:[%s17] sm:$0x3]
  %v1712 = vperm.slane %v1710, 0
  %v1713 = vperm.slane %v1710, 1
  %v1748 = vunpack.c.l.b16 %v1678
  %v1749 = vunpack.c.h.b16 %v1678
  %v1750 = vunpack.c.l.b16 %v1679
  %v1751 = vunpack.c.h.b16 %v1679
  %v1752 = vunpack.c.l.b16 %v1680
  %v1753 = vunpack.c.h.b16 %v1680
  %v1754 = vunpack.c.l.b16 %v1681
  %v1755 = vunpack.c.h.b16 %v1681
  %v1756 = vunpack.c.l.b16 %v1682
  %v1757 = vunpack.c.h.b16 %v1682
  %v1758 = vunpack.c.l.b16 %v1683
  %v1759 = vunpack.c.h.b16 %v1683
  %v1760 = vunpack.c.l.b16 %v1684
  %v1761 = vunpack.c.h.b16 %v1684
  %v1762 = vunpack.c.l.b16 %v1685
  %v1763 = vunpack.c.h.b16 %v1685
  %v1764 = vunpack.c.l.b16 %v1686
  %v1765 = vunpack.c.h.b16 %v1686
  %v1766 = vunpack.c.l.b16 %v1687
  %v1767 = vunpack.c.h.b16 %v1687
  %v1768 = vunpack.c.l.b16 %v1688
  %v1769 = vunpack.c.h.b16 %v1688
  %v1770 = vunpack.c.l.b16 %v1689
  %v1771 = vunpack.c.h.b16 %v1689
  %v1772 = vunpack.c.l.b16 %v1690
  %v1773 = vunpack.c.h.b16 %v1690
  %v1774 = vunpack.c.l.b16 %v1691
  %v1775 = vunpack.c.h.b16 %v1691
  %v1776 = vunpack.c.l.b16 %v1692
  %v1777 = vunpack.c.h.b16 %v1692
  %v1778 = vunpack.c.l.b16 %v1693
  %v1779 = vunpack.c.h.b16 %v1693
  %v1780 = vunpack.c.l.b16 %v1694
  %v1781 = vunpack.c.h.b16 %v1694
  %v1782 = vunpack.c.l.b16 %v1695
  %v1783 = vunpack.c.h.b16 %v1695
  %v1784 = vunpack.c.l.b16 %v1696
  %v1785 = vunpack.c.h.b16 %v1696
  %v1786 = vunpack.c.l.b16 %v1697
  %v1787 = vunpack.c.h.b16 %v1697
  %v1788 = vunpack.c.l.b16 %v1698
  %v1789 = vunpack.c.h.b16 %v1698
  %v1790 = vunpack.c.l.b16 %v1699
  %v1791 = vunpack.c.h.b16 %v1699
  %v1792 = vunpack.c.l.b16 %v1700
  %v1793 = vunpack.c.h.b16 %v1700
  %v1794 = vunpack.c.l.b16 %v1701
  %v1795 = vunpack.c.h.b16 %v1701
  %v1796 = vunpack.c.l.b16 %v1702
  %v1797 = vunpack.c.h.b16 %v1702
  %v1798 = vunpack.c.l.b16 %v1703
  %v1799 = vunpack.c.h.b16 %v1703
  %v1800 = vunpack.c.l.b16 %v1704
  %v1801 = vunpack.c.h.b16 %v1704
  %v1802 = vunpack.c.l.b16 %v1705
  %v1803 = vunpack.c.h.b16 %v1705
  %v1804 = vunpack.c.l.b16 %v1706
  %v1805 = vunpack.c.h.b16 %v1706
  %v1806 = vunpack.c.l.b16 %v1707
  %v1807 = vunpack.c.h.b16 %v1707
  %v1808 = vunpack.c.l.b16 %v1708
  %v1809 = vunpack.c.h.b16 %v1708
  %v1810 = vunpack.c.l.b16 %v1709
  %v1811 = vunpack.c.h.b16 %v1709
  %v1812 = vpack.c.b16 %v1750, %v1748
  %v1813 = vpack.c.b16 %v1751, %v1749
  %v1814 = vpack.c.b16 %v1754, %v1752
  %v1815 = vpack.c.b16 %v1755, %v1753
  %v1816 = vpack.c.b16 %v1758, %v1756
  %v1817 = vpack.c.b16 %v1759, %v1757
  %v1818 = vpack.c.b16 %v1762, %v1760
  %v1819 = vpack.c.b16 %v1763, %v1761
  %v1820 = vpack.c.b16 %v1766, %v1764
  %v1821 = vpack.c.b16 %v1767, %v1765
  %v1822 = vpack.c.b16 %v1770, %v1768
  %v1823 = vpack.c.b16 %v1771, %v1769
  %v1824 = vpack.c.b16 %v1774, %v1772
  %v1825 = vpack.c.b16 %v1775, %v1773
  %v1826 = vpack.c.b16 %v1778, %v1776
  %v1827 = vpack.c.b16 %v1779, %v1777
  %v1828 = vpack.c.b16 %v1782, %v1780
  %v1829 = vpack.c.b16 %v1783, %v1781
  %v1830 = vpack.c.b16 %v1786, %v1784
  %v1831 = vpack.c.b16 %v1787, %v1785
  %v1832 = vpack.c.b16 %v1790, %v1788
  %v1833 = vpack.c.b16 %v1791, %v1789
  %v1834 = vpack.c.b16 %v1794, %v1792
  %v1835 = vpack.c.b16 %v1795, %v1793
  %v1836 = vpack.c.b16 %v1798, %v1796
  %v1837 = vpack.c.b16 %v1799, %v1797
  %v1838 = vpack.c.b16 %v1802, %v1800
  %v1839 = vpack.c.b16 %v1803, %v1801
  %v1840 = vpack.c.b16 %v1806, %v1804
  %v1841 = vpack.c.b16 %v1807, %v1805
  %v1842 = vpack.c.b16 %v1810, %v1808
  %v1843 = vpack.c.b16 %v1811, %v1809
  %1876 = vmatpush.bf16.msra.mxu0 %v1826
  %1877 = vmatpush.bf16.msra.mxu0 %v1824
  %1878 = vmatpush.bf16.msra.mxu0 %v1822
  %1879 = vmatpush.bf16.msra.mxu0 %v1820
  %1880 = vmatpush.bf16.msra.mxu0 %v1818
  %1881 = vmatpush.bf16.msra.mxu0 %v1816
  %1882 = vmatpush.bf16.msra.mxu0 %v1814
  %1883 = vmatpush.bf16.msra.mxu0 %v1812
  %1884 = vmatmul.bf16.gmra.mxu0 %v1676
  %v1885 = vpop.f32.mrf.mxu0
  %v1886 = vadd.f32 %v1712, %v1885
  %v1887 = vpop.f32.mrf.mxu0
  %v1888 = vadd.f32 %v1712, %v1887
  %1889 = vdwg.mxu0
  %1890 = vmatpush.bf16.msra.mxu0 %v1842
  %1891 = vmatpush.bf16.msra.mxu0 %v1840
  %1892 = vmatpush.bf16.msra.mxu0 %v1838
  %1893 = vmatpush.bf16.msra.mxu0 %v1836
  %1894 = vmatpush.bf16.msra.mxu0 %v1834
  %1895 = vmatpush.bf16.msra.mxu0 %v1832
  %1896 = vmatpush.bf16.msra.mxu0 %v1830
  %1897 = vmatpush.bf16.msra.mxu0 %v1828
  %1898 = vmatmul.bf16.gmra.mxu0 %v1677
  %v1899 = vpop.f32.mrf.mxu0
  %v1900 = vadd.f32 %v1886, %v1899
  %v1901 = vpop.f32.mrf.mxu0
  %v1902 = vadd.f32 %v1888, %v1901
  %1903 = vdwg.mxu0
  %1904 = vmatpush.bf16.msra.mxu0 %v1827
  %1905 = vmatpush.bf16.msra.mxu0 %v1825
  %1906 = vmatpush.bf16.msra.mxu0 %v1823
  %1907 = vmatpush.bf16.msra.mxu0 %v1821
  %1908 = vmatpush.bf16.msra.mxu0 %v1819
  %1909 = vmatpush.bf16.msra.mxu0 %v1817
  %1910 = vmatpush.bf16.msra.mxu0 %v1815
  %1911 = vmatpush.bf16.msra.mxu0 %v1813
  %1912 = vmatmul.bf16.gmra.mxu0 %v1676
  %v1913 = vpop.f32.mrf.mxu0
  %v1914 = vadd.f32 %v1713, %v1913
  %v1915 = vpop.f32.mrf.mxu0
  %v1916 = vadd.f32 %v1713, %v1915
  %1917 = vdwg.mxu0
  %1918 = vmatpush.bf16.msra.mxu0 %v1843
  %1919 = vmatpush.bf16.msra.mxu0 %v1841
  %1920 = vmatpush.bf16.msra.mxu0 %v1839
  %1921 = vmatpush.bf16.msra.mxu0 %v1837
  %1922 = vmatpush.bf16.msra.mxu0 %v1835
  %1923 = vmatpush.bf16.msra.mxu0 %v1833
  %1924 = vmatpush.bf16.msra.mxu0 %v1831
  %1925 = vmatpush.bf16.msra.mxu0 %v1829
  %1926 = vmatmul.bf16.gmra.mxu0 %v1677
  %v1927 = vpop.f32.mrf.mxu0
  %v1928 = vadd.f32 %v1914, %v1927
  %v1929 = vpop.f32.mrf.mxu0
  %v1930 = vadd.f32 %v1916, %v1929
  %1931 = vdwg.mxu0
  %v1932 = vld [vmem:[#allocation7] sm:$0xff]
  %v1933 = vld [vmem:[#allocation7 + $0x8] sm:$0xff]
  %v1934 = vld [vmem:[#allocation7 + $0x10] sm:$0xff]
  %v1935 = vld [vmem:[#allocation7 + $0x18] sm:$0xff]
  %v1936 = vld [vmem:[#allocation7 + $0x20] sm:$0xff]
  %v1937 = vld [vmem:[#allocation7 + $0x28] sm:$0xff]
  %v1938 = vld [vmem:[#allocation7 + $0x30] sm:$0xff]
  %v1939 = vld [vmem:[#allocation7 + $0x38] sm:$0xff]
  %v1940 = vld [vmem:[#allocation7 + $0x40] sm:$0xff]
  %v1941 = vld [vmem:[#allocation7 + $0x48] sm:$0xff]
  %v1942 = vld [vmem:[#allocation7 + $0x50] sm:$0xff]
  %v1943 = vld [vmem:[#allocation7 + $0x58] sm:$0xff]
  %v1944 = vld [vmem:[#allocation7 + $0x60] sm:$0xff]
  %v1945 = vld [vmem:[#allocation7 + $0x68] sm:$0xff]
  %v1946 = vld [vmem:[#allocation7 + $0x70] sm:$0xff]
  %v1947 = vld [vmem:[#allocation7 + $0x78] sm:$0xff]
  %v1948 = vld [vmem:[#allocation7 + $0x80] sm:$0xff]
  %v1949 = vld [vmem:[#allocation7 + $0x88] sm:$0xff]
  %v1950 = vld [vmem:[#allocation7 + $0x90] sm:$0xff]
  %v1951 = vld [vmem:[#allocation7 + $0x98] sm:$0xff]
  %v1952 = vld [vmem:[#allocation7 + $0xa0] sm:$0xff]
  %v1953 = vld [vmem:[#allocation7 + $0xa8] sm:$0xff]
  %v1954 = vld [vmem:[#allocation7 + $0xb0] sm:$0xff]
  %v1955 = vld [vmem:[#allocation7 + $0xb8] sm:$0xff]
  %v1956 = vld [vmem:[#allocation7 + $0xc0] sm:$0xff]
  %v1957 = vld [vmem:[#allocation7 + $0xc8] sm:$0xff]
  %v1958 = vld [vmem:[#allocation7 + $0xd0] sm:$0xff]
  %v1959 = vld [vmem:[#allocation7 + $0xd8] sm:$0xff]
  %v1960 = vld [vmem:[#allocation7 + $0xe0] sm:$0xff]
  %v1961 = vld [vmem:[#allocation7 + $0xe8] sm:$0xff]
  %v1962 = vld [vmem:[#allocation7 + $0xf0] sm:$0xff]
  %v1963 = vld [vmem:[#allocation7 + $0xf8] sm:$0xff]
  %v1964 = vld [vmem:[%s13] sm:$0x3]
  %v1966 = vperm.slane %v1964, 0
  %v1967 = vperm.slane %v1964, 1
  %v2002 = vunpack.c.l.b16 %v1932
  %v2003 = vunpack.c.h.b16 %v1932
  %v2004 = vunpack.c.l.b16 %v1933
  %v2005 = vunpack.c.h.b16 %v1933
  %v2006 = vunpack.c.l.b16 %v1934
  %v2007 = vunpack.c.h.b16 %v1934
  %v2008 = vunpack.c.l.b16 %v1935
  %v2009 = vunpack.c.h.b16 %v1935
  %v2010 = vunpack.c.l.b16 %v1936
  %v2011 = vunpack.c.h.b16 %v1936
  %v2012 = vunpack.c.l.b16 %v1937
  %v2013 = vunpack.c.h.b16 %v1937
  %v2014 = vunpack.c.l.b16 %v1938
  %v2015 = vunpack.c.h.b16 %v1938
  %v2016 = vunpack.c.l.b16 %v1939
  %v2017 = vunpack.c.h.b16 %v1939
  %v2018 = vunpack.c.l.b16 %v1940
  %v2019 = vunpack.c.h.b16 %v1940
  %v2020 = vunpack.c.l.b16 %v1941
  %v2021 = vunpack.c.h.b16 %v1941
  %v2022 = vunpack.c.l.b16 %v1942
  %v2023 = vunpack.c.h.b16 %v1942
  %v2024 = vunpack.c.l.b16 %v1943
  %v2025 = vunpack.c.h.b16 %v1943
  %v2026 = vunpack.c.l.b16 %v1944
  %v2027 = vunpack.c.h.b16 %v1944
  %v2028 = vunpack.c.l.b16 %v1945
  %v2029 = vunpack.c.h.b16 %v1945
  %v2030 = vunpack.c.l.b16 %v1946
  %v2031 = vunpack.c.h.b16 %v1946
  %v2032 = vunpack.c.l.b16 %v1947
  %v2033 = vunpack.c.h.b16 %v1947
  %v2034 = vunpack.c.l.b16 %v1948
  %v2035 = vunpack.c.h.b16 %v1948
  %v2036 = vunpack.c.l.b16 %v1949
  %v2037 = vunpack.c.h.b16 %v1949
  %v2038 = vunpack.c.l.b16 %v1950
  %v2039 = vunpack.c.h.b16 %v1950
  %v2040 = vunpack.c.l.b16 %v1951
  %v2041 = vunpack.c.h.b16 %v1951
  %v2042 = vunpack.c.l.b16 %v1952
  %v2043 = vunpack.c.h.b16 %v1952
  %v2044 = vunpack.c.l.b16 %v1953
  %v2045 = vunpack.c.h.b16 %v1953
  %v2046 = vunpack.c.l.b16 %v1954
  %v2047 = vunpack.c.h.b16 %v1954
  %v2048 = vunpack.c.l.b16 %v1955
  %v2049 = vunpack.c.h.b16 %v1955
  %v2050 = vunpack.c.l.b16 %v1956
  %v2051 = vunpack.c.h.b16 %v1956
  %v2052 = vunpack.c.l.b16 %v1957
  %v2053 = vunpack.c.h.b16 %v1957
  %v2054 = vunpack.c.l.b16 %v1958
  %v2055 = vunpack.c.h.b16 %v1958
  %v2056 = vunpack.c.l.b16 %v1959
  %v2057 = vunpack.c.h.b16 %v1959
  %v2058 = vunpack.c.l.b16 %v1960
  %v2059 = vunpack.c.h.b16 %v1960
  %v2060 = vunpack.c.l.b16 %v1961
  %v2061 = vunpack.c.h.b16 %v1961
  %v2062 = vunpack.c.l.b16 %v1962
  %v2063 = vunpack.c.h.b16 %v1962
  %v2064 = vunpack.c.l.b16 %v1963
  %v2065 = vunpack.c.h.b16 %v1963
  %v2066 = vpack.c.b16 %v2004, %v2002
  %v2067 = vpack.c.b16 %v2005, %v2003
  %v2068 = vpack.c.b16 %v2008, %v2006
  %v2069 = vpack.c.b16 %v2009, %v2007
  %v2070 = vpack.c.b16 %v2012, %v2010
  %v2071 = vpack.c.b16 %v2013, %v2011
  %v2072 = vpack.c.b16 %v2016, %v2014
  %v2073 = vpack.c.b16 %v2017, %v2015
  %v2074 = vpack.c.b16 %v2020, %v2018
  %v2075 = vpack.c.b16 %v2021, %v2019
  %v2076 = vpack.c.b16 %v2024, %v2022
  %v2077 = vpack.c.b16 %v2025, %v2023
  %v2078 = vpack.c.b16 %v2028, %v2026
  %v2079 = vpack.c.b16 %v2029, %v2027
  %v2080 = vpack.c.b16 %v2032, %v2030
  %v2081 = vpack.c.b16 %v2033, %v2031
  %v2082 = vpack.c.b16 %v2036, %v2034
  %v2083 = vpack.c.b16 %v2037, %v2035
  %v2084 = vpack.c.b16 %v2040, %v2038
  %v2085 = vpack.c.b16 %v2041, %v2039
  %v2086 = vpack.c.b16 %v2044, %v2042
  %v2087 = vpack.c.b16 %v2045, %v2043
  %v2088 = vpack.c.b16 %v2048, %v2046
  %v2089 = vpack.c.b16 %v2049, %v2047
  %v2090 = vpack.c.b16 %v2052, %v2050
  %v2091 = vpack.c.b16 %v2053, %v2051
  %v2092 = vpack.c.b16 %v2056, %v2054
  %v2093 = vpack.c.b16 %v2057, %v2055
  %v2094 = vpack.c.b16 %v2060, %v2058
  %v2095 = vpack.c.b16 %v2061, %v2059
  %v2096 = vpack.c.b16 %v2064, %v2062
  %v2097 = vpack.c.b16 %v2065, %v2063
  %2130 = vmatpush.bf16.msra.mxu0 %v2080
  %2131 = vmatpush.bf16.msra.mxu0 %v2078
  %2132 = vmatpush.bf16.msra.mxu0 %v2076
  %2133 = vmatpush.bf16.msra.mxu0 %v2074
  %2134 = vmatpush.bf16.msra.mxu0 %v2072
  %2135 = vmatpush.bf16.msra.mxu0 %v2070
  %2136 = vmatpush.bf16.msra.mxu0 %v2068
  %2137 = vmatpush.bf16.msra.mxu0 %v2066
  %2138 = vmatmul.bf16.gmra.mxu0 %v1676
  %v2139 = vpop.f32.mrf.mxu0
  %v2140 = vadd.f32 %v1966, %v2139
  %v2141 = vpop.f32.mrf.mxu0
  %v2142 = vadd.f32 %v1966, %v2141
  %2143 = vdwg.mxu0
  %2144 = vmatpush.bf16.msra.mxu0 %v2096
  %2145 = vmatpush.bf16.msra.mxu0 %v2094
  %2146 = vmatpush.bf16.msra.mxu0 %v2092
  %2147 = vmatpush.bf16.msra.mxu0 %v2090
  %2148 = vmatpush.bf16.msra.mxu0 %v2088
  %2149 = vmatpush.bf16.msra.mxu0 %v2086
  %2150 = vmatpush.bf16.msra.mxu0 %v2084
  %2151 = vmatpush.bf16.msra.mxu0 %v2082
  %2152 = vmatmul.bf16.gmra.mxu0 %v1677
  %v2153 = vpop.f32.mrf.mxu0
  %v2154 = vadd.f32 %v2140, %v2153
  %v2155 = vpop.f32.mrf.mxu0
  %v2156 = vadd.f32 %v2142, %v2155
  %2157 = vdwg.mxu0
  %2158 = vmatpush.bf16.msra.mxu0 %v2081
  %2159 = vmatpush.bf16.msra.mxu0 %v2079
  %2160 = vmatpush.bf16.msra.mxu0 %v2077
  %2161 = vmatpush.bf16.msra.mxu0 %v2075
  %2162 = vmatpush.bf16.msra.mxu0 %v2073
  %2163 = vmatpush.bf16.msra.mxu0 %v2071
  %2164 = vmatpush.bf16.msra.mxu0 %v2069
  %2165 = vmatpush.bf16.msra.mxu0 %v2067
  %2166 = vmatmul.bf16.gmra.mxu0 %v1676
  %v2167 = vpop.f32.mrf.mxu0
  %v2168 = vadd.f32 %v1967, %v2167
  %v2169 = vpop.f32.mrf.mxu0
  %v2170 = vadd.f32 %v1967, %v2169
  %2171 = vdwg.mxu0
  %2172 = vmatpush.bf16.msra.mxu0 %v2097
  %2173 = vmatpush.bf16.msra.mxu0 %v2095
  %2174 = vmatpush.bf16.msra.mxu0 %v2093
  %2175 = vmatpush.bf16.msra.mxu0 %v2091
  %2176 = vmatpush.bf16.msra.mxu0 %v2089
  %2177 = vmatpush.bf16.msra.mxu0 %v2087
  %2178 = vmatpush.bf16.msra.mxu0 %v2085
  %2179 = vmatpush.bf16.msra.mxu0 %v2083
  %2180 = vmatmul.bf16.gmra.mxu0 %v1677
  %v2181 = vpop.f32.mrf.mxu0
  %v2182 = vadd.f32 %v2168, %v2181
  %v2183 = vpop.f32.mrf.mxu0
  %v2184 = vadd.f32 %v2170, %v2183
  %2185 = vdwg.mxu0
  %v2186 = vmax.f32 %v2154, 0.0
  %v2187 = vmax.f32 %v2182, 0.0
  %v2188 = vmax.f32 %v2156, 0.0
  %v2189 = vmax.f32 %v2184, 0.0
  %v2190 = vpack.c.bf16 %v2188, %v2186
  %v2191 = vpack.c.bf16 %v2189, %v2187
  %v2192 = vld [vmem:[#allocation8] sm:$0xff]
  %v2193 = vld [vmem:[#allocation8 + $0x8] sm:$0xff]
  %v2194 = vld [vmem:[#allocation8 + $0x10] sm:$0xff]
  %v2195 = vld [vmem:[#allocation8 + $0x18] sm:$0xff]
  %v2196 = vld [vmem:[#allocation8 + $0x20] sm:$0xff]
  %v2197 = vld [vmem:[#allocation8 + $0x28] sm:$0xff]
  %v2198 = vld [vmem:[#allocation8 + $0x30] sm:$0xff]
  %v2199 = vld [vmem:[#allocation8 + $0x38] sm:$0xff]
  %v2200 = vld [vmem:[#allocation8 + $0x40] sm:$0xff]
  %v2201 = vld [vmem:[#allocation8 + $0x48] sm:$0xff]
  %v2202 = vld [vmem:[#allocation8 + $0x50] sm:$0xff]
  %v2203 = vld [vmem:[#allocation8 + $0x58] sm:$0xff]
  %v2204 = vld [vmem:[#allocation8 + $0x60] sm:$0xff]
  %v2205 = vld [vmem:[#allocation8 + $0x68] sm:$0xff]
  %v2206 = vld [vmem:[#allocation8 + $0x70] sm:$0xff]
  %v2207 = vld [vmem:[#allocation8 + $0x78] sm:$0xff]
  %v2208 = vld [vmem:[#allocation8 + $0x80] sm:$0xff]
  %v2209 = vld [vmem:[#allocation8 + $0x88] sm:$0xff]
  %v2210 = vld [vmem:[#allocation8 + $0x90] sm:$0xff]
  %v2211 = vld [vmem:[#allocation8 + $0x98] sm:$0xff]
  %v2212 = vld [vmem:[#allocation8 + $0xa0] sm:$0xff]
  %v2213 = vld [vmem:[#allocation8 + $0xa8] sm:$0xff]
  %v2214 = vld [vmem:[#allocation8 + $0xb0] sm:$0xff]
  %v2215 = vld [vmem:[#allocation8 + $0xb8] sm:$0xff]
  %v2216 = vld [vmem:[#allocation8 + $0xc0] sm:$0xff]
  %v2217 = vld [vmem:[#allocation8 + $0xc8] sm:$0xff]
  %v2218 = vld [vmem:[#allocation8 + $0xd0] sm:$0xff]
  %v2219 = vld [vmem:[#allocation8 + $0xd8] sm:$0xff]
  %v2220 = vld [vmem:[#allocation8 + $0xe0] sm:$0xff]
  %v2221 = vld [vmem:[#allocation8 + $0xe8] sm:$0xff]
  %v2222 = vld [vmem:[#allocation8 + $0xf0] sm:$0xff]
  %v2223 = vld [vmem:[#allocation8 + $0xf8] sm:$0xff]
  %v2224 = vld [vmem:[%s15] sm:$0x3]
  %v2226 = vperm.slane %v2224, 0
  %v2227 = vperm.slane %v2224, 1
  %v2262 = vunpack.c.l.b16 %v2192
  %v2263 = vunpack.c.h.b16 %v2192
  %v2264 = vunpack.c.l.b16 %v2193
  %v2265 = vunpack.c.h.b16 %v2193
  %v2266 = vunpack.c.l.b16 %v2194
  %v2267 = vunpack.c.h.b16 %v2194
  %v2268 = vunpack.c.l.b16 %v2195
  %v2269 = vunpack.c.h.b16 %v2195
  %v2270 = vunpack.c.l.b16 %v2196
  %v2271 = vunpack.c.h.b16 %v2196
  %v2272 = vunpack.c.l.b16 %v2197
  %v2273 = vunpack.c.h.b16 %v2197
  %v2274 = vunpack.c.l.b16 %v2198
  %v2275 = vunpack.c.h.b16 %v2198
  %v2276 = vunpack.c.l.b16 %v2199
  %v2277 = vunpack.c.h.b16 %v2199
  %v2278 = vunpack.c.l.b16 %v2200
  %v2279 = vunpack.c.h.b16 %v2200
  %v2280 = vunpack.c.l.b16 %v2201
  %v2281 = vunpack.c.h.b16 %v2201
  %v2282 = vunpack.c.l.b16 %v2202
  %v2283 = vunpack.c.h.b16 %v2202
  %v2284 = vunpack.c.l.b16 %v2203
  %v2285 = vunpack.c.h.b16 %v2203
  %v2286 = vunpack.c.l.b16 %v2204
  %v2287 = vunpack.c.h.b16 %v2204
  %v2288 = vunpack.c.l.b16 %v2205
  %v2289 = vunpack.c.h.b16 %v2205
  %v2290 = vunpack.c.l.b16 %v2206
  %v2291 = vunpack.c.h.b16 %v2206
  %v2292 = vunpack.c.l.b16 %v2207
  %v2293 = vunpack.c.h.b16 %v2207
  %v2294 = vunpack.c.l.b16 %v2208
  %v2295 = vunpack.c.h.b16 %v2208
  %v2296 = vunpack.c.l.b16 %v2209
  %v2297 = vunpack.c.h.b16 %v2209
  %v2298 = vunpack.c.l.b16 %v2210
  %v2299 = vunpack.c.h.b16 %v2210
  %v2300 = vunpack.c.l.b16 %v2211
  %v2301 = vunpack.c.h.b16 %v2211
  %v2302 = vunpack.c.l.b16 %v2212
  %v2303 = vunpack.c.h.b16 %v2212
  %v2304 = vunpack.c.l.b16 %v2213
  %v2305 = vunpack.c.h.b16 %v2213
  %v2306 = vunpack.c.l.b16 %v2214
  %v2307 = vunpack.c.h.b16 %v2214
  %v2308 = vunpack.c.l.b16 %v2215
  %v2309 = vunpack.c.h.b16 %v2215
  %v2310 = vunpack.c.l.b16 %v2216
  %v2311 = vunpack.c.h.b16 %v2216
  %v2312 = vunpack.c.l.b16 %v2217
  %v2313 = vunpack.c.h.b16 %v2217
  %v2314 = vunpack.c.l.b16 %v2218
  %v2315 = vunpack.c.h.b16 %v2218
  %v2316 = vunpack.c.l.b16 %v2219
  %v2317 = vunpack.c.h.b16 %v2219
  %v2318 = vunpack.c.l.b16 %v2220
  %v2319 = vunpack.c.h.b16 %v2220
  %v2320 = vunpack.c.l.b16 %v2221
  %v2321 = vunpack.c.h.b16 %v2221
  %v2322 = vunpack.c.l.b16 %v2222
  %v2323 = vunpack.c.h.b16 %v2222
  %v2324 = vunpack.c.l.b16 %v2223
  %v2325 = vunpack.c.h.b16 %v2223
  %v2326 = vpack.c.b16 %v2264, %v2262
  %v2327 = vpack.c.b16 %v2265, %v2263
  %v2328 = vpack.c.b16 %v2268, %v2266
  %v2329 = vpack.c.b16 %v2269, %v2267
  %v2330 = vpack.c.b16 %v2272, %v2270
  %v2331 = vpack.c.b16 %v2273, %v2271
  %v2332 = vpack.c.b16 %v2276, %v2274
  %v2333 = vpack.c.b16 %v2277, %v2275
  %v2334 = vpack.c.b16 %v2280, %v2278
  %v2335 = vpack.c.b16 %v2281, %v2279
  %v2336 = vpack.c.b16 %v2284, %v2282
  %v2337 = vpack.c.b16 %v2285, %v2283
  %v2338 = vpack.c.b16 %v2288, %v2286
  %v2339 = vpack.c.b16 %v2289, %v2287
  %v2340 = vpack.c.b16 %v2292, %v2290
  %v2341 = vpack.c.b16 %v2293, %v2291
  %v2342 = vpack.c.b16 %v2296, %v2294
  %v2343 = vpack.c.b16 %v2297, %v2295
  %v2344 = vpack.c.b16 %v2300, %v2298
  %v2345 = vpack.c.b16 %v2301, %v2299
  %v2346 = vpack.c.b16 %v2304, %v2302
  %v2347 = vpack.c.b16 %v2305, %v2303
  %v2348 = vpack.c.b16 %v2308, %v2306
  %v2349 = vpack.c.b16 %v2309, %v2307
  %v2350 = vpack.c.b16 %v2312, %v2310
  %v2351 = vpack.c.b16 %v2313, %v2311
  %v2352 = vpack.c.b16 %v2316, %v2314
  %v2353 = vpack.c.b16 %v2317, %v2315
  %v2354 = vpack.c.b16 %v2320, %v2318
  %v2355 = vpack.c.b16 %v2321, %v2319
  %v2356 = vpack.c.b16 %v2324, %v2322
  %v2357 = vpack.c.b16 %v2325, %v2323
  %2390 = vmatpush.bf16.msra.mxu0 %v2340
  %2391 = vmatpush.bf16.msra.mxu0 %v2338
  %2392 = vmatpush.bf16.msra.mxu0 %v2336
  %2393 = vmatpush.bf16.msra.mxu0 %v2334
  %2394 = vmatpush.bf16.msra.mxu0 %v2332
  %2395 = vmatpush.bf16.msra.mxu0 %v2330
  %2396 = vmatpush.bf16.msra.mxu0 %v2328
  %2397 = vmatpush.bf16.msra.mxu0 %v2326
  %2398 = vmatmul.bf16.gmra.mxu0 %v2190
  %v2399 = vpop.f32.mrf.mxu0
  %v2400 = vadd.f32 %v2226, %v2399
  %v2401 = vpop.f32.mrf.mxu0
  %v2402 = vadd.f32 %v2226, %v2401
  %2403 = vdwg.mxu0
  %2404 = vmatpush.bf16.msra.mxu0 %v2356
  %2405 = vmatpush.bf16.msra.mxu0 %v2354
  %2406 = vmatpush.bf16.msra.mxu0 %v2352
  %2407 = vmatpush.bf16.msra.mxu0 %v2350
  %2408 = vmatpush.bf16.msra.mxu0 %v2348
  %2409 = vmatpush.bf16.msra.mxu0 %v2346
  %2410 = vmatpush.bf16.msra.mxu0 %v2344
  %2411 = vmatpush.bf16.msra.mxu0 %v2342
  %2412 = vmatmul.bf16.gmra.mxu0 %v2191
  %v2413 = vpop.f32.mrf.mxu0
  %v2414 = vadd.f32 %v2400, %v2413
  %v2415 = vpop.f32.mrf.mxu0
  %v2416 = vadd.f32 %v2402, %v2415
  %2417 = vdwg.mxu0
  %2418 = vmatpush.bf16.msra.mxu0 %v2341
  %2419 = vmatpush.bf16.msra.mxu0 %v2339
  %2420 = vmatpush.bf16.msra.mxu0 %v2337
  %2421 = vmatpush.bf16.msra.mxu0 %v2335
  %2422 = vmatpush.bf16.msra.mxu0 %v2333
  %2423 = vmatpush.bf16.msra.mxu0 %v2331
  %2424 = vmatpush.bf16.msra.mxu0 %v2329
  %2425 = vmatpush.bf16.msra.mxu0 %v2327
  %2426 = vmatmul.bf16.gmra.mxu0 %v2190
  %v2427 = vpop.f32.mrf.mxu0
  %v2428 = vadd.f32 %v2227, %v2427
  %v2429 = vpop.f32.mrf.mxu0
  %v2430 = vadd.f32 %v2227, %v2429
  %2431 = vdwg.mxu0
  %2432 = vmatpush.bf16.msra.mxu0 %v2357
  %2433 = vmatpush.bf16.msra.mxu0 %v2355
  %2434 = vmatpush.bf16.msra.mxu0 %v2353
  %2435 = vmatpush.bf16.msra.mxu0 %v2351
  %2436 = vmatpush.bf16.msra.mxu0 %v2349
  %2437 = vmatpush.bf16.msra.mxu0 %v2347
  %2438 = vmatpush.bf16.msra.mxu0 %v2345
  %2439 = vmatpush.bf16.msra.mxu0 %v2343
  %2440 = vmatmul.bf16.gmra.mxu0 %v2191
  %v2441 = vpop.f32.mrf.mxu0
  %v2442 = vadd.f32 %v2428, %v2441
  %v2443 = vpop.f32.mrf.mxu0
  %v2444 = vadd.f32 %v2430, %v2443
  %2445 = vdwg.mxu0
  %v2446 = vadd.f32 %v2414, %v1900
  %v2447 = vadd.f32 %v2442, %v1928
  %v2448 = vadd.f32 %v2416, %v1902
  %v2449 = vadd.f32 %v2444, %v1930
  %v2450 = vmax.f32 %v2446, 0.0
  %v2451 = vmax.f32 %v2447, 0.0
  %v2452 = vmax.f32 %v2448, 0.0
  %v2453 = vmax.f32 %v2449, 0.0
  %s2454 = scalar_lea.sflag [#allocation23], 10
  // Predicated region
  $region130: #{image_inertial_encoder_forward.1} parent=0 // pred_check
    _
  $region131: #{image_inertial_encoder_forward.1} parent=0 // pred_check_branch
    %2456 = sbr.rel target = $region133
  $region132: #{image_inertial_encoder_forward.1} parent=0 // pred_region
    %2457 = sst [smem:[#allocation26]] [#allocation47]
    %2458 = sst [smem:[#allocation27]] [#allocation46]
  $region133: #{image_inertial_encoder_forward.1} parent=0 // pred_fallthru
    _
  %2460 = shalt.err (0)
  %s2462 = sshll.u32 %s65, 4
  %s2463 = int_to_ptr.hbm [resolvable:$true] %s2462
  %s2464 = sshll.u32 [#allocation12], 4
  %s2465 = int_to_ptr.vmem [resolvable:$true] %s2464
  %2467 = dma.hbm_to_vmem [thread:$0]  %s2463, 4096, %s2465, %s2454
  %s2468 = scalar_lea.sflag [#allocation23], 11
  // Predicated region
  $region134: #{image_inertial_encoder_forward.1} parent=0 // pred_check
    _
  $region135: #{image_inertial_encoder_forward.1} parent=0 // pred_check_branch
    %2470 = sbr.rel target = $region137
  $region136: #{image_inertial_encoder_forward.1} parent=0 // pred_region
    %2471 = sst [smem:[#allocation26]] [#allocation49]
    %2472 = sst [smem:[#allocation27]] [#allocation48]
  $region137: #{image_inertial_encoder_forward.1} parent=0 // pred_fallthru
    _
  %2474 = shalt.err (0)
  %s2476 = sshll.u32 %s67, 4
  %s2477 = int_to_ptr.hbm [resolvable:$true] %s2476
  %s2478 = sshll.u32 [#allocation13], 4
  %s2479 = int_to_ptr.vmem [resolvable:$true] %s2478
  %2481 = dma.hbm_to_vmem [thread:$0]  %s2477, 4096, %s2479, %s2468
  %s2482 = scalar_lea.sflag [#allocation23], 12
  // Predicated region
  $region138: #{image_inertial_encoder_forward.1} parent=0 // pred_check
    _
  $region139: #{image_inertial_encoder_forward.1} parent=0 // pred_check_branch
    %2484 = sbr.rel target = $region141
  $region140: #{image_inertial_encoder_forward.1} parent=0 // pred_region
    %2485 = sst [smem:[#allocation26]] [#allocation51]
    %2486 = sst [smem:[#allocation27]] [#allocation50]
  $region141: #{image_inertial_encoder_forward.1} parent=0 // pred_fallthru
    _
  %2488 = shalt.err (0)
  %s2490 = sshll.u32 %s69, 4
  %s2491 = int_to_ptr.hbm [resolvable:$true] %s2490
  %s2492 = sshll.u32 [#allocation14], 4
  %s2493 = int_to_ptr.vmem [resolvable:$true] %s2492
  %2495 = dma.hbm_to_vmem [thread:$0]  %s2491, 4096, %s2493, %s2482
  %s2496 = sshll.u32 %s543, 4
  %2497 = dma.done %s1642, %s2496
  %s2498 = sshll.u32 %s543, 4
  %2499 = dma.done %s1656, %s2498
  %v2500 = vpack.c.bf16 %v2452, %v2450
  %v2501 = vpack.c.bf16 %v2453, %v2451
  %v2502 = vld [vmem:[#allocation10] sm:$0xff]
  %v2503 = vld [vmem:[#allocation10 + $0x8] sm:$0xff]
  %v2504 = vld [vmem:[#allocation10 + $0x10] sm:$0xff]
  %v2505 = vld [vmem:[#allocation10 + $0x18] sm:$0xff]
  %v2506 = vld [vmem:[#allocation10 + $0x20] sm:$0xff]
  %v2507 = vld [vmem:[#allocation10 + $0x28] sm:$0xff]
  %v2508 = vld [vmem:[#allocation10 + $0x30] sm:$0xff]
  %v2509 = vld [vmem:[#allocation10 + $0x38] sm:$0xff]
  %v2510 = vld [vmem:[#allocation10 + $0x40] sm:$0xff]
  %v2511 = vld [vmem:[#allocation10 + $0x48] sm:$0xff]
  %v2512 = vld [vmem:[#allocation10 + $0x50] sm:$0xff]
  %v2513 = vld [vmem:[#allocation10 + $0x58] sm:$0xff]
  %v2514 = vld [vmem:[#allocation10 + $0x60] sm:$0xff]
  %v2515 = vld [vmem:[#allocation10 + $0x68] sm:$0xff]
  %v2516 = vld [vmem:[#allocation10 + $0x70] sm:$0xff]
  %v2517 = vld [vmem:[#allocation10 + $0x78] sm:$0xff]
  %v2518 = vld [vmem:[#allocation10 + $0x80] sm:$0xff]
  %v2519 = vld [vmem:[#allocation10 + $0x88] sm:$0xff]
  %v2520 = vld [vmem:[#allocation10 + $0x90] sm:$0xff]
  %v2521 = vld [vmem:[#allocation10 + $0x98] sm:$0xff]
  %v2522 = vld [vmem:[#allocation10 + $0xa0] sm:$0xff]
  %v2523 = vld [vmem:[#allocation10 + $0xa8] sm:$0xff]
  %v2524 = vld [vmem:[#allocation10 + $0xb0] sm:$0xff]
  %v2525 = vld [vmem:[#allocation10 + $0xb8] sm:$0xff]
  %v2526 = vld [vmem:[#allocation10 + $0xc0] sm:$0xff]
  %v2527 = vld [vmem:[#allocation10 + $0xc8] sm:$0xff]
  %v2528 = vld [vmem:[#allocation10 + $0xd0] sm:$0xff]
  %v2529 = vld [vmem:[#allocation10 + $0xd8] sm:$0xff]
  %v2530 = vld [vmem:[#allocation10 + $0xe0] sm:$0xff]
  %v2531 = vld [vmem:[#allocation10 + $0xe8] sm:$0xff]
  %v2532 = vld [vmem:[#allocation10 + $0xf0] sm:$0xff]
  %v2533 = vld [vmem:[#allocation10 + $0xf8] sm:$0xff]
  %v2534 = vld [vmem:[%s19] sm:$0x3]
  %v2536 = vperm.slane %v2534, 0
  %v2537 = vperm.slane %v2534, 1
  %v2572 = vunpack.c.l.b16 %v2502
  %v2573 = vunpack.c.h.b16 %v2502
  %v2574 = vunpack.c.l.b16 %v2503
  %v2575 = vunpack.c.h.b16 %v2503
  %v2576 = vunpack.c.l.b16 %v2504
  %v2577 = vunpack.c.h.b16 %v2504
  %v2578 = vunpack.c.l.b16 %v2505
  %v2579 = vunpack.c.h.b16 %v2505
  %v2580 = vunpack.c.l.b16 %v2506
  %v2581 = vunpack.c.h.b16 %v2506
  %v2582 = vunpack.c.l.b16 %v2507
  %v2583 = vunpack.c.h.b16 %v2507
  %v2584 = vunpack.c.l.b16 %v2508
  %v2585 = vunpack.c.h.b16 %v2508
  %v2586 = vunpack.c.l.b16 %v2509
  %v2587 = vunpack.c.h.b16 %v2509
  %v2588 = vunpack.c.l.b16 %v2510
  %v2589 = vunpack.c.h.b16 %v2510
  %v2590 = vunpack.c.l.b16 %v2511
  %v2591 = vunpack.c.h.b16 %v2511
  %v2592 = vunpack.c.l.b16 %v2512
  %v2593 = vunpack.c.h.b16 %v2512
  %v2594 = vunpack.c.l.b16 %v2513
  %v2595 = vunpack.c.h.b16 %v2513
  %v2596 = vunpack.c.l.b16 %v2514
  %v2597 = vunpack.c.h.b16 %v2514
  %v2598 = vunpack.c.l.b16 %v2515
  %v2599 = vunpack.c.h.b16 %v2515
  %v2600 = vunpack.c.l.b16 %v2516
  %v2601 = vunpack.c.h.b16 %v2516
  %v2602 = vunpack.c.l.b16 %v2517
  %v2603 = vunpack.c.h.b16 %v2517
  %v2604 = vunpack.c.l.b16 %v2518
  %v2605 = vunpack.c.h.b16 %v2518
  %v2606 = vunpack.c.l.b16 %v2519
  %v2607 = vunpack.c.h.b16 %v2519
  %v2608 = vunpack.c.l.b16 %v2520
  %v2609 = vunpack.c.h.b16 %v2520
  %v2610 = vunpack.c.l.b16 %v2521
  %v2611 = vunpack.c.h.b16 %v2521
  %v2612 = vunpack.c.l.b16 %v2522
  %v2613 = vunpack.c.h.b16 %v2522
  %v2614 = vunpack.c.l.b16 %v2523
  %v2615 = vunpack.c.h.b16 %v2523
  %v2616 = vunpack.c.l.b16 %v2524
  %v2617 = vunpack.c.h.b16 %v2524
  %v2618 = vunpack.c.l.b16 %v2525
  %v2619 = vunpack.c.h.b16 %v2525
  %v2620 = vunpack.c.l.b16 %v2526
  %v2621 = vunpack.c.h.b16 %v2526
  %v2622 = vunpack.c.l.b16 %v2527
  %v2623 = vunpack.c.h.b16 %v2527
  %v2624 = vunpack.c.l.b16 %v2528
  %v2625 = vunpack.c.h.b16 %v2528
  %v2626 = vunpack.c.l.b16 %v2529
  %v2627 = vunpack.c.h.b16 %v2529
  %v2628 = vunpack.c.l.b16 %v2530
  %v2629 = vunpack.c.h.b16 %v2530
  %v2630 = vunpack.c.l.b16 %v2531
  %v2631 = vunpack.c.h.b16 %v2531
  %v2632 = vunpack.c.l.b16 %v2532
  %v2633 = vunpack.c.h.b16 %v2532
  %v2634 = vunpack.c.l.b16 %v2533
  %v2635 = vunpack.c.h.b16 %v2533
  %v2636 = vpack.c.b16 %v2574, %v2572
  %v2637 = vpack.c.b16 %v2575, %v2573
  %v2638 = vpack.c.b16 %v2578, %v2576
  %v2639 = vpack.c.b16 %v2579, %v2577
  %v2640 = vpack.c.b16 %v2582, %v2580
  %v2641 = vpack.c.b16 %v2583, %v2581
  %v2642 = vpack.c.b16 %v2586, %v2584
  %v2643 = vpack.c.b16 %v2587, %v2585
  %v2644 = vpack.c.b16 %v2590, %v2588
  %v2645 = vpack.c.b16 %v2591, %v2589
  %v2646 = vpack.c.b16 %v2594, %v2592
  %v2647 = vpack.c.b16 %v2595, %v2593
  %v2648 = vpack.c.b16 %v2598, %v2596
  %v2649 = vpack.c.b16 %v2599, %v2597
  %v2650 = vpack.c.b16 %v2602, %v2600
  %v2651 = vpack.c.b16 %v2603, %v2601
  %v2652 = vpack.c.b16 %v2606, %v2604
  %v2653 = vpack.c.b16 %v2607, %v2605
  %v2654 = vpack.c.b16 %v2610, %v2608
  %v2655 = vpack.c.b16 %v2611, %v2609
  %v2656 = vpack.c.b16 %v2614, %v2612
  %v2657 = vpack.c.b16 %v2615, %v2613
  %v2658 = vpack.c.b16 %v2618, %v2616
  %v2659 = vpack.c.b16 %v2619, %v2617
  %v2660 = vpack.c.b16 %v2622, %v2620
  %v2661 = vpack.c.b16 %v2623, %v2621
  %v2662 = vpack.c.b16 %v2626, %v2624
  %v2663 = vpack.c.b16 %v2627, %v2625
  %v2664 = vpack.c.b16 %v2630, %v2628
  %v2665 = vpack.c.b16 %v2631, %v2629
  %v2666 = vpack.c.b16 %v2634, %v2632
  %v2667 = vpack.c.b16 %v2635, %v2633
  %2700 = vmatpush.bf16.msra.mxu0 %v2650
  %2701 = vmatpush.bf16.msra.mxu0 %v2648
  %2702 = vmatpush.bf16.msra.mxu0 %v2646
  %2703 = vmatpush.bf16.msra.mxu0 %v2644
  %2704 = vmatpush.bf16.msra.mxu0 %v2642
  %2705 = vmatpush.bf16.msra.mxu0 %v2640
  %2706 = vmatpush.bf16.msra.mxu0 %v2638
  %2707 = vmatpush.bf16.msra.mxu0 %v2636
  %2708 = vmatmul.bf16.gmra.mxu0 %v2500
  %v2709 = vpop.f32.mrf.mxu0
  %v2710 = vadd.f32 %v2536, %v2709
  %v2711 = vpop.f32.mrf.mxu0
  %v2712 = vadd.f32 %v2536, %v2711
  %2713 = vdwg.mxu0
  %2714 = vmatpush.bf16.msra.mxu0 %v2666
  %2715 = vmatpush.bf16.msra.mxu0 %v2664
  %2716 = vmatpush.bf16.msra.mxu0 %v2662
  %2717 = vmatpush.bf16.msra.mxu0 %v2660
  %2718 = vmatpush.bf16.msra.mxu0 %v2658
  %2719 = vmatpush.bf16.msra.mxu0 %v2656
  %2720 = vmatpush.bf16.msra.mxu0 %v2654
  %2721 = vmatpush.bf16.msra.mxu0 %v2652
  %2722 = vmatmul.bf16.gmra.mxu0 %v2501
  %v2723 = vpop.f32.mrf.mxu0
  %v2724 = vadd.f32 %v2710, %v2723
  %v2725 = vpop.f32.mrf.mxu0
  %v2726 = vadd.f32 %v2712, %v2725
  %2727 = vdwg.mxu0
  %2728 = vmatpush.bf16.msra.mxu0 %v2651
  %2729 = vmatpush.bf16.msra.mxu0 %v2649
  %2730 = vmatpush.bf16.msra.mxu0 %v2647
  %2731 = vmatpush.bf16.msra.mxu0 %v2645
  %2732 = vmatpush.bf16.msra.mxu0 %v2643
  %2733 = vmatpush.bf16.msra.mxu0 %v2641
  %2734 = vmatpush.bf16.msra.mxu0 %v2639
  %2735 = vmatpush.bf16.msra.mxu0 %v2637
  %2736 = vmatmul.bf16.gmra.mxu0 %v2500
  %v2737 = vpop.f32.mrf.mxu0
  %v2738 = vadd.f32 %v2537, %v2737
  %v2739 = vpop.f32.mrf.mxu0
  %v2740 = vadd.f32 %v2537, %v2739
  %2741 = vdwg.mxu0
  %2742 = vmatpush.bf16.msra.mxu0 %v2667
  %2743 = vmatpush.bf16.msra.mxu0 %v2665
  %2744 = vmatpush.bf16.msra.mxu0 %v2663
  %2745 = vmatpush.bf16.msra.mxu0 %v2661
  %2746 = vmatpush.bf16.msra.mxu0 %v2659
  %2747 = vmatpush.bf16.msra.mxu0 %v2657
  %2748 = vmatpush.bf16.msra.mxu0 %v2655
  %2749 = vmatpush.bf16.msra.mxu0 %v2653
  %2750 = vmatmul.bf16.gmra.mxu0 %v2501
  %v2751 = vpop.f32.mrf.mxu0
  %v2752 = vadd.f32 %v2738, %v2751
  %v2753 = vpop.f32.mrf.mxu0
  %v2754 = vadd.f32 %v2740, %v2753
  %2755 = vdwg.mxu0
  %v2756 = vmax.f32 %v2724, 0.0
  %v2757 = vmax.f32 %v2752, 0.0
  %v2758 = vmax.f32 %v2726, 0.0
  %v2759 = vmax.f32 %v2754, 0.0
  %v2760 = vpack.c.bf16 %v2758, %v2756
  %v2761 = vpack.c.bf16 %v2759, %v2757
  %v2762 = vld [vmem:[#allocation11] sm:$0xff]
  %v2763 = vld [vmem:[#allocation11 + $0x8] sm:$0xff]
  %v2764 = vld [vmem:[#allocation11 + $0x10] sm:$0xff]
  %v2765 = vld [vmem:[#allocation11 + $0x18] sm:$0xff]
  %v2766 = vld [vmem:[#allocation11 + $0x20] sm:$0xff]
  %v2767 = vld [vmem:[#allocation11 + $0x28] sm:$0xff]
  %v2768 = vld [vmem:[#allocation11 + $0x30] sm:$0xff]
  %v2769 = vld [vmem:[#allocation11 + $0x38] sm:$0xff]
  %v2770 = vld [vmem:[#allocation11 + $0x40] sm:$0xff]
  %v2771 = vld [vmem:[#allocation11 + $0x48] sm:$0xff]
  %v2772 = vld [vmem:[#allocation11 + $0x50] sm:$0xff]
  %v2773 = vld [vmem:[#allocation11 + $0x58] sm:$0xff]
  %v2774 = vld [vmem:[#allocation11 + $0x60] sm:$0xff]
  %v2775 = vld [vmem:[#allocation11 + $0x68] sm:$0xff]
  %v2776 = vld [vmem:[#allocation11 + $0x70] sm:$0xff]
  %v2777 = vld [vmem:[#allocation11 + $0x78] sm:$0xff]
  %v2778 = vld [vmem:[#allocation11 + $0x80] sm:$0xff]
  %v2779 = vld [vmem:[#allocation11 + $0x88] sm:$0xff]
  %v2780 = vld [vmem:[#allocation11 + $0x90] sm:$0xff]
  %v2781 = vld [vmem:[#allocation11 + $0x98] sm:$0xff]
  %v2782 = vld [vmem:[#allocation11 + $0xa0] sm:$0xff]
  %v2783 = vld [vmem:[#allocation11 + $0xa8] sm:$0xff]
  %v2784 = vld [vmem:[#allocation11 + $0xb0] sm:$0xff]
  %v2785 = vld [vmem:[#allocation11 + $0xb8] sm:$0xff]
  %v2786 = vld [vmem:[#allocation11 + $0xc0] sm:$0xff]
  %v2787 = vld [vmem:[#allocation11 + $0xc8] sm:$0xff]
  %v2788 = vld [vmem:[#allocation11 + $0xd0] sm:$0xff]
  %v2789 = vld [vmem:[#allocation11 + $0xd8] sm:$0xff]
  %v2790 = vld [vmem:[#allocation11 + $0xe0] sm:$0xff]
  %v2791 = vld [vmem:[#allocation11 + $0xe8] sm:$0xff]
  %v2792 = vld [vmem:[#allocation11 + $0xf0] sm:$0xff]
  %v2793 = vld [vmem:[#allocation11 + $0xf8] sm:$0xff]
  %v2794 = vld [vmem:[%s21] sm:$0x3]
  %v2796 = vperm.slane %v2794, 0
  %v2797 = vperm.slane %v2794, 1
  %v2832 = vunpack.c.l.b16 %v2762
  %v2833 = vunpack.c.h.b16 %v2762
  %v2834 = vunpack.c.l.b16 %v2763
  %v2835 = vunpack.c.h.b16 %v2763
  %v2836 = vunpack.c.l.b16 %v2764
  %v2837 = vunpack.c.h.b16 %v2764
  %v2838 = vunpack.c.l.b16 %v2765
  %v2839 = vunpack.c.h.b16 %v2765
  %v2840 = vunpack.c.l.b16 %v2766
  %v2841 = vunpack.c.h.b16 %v2766
  %v2842 = vunpack.c.l.b16 %v2767
  %v2843 = vunpack.c.h.b16 %v2767
  %v2844 = vunpack.c.l.b16 %v2768
  %v2845 = vunpack.c.h.b16 %v2768
  %v2846 = vunpack.c.l.b16 %v2769
  %v2847 = vunpack.c.h.b16 %v2769
  %v2848 = vunpack.c.l.b16 %v2770
  %v2849 = vunpack.c.h.b16 %v2770
  %v2850 = vunpack.c.l.b16 %v2771
  %v2851 = vunpack.c.h.b16 %v2771
  %v2852 = vunpack.c.l.b16 %v2772
  %v2853 = vunpack.c.h.b16 %v2772
  %v2854 = vunpack.c.l.b16 %v2773
  %v2855 = vunpack.c.h.b16 %v2773
  %v2856 = vunpack.c.l.b16 %v2774
  %v2857 = vunpack.c.h.b16 %v2774
  %v2858 = vunpack.c.l.b16 %v2775
  %v2859 = vunpack.c.h.b16 %v2775
  %v2860 = vunpack.c.l.b16 %v2776
  %v2861 = vunpack.c.h.b16 %v2776
  %v2862 = vunpack.c.l.b16 %v2777
  %v2863 = vunpack.c.h.b16 %v2777
  %v2864 = vunpack.c.l.b16 %v2778
  %v2865 = vunpack.c.h.b16 %v2778
  %v2866 = vunpack.c.l.b16 %v2779
  %v2867 = vunpack.c.h.b16 %v2779
  %v2868 = vunpack.c.l.b16 %v2780
  %v2869 = vunpack.c.h.b16 %v2780
  %v2870 = vunpack.c.l.b16 %v2781
  %v2871 = vunpack.c.h.b16 %v2781
  %v2872 = vunpack.c.l.b16 %v2782
  %v2873 = vunpack.c.h.b16 %v2782
  %v2874 = vunpack.c.l.b16 %v2783
  %v2875 = vunpack.c.h.b16 %v2783
  %v2876 = vunpack.c.l.b16 %v2784
  %v2877 = vunpack.c.h.b16 %v2784
  %v2878 = vunpack.c.l.b16 %v2785
  %v2879 = vunpack.c.h.b16 %v2785
  %v2880 = vunpack.c.l.b16 %v2786
  %v2881 = vunpack.c.h.b16 %v2786
  %v2882 = vunpack.c.l.b16 %v2787
  %v2883 = vunpack.c.h.b16 %v2787
  %v2884 = vunpack.c.l.b16 %v2788
  %v2885 = vunpack.c.h.b16 %v2788
  %v2886 = vunpack.c.l.b16 %v2789
  %v2887 = vunpack.c.h.b16 %v2789
  %v2888 = vunpack.c.l.b16 %v2790
  %v2889 = vunpack.c.h.b16 %v2790
  %v2890 = vunpack.c.l.b16 %v2791
  %v2891 = vunpack.c.h.b16 %v2791
  %v2892 = vunpack.c.l.b16 %v2792
  %v2893 = vunpack.c.h.b16 %v2792
  %v2894 = vunpack.c.l.b16 %v2793
  %v2895 = vunpack.c.h.b16 %v2793
  %v2896 = vpack.c.b16 %v2834, %v2832
  %v2897 = vpack.c.b16 %v2835, %v2833
  %v2898 = vpack.c.b16 %v2838, %v2836
  %v2899 = vpack.c.b16 %v2839, %v2837
  %v2900 = vpack.c.b16 %v2842, %v2840
  %v2901 = vpack.c.b16 %v2843, %v2841
  %v2902 = vpack.c.b16 %v2846, %v2844
  %v2903 = vpack.c.b16 %v2847, %v2845
  %v2904 = vpack.c.b16 %v2850, %v2848
  %v2905 = vpack.c.b16 %v2851, %v2849
  %v2906 = vpack.c.b16 %v2854, %v2852
  %v2907 = vpack.c.b16 %v2855, %v2853
  %v2908 = vpack.c.b16 %v2858, %v2856
  %v2909 = vpack.c.b16 %v2859, %v2857
  %v2910 = vpack.c.b16 %v2862, %v2860
  %v2911 = vpack.c.b16 %v2863, %v2861
  %v2912 = vpack.c.b16 %v2866, %v2864
  %v2913 = vpack.c.b16 %v2867, %v2865
  %v2914 = vpack.c.b16 %v2870, %v2868
  %v2915 = vpack.c.b16 %v2871, %v2869
  %v2916 = vpack.c.b16 %v2874, %v2872
  %v2917 = vpack.c.b16 %v2875, %v2873
  %v2918 = vpack.c.b16 %v2878, %v2876
  %v2919 = vpack.c.b16 %v2879, %v2877
  %v2920 = vpack.c.b16 %v2882, %v2880
  %v2921 = vpack.c.b16 %v2883, %v2881
  %v2922 = vpack.c.b16 %v2886, %v2884
  %v2923 = vpack.c.b16 %v2887, %v2885
  %v2924 = vpack.c.b16 %v2890, %v2888
  %v2925 = vpack.c.b16 %v2891, %v2889
  %v2926 = vpack.c.b16 %v2894, %v2892
  %v2927 = vpack.c.b16 %v2895, %v2893
  %2960 = vmatpush.bf16.msra.mxu0 %v2910
  %2961 = vmatpush.bf16.msra.mxu0 %v2908
  %2962 = vmatpush.bf16.msra.mxu0 %v2906
  %2963 = vmatpush.bf16.msra.mxu0 %v2904
  %2964 = vmatpush.bf16.msra.mxu0 %v2902
  %2965 = vmatpush.bf16.msra.mxu0 %v2900
  %2966 = vmatpush.bf16.msra.mxu0 %v2898
  %2967 = vmatpush.bf16.msra.mxu0 %v2896
  %2968 = vmatmul.bf16.gmra.mxu0 %v2760
  %v2969 = vpop.f32.mrf.mxu0
  %v2970 = vadd.f32 %v2796, %v2969
  %v2971 = vpop.f32.mrf.mxu0
  %v2972 = vadd.f32 %v2796, %v2971
  %2973 = vdwg.mxu0
  %2974 = vmatpush.bf16.msra.mxu0 %v2926
  %2975 = vmatpush.bf16.msra.mxu0 %v2924
  %2976 = vmatpush.bf16.msra.mxu0 %v2922
  %2977 = vmatpush.bf16.msra.mxu0 %v2920
  %2978 = vmatpush.bf16.msra.mxu0 %v2918
  %2979 = vmatpush.bf16.msra.mxu0 %v2916
  %2980 = vmatpush.bf16.msra.mxu0 %v2914
  %2981 = vmatpush.bf16.msra.mxu0 %v2912
  %2982 = vmatmul.bf16.gmra.mxu0 %v2761
  %v2983 = vpop.f32.mrf.mxu0
  %v2984 = vadd.f32 %v2970, %v2983
  %v2985 = vpop.f32.mrf.mxu0
  %v2986 = vadd.f32 %v2972, %v2985
  %2987 = vdwg.mxu0
  %2988 = vmatpush.bf16.msra.mxu0 %v2911
  %2989 = vmatpush.bf16.msra.mxu0 %v2909
  %2990 = vmatpush.bf16.msra.mxu0 %v2907
  %2991 = vmatpush.bf16.msra.mxu0 %v2905
  %2992 = vmatpush.bf16.msra.mxu0 %v2903
  %2993 = vmatpush.bf16.msra.mxu0 %v2901
  %2994 = vmatpush.bf16.msra.mxu0 %v2899
  %2995 = vmatpush.bf16.msra.mxu0 %v2897
  %2996 = vmatmul.bf16.gmra.mxu0 %v2760
  %v2997 = vpop.f32.mrf.mxu0
  %v2998 = vadd.f32 %v2797, %v2997
  %v2999 = vpop.f32.mrf.mxu0
  %v3000 = vadd.f32 %v2797, %v2999
  %3001 = vdwg.mxu0
  %3002 = vmatpush.bf16.msra.mxu0 %v2927
  %3003 = vmatpush.bf16.msra.mxu0 %v2925
  %3004 = vmatpush.bf16.msra.mxu0 %v2923
  %3005 = vmatpush.bf16.msra.mxu0 %v2921
  %3006 = vmatpush.bf16.msra.mxu0 %v2919
  %3007 = vmatpush.bf16.msra.mxu0 %v2917
  %3008 = vmatpush.bf16.msra.mxu0 %v2915
  %3009 = vmatpush.bf16.msra.mxu0 %v2913
  %3010 = vmatmul.bf16.gmra.mxu0 %v2761
  %v3011 = vpop.f32.mrf.mxu0
  %v3012 = vadd.f32 %v2998, %v3011
  %v3013 = vpop.f32.mrf.mxu0
  %v3014 = vadd.f32 %v3000, %v3013
  %3015 = vdwg.mxu0
  %v3016 = vadd.f32 %v2984, %v2450
  %v3017 = vadd.f32 %v3012, %v2451
  %v3018 = vadd.f32 %v2986, %v2452
  %v3019 = vadd.f32 %v3014, %v2453
  %v3020 = vmax.f32 %v3016, 0.0
  %v3021 = vmax.f32 %v3017, 0.0
  %v3022 = vmax.f32 %v3018, 0.0
  %v3023 = vmax.f32 %v3019, 0.0
  %s3024 = scalar_lea.sflag [#allocation23], 13
  // Predicated region
  $region142: #{image_inertial_encoder_forward.1} parent=0 // pred_check
    _
  $region143: #{image_inertial_encoder_forward.1} parent=0 // pred_check_branch
    %3026 = sbr.rel target = $region145
  $region144: #{image_inertial_encoder_forward.1} parent=0 // pred_region
    %3027 = sst [smem:[#allocation26]] [#allocation53]
    %3028 = sst [smem:[#allocation27]] [#allocation52]
  $region145: #{image_inertial_encoder_forward.1} parent=0 // pred_fallthru
    _
  %3030 = shalt.err (0)
  %s3032 = sshll.u32 %s71, 4
  %s3033 = int_to_ptr.hbm [resolvable:$true] %s3032
  %s3034 = sshll.u32 [#allocation15], 4
  %s3035 = int_to_ptr.vmem [resolvable:$true] %s3034
  %3037 = dma.hbm_to_vmem [thread:$0]  %s3033, 4096, %s3035, %s3024
  %s3038 = scalar_lea.sflag [#allocation23], 14
  // Predicated region
  $region146: #{image_inertial_encoder_forward.1} parent=0 // pred_check
    _
  $region147: #{image_inertial_encoder_forward.1} parent=0 // pred_check_branch
    %3040 = sbr.rel target = $region149
  $region148: #{image_inertial_encoder_forward.1} parent=0 // pred_region
    %3041 = sst [smem:[#allocation26]] [#allocation55]
    %3042 = sst [smem:[#allocation27]] [#allocation54]
  $region149: #{image_inertial_encoder_forward.1} parent=0 // pred_fallthru
    _
  %3044 = shalt.err (0)
  %s3046 = sshll.u32 %s73, 4
  %s3047 = int_to_ptr.hbm [resolvable:$true] %s3046
  %s3048 = sshll.u32 [#allocation16], 4
  %s3049 = int_to_ptr.vmem [resolvable:$true] %s3048
  %3051 = dma.hbm_to_vmem [thread:$0]  %s3047, 4096, %s3049, %s3038
  %s3052 = sshll.u32 %s543, 4
  %3053 = dma.done %s2454, %s3052
  %s3054 = sshll.u32 %s543, 4
  %3055 = dma.done %s2468, %s3054
  %s3056 = sshll.u32 %s543, 4
  %3057 = dma.done %s2482, %s3056
  %v3058 = vpack.c.bf16 %v3022, %v3020
  %v3059 = vpack.c.bf16 %v3023, %v3021
  %v3060 = vld [vmem:[#allocation14] sm:$0xff]
  %v3061 = vld [vmem:[#allocation14 + $0x8] sm:$0xff]
  %v3062 = vld [vmem:[#allocation14 + $0x10] sm:$0xff]
  %v3063 = vld [vmem:[#allocation14 + $0x18] sm:$0xff]
  %v3064 = vld [vmem:[#allocation14 + $0x20] sm:$0xff]
  %v3065 = vld [vmem:[#allocation14 + $0x28] sm:$0xff]
  %v3066 = vld [vmem:[#allocation14 + $0x30] sm:$0xff]
  %v3067 = vld [vmem:[#allocation14 + $0x38] sm:$0xff]
  %v3068 = vld [vmem:[#allocation14 + $0x40] sm:$0xff]
  %v3069 = vld [vmem:[#allocation14 + $0x48] sm:$0xff]
  %v3070 = vld [vmem:[#allocation14 + $0x50] sm:$0xff]
  %v3071 = vld [vmem:[#allocation14 + $0x58] sm:$0xff]
  %v3072 = vld [vmem:[#allocation14 + $0x60] sm:$0xff]
  %v3073 = vld [vmem:[#allocation14 + $0x68] sm:$0xff]
  %v3074 = vld [vmem:[#allocation14 + $0x70] sm:$0xff]
  %v3075 = vld [vmem:[#allocation14 + $0x78] sm:$0xff]
  %v3076 = vld [vmem:[#allocation14 + $0x80] sm:$0xff]
  %v3077 = vld [vmem:[#allocation14 + $0x88] sm:$0xff]
  %v3078 = vld [vmem:[#allocation14 + $0x90] sm:$0xff]
  %v3079 = vld [vmem:[#allocation14 + $0x98] sm:$0xff]
  %v3080 = vld [vmem:[#allocation14 + $0xa0] sm:$0xff]
  %v3081 = vld [vmem:[#allocation14 + $0xa8] sm:$0xff]
  %v3082 = vld [vmem:[#allocation14 + $0xb0] sm:$0xff]
  %v3083 = vld [vmem:[#allocation14 + $0xb8] sm:$0xff]
  %v3084 = vld [vmem:[#allocation14 + $0xc0] sm:$0xff]
  %v3085 = vld [vmem:[#allocation14 + $0xc8] sm:$0xff]
  %v3086 = vld [vmem:[#allocation14 + $0xd0] sm:$0xff]
  %v3087 = vld [vmem:[#allocation14 + $0xd8] sm:$0xff]
  %v3088 = vld [vmem:[#allocation14 + $0xe0] sm:$0xff]
  %v3089 = vld [vmem:[#allocation14 + $0xe8] sm:$0xff]
  %v3090 = vld [vmem:[#allocation14 + $0xf0] sm:$0xff]
  %v3091 = vld [vmem:[#allocation14 + $0xf8] sm:$0xff]
  %v3092 = vld [vmem:[%s27] sm:$0x3]
  %v3094 = vperm.slane %v3092, 0
  %v3095 = vperm.slane %v3092, 1
  %v3130 = vunpack.c.l.b16 %v3060
  %v3131 = vunpack.c.h.b16 %v3060
  %v3132 = vunpack.c.l.b16 %v3061
  %v3133 = vunpack.c.h.b16 %v3061
  %v3134 = vunpack.c.l.b16 %v3062
  %v3135 = vunpack.c.h.b16 %v3062
  %v3136 = vunpack.c.l.b16 %v3063
  %v3137 = vunpack.c.h.b16 %v3063
  %v3138 = vunpack.c.l.b16 %v3064
  %v3139 = vunpack.c.h.b16 %v3064
  %v3140 = vunpack.c.l.b16 %v3065
  %v3141 = vunpack.c.h.b16 %v3065
  %v3142 = vunpack.c.l.b16 %v3066
  %v3143 = vunpack.c.h.b16 %v3066
  %v3144 = vunpack.c.l.b16 %v3067
  %v3145 = vunpack.c.h.b16 %v3067
  %v3146 = vunpack.c.l.b16 %v3068
  %v3147 = vunpack.c.h.b16 %v3068
  %v3148 = vunpack.c.l.b16 %v3069
  %v3149 = vunpack.c.h.b16 %v3069
  %v3150 = vunpack.c.l.b16 %v3070
  %v3151 = vunpack.c.h.b16 %v3070
  %v3152 = vunpack.c.l.b16 %v3071
  %v3153 = vunpack.c.h.b16 %v3071
  %v3154 = vunpack.c.l.b16 %v3072
  %v3155 = vunpack.c.h.b16 %v3072
  %v3156 = vunpack.c.l.b16 %v3073
  %v3157 = vunpack.c.h.b16 %v3073
  %v3158 = vunpack.c.l.b16 %v3074
  %v3159 = vunpack.c.h.b16 %v3074
  %v3160 = vunpack.c.l.b16 %v3075
  %v3161 = vunpack.c.h.b16 %v3075
  %v3162 = vunpack.c.l.b16 %v3076
  %v3163 = vunpack.c.h.b16 %v3076
  %v3164 = vunpack.c.l.b16 %v3077
  %v3165 = vunpack.c.h.b16 %v3077
  %v3166 = vunpack.c.l.b16 %v3078
  %v3167 = vunpack.c.h.b16 %v3078
  %v3168 = vunpack.c.l.b16 %v3079
  %v3169 = vunpack.c.h.b16 %v3079
  %v3170 = vunpack.c.l.b16 %v3080
  %v3171 = vunpack.c.h.b16 %v3080
  %v3172 = vunpack.c.l.b16 %v3081
  %v3173 = vunpack.c.h.b16 %v3081
  %v3174 = vunpack.c.l.b16 %v3082
  %v3175 = vunpack.c.h.b16 %v3082
  %v3176 = vunpack.c.l.b16 %v3083
  %v3177 = vunpack.c.h.b16 %v3083
  %v3178 = vunpack.c.l.b16 %v3084
  %v3179 = vunpack.c.h.b16 %v3084
  %v3180 = vunpack.c.l.b16 %v3085
  %v3181 = vunpack.c.h.b16 %v3085
  %v3182 = vunpack.c.l.b16 %v3086
  %v3183 = vunpack.c.h.b16 %v3086
  %v3184 = vunpack.c.l.b16 %v3087
  %v3185 = vunpack.c.h.b16 %v3087
  %v3186 = vunpack.c.l.b16 %v3088
  %v3187 = vunpack.c.h.b16 %v3088
  %v3188 = vunpack.c.l.b16 %v3089
  %v3189 = vunpack.c.h.b16 %v3089
  %v3190 = vunpack.c.l.b16 %v3090
  %v3191 = vunpack.c.h.b16 %v3090
  %v3192 = vunpack.c.l.b16 %v3091
  %v3193 = vunpack.c.h.b16 %v3091
  %v3194 = vpack.c.b16 %v3132, %v3130
  %v3195 = vpack.c.b16 %v3133, %v3131
  %v3196 = vpack.c.b16 %v3136, %v3134
  %v3197 = vpack.c.b16 %v3137, %v3135
  %v3198 = vpack.c.b16 %v3140, %v3138
  %v3199 = vpack.c.b16 %v3141, %v3139
  %v3200 = vpack.c.b16 %v3144, %v3142
  %v3201 = vpack.c.b16 %v3145, %v3143
  %v3202 = vpack.c.b16 %v3148, %v3146
  %v3203 = vpack.c.b16 %v3149, %v3147
  %v3204 = vpack.c.b16 %v3152, %v3150
  %v3205 = vpack.c.b16 %v3153, %v3151
  %v3206 = vpack.c.b16 %v3156, %v3154
  %v3207 = vpack.c.b16 %v3157, %v3155
  %v3208 = vpack.c.b16 %v3160, %v3158
  %v3209 = vpack.c.b16 %v3161, %v3159
  %v3210 = vpack.c.b16 %v3164, %v3162
  %v3211 = vpack.c.b16 %v3165, %v3163
  %v3212 = vpack.c.b16 %v3168, %v3166
  %v3213 = vpack.c.b16 %v3169, %v3167
  %v3214 = vpack.c.b16 %v3172, %v3170
  %v3215 = vpack.c.b16 %v3173, %v3171
  %v3216 = vpack.c.b16 %v3176, %v3174
  %v3217 = vpack.c.b16 %v3177, %v3175
  %v3218 = vpack.c.b16 %v3180, %v3178
  %v3219 = vpack.c.b16 %v3181, %v3179
  %v3220 = vpack.c.b16 %v3184, %v3182
  %v3221 = vpack.c.b16 %v3185, %v3183
  %v3222 = vpack.c.b16 %v3188, %v3186
  %v3223 = vpack.c.b16 %v3189, %v3187
  %v3224 = vpack.c.b16 %v3192, %v3190
  %v3225 = vpack.c.b16 %v3193, %v3191
  %3258 = vmatpush.bf16.msra.mxu0 %v3208
  %3259 = vmatpush.bf16.msra.mxu0 %v3206
  %3260 = vmatpush.bf16.msra.mxu0 %v3204
  %3261 = vmatpush.bf16.msra.mxu0 %v3202
  %3262 = vmatpush.bf16.msra.mxu0 %v3200
  %3263 = vmatpush.bf16.msra.mxu0 %v3198
  %3264 = vmatpush.bf16.msra.mxu0 %v3196
  %3265 = vmatpush.bf16.msra.mxu0 %v3194
  %3266 = vmatmul.bf16.gmra.mxu0 %v3058
  %v3267 = vpop.f32.mrf.mxu0
  %v3268 = vadd.f32 %v3094, %v3267
  %v3269 = vpop.f32.mrf.mxu0
  %v3270 = vadd.f32 %v3094, %v3269
  %3271 = vdwg.mxu0
  %3272 = vmatpush.bf16.msra.mxu0 %v3224
  %3273 = vmatpush.bf16.msra.mxu0 %v3222
  %3274 = vmatpush.bf16.msra.mxu0 %v3220
  %3275 = vmatpush.bf16.msra.mxu0 %v3218
  %3276 = vmatpush.bf16.msra.mxu0 %v3216
  %3277 = vmatpush.bf16.msra.mxu0 %v3214
  %3278 = vmatpush.bf16.msra.mxu0 %v3212
  %3279 = vmatpush.bf16.msra.mxu0 %v3210
  %3280 = vmatmul.bf16.gmra.mxu0 %v3059
  %v3281 = vpop.f32.mrf.mxu0
  %v3282 = vadd.f32 %v3268, %v3281
  %v3283 = vpop.f32.mrf.mxu0
  %v3284 = vadd.f32 %v3270, %v3283
  %3285 = vdwg.mxu0
  %3286 = vmatpush.bf16.msra.mxu0 %v3209
  %3287 = vmatpush.bf16.msra.mxu0 %v3207
  %3288 = vmatpush.bf16.msra.mxu0 %v3205
  %3289 = vmatpush.bf16.msra.mxu0 %v3203
  %3290 = vmatpush.bf16.msra.mxu0 %v3201
  %3291 = vmatpush.bf16.msra.mxu0 %v3199
  %3292 = vmatpush.bf16.msra.mxu0 %v3197
  %3293 = vmatpush.bf16.msra.mxu0 %v3195
  %3294 = vmatmul.bf16.gmra.mxu0 %v3058
  %v3295 = vpop.f32.mrf.mxu0
  %v3296 = vadd.f32 %v3095, %v3295
  %v3297 = vpop.f32.mrf.mxu0
  %v3298 = vadd.f32 %v3095, %v3297
  %3299 = vdwg.mxu0
  %3300 = vmatpush.bf16.msra.mxu0 %v3225
  %3301 = vmatpush.bf16.msra.mxu0 %v3223
  %3302 = vmatpush.bf16.msra.mxu0 %v3221
  %3303 = vmatpush.bf16.msra.mxu0 %v3219
  %3304 = vmatpush.bf16.msra.mxu0 %v3217
  %3305 = vmatpush.bf16.msra.mxu0 %v3215
  %3306 = vmatpush.bf16.msra.mxu0 %v3213
  %3307 = vmatpush.bf16.msra.mxu0 %v3211
  %3308 = vmatmul.bf16.gmra.mxu0 %v3059
  %v3309 = vpop.f32.mrf.mxu0
  %v3310 = vadd.f32 %v3296, %v3309
  %v3311 = vpop.f32.mrf.mxu0
  %v3312 = vadd.f32 %v3298, %v3311
  %3313 = vdwg.mxu0
  %v3314 = vld [vmem:[#allocation12] sm:$0xff]
  %v3315 = vld [vmem:[#allocation12 + $0x8] sm:$0xff]
  %v3316 = vld [vmem:[#allocation12 + $0x10] sm:$0xff]
  %v3317 = vld [vmem:[#allocation12 + $0x18] sm:$0xff]
  %v3318 = vld [vmem:[#allocation12 + $0x20] sm:$0xff]
  %v3319 = vld [vmem:[#allocation12 + $0x28] sm:$0xff]
  %v3320 = vld [vmem:[#allocation12 + $0x30] sm:$0xff]
  %v3321 = vld [vmem:[#allocation12 + $0x38] sm:$0xff]
  %v3322 = vld [vmem:[#allocation12 + $0x40] sm:$0xff]
  %v3323 = vld [vmem:[#allocation12 + $0x48] sm:$0xff]
  %v3324 = vld [vmem:[#allocation12 + $0x50] sm:$0xff]
  %v3325 = vld [vmem:[#allocation12 + $0x58] sm:$0xff]
  %v3326 = vld [vmem:[#allocation12 + $0x60] sm:$0xff]
  %v3327 = vld [vmem:[#allocation12 + $0x68] sm:$0xff]
  %v3328 = vld [vmem:[#allocation12 + $0x70] sm:$0xff]
  %v3329 = vld [vmem:[#allocation12 + $0x78] sm:$0xff]
  %v3330 = vld [vmem:[#allocation12 + $0x80] sm:$0xff]
  %v3331 = vld [vmem:[#allocation12 + $0x88] sm:$0xff]
  %v3332 = vld [vmem:[#allocation12 + $0x90] sm:$0xff]
  %v3333 = vld [vmem:[#allocation12 + $0x98] sm:$0xff]
  %v3334 = vld [vmem:[#allocation12 + $0xa0] sm:$0xff]
  %v3335 = vld [vmem:[#allocation12 + $0xa8] sm:$0xff]
  %v3336 = vld [vmem:[#allocation12 + $0xb0] sm:$0xff]
  %v3337 = vld [vmem:[#allocation12 + $0xb8] sm:$0xff]
  %v3338 = vld [vmem:[#allocation12 + $0xc0] sm:$0xff]
  %v3339 = vld [vmem:[#allocation12 + $0xc8] sm:$0xff]
  %v3340 = vld [vmem:[#allocation12 + $0xd0] sm:$0xff]
  %v3341 = vld [vmem:[#allocation12 + $0xd8] sm:$0xff]
  %v3342 = vld [vmem:[#allocation12 + $0xe0] sm:$0xff]
  %v3343 = vld [vmem:[#allocation12 + $0xe8] sm:$0xff]
  %v3344 = vld [vmem:[#allocation12 + $0xf0] sm:$0xff]
  %v3345 = vld [vmem:[#allocation12 + $0xf8] sm:$0xff]
  %v3346 = vld [vmem:[%s23] sm:$0x3]
  %v3348 = vperm.slane %v3346, 0
  %v3349 = vperm.slane %v3346, 1
  %v3384 = vunpack.c.l.b16 %v3314
  %v3385 = vunpack.c.h.b16 %v3314
  %v3386 = vunpack.c.l.b16 %v3315
  %v3387 = vunpack.c.h.b16 %v3315
  %v3388 = vunpack.c.l.b16 %v3316
  %v3389 = vunpack.c.h.b16 %v3316
  %v3390 = vunpack.c.l.b16 %v3317
  %v3391 = vunpack.c.h.b16 %v3317
  %v3392 = vunpack.c.l.b16 %v3318
  %v3393 = vunpack.c.h.b16 %v3318
  %v3394 = vunpack.c.l.b16 %v3319
  %v3395 = vunpack.c.h.b16 %v3319
  %v3396 = vunpack.c.l.b16 %v3320
  %v3397 = vunpack.c.h.b16 %v3320
  %v3398 = vunpack.c.l.b16 %v3321
  %v3399 = vunpack.c.h.b16 %v3321
  %v3400 = vunpack.c.l.b16 %v3322
  %v3401 = vunpack.c.h.b16 %v3322
  %v3402 = vunpack.c.l.b16 %v3323
  %v3403 = vunpack.c.h.b16 %v3323
  %v3404 = vunpack.c.l.b16 %v3324
  %v3405 = vunpack.c.h.b16 %v3324
  %v3406 = vunpack.c.l.b16 %v3325
  %v3407 = vunpack.c.h.b16 %v3325
  %v3408 = vunpack.c.l.b16 %v3326
  %v3409 = vunpack.c.h.b16 %v3326
  %v3410 = vunpack.c.l.b16 %v3327
  %v3411 = vunpack.c.h.b16 %v3327
  %v3412 = vunpack.c.l.b16 %v3328
  %v3413 = vunpack.c.h.b16 %v3328
  %v3414 = vunpack.c.l.b16 %v3329
  %v3415 = vunpack.c.h.b16 %v3329
  %v3416 = vunpack.c.l.b16 %v3330
  %v3417 = vunpack.c.h.b16 %v3330
  %v3418 = vunpack.c.l.b16 %v3331
  %v3419 = vunpack.c.h.b16 %v3331
  %v3420 = vunpack.c.l.b16 %v3332
  %v3421 = vunpack.c.h.b16 %v3332
  %v3422 = vunpack.c.l.b16 %v3333
  %v3423 = vunpack.c.h.b16 %v3333
  %v3424 = vunpack.c.l.b16 %v3334
  %v3425 = vunpack.c.h.b16 %v3334
  %v3426 = vunpack.c.l.b16 %v3335
  %v3427 = vunpack.c.h.b16 %v3335
  %v3428 = vunpack.c.l.b16 %v3336
  %v3429 = vunpack.c.h.b16 %v3336
  %v3430 = vunpack.c.l.b16 %v3337
  %v3431 = vunpack.c.h.b16 %v3337
  %v3432 = vunpack.c.l.b16 %v3338
  %v3433 = vunpack.c.h.b16 %v3338
  %v3434 = vunpack.c.l.b16 %v3339
  %v3435 = vunpack.c.h.b16 %v3339
  %v3436 = vunpack.c.l.b16 %v3340
  %v3437 = vunpack.c.h.b16 %v3340
  %v3438 = vunpack.c.l.b16 %v3341
  %v3439 = vunpack.c.h.b16 %v3341
  %v3440 = vunpack.c.l.b16 %v3342
  %v3441 = vunpack.c.h.b16 %v3342
  %v3442 = vunpack.c.l.b16 %v3343
  %v3443 = vunpack.c.h.b16 %v3343
  %v3444 = vunpack.c.l.b16 %v3344
  %v3445 = vunpack.c.h.b16 %v3344
  %v3446 = vunpack.c.l.b16 %v3345
  %v3447 = vunpack.c.h.b16 %v3345
  %v3448 = vpack.c.b16 %v3386, %v3384
  %v3449 = vpack.c.b16 %v3387, %v3385
  %v3450 = vpack.c.b16 %v3390, %v3388
  %v3451 = vpack.c.b16 %v3391, %v3389
  %v3452 = vpack.c.b16 %v3394, %v3392
  %v3453 = vpack.c.b16 %v3395, %v3393
  %v3454 = vpack.c.b16 %v3398, %v3396
  %v3455 = vpack.c.b16 %v3399, %v3397
  %v3456 = vpack.c.b16 %v3402, %v3400
  %v3457 = vpack.c.b16 %v3403, %v3401
  %v3458 = vpack.c.b16 %v3406, %v3404
  %v3459 = vpack.c.b16 %v3407, %v3405
  %v3460 = vpack.c.b16 %v3410, %v3408
  %v3461 = vpack.c.b16 %v3411, %v3409
  %v3462 = vpack.c.b16 %v3414, %v3412
  %v3463 = vpack.c.b16 %v3415, %v3413
  %v3464 = vpack.c.b16 %v3418, %v3416
  %v3465 = vpack.c.b16 %v3419, %v3417
  %v3466 = vpack.c.b16 %v3422, %v3420
  %v3467 = vpack.c.b16 %v3423, %v3421
  %v3468 = vpack.c.b16 %v3426, %v3424
  %v3469 = vpack.c.b16 %v3427, %v3425
  %v3470 = vpack.c.b16 %v3430, %v3428
  %v3471 = vpack.c.b16 %v3431, %v3429
  %v3472 = vpack.c.b16 %v3434, %v3432
  %v3473 = vpack.c.b16 %v3435, %v3433
  %v3474 = vpack.c.b16 %v3438, %v3436
  %v3475 = vpack.c.b16 %v3439, %v3437
  %v3476 = vpack.c.b16 %v3442, %v3440
  %v3477 = vpack.c.b16 %v3443, %v3441
  %v3478 = vpack.c.b16 %v3446, %v3444
  %v3479 = vpack.c.b16 %v3447, %v3445
  %3512 = vmatpush.bf16.msra.mxu0 %v3462
  %3513 = vmatpush.bf16.msra.mxu0 %v3460
  %3514 = vmatpush.bf16.msra.mxu0 %v3458
  %3515 = vmatpush.bf16.msra.mxu0 %v3456
  %3516 = vmatpush.bf16.msra.mxu0 %v3454
  %3517 = vmatpush.bf16.msra.mxu0 %v3452
  %3518 = vmatpush.bf16.msra.mxu0 %v3450
  %3519 = vmatpush.bf16.msra.mxu0 %v3448
  %3520 = vmatmul.bf16.gmra.mxu0 %v3058
  %v3521 = vpop.f32.mrf.mxu0
  %v3522 = vadd.f32 %v3348, %v3521
  %v3523 = vpop.f32.mrf.mxu0
  %v3524 = vadd.f32 %v3348, %v3523
  %3525 = vdwg.mxu0
  %3526 = vmatpush.bf16.msra.mxu0 %v3478
  %3527 = vmatpush.bf16.msra.mxu0 %v3476
  %3528 = vmatpush.bf16.msra.mxu0 %v3474
  %3529 = vmatpush.bf16.msra.mxu0 %v3472
  %3530 = vmatpush.bf16.msra.mxu0 %v3470
  %3531 = vmatpush.bf16.msra.mxu0 %v3468
  %3532 = vmatpush.bf16.msra.mxu0 %v3466
  %3533 = vmatpush.bf16.msra.mxu0 %v3464
  %3534 = vmatmul.bf16.gmra.mxu0 %v3059
  %v3535 = vpop.f32.mrf.mxu0
  %v3536 = vadd.f32 %v3522, %v3535
  %v3537 = vpop.f32.mrf.mxu0
  %v3538 = vadd.f32 %v3524, %v3537
  %3539 = vdwg.mxu0
  %3540 = vmatpush.bf16.msra.mxu0 %v3463
  %3541 = vmatpush.bf16.msra.mxu0 %v3461
  %3542 = vmatpush.bf16.msra.mxu0 %v3459
  %3543 = vmatpush.bf16.msra.mxu0 %v3457
  %3544 = vmatpush.bf16.msra.mxu0 %v3455
  %3545 = vmatpush.bf16.msra.mxu0 %v3453
  %3546 = vmatpush.bf16.msra.mxu0 %v3451
  %3547 = vmatpush.bf16.msra.mxu0 %v3449
  %3548 = vmatmul.bf16.gmra.mxu0 %v3058
  %v3549 = vpop.f32.mrf.mxu0
  %v3550 = vadd.f32 %v3349, %v3549
  %v3551 = vpop.f32.mrf.mxu0
  %v3552 = vadd.f32 %v3349, %v3551
  %3553 = vdwg.mxu0
  %3554 = vmatpush.bf16.msra.mxu0 %v3479
  %3555 = vmatpush.bf16.msra.mxu0 %v3477
  %3556 = vmatpush.bf16.msra.mxu0 %v3475
  %3557 = vmatpush.bf16.msra.mxu0 %v3473
  %3558 = vmatpush.bf16.msra.mxu0 %v3471
  %3559 = vmatpush.bf16.msra.mxu0 %v3469
  %3560 = vmatpush.bf16.msra.mxu0 %v3467
  %3561 = vmatpush.bf16.msra.mxu0 %v3465
  %3562 = vmatmul.bf16.gmra.mxu0 %v3059
  %v3563 = vpop.f32.mrf.mxu0
  %v3564 = vadd.f32 %v3550, %v3563
  %v3565 = vpop.f32.mrf.mxu0
  %v3566 = vadd.f32 %v3552, %v3565
  %3567 = vdwg.mxu0
  %v3568 = vmax.f32 %v3536, 0.0
  %v3569 = vmax.f32 %v3564, 0.0
  %v3570 = vmax.f32 %v3538, 0.0
  %v3571 = vmax.f32 %v3566, 0.0
  %v3572 = vpack.c.bf16 %v3570, %v3568
  %v3573 = vpack.c.bf16 %v3571, %v3569
  %v3574 = vld [vmem:[#allocation13] sm:$0xff]
  %v3575 = vld [vmem:[#allocation13 + $0x8] sm:$0xff]
  %v3576 = vld [vmem:[#allocation13 + $0x10] sm:$0xff]
  %v3577 = vld [vmem:[#allocation13 + $0x18] sm:$0xff]
  %v3578 = vld [vmem:[#allocation13 + $0x20] sm:$0xff]
  %v3579 = vld [vmem:[#allocation13 + $0x28] sm:$0xff]
  %v3580 = vld [vmem:[#allocation13 + $0x30] sm:$0xff]
  %v3581 = vld [vmem:[#allocation13 + $0x38] sm:$0xff]
  %v3582 = vld [vmem:[#allocation13 + $0x40] sm:$0xff]
  %v3583 = vld [vmem:[#allocation13 + $0x48] sm:$0xff]
  %v3584 = vld [vmem:[#allocation13 + $0x50] sm:$0xff]
  %v3585 = vld [vmem:[#allocation13 + $0x58] sm:$0xff]
  %v3586 = vld [vmem:[#allocation13 + $0x60] sm:$0xff]
  %v3587 = vld [vmem:[#allocation13 + $0x68] sm:$0xff]
  %v3588 = vld [vmem:[#allocation13 + $0x70] sm:$0xff]
  %v3589 = vld [vmem:[#allocation13 + $0x78] sm:$0xff]
  %v3590 = vld [vmem:[#allocation13 + $0x80] sm:$0xff]
  %v3591 = vld [vmem:[#allocation13 + $0x88] sm:$0xff]
  %v3592 = vld [vmem:[#allocation13 + $0x90] sm:$0xff]
  %v3593 = vld [vmem:[#allocation13 + $0x98] sm:$0xff]
  %v3594 = vld [vmem:[#allocation13 + $0xa0] sm:$0xff]
  %v3595 = vld [vmem:[#allocation13 + $0xa8] sm:$0xff]
  %v3596 = vld [vmem:[#allocation13 + $0xb0] sm:$0xff]
  %v3597 = vld [vmem:[#allocation13 + $0xb8] sm:$0xff]
  %v3598 = vld [vmem:[#allocation13 + $0xc0] sm:$0xff]
  %v3599 = vld [vmem:[#allocation13 + $0xc8] sm:$0xff]
  %v3600 = vld [vmem:[#allocation13 + $0xd0] sm:$0xff]
  %v3601 = vld [vmem:[#allocation13 + $0xd8] sm:$0xff]
  %v3602 = vld [vmem:[#allocation13 + $0xe0] sm:$0xff]
  %v3603 = vld [vmem:[#allocation13 + $0xe8] sm:$0xff]
  %v3604 = vld [vmem:[#allocation13 + $0xf0] sm:$0xff]
  %v3605 = vld [vmem:[#allocation13 + $0xf8] sm:$0xff]
  %v3606 = vld [vmem:[%s25] sm:$0x3]
  %v3608 = vperm.slane %v3606, 0
  %v3609 = vperm.slane %v3606, 1
  %v3644 = vunpack.c.l.b16 %v3574
  %v3645 = vunpack.c.h.b16 %v3574
  %v3646 = vunpack.c.l.b16 %v3575
  %v3647 = vunpack.c.h.b16 %v3575
  %v3648 = vunpack.c.l.b16 %v3576
  %v3649 = vunpack.c.h.b16 %v3576
  %v3650 = vunpack.c.l.b16 %v3577
  %v3651 = vunpack.c.h.b16 %v3577
  %v3652 = vunpack.c.l.b16 %v3578
  %v3653 = vunpack.c.h.b16 %v3578
  %v3654 = vunpack.c.l.b16 %v3579
  %v3655 = vunpack.c.h.b16 %v3579
  %v3656 = vunpack.c.l.b16 %v3580
  %v3657 = vunpack.c.h.b16 %v3580
  %v3658 = vunpack.c.l.b16 %v3581
  %v3659 = vunpack.c.h.b16 %v3581
  %v3660 = vunpack.c.l.b16 %v3582
  %v3661 = vunpack.c.h.b16 %v3582
  %v3662 = vunpack.c.l.b16 %v3583
  %v3663 = vunpack.c.h.b16 %v3583
  %v3664 = vunpack.c.l.b16 %v3584
  %v3665 = vunpack.c.h.b16 %v3584
  %v3666 = vunpack.c.l.b16 %v3585
  %v3667 = vunpack.c.h.b16 %v3585
  %v3668 = vunpack.c.l.b16 %v3586
  %v3669 = vunpack.c.h.b16 %v3586
  %v3670 = vunpack.c.l.b16 %v3587
  %v3671 = vunpack.c.h.b16 %v3587
  %v3672 = vunpack.c.l.b16 %v3588
  %v3673 = vunpack.c.h.b16 %v3588
  %v3674 = vunpack.c.l.b16 %v3589
  %v3675 = vunpack.c.h.b16 %v3589
  %v3676 = vunpack.c.l.b16 %v3590
  %v3677 = vunpack.c.h.b16 %v3590
  %v3678 = vunpack.c.l.b16 %v3591
  %v3679 = vunpack.c.h.b16 %v3591
  %v3680 = vunpack.c.l.b16 %v3592
  %v3681 = vunpack.c.h.b16 %v3592
  %v3682 = vunpack.c.l.b16 %v3593
  %v3683 = vunpack.c.h.b16 %v3593
  %v3684 = vunpack.c.l.b16 %v3594
  %v3685 = vunpack.c.h.b16 %v3594
  %v3686 = vunpack.c.l.b16 %v3595
  %v3687 = vunpack.c.h.b16 %v3595
  %v3688 = vunpack.c.l.b16 %v3596
  %v3689 = vunpack.c.h.b16 %v3596
  %v3690 = vunpack.c.l.b16 %v3597
  %v3691 = vunpack.c.h.b16 %v3597
  %v3692 = vunpack.c.l.b16 %v3598
  %v3693 = vunpack.c.h.b16 %v3598
  %v3694 = vunpack.c.l.b16 %v3599
  %v3695 = vunpack.c.h.b16 %v3599
  %v3696 = vunpack.c.l.b16 %v3600
  %v3697 = vunpack.c.h.b16 %v3600
  %v3698 = vunpack.c.l.b16 %v3601
  %v3699 = vunpack.c.h.b16 %v3601
  %v3700 = vunpack.c.l.b16 %v3602
  %v3701 = vunpack.c.h.b16 %v3602
  %v3702 = vunpack.c.l.b16 %v3603
  %v3703 = vunpack.c.h.b16 %v3603
  %v3704 = vunpack.c.l.b16 %v3604
  %v3705 = vunpack.c.h.b16 %v3604
  %v3706 = vunpack.c.l.b16 %v3605
  %v3707 = vunpack.c.h.b16 %v3605
  %v3708 = vpack.c.b16 %v3646, %v3644
  %v3709 = vpack.c.b16 %v3647, %v3645
  %v3710 = vpack.c.b16 %v3650, %v3648
  %v3711 = vpack.c.b16 %v3651, %v3649
  %v3712 = vpack.c.b16 %v3654, %v3652
  %v3713 = vpack.c.b16 %v3655, %v3653
  %v3714 = vpack.c.b16 %v3658, %v3656
  %v3715 = vpack.c.b16 %v3659, %v3657
  %v3716 = vpack.c.b16 %v3662, %v3660
  %v3717 = vpack.c.b16 %v3663, %v3661
  %v3718 = vpack.c.b16 %v3666, %v3664
  %v3719 = vpack.c.b16 %v3667, %v3665
  %v3720 = vpack.c.b16 %v3670, %v3668
  %v3721 = vpack.c.b16 %v3671, %v3669
  %v3722 = vpack.c.b16 %v3674, %v3672
  %v3723 = vpack.c.b16 %v3675, %v3673
  %v3724 = vpack.c.b16 %v3678, %v3676
  %v3725 = vpack.c.b16 %v3679, %v3677
  %v3726 = vpack.c.b16 %v3682, %v3680
  %v3727 = vpack.c.b16 %v3683, %v3681
  %v3728 = vpack.c.b16 %v3686, %v3684
  %v3729 = vpack.c.b16 %v3687, %v3685
  %v3730 = vpack.c.b16 %v3690, %v3688
  %v3731 = vpack.c.b16 %v3691, %v3689
  %v3732 = vpack.c.b16 %v3694, %v3692
  %v3733 = vpack.c.b16 %v3695, %v3693
  %v3734 = vpack.c.b16 %v3698, %v3696
  %v3735 = vpack.c.b16 %v3699, %v3697
  %v3736 = vpack.c.b16 %v3702, %v3700
  %v3737 = vpack.c.b16 %v3703, %v3701
  %v3738 = vpack.c.b16 %v3706, %v3704
  %v3739 = vpack.c.b16 %v3707, %v3705
  %3772 = vmatpush.bf16.msra.mxu0 %v3722
  %3773 = vmatpush.bf16.msra.mxu0 %v3720
  %3774 = vmatpush.bf16.msra.mxu0 %v3718
  %3775 = vmatpush.bf16.msra.mxu0 %v3716
  %3776 = vmatpush.bf16.msra.mxu0 %v3714
  %3777 = vmatpush.bf16.msra.mxu0 %v3712
  %3778 = vmatpush.bf16.msra.mxu0 %v3710
  %3779 = vmatpush.bf16.msra.mxu0 %v3708
  %3780 = vmatmul.bf16.gmra.mxu0 %v3572
  %v3781 = vpop.f32.mrf.mxu0
  %v3782 = vadd.f32 %v3608, %v3781
  %v3783 = vpop.f32.mrf.mxu0
  %v3784 = vadd.f32 %v3608, %v3783
  %3785 = vdwg.mxu0
  %3786 = vmatpush.bf16.msra.mxu0 %v3738
  %3787 = vmatpush.bf16.msra.mxu0 %v3736
  %3788 = vmatpush.bf16.msra.mxu0 %v3734
  %3789 = vmatpush.bf16.msra.mxu0 %v3732
  %3790 = vmatpush.bf16.msra.mxu0 %v3730
  %3791 = vmatpush.bf16.msra.mxu0 %v3728
  %3792 = vmatpush.bf16.msra.mxu0 %v3726
  %3793 = vmatpush.bf16.msra.mxu0 %v3724
  %3794 = vmatmul.bf16.gmra.mxu0 %v3573
  %v3795 = vpop.f32.mrf.mxu0
  %v3796 = vadd.f32 %v3782, %v3795
  %v3797 = vpop.f32.mrf.mxu0
  %v3798 = vadd.f32 %v3784, %v3797
  %3799 = vdwg.mxu0
  %3800 = vmatpush.bf16.msra.mxu0 %v3723
  %3801 = vmatpush.bf16.msra.mxu0 %v3721
  %3802 = vmatpush.bf16.msra.mxu0 %v3719
  %3803 = vmatpush.bf16.msra.mxu0 %v3717
  %3804 = vmatpush.bf16.msra.mxu0 %v3715
  %3805 = vmatpush.bf16.msra.mxu0 %v3713
  %3806 = vmatpush.bf16.msra.mxu0 %v3711
  %3807 = vmatpush.bf16.msra.mxu0 %v3709
  %3808 = vmatmul.bf16.gmra.mxu0 %v3572
  %v3809 = vpop.f32.mrf.mxu0
  %v3810 = vadd.f32 %v3609, %v3809
  %v3811 = vpop.f32.mrf.mxu0
  %v3812 = vadd.f32 %v3609, %v3811
  %3813 = vdwg.mxu0
  %3814 = vmatpush.bf16.msra.mxu0 %v3739
  %3815 = vmatpush.bf16.msra.mxu0 %v3737
  %3816 = vmatpush.bf16.msra.mxu0 %v3735
  %3817 = vmatpush.bf16.msra.mxu0 %v3733
  %3818 = vmatpush.bf16.msra.mxu0 %v3731
  %3819 = vmatpush.bf16.msra.mxu0 %v3729
  %3820 = vmatpush.bf16.msra.mxu0 %v3727
  %3821 = vmatpush.bf16.msra.mxu0 %v3725
  %3822 = vmatmul.bf16.gmra.mxu0 %v3573
  %v3823 = vpop.f32.mrf.mxu0
  %v3824 = vadd.f32 %v3810, %v3823
  %v3825 = vpop.f32.mrf.mxu0
  %v3826 = vadd.f32 %v3812, %v3825
  %3827 = vdwg.mxu0
  %v3828 = vadd.f32 %v3796, %v3282
  %v3829 = vadd.f32 %v3824, %v3310
  %v3830 = vadd.f32 %v3798, %v3284
  %v3831 = vadd.f32 %v3826, %v3312
  %v3832 = vmax.f32 %v3828, 0.0
  %v3833 = vmax.f32 %v3829, 0.0
  %v3834 = vmax.f32 %v3830, 0.0
  %v3835 = vmax.f32 %v3831, 0.0
  %s3836 = scalar_lea.sflag [#allocation23], 15
  // Predicated region
  $region150: #{image_inertial_encoder_forward.1} parent=0 // pred_check
    _
  $region151: #{image_inertial_encoder_forward.1} parent=0 // pred_check_branch
    %3838 = sbr.rel target = $region153
  $region152: #{image_inertial_encoder_forward.1} parent=0 // pred_region
    %3839 = sst [smem:[#allocation26]] [#allocation57]
    %3840 = sst [smem:[#allocation27]] [#allocation56]
  $region153: #{image_inertial_encoder_forward.1} parent=0 // pred_fallthru
    _
  %3842 = shalt.err (0)
  %s3844 = sshll.u32 %s75, 4
  %s3845 = int_to_ptr.hbm [resolvable:$true] %s3844
  %s3846 = sshll.u32 [#allocation17], 4
  %s3847 = int_to_ptr.vmem [resolvable:$true] %s3846
  %3849 = dma.hbm_to_vmem [thread:$0]  %s3845, 8192, %s3847, %s3836
  %s3850 = scalar_lea.sflag [#allocation23], 16
  // Predicated region
  $region154: #{image_inertial_encoder_forward.1} parent=0 // pred_check
    _
  $region155: #{image_inertial_encoder_forward.1} parent=0 // pred_check_branch
    %3852 = sbr.rel target = $region157
  $region156: #{image_inertial_encoder_forward.1} parent=0 // pred_region
    %3853 = sst [smem:[#allocation26]] [#allocation59]
    %3854 = sst [smem:[#allocation27]] [#allocation58]
  $region157: #{image_inertial_encoder_forward.1} parent=0 // pred_fallthru
    _
  %3856 = shalt.err (0)
  %s3858 = sshll.u32 %s77, 4
  %s3859 = int_to_ptr.hbm [resolvable:$true] %s3858
  %s3860 = sshll.u32 [#allocation18], 4
  %s3861 = int_to_ptr.vmem [resolvable:$true] %s3860
  %3863 = dma.hbm_to_vmem [thread:$0]  %s3859, 16384, %s3861, %s3850
  %s3864 = scalar_lea.sflag [#allocation23], 17
  // Predicated region
  $region158: #{image_inertial_encoder_forward.1} parent=0 // pred_check
    _
  $region159: #{image_inertial_encoder_forward.1} parent=0 // pred_check_branch
    %3866 = sbr.rel (0) target = $region161
  $region160: #{image_inertial_encoder_forward.1} parent=0 // pred_region
    loop: start=0, step=1, limit=1
    $region162: #{image_inertial_encoder_forward.1} parent=160 // loop_pre_header
      _
    $region163: #{image_inertial_encoder_forward.1} parent=160 // loop_header
      %s3868 = sphi 0, %s3872
      %p3869 = scmp.ge.s32.totalorder %s3868, 1
      %s3873 = sphi %s79, %s79
      %s3874 = sphi [#allocation19], [#allocation19]
    $region164: #{image_inertial_encoder_forward.1} parent=160 // loop_header_branch
      %3871 = sbr.rel (%p3869) target = $region168
    $region165: #{image_inertial_encoder_forward.1} parent=160 // loop_body
      %v3875 = vld [vmem:[%s3873] sm:$0xff]
      %3876 = vst [vmem:[%s3874] sm:$0xff] %v3875
      %v3877 = vld [vmem:[%s3873 + $0x8] sm:$0xff]
      %3878 = vst [vmem:[%s3874 + $0x8] sm:$0xff] %v3877
      %v3879 = vld [vmem:[%s3873 + $0x10] sm:$0xff]
      %3880 = vst [vmem:[%s3874 + $0x10] sm:$0xff] %v3879
      %v3881 = vld [vmem:[%s3873 + $0x18] sm:$0xff]
      %3882 = vst [vmem:[%s3874 + $0x18] sm:$0xff] %v3881
      %v3883 = vld [vmem:[%s3873 + $0x20] sm:$0xff]
      %3884 = vst [vmem:[%s3874 + $0x20] sm:$0xff] %v3883
      %v3885 = vld [vmem:[%s3873 + $0x28] sm:$0xff]
      %3886 = vst [vmem:[%s3874 + $0x28] sm:$0xff] %v3885
      %v3887 = vld [vmem:[%s3873 + $0x30] sm:$0xff]
      %3888 = vst [vmem:[%s3874 + $0x30] sm:$0xff] %v3887
      %v3889 = vld [vmem:[%s3873 + $0x38] sm:$0xff]
      %3890 = vst [vmem:[%s3874 + $0x38] sm:$0xff] %v3889
      %v3891 = vld [vmem:[%s3873 + $0x40] sm:$0xff]
      %3892 = vst [vmem:[%s3874 + $0x40] sm:$0xff] %v3891
      %v3893 = vld [vmem:[%s3873 + $0x48] sm:$0xff]
      %3894 = vst [vmem:[%s3874 + $0x48] sm:$0xff] %v3893
      %v3895 = vld [vmem:[%s3873 + $0x50] sm:$0xff]
      %3896 = vst [vmem:[%s3874 + $0x50] sm:$0xff] %v3895
      %v3897 = vld [vmem:[%s3873 + $0x58] sm:$0xff]
      %3898 = vst [vmem:[%s3874 + $0x58] sm:$0xff] %v3897
      %v3899 = vld [vmem:[%s3873 + $0x60] sm:$0xff]
      %3900 = vst [vmem:[%s3874 + $0x60] sm:$0xff] %v3899
      %v3901 = vld [vmem:[%s3873 + $0x68] sm:$0xff]
      %3902 = vst [vmem:[%s3874 + $0x68] sm:$0xff] %v3901
      %v3903 = vld [vmem:[%s3873 + $0x70] sm:$0xff]
      %3904 = vst [vmem:[%s3874 + $0x70] sm:$0xff] %v3903
      %v3905 = vld [vmem:[%s3873 + $0x78] sm:$0xff]
      %3906 = vst [vmem:[%s3874 + $0x78] sm:$0xff] %v3905
      %v3907 = vld [vmem:[%s3873 + $0x80] sm:$0xff]
      %3908 = vst [vmem:[%s3874 + $0x80] sm:$0xff] %v3907
      %v3909 = vld [vmem:[%s3873 + $0x88] sm:$0xff]
      %3910 = vst [vmem:[%s3874 + $0x88] sm:$0xff] %v3909
      %v3911 = vld [vmem:[%s3873 + $0x90] sm:$0xff]
      %3912 = vst [vmem:[%s3874 + $0x90] sm:$0xff] %v3911
      %v3913 = vld [vmem:[%s3873 + $0x98] sm:$0xff]
      %3914 = vst [vmem:[%s3874 + $0x98] sm:$0xff] %v3913
      %v3915 = vld [vmem:[%s3873 + $0xa0] sm:$0xff]
      %3916 = vst [vmem:[%s3874 + $0xa0] sm:$0xff] %v3915
      %v3917 = vld [vmem:[%s3873 + $0xa8] sm:$0xff]
      %3918 = vst [vmem:[%s3874 + $0xa8] sm:$0xff] %v3917
      %v3919 = vld [vmem:[%s3873 + $0xb0] sm:$0xff]
      %3920 = vst [vmem:[%s3874 + $0xb0] sm:$0xff] %v3919
      %v3921 = vld [vmem:[%s3873 + $0xb8] sm:$0xff]
      %3922 = vst [vmem:[%s3874 + $0xb8] sm:$0xff] %v3921
      %v3923 = vld [vmem:[%s3873 + $0xc0] sm:$0xff]
      %3924 = vst [vmem:[%s3874 + $0xc0] sm:$0xff] %v3923
      %v3925 = vld [vmem:[%s3873 + $0xc8] sm:$0xff]
      %3926 = vst [vmem:[%s3874 + $0xc8] sm:$0xff] %v3925
      %v3927 = vld [vmem:[%s3873 + $0xd0] sm:$0xff]
      %3928 = vst [vmem:[%s3874 + $0xd0] sm:$0xff] %v3927
      %v3929 = vld [vmem:[%s3873 + $0xd8] sm:$0xff]
      %3930 = vst [vmem:[%s3874 + $0xd8] sm:$0xff] %v3929
      %v3931 = vld [vmem:[%s3873 + $0xe0] sm:$0xff]
      %3932 = vst [vmem:[%s3874 + $0xe0] sm:$0xff] %v3931
      %v3933 = vld [vmem:[%s3873 + $0xe8] sm:$0xff]
      %3934 = vst [vmem:[%s3874 + $0xe8] sm:$0xff] %v3933
      %v3935 = vld [vmem:[%s3873 + $0xf0] sm:$0xff]
      %3936 = vst [vmem:[%s3874 + $0xf0] sm:$0xff] %v3935
      %v3937 = vld [vmem:[%s3873 + $0xf8] sm:$0xff]
      %3938 = vst [vmem:[%s3874 + $0xf8] sm:$0xff] %v3937
      %v3939 = vld [vmem:[%s3873 + $0x100] sm:$0xff]
      %3940 = vst [vmem:[%s3874 + $0x100] sm:$0xff] %v3939
      %v3941 = vld [vmem:[%s3873 + $0x108] sm:$0xff]
      %3942 = vst [vmem:[%s3874 + $0x108] sm:$0xff] %v3941
      %v3943 = vld [vmem:[%s3873 + $0x110] sm:$0xff]
      %3944 = vst [vmem:[%s3874 + $0x110] sm:$0xff] %v3943
      %v3945 = vld [vmem:[%s3873 + $0x118] sm:$0xff]
      %3946 = vst [vmem:[%s3874 + $0x118] sm:$0xff] %v3945
      %v3947 = vld [vmem:[%s3873 + $0x120] sm:$0xff]
      %3948 = vst [vmem:[%s3874 + $0x120] sm:$0xff] %v3947
      %v3949 = vld [vmem:[%s3873 + $0x128] sm:$0xff]
      %3950 = vst [vmem:[%s3874 + $0x128] sm:$0xff] %v3949
      %v3951 = vld [vmem:[%s3873 + $0x130] sm:$0xff]
      %3952 = vst [vmem:[%s3874 + $0x130] sm:$0xff] %v3951
      %v3953 = vld [vmem:[%s3873 + $0x138] sm:$0xff]
      %3954 = vst [vmem:[%s3874 + $0x138] sm:$0xff] %v3953
      %v3955 = vld [vmem:[%s3873 + $0x140] sm:$0xff]
      %3956 = vst [vmem:[%s3874 + $0x140] sm:$0xff] %v3955
      %v3957 = vld [vmem:[%s3873 + $0x148] sm:$0xff]
      %3958 = vst [vmem:[%s3874 + $0x148] sm:$0xff] %v3957
      %v3959 = vld [vmem:[%s3873 + $0x150] sm:$0xff]
      %3960 = vst [vmem:[%s3874 + $0x150] sm:$0xff] %v3959
      %v3961 = vld [vmem:[%s3873 + $0x158] sm:$0xff]
      %3962 = vst [vmem:[%s3874 + $0x158] sm:$0xff] %v3961
      %v3963 = vld [vmem:[%s3873 + $0x160] sm:$0xff]
      %3964 = vst [vmem:[%s3874 + $0x160] sm:$0xff] %v3963
      %v3965 = vld [vmem:[%s3873 + $0x168] sm:$0xff]
      %3966 = vst [vmem:[%s3874 + $0x168] sm:$0xff] %v3965
      %v3967 = vld [vmem:[%s3873 + $0x170] sm:$0xff]
      %3968 = vst [vmem:[%s3874 + $0x170] sm:$0xff] %v3967
      %v3969 = vld [vmem:[%s3873 + $0x178] sm:$0xff]
      %3970 = vst [vmem:[%s3874 + $0x178] sm:$0xff] %v3969
      %v3971 = vld [vmem:[%s3873 + $0x180] sm:$0xff]
      %3972 = vst [vmem:[%s3874 + $0x180] sm:$0xff] %v3971
      %v3973 = vld [vmem:[%s3873 + $0x188] sm:$0xff]
      %3974 = vst [vmem:[%s3874 + $0x188] sm:$0xff] %v3973
      %v3975 = vld [vmem:[%s3873 + $0x190] sm:$0xff]
      %3976 = vst [vmem:[%s3874 + $0x190] sm:$0xff] %v3975
      %v3977 = vld [vmem:[%s3873 + $0x198] sm:$0xff]
      %3978 = vst [vmem:[%s3874 + $0x198] sm:$0xff] %v3977
      %v3979 = vld [vmem:[%s3873 + $0x1a0] sm:$0xff]
      %3980 = vst [vmem:[%s3874 + $0x1a0] sm:$0xff] %v3979
      %v3981 = vld [vmem:[%s3873 + $0x1a8] sm:$0xff]
      %3982 = vst [vmem:[%s3874 + $0x1a8] sm:$0xff] %v3981
      %v3983 = vld [vmem:[%s3873 + $0x1b0] sm:$0xff]
      %3984 = vst [vmem:[%s3874 + $0x1b0] sm:$0xff] %v3983
      %v3985 = vld [vmem:[%s3873 + $0x1b8] sm:$0xff]
      %3986 = vst [vmem:[%s3874 + $0x1b8] sm:$0xff] %v3985
      %v3987 = vld [vmem:[%s3873 + $0x1c0] sm:$0xff]
      %3988 = vst [vmem:[%s3874 + $0x1c0] sm:$0xff] %v3987
      %v3989 = vld [vmem:[%s3873 + $0x1c8] sm:$0xff]
      %3990 = vst [vmem:[%s3874 + $0x1c8] sm:$0xff] %v3989
      %v3991 = vld [vmem:[%s3873 + $0x1d0] sm:$0xff]
      %3992 = vst [vmem:[%s3874 + $0x1d0] sm:$0xff] %v3991
      %v3993 = vld [vmem:[%s3873 + $0x1d8] sm:$0xff]
      %3994 = vst [vmem:[%s3874 + $0x1d8] sm:$0xff] %v3993
      %v3995 = vld [vmem:[%s3873 + $0x1e0] sm:$0xff]
      %3996 = vst [vmem:[%s3874 + $0x1e0] sm:$0xff] %v3995
      %v3997 = vld [vmem:[%s3873 + $0x1e8] sm:$0xff]
      %3998 = vst [vmem:[%s3874 + $0x1e8] sm:$0xff] %v3997
      %v3999 = vld [vmem:[%s3873 + $0x1f0] sm:$0xff]
      %4000 = vst [vmem:[%s3874 + $0x1f0] sm:$0xff] %v3999
      %v4001 = vld [vmem:[%s3873 + $0x1f8] sm:$0xff]
      %4002 = vst [vmem:[%s3874 + $0x1f8] sm:$0xff] %v4001
    $region166: #{image_inertial_encoder_forward.1} parent=160 // loop_footer
      %s3872 = sadd.s32 1, %s3868
    $region167: #{image_inertial_encoder_forward.1} parent=160 // loop_footer_branch
      %3867 = sbr.rel target = $region163
    $region168: #{image_inertial_encoder_forward.1} parent=160 // loop_exit
      _
  $region161: #{image_inertial_encoder_forward.1} parent=0 // pred_fallthru
    _
  // Predicated region
  $region169: #{image_inertial_encoder_forward.1} parent=0 // pred_check
    _
  $region170: #{image_inertial_encoder_forward.1} parent=0 // pred_check_branch
    %4004 = sbr.rel target = $region172
  $region171: #{image_inertial_encoder_forward.1} parent=0 // pred_region
    _
  $region172: #{image_inertial_encoder_forward.1} parent=0 // pred_fallthru
    _
  // Predicated region
  $region173: #{image_inertial_encoder_forward.1} parent=0 // pred_check
    _
  $region174: #{image_inertial_encoder_forward.1} parent=0 // pred_check_branch
    %4007 = sbr.rel (0) target = $region176
  $region175: #{image_inertial_encoder_forward.1} parent=0 // pred_region
    %4008 = vsyncadd %s3864, 8192
  $region176: #{image_inertial_encoder_forward.1} parent=0 // pred_fallthru
    _
  %s4009 = sshll.u32 %s543, 4
  %4010 = dma.done %s3024, %s4009
  %s4011 = sshll.u32 %s543, 4
  %4012 = dma.done %s3038, %s4011
  %v4013 = vpack.c.bf16 %v3834, %v3832
  %v4014 = vpack.c.bf16 %v3835, %v3833
  %v4015 = vld [vmem:[#allocation15] sm:$0xff]
  %v4016 = vld [vmem:[#allocation15 + $0x8] sm:$0xff]
  %v4017 = vld [vmem:[#allocation15 + $0x10] sm:$0xff]
  %v4018 = vld [vmem:[#allocation15 + $0x18] sm:$0xff]
  %v4019 = vld [vmem:[#allocation15 + $0x20] sm:$0xff]
  %v4020 = vld [vmem:[#allocation15 + $0x28] sm:$0xff]
  %v4021 = vld [vmem:[#allocation15 + $0x30] sm:$0xff]
  %v4022 = vld [vmem:[#allocation15 + $0x38] sm:$0xff]
  %v4023 = vld [vmem:[#allocation15 + $0x40] sm:$0xff]
  %v4024 = vld [vmem:[#allocation15 + $0x48] sm:$0xff]
  %v4025 = vld [vmem:[#allocation15 + $0x50] sm:$0xff]
  %v4026 = vld [vmem:[#allocation15 + $0x58] sm:$0xff]
  %v4027 = vld [vmem:[#allocation15 + $0x60] sm:$0xff]
  %v4028 = vld [vmem:[#allocation15 + $0x68] sm:$0xff]
  %v4029 = vld [vmem:[#allocation15 + $0x70] sm:$0xff]
  %v4030 = vld [vmem:[#allocation15 + $0x78] sm:$0xff]
  %v4031 = vld [vmem:[#allocation15 + $0x80] sm:$0xff]
  %v4032 = vld [vmem:[#allocation15 + $0x88] sm:$0xff]
  %v4033 = vld [vmem:[#allocation15 + $0x90] sm:$0xff]
  %v4034 = vld [vmem:[#allocation15 + $0x98] sm:$0xff]
  %v4035 = vld [vmem:[#allocation15 + $0xa0] sm:$0xff]
  %v4036 = vld [vmem:[#allocation15 + $0xa8] sm:$0xff]
  %v4037 = vld [vmem:[#allocation15 + $0xb0] sm:$0xff]
  %v4038 = vld [vmem:[#allocation15 + $0xb8] sm:$0xff]
  %v4039 = vld [vmem:[#allocation15 + $0xc0] sm:$0xff]
  %v4040 = vld [vmem:[#allocation15 + $0xc8] sm:$0xff]
  %v4041 = vld [vmem:[#allocation15 + $0xd0] sm:$0xff]
  %v4042 = vld [vmem:[#allocation15 + $0xd8] sm:$0xff]
  %v4043 = vld [vmem:[#allocation15 + $0xe0] sm:$0xff]
  %v4044 = vld [vmem:[#allocation15 + $0xe8] sm:$0xff]
  %v4045 = vld [vmem:[#allocation15 + $0xf0] sm:$0xff]
  %v4046 = vld [vmem:[#allocation15 + $0xf8] sm:$0xff]
  %v4047 = vld [vmem:[%s29] sm:$0x3]
  %v4049 = vperm.slane %v4047, 0
  %v4050 = vperm.slane %v4047, 1
  %v4085 = vunpack.c.l.b16 %v4015
  %v4086 = vunpack.c.h.b16 %v4015
  %v4087 = vunpack.c.l.b16 %v4016
  %v4088 = vunpack.c.h.b16 %v4016
  %v4089 = vunpack.c.l.b16 %v4017
  %v4090 = vunpack.c.h.b16 %v4017
  %v4091 = vunpack.c.l.b16 %v4018
  %v4092 = vunpack.c.h.b16 %v4018
  %v4093 = vunpack.c.l.b16 %v4019
  %v4094 = vunpack.c.h.b16 %v4019
  %v4095 = vunpack.c.l.b16 %v4020
  %v4096 = vunpack.c.h.b16 %v4020
  %v4097 = vunpack.c.l.b16 %v4021
  %v4098 = vunpack.c.h.b16 %v4021
  %v4099 = vunpack.c.l.b16 %v4022
  %v4100 = vunpack.c.h.b16 %v4022
  %v4101 = vunpack.c.l.b16 %v4023
  %v4102 = vunpack.c.h.b16 %v4023
  %v4103 = vunpack.c.l.b16 %v4024
  %v4104 = vunpack.c.h.b16 %v4024
  %v4105 = vunpack.c.l.b16 %v4025
  %v4106 = vunpack.c.h.b16 %v4025
  %v4107 = vunpack.c.l.b16 %v4026
  %v4108 = vunpack.c.h.b16 %v4026
  %v4109 = vunpack.c.l.b16 %v4027
  %v4110 = vunpack.c.h.b16 %v4027
  %v4111 = vunpack.c.l.b16 %v4028
  %v4112 = vunpack.c.h.b16 %v4028
  %v4113 = vunpack.c.l.b16 %v4029
  %v4114 = vunpack.c.h.b16 %v4029
  %v4115 = vunpack.c.l.b16 %v4030
  %v4116 = vunpack.c.h.b16 %v4030
  %v4117 = vunpack.c.l.b16 %v4031
  %v4118 = vunpack.c.h.b16 %v4031
  %v4119 = vunpack.c.l.b16 %v4032
  %v4120 = vunpack.c.h.b16 %v4032
  %v4121 = vunpack.c.l.b16 %v4033
  %v4122 = vunpack.c.h.b16 %v4033
  %v4123 = vunpack.c.l.b16 %v4034
  %v4124 = vunpack.c.h.b16 %v4034
  %v4125 = vunpack.c.l.b16 %v4035
  %v4126 = vunpack.c.h.b16 %v4035
  %v4127 = vunpack.c.l.b16 %v4036
  %v4128 = vunpack.c.h.b16 %v4036
  %v4129 = vunpack.c.l.b16 %v4037
  %v4130 = vunpack.c.h.b16 %v4037
  %v4131 = vunpack.c.l.b16 %v4038
  %v4132 = vunpack.c.h.b16 %v4038
  %v4133 = vunpack.c.l.b16 %v4039
  %v4134 = vunpack.c.h.b16 %v4039
  %v4135 = vunpack.c.l.b16 %v4040
  %v4136 = vunpack.c.h.b16 %v4040
  %v4137 = vunpack.c.l.b16 %v4041
  %v4138 = vunpack.c.h.b16 %v4041
  %v4139 = vunpack.c.l.b16 %v4042
  %v4140 = vunpack.c.h.b16 %v4042
  %v4141 = vunpack.c.l.b16 %v4043
  %v4142 = vunpack.c.h.b16 %v4043
  %v4143 = vunpack.c.l.b16 %v4044
  %v4144 = vunpack.c.h.b16 %v4044
  %v4145 = vunpack.c.l.b16 %v4045
  %v4146 = vunpack.c.h.b16 %v4045
  %v4147 = vunpack.c.l.b16 %v4046
  %v4148 = vunpack.c.h.b16 %v4046
  %v4149 = vpack.c.b16 %v4087, %v4085
  %v4150 = vpack.c.b16 %v4088, %v4086
  %v4151 = vpack.c.b16 %v4091, %v4089
  %v4152 = vpack.c.b16 %v4092, %v4090
  %v4153 = vpack.c.b16 %v4095, %v4093
  %v4154 = vpack.c.b16 %v4096, %v4094
  %v4155 = vpack.c.b16 %v4099, %v4097
  %v4156 = vpack.c.b16 %v4100, %v4098
  %v4157 = vpack.c.b16 %v4103, %v4101
  %v4158 = vpack.c.b16 %v4104, %v4102
  %v4159 = vpack.c.b16 %v4107, %v4105
  %v4160 = vpack.c.b16 %v4108, %v4106
  %v4161 = vpack.c.b16 %v4111, %v4109
  %v4162 = vpack.c.b16 %v4112, %v4110
  %v4163 = vpack.c.b16 %v4115, %v4113
  %v4164 = vpack.c.b16 %v4116, %v4114
  %v4165 = vpack.c.b16 %v4119, %v4117
  %v4166 = vpack.c.b16 %v4120, %v4118
  %v4167 = vpack.c.b16 %v4123, %v4121
  %v4168 = vpack.c.b16 %v4124, %v4122
  %v4169 = vpack.c.b16 %v4127, %v4125
  %v4170 = vpack.c.b16 %v4128, %v4126
  %v4171 = vpack.c.b16 %v4131, %v4129
  %v4172 = vpack.c.b16 %v4132, %v4130
  %v4173 = vpack.c.b16 %v4135, %v4133
  %v4174 = vpack.c.b16 %v4136, %v4134
  %v4175 = vpack.c.b16 %v4139, %v4137
  %v4176 = vpack.c.b16 %v4140, %v4138
  %v4177 = vpack.c.b16 %v4143, %v4141
  %v4178 = vpack.c.b16 %v4144, %v4142
  %v4179 = vpack.c.b16 %v4147, %v4145
  %v4180 = vpack.c.b16 %v4148, %v4146
  %4213 = vmatpush.bf16.msra.mxu0 %v4163
  %4214 = vmatpush.bf16.msra.mxu0 %v4161
  %4215 = vmatpush.bf16.msra.mxu0 %v4159
  %4216 = vmatpush.bf16.msra.mxu0 %v4157
  %4217 = vmatpush.bf16.msra.mxu0 %v4155
  %4218 = vmatpush.bf16.msra.mxu0 %v4153
  %4219 = vmatpush.bf16.msra.mxu0 %v4151
  %4220 = vmatpush.bf16.msra.mxu0 %v4149
  %4221 = vmatmul.bf16.gmra.mxu0 %v4013
  %v4222 = vpop.f32.mrf.mxu0
  %v4223 = vadd.f32 %v4049, %v4222
  %v4224 = vpop.f32.mrf.mxu0
  %v4225 = vadd.f32 %v4049, %v4224
  %4226 = vdwg.mxu0
  %4227 = vmatpush.bf16.msra.mxu0 %v4179
  %4228 = vmatpush.bf16.msra.mxu0 %v4177
  %4229 = vmatpush.bf16.msra.mxu0 %v4175
  %4230 = vmatpush.bf16.msra.mxu0 %v4173
  %4231 = vmatpush.bf16.msra.mxu0 %v4171
  %4232 = vmatpush.bf16.msra.mxu0 %v4169
  %4233 = vmatpush.bf16.msra.mxu0 %v4167
  %4234 = vmatpush.bf16.msra.mxu0 %v4165
  %4235 = vmatmul.bf16.gmra.mxu0 %v4014
  %v4236 = vpop.f32.mrf.mxu0
  %v4237 = vadd.f32 %v4223, %v4236
  %v4238 = vpop.f32.mrf.mxu0
  %v4239 = vadd.f32 %v4225, %v4238
  %4240 = vdwg.mxu0
  %4241 = vmatpush.bf16.msra.mxu0 %v4164
  %4242 = vmatpush.bf16.msra.mxu0 %v4162
  %4243 = vmatpush.bf16.msra.mxu0 %v4160
  %4244 = vmatpush.bf16.msra.mxu0 %v4158
  %4245 = vmatpush.bf16.msra.mxu0 %v4156
  %4246 = vmatpush.bf16.msra.mxu0 %v4154
  %4247 = vmatpush.bf16.msra.mxu0 %v4152
  %4248 = vmatpush.bf16.msra.mxu0 %v4150
  %4249 = vmatmul.bf16.gmra.mxu0 %v4013
  %v4250 = vpop.f32.mrf.mxu0
  %v4251 = vadd.f32 %v4050, %v4250
  %v4252 = vpop.f32.mrf.mxu0
  %v4253 = vadd.f32 %v4050, %v4252
  %4254 = vdwg.mxu0
  %4255 = vmatpush.bf16.msra.mxu0 %v4180
  %4256 = vmatpush.bf16.msra.mxu0 %v4178
  %4257 = vmatpush.bf16.msra.mxu0 %v4176
  %4258 = vmatpush.bf16.msra.mxu0 %v4174
  %4259 = vmatpush.bf16.msra.mxu0 %v4172
  %4260 = vmatpush.bf16.msra.mxu0 %v4170
  %4261 = vmatpush.bf16.msra.mxu0 %v4168
  %4262 = vmatpush.bf16.msra.mxu0 %v4166
  %4263 = vmatmul.bf16.gmra.mxu0 %v4014
  %v4264 = vpop.f32.mrf.mxu0
  %v4265 = vadd.f32 %v4251, %v4264
  %v4266 = vpop.f32.mrf.mxu0
  %v4267 = vadd.f32 %v4253, %v4266
  %4268 = vdwg.mxu0
  %v4269 = vmax.f32 %v4237, 0.0
  %v4270 = vmax.f32 %v4265, 0.0
  %v4271 = vmax.f32 %v4239, 0.0
  %v4272 = vmax.f32 %v4267, 0.0
  %v4273 = vpack.c.bf16 %v4271, %v4269
  %v4274 = vpack.c.bf16 %v4272, %v4270
  %v4275 = vld [vmem:[#allocation16] sm:$0xff]
  %v4276 = vld [vmem:[#allocation16 + $0x8] sm:$0xff]
  %v4277 = vld [vmem:[#allocation16 + $0x10] sm:$0xff]
  %v4278 = vld [vmem:[#allocation16 + $0x18] sm:$0xff]
  %v4279 = vld [vmem:[#allocation16 + $0x20] sm:$0xff]
  %v4280 = vld [vmem:[#allocation16 + $0x28] sm:$0xff]
  %v4281 = vld [vmem:[#allocation16 + $0x30] sm:$0xff]
  %v4282 = vld [vmem:[#allocation16 + $0x38] sm:$0xff]
  %v4283 = vld [vmem:[#allocation16 + $0x40] sm:$0xff]
  %v4284 = vld [vmem:[#allocation16 + $0x48] sm:$0xff]
  %v4285 = vld [vmem:[#allocation16 + $0x50] sm:$0xff]
  %v4286 = vld [vmem:[#allocation16 + $0x58] sm:$0xff]
  %v4287 = vld [vmem:[#allocation16 + $0x60] sm:$0xff]
  %v4288 = vld [vmem:[#allocation16 + $0x68] sm:$0xff]
  %v4289 = vld [vmem:[#allocation16 + $0x70] sm:$0xff]
  %v4290 = vld [vmem:[#allocation16 + $0x78] sm:$0xff]
  %v4291 = vld [vmem:[#allocation16 + $0x80] sm:$0xff]
  %v4292 = vld [vmem:[#allocation16 + $0x88] sm:$0xff]
  %v4293 = vld [vmem:[#allocation16 + $0x90] sm:$0xff]
  %v4294 = vld [vmem:[#allocation16 + $0x98] sm:$0xff]
  %v4295 = vld [vmem:[#allocation16 + $0xa0] sm:$0xff]
  %v4296 = vld [vmem:[#allocation16 + $0xa8] sm:$0xff]
  %v4297 = vld [vmem:[#allocation16 + $0xb0] sm:$0xff]
  %v4298 = vld [vmem:[#allocation16 + $0xb8] sm:$0xff]
  %v4299 = vld [vmem:[#allocation16 + $0xc0] sm:$0xff]
  %v4300 = vld [vmem:[#allocation16 + $0xc8] sm:$0xff]
  %v4301 = vld [vmem:[#allocation16 + $0xd0] sm:$0xff]
  %v4302 = vld [vmem:[#allocation16 + $0xd8] sm:$0xff]
  %v4303 = vld [vmem:[#allocation16 + $0xe0] sm:$0xff]
  %v4304 = vld [vmem:[#allocation16 + $0xe8] sm:$0xff]
  %v4305 = vld [vmem:[#allocation16 + $0xf0] sm:$0xff]
  %v4306 = vld [vmem:[#allocation16 + $0xf8] sm:$0xff]
  %v4307 = vld [vmem:[%s31] sm:$0x3]
  %v4309 = vperm.slane %v4307, 0
  %v4310 = vperm.slane %v4307, 1
  %v4345 = vunpack.c.l.b16 %v4275
  %v4346 = vunpack.c.h.b16 %v4275
  %v4347 = vunpack.c.l.b16 %v4276
  %v4348 = vunpack.c.h.b16 %v4276
  %v4349 = vunpack.c.l.b16 %v4277
  %v4350 = vunpack.c.h.b16 %v4277
  %v4351 = vunpack.c.l.b16 %v4278
  %v4352 = vunpack.c.h.b16 %v4278
  %v4353 = vunpack.c.l.b16 %v4279
  %v4354 = vunpack.c.h.b16 %v4279
  %v4355 = vunpack.c.l.b16 %v4280
  %v4356 = vunpack.c.h.b16 %v4280
  %v4357 = vunpack.c.l.b16 %v4281
  %v4358 = vunpack.c.h.b16 %v4281
  %v4359 = vunpack.c.l.b16 %v4282
  %v4360 = vunpack.c.h.b16 %v4282
  %v4361 = vunpack.c.l.b16 %v4283
  %v4362 = vunpack.c.h.b16 %v4283
  %v4363 = vunpack.c.l.b16 %v4284
  %v4364 = vunpack.c.h.b16 %v4284
  %v4365 = vunpack.c.l.b16 %v4285
  %v4366 = vunpack.c.h.b16 %v4285
  %v4367 = vunpack.c.l.b16 %v4286
  %v4368 = vunpack.c.h.b16 %v4286
  %v4369 = vunpack.c.l.b16 %v4287
  %v4370 = vunpack.c.h.b16 %v4287
  %v4371 = vunpack.c.l.b16 %v4288
  %v4372 = vunpack.c.h.b16 %v4288
  %v4373 = vunpack.c.l.b16 %v4289
  %v4374 = vunpack.c.h.b16 %v4289
  %v4375 = vunpack.c.l.b16 %v4290
  %v4376 = vunpack.c.h.b16 %v4290
  %v4377 = vunpack.c.l.b16 %v4291
  %v4378 = vunpack.c.h.b16 %v4291
  %v4379 = vunpack.c.l.b16 %v4292
  %v4380 = vunpack.c.h.b16 %v4292
  %v4381 = vunpack.c.l.b16 %v4293
  %v4382 = vunpack.c.h.b16 %v4293
  %v4383 = vunpack.c.l.b16 %v4294
  %v4384 = vunpack.c.h.b16 %v4294
  %v4385 = vunpack.c.l.b16 %v4295
  %v4386 = vunpack.c.h.b16 %v4295
  %v4387 = vunpack.c.l.b16 %v4296
  %v4388 = vunpack.c.h.b16 %v4296
  %v4389 = vunpack.c.l.b16 %v4297
  %v4390 = vunpack.c.h.b16 %v4297
  %v4391 = vunpack.c.l.b16 %v4298
  %v4392 = vunpack.c.h.b16 %v4298
  %v4393 = vunpack.c.l.b16 %v4299
  %v4394 = vunpack.c.h.b16 %v4299
  %v4395 = vunpack.c.l.b16 %v4300
  %v4396 = vunpack.c.h.b16 %v4300
  %v4397 = vunpack.c.l.b16 %v4301
  %v4398 = vunpack.c.h.b16 %v4301
  %v4399 = vunpack.c.l.b16 %v4302
  %v4400 = vunpack.c.h.b16 %v4302
  %v4401 = vunpack.c.l.b16 %v4303
  %v4402 = vunpack.c.h.b16 %v4303
  %v4403 = vunpack.c.l.b16 %v4304
  %v4404 = vunpack.c.h.b16 %v4304
  %v4405 = vunpack.c.l.b16 %v4305
  %v4406 = vunpack.c.h.b16 %v4305
  %v4407 = vunpack.c.l.b16 %v4306
  %v4408 = vunpack.c.h.b16 %v4306
  %v4409 = vpack.c.b16 %v4347, %v4345
  %v4410 = vpack.c.b16 %v4348, %v4346
  %v4411 = vpack.c.b16 %v4351, %v4349
  %v4412 = vpack.c.b16 %v4352, %v4350
  %v4413 = vpack.c.b16 %v4355, %v4353
  %v4414 = vpack.c.b16 %v4356, %v4354
  %v4415 = vpack.c.b16 %v4359, %v4357
  %v4416 = vpack.c.b16 %v4360, %v4358
  %v4417 = vpack.c.b16 %v4363, %v4361
  %v4418 = vpack.c.b16 %v4364, %v4362
  %v4419 = vpack.c.b16 %v4367, %v4365
  %v4420 = vpack.c.b16 %v4368, %v4366
  %v4421 = vpack.c.b16 %v4371, %v4369
  %v4422 = vpack.c.b16 %v4372, %v4370
  %v4423 = vpack.c.b16 %v4375, %v4373
  %v4424 = vpack.c.b16 %v4376, %v4374
  %v4425 = vpack.c.b16 %v4379, %v4377
  %v4426 = vpack.c.b16 %v4380, %v4378
  %v4427 = vpack.c.b16 %v4383, %v4381
  %v4428 = vpack.c.b16 %v4384, %v4382
  %v4429 = vpack.c.b16 %v4387, %v4385
  %v4430 = vpack.c.b16 %v4388, %v4386
  %v4431 = vpack.c.b16 %v4391, %v4389
  %v4432 = vpack.c.b16 %v4392, %v4390
  %v4433 = vpack.c.b16 %v4395, %v4393
  %v4434 = vpack.c.b16 %v4396, %v4394
  %v4435 = vpack.c.b16 %v4399, %v4397
  %v4436 = vpack.c.b16 %v4400, %v4398
  %v4437 = vpack.c.b16 %v4403, %v4401
  %v4438 = vpack.c.b16 %v4404, %v4402
  %v4439 = vpack.c.b16 %v4407, %v4405
  %v4440 = vpack.c.b16 %v4408, %v4406
  %4473 = vmatpush.bf16.msra.mxu0 %v4423
  %4474 = vmatpush.bf16.msra.mxu0 %v4421
  %4475 = vmatpush.bf16.msra.mxu0 %v4419
  %4476 = vmatpush.bf16.msra.mxu0 %v4417
  %4477 = vmatpush.bf16.msra.mxu0 %v4415
  %4478 = vmatpush.bf16.msra.mxu0 %v4413
  %4479 = vmatpush.bf16.msra.mxu0 %v4411
  %4480 = vmatpush.bf16.msra.mxu0 %v4409
  %4481 = vmatmul.bf16.gmra.mxu0 %v4273
  %v4482 = vpop.f32.mrf.mxu0
  %v4483 = vadd.f32 %v4309, %v4482
  %v4484 = vpop.f32.mrf.mxu0
  %v4485 = vadd.f32 %v4309, %v4484
  %4486 = vdwg.mxu0
  %4487 = vmatpush.bf16.msra.mxu0 %v4439
  %4488 = vmatpush.bf16.msra.mxu0 %v4437
  %4489 = vmatpush.bf16.msra.mxu0 %v4435
  %4490 = vmatpush.bf16.msra.mxu0 %v4433
  %4491 = vmatpush.bf16.msra.mxu0 %v4431
  %4492 = vmatpush.bf16.msra.mxu0 %v4429
  %4493 = vmatpush.bf16.msra.mxu0 %v4427
  %4494 = vmatpush.bf16.msra.mxu0 %v4425
  %4495 = vmatmul.bf16.gmra.mxu0 %v4274
  %v4496 = vpop.f32.mrf.mxu0
  %v4497 = vadd.f32 %v4483, %v4496
  %v4498 = vpop.f32.mrf.mxu0
  %v4499 = vadd.f32 %v4485, %v4498
  %4500 = vdwg.mxu0
  %4501 = vmatpush.bf16.msra.mxu0 %v4424
  %4502 = vmatpush.bf16.msra.mxu0 %v4422
  %4503 = vmatpush.bf16.msra.mxu0 %v4420
  %4504 = vmatpush.bf16.msra.mxu0 %v4418
  %4505 = vmatpush.bf16.msra.mxu0 %v4416
  %4506 = vmatpush.bf16.msra.mxu0 %v4414
  %4507 = vmatpush.bf16.msra.mxu0 %v4412
  %4508 = vmatpush.bf16.msra.mxu0 %v4410
  %4509 = vmatmul.bf16.gmra.mxu0 %v4273
  %v4510 = vpop.f32.mrf.mxu0
  %v4511 = vadd.f32 %v4310, %v4510
  %v4512 = vpop.f32.mrf.mxu0
  %v4513 = vadd.f32 %v4310, %v4512
  %4514 = vdwg.mxu0
  %4515 = vmatpush.bf16.msra.mxu0 %v4440
  %4516 = vmatpush.bf16.msra.mxu0 %v4438
  %4517 = vmatpush.bf16.msra.mxu0 %v4436
  %4518 = vmatpush.bf16.msra.mxu0 %v4434
  %4519 = vmatpush.bf16.msra.mxu0 %v4432
  %4520 = vmatpush.bf16.msra.mxu0 %v4430
  %4521 = vmatpush.bf16.msra.mxu0 %v4428
  %4522 = vmatpush.bf16.msra.mxu0 %v4426
  %4523 = vmatmul.bf16.gmra.mxu0 %v4274
  %v4524 = vpop.f32.mrf.mxu0
  %v4525 = vadd.f32 %v4511, %v4524
  %v4526 = vpop.f32.mrf.mxu0
  %v4527 = vadd.f32 %v4513, %v4526
  %4528 = vdwg.mxu0
  %v4529 = vadd.f32 %v4497, %v3832
  %v4530 = vadd.f32 %v4525, %v3833
  %v4531 = vadd.f32 %v4499, %v3834
  %v4532 = vadd.f32 %v4527, %v3835
  %v4533 = vmax.f32 %v4529, 0.0
  %v4534 = vmax.f32 %v4530, 0.0
  %v4535 = vmax.f32 %v4531, 0.0
  %v4536 = vmax.f32 %v4532, 0.0
  %s4537 = scalar_lea.sflag [#allocation23], 18
  // Predicated region
  $region177: #{image_inertial_encoder_forward.1} parent=0 // pred_check
    _
  $region178: #{image_inertial_encoder_forward.1} parent=0 // pred_check_branch
    %4539 = sbr.rel target = $region180
  $region179: #{image_inertial_encoder_forward.1} parent=0 // pred_region
    %4540 = sst [smem:[#allocation26]] [#allocation62]
    %4541 = sst [smem:[#allocation27]] [#allocation61]
  $region180: #{image_inertial_encoder_forward.1} parent=0 // pred_fallthru
    _
  %4543 = shalt.err (0)
  %s4545 = sshll.u32 %s81, 4
  %s4546 = int_to_ptr.hbm [resolvable:$true] %s4545
  %s4547 = sshll.u32 [#allocation20], 4
  %s4548 = int_to_ptr.vmem [resolvable:$true] %s4547
  %4550 = dma.hbm_to_vmem [thread:$0]  %s4546, 16384, %s4548, %s4537
  %s4551 = scalar_lea.sflag [#allocation23], 19
  // Predicated region
  $region181: #{image_inertial_encoder_forward.1} parent=0 // pred_check
    _
  $region182: #{image_inertial_encoder_forward.1} parent=0 // pred_check_branch
    %4553 = sbr.rel target = $region184
  $region183: #{image_inertial_encoder_forward.1} parent=0 // pred_region
    %4554 = sst [smem:[#allocation26]] [#allocation64]
    %4555 = sst [smem:[#allocation27]] [#allocation63]
  $region184: #{image_inertial_encoder_forward.1} parent=0 // pred_fallthru
    _
  %4557 = shalt.err (0)
  %s4559 = sshll.u32 %s83, 4
  %s4560 = int_to_ptr.hbm [resolvable:$true] %s4559
  %s4561 = sshll.u32 [#allocation21], 4
  %s4562 = int_to_ptr.vmem [resolvable:$true] %s4561
  %4564 = dma.hbm_to_vmem [thread:$0]  %s4560, 16384, %s4562, %s4551
  %s4565 = scalar_lea.sflag [#allocation23], 20
  // Predicated region
  $region185: #{image_inertial_encoder_forward.1} parent=0 // pred_check
    _
  $region186: #{image_inertial_encoder_forward.1} parent=0 // pred_check_branch
    %4567 = sbr.rel target = $region188
  $region187: #{image_inertial_encoder_forward.1} parent=0 // pred_region
    %4568 = sst [smem:[#allocation26]] [#allocation66]
    %4569 = sst [smem:[#allocation27]] [#allocation65]
  $region188: #{image_inertial_encoder_forward.1} parent=0 // pred_fallthru
    _
  %4571 = shalt.err (0)
  %s4573 = sshll.u32 %s85, 4
  %s4574 = int_to_ptr.hbm [resolvable:$true] %s4573
  %s4575 = sshll.u32 [#allocation22], 4
  %s4576 = int_to_ptr.vmem [resolvable:$true] %s4575
  %4578 = dma.hbm_to_vmem [thread:$0]  %s4574, 4096, %s4576, %s4565
  %s4579 = smul.u32 %s542, 4
  %s4580 = sshll.u32 %s4579, 4
  %4581 = dma.done %s3836, %s4580
  %s4582 = smul.u32 4, 64
  %s4583 = smul.u32 %s4582, 4
  %s4584 = sshll.u32 %s4583, 4
  %4585 = dma.done %s3850, %s4584
  %s4586 = sshll.u32 %s4579, 4
  %4587 = dma.done %s3864, %s4586
  %v4588 = vpack.c.bf16 %v4535, %v4533
  %v4589 = vpack.c.bf16 %v4536, %v4534
  %v4590 = vld [vmem:[#allocation19] sm:$0xff]
  %v4591 = vld [vmem:[#allocation19 + $0x8] sm:$0xff]
  %v4592 = vld [vmem:[#allocation19 + $0x10] sm:$0xff]
  %v4593 = vld [vmem:[#allocation19 + $0x18] sm:$0xff]
  %v4594 = vld [vmem:[#allocation19 + $0x20] sm:$0xff]
  %v4595 = vld [vmem:[#allocation19 + $0x28] sm:$0xff]
  %v4596 = vld [vmem:[#allocation19 + $0x30] sm:$0xff]
  %v4597 = vld [vmem:[#allocation19 + $0x38] sm:$0xff]
  %v4598 = vld [vmem:[#allocation19 + $0x40] sm:$0xff]
  %v4599 = vld [vmem:[#allocation19 + $0x48] sm:$0xff]
  %v4600 = vld [vmem:[#allocation19 + $0x50] sm:$0xff]
  %v4601 = vld [vmem:[#allocation19 + $0x58] sm:$0xff]
  %v4602 = vld [vmem:[#allocation19 + $0x60] sm:$0xff]
  %v4603 = vld [vmem:[#allocation19 + $0x68] sm:$0xff]
  %v4604 = vld [vmem:[#allocation19 + $0x70] sm:$0xff]
  %v4605 = vld [vmem:[#allocation19 + $0x78] sm:$0xff]
  %v4606 = vld [vmem:[#allocation19 + $0x80] sm:$0xff]
  %v4607 = vld [vmem:[#allocation19 + $0x88] sm:$0xff]
  %v4608 = vld [vmem:[#allocation19 + $0x90] sm:$0xff]
  %v4609 = vld [vmem:[#allocation19 + $0x98] sm:$0xff]
  %v4610 = vld [vmem:[#allocation19 + $0xa0] sm:$0xff]
  %v4611 = vld [vmem:[#allocation19 + $0xa8] sm:$0xff]
  %v4612 = vld [vmem:[#allocation19 + $0xb0] sm:$0xff]
  %v4613 = vld [vmem:[#allocation19 + $0xb8] sm:$0xff]
  %v4614 = vld [vmem:[#allocation19 + $0xc0] sm:$0xff]
  %v4615 = vld [vmem:[#allocation19 + $0xc8] sm:$0xff]
  %v4616 = vld [vmem:[#allocation19 + $0xd0] sm:$0xff]
  %v4617 = vld [vmem:[#allocation19 + $0xd8] sm:$0xff]
  %v4618 = vld [vmem:[#allocation19 + $0xe0] sm:$0xff]
  %v4619 = vld [vmem:[#allocation19 + $0xe8] sm:$0xff]
  %v4620 = vld [vmem:[#allocation19 + $0xf0] sm:$0xff]
  %v4621 = vld [vmem:[#allocation19 + $0xf8] sm:$0xff]
  %v4622 = vld [vmem:[#allocation19 + $0x100] sm:$0xff]
  %v4623 = vld [vmem:[#allocation19 + $0x108] sm:$0xff]
  %v4624 = vld [vmem:[#allocation19 + $0x110] sm:$0xff]
  %v4625 = vld [vmem:[#allocation19 + $0x118] sm:$0xff]
  %v4626 = vld [vmem:[#allocation19 + $0x120] sm:$0xff]
  %v4627 = vld [vmem:[#allocation19 + $0x128] sm:$0xff]
  %v4628 = vld [vmem:[#allocation19 + $0x130] sm:$0xff]
  %v4629 = vld [vmem:[#allocation19 + $0x138] sm:$0xff]
  %v4630 = vld [vmem:[#allocation19 + $0x140] sm:$0xff]
  %v4631 = vld [vmem:[#allocation19 + $0x148] sm:$0xff]
  %v4632 = vld [vmem:[#allocation19 + $0x150] sm:$0xff]
  %v4633 = vld [vmem:[#allocation19 + $0x158] sm:$0xff]
  %v4634 = vld [vmem:[#allocation19 + $0x160] sm:$0xff]
  %v4635 = vld [vmem:[#allocation19 + $0x168] sm:$0xff]
  %v4636 = vld [vmem:[#allocation19 + $0x170] sm:$0xff]
  %v4637 = vld [vmem:[#allocation19 + $0x178] sm:$0xff]
  %v4638 = vld [vmem:[#allocation19 + $0x180] sm:$0xff]
  %v4639 = vld [vmem:[#allocation19 + $0x188] sm:$0xff]
  %v4640 = vld [vmem:[#allocation19 + $0x190] sm:$0xff]
  %v4641 = vld [vmem:[#allocation19 + $0x198] sm:$0xff]
  %v4642 = vld [vmem:[#allocation19 + $0x1a0] sm:$0xff]
  %v4643 = vld [vmem:[#allocation19 + $0x1a8] sm:$0xff]
  %v4644 = vld [vmem:[#allocation19 + $0x1b0] sm:$0xff]
  %v4645 = vld [vmem:[#allocation19 + $0x1b8] sm:$0xff]
  %v4646 = vld [vmem:[#allocation19 + $0x1c0] sm:$0xff]
  %v4647 = vld [vmem:[#allocation19 + $0x1c8] sm:$0xff]
  %v4648 = vld [vmem:[#allocation19 + $0x1d0] sm:$0xff]
  %v4649 = vld [vmem:[#allocation19 + $0x1d8] sm:$0xff]
  %v4650 = vld [vmem:[#allocation19 + $0x1e0] sm:$0xff]
  %v4651 = vld [vmem:[#allocation19 + $0x1e8] sm:$0xff]
  %v4652 = vld [vmem:[#allocation19 + $0x1f0] sm:$0xff]
  %v4653 = vld [vmem:[#allocation19 + $0x1f8] sm:$0xff]
  %v4654 = vld [vmem:[%s37] sm:$0xf]
  %v4656 = vperm.slane %v4654, 0
  %v4657 = vperm.slane %v4654, 1
  %v4658 = vperm.slane %v4654, 2
  %v4659 = vperm.slane %v4654, 3
  %v4728 = vunpack.c.l.b16 %v4590
  %v4729 = vunpack.c.h.b16 %v4590
  %v4730 = vunpack.c.l.b16 %v4591
  %v4731 = vunpack.c.h.b16 %v4591
  %v4732 = vunpack.c.l.b16 %v4592
  %v4733 = vunpack.c.h.b16 %v4592
  %v4734 = vunpack.c.l.b16 %v4593
  %v4735 = vunpack.c.h.b16 %v4593
  %v4736 = vunpack.c.l.b16 %v4594
  %v4737 = vunpack.c.h.b16 %v4594
  %v4738 = vunpack.c.l.b16 %v4595
  %v4739 = vunpack.c.h.b16 %v4595
  %v4740 = vunpack.c.l.b16 %v4596
  %v4741 = vunpack.c.h.b16 %v4596
  %v4742 = vunpack.c.l.b16 %v4597
  %v4743 = vunpack.c.h.b16 %v4597
  %v4744 = vunpack.c.l.b16 %v4598
  %v4745 = vunpack.c.h.b16 %v4598
  %v4746 = vunpack.c.l.b16 %v4599
  %v4747 = vunpack.c.h.b16 %v4599
  %v4748 = vunpack.c.l.b16 %v4600
  %v4749 = vunpack.c.h.b16 %v4600
  %v4750 = vunpack.c.l.b16 %v4601
  %v4751 = vunpack.c.h.b16 %v4601
  %v4752 = vunpack.c.l.b16 %v4602
  %v4753 = vunpack.c.h.b16 %v4602
  %v4754 = vunpack.c.l.b16 %v4603
  %v4755 = vunpack.c.h.b16 %v4603
  %v4756 = vunpack.c.l.b16 %v4604
  %v4757 = vunpack.c.h.b16 %v4604
  %v4758 = vunpack.c.l.b16 %v4605
  %v4759 = vunpack.c.h.b16 %v4605
  %v4760 = vunpack.c.l.b16 %v4606
  %v4761 = vunpack.c.h.b16 %v4606
  %v4762 = vunpack.c.l.b16 %v4607
  %v4763 = vunpack.c.h.b16 %v4607
  %v4764 = vunpack.c.l.b16 %v4608
  %v4765 = vunpack.c.h.b16 %v4608
  %v4766 = vunpack.c.l.b16 %v4609
  %v4767 = vunpack.c.h.b16 %v4609
  %v4768 = vunpack.c.l.b16 %v4610
  %v4769 = vunpack.c.h.b16 %v4610
  %v4770 = vunpack.c.l.b16 %v4611
  %v4771 = vunpack.c.h.b16 %v4611
  %v4772 = vunpack.c.l.b16 %v4612
  %v4773 = vunpack.c.h.b16 %v4612
  %v4774 = vunpack.c.l.b16 %v4613
  %v4775 = vunpack.c.h.b16 %v4613
  %v4776 = vunpack.c.l.b16 %v4614
  %v4777 = vunpack.c.h.b16 %v4614
  %v4778 = vunpack.c.l.b16 %v4615
  %v4779 = vunpack.c.h.b16 %v4615
  %v4780 = vunpack.c.l.b16 %v4616
  %v4781 = vunpack.c.h.b16 %v4616
  %v4782 = vunpack.c.l.b16 %v4617
  %v4783 = vunpack.c.h.b16 %v4617
  %v4784 = vunpack.c.l.b16 %v4618
  %v4785 = vunpack.c.h.b16 %v4618
  %v4786 = vunpack.c.l.b16 %v4619
  %v4787 = vunpack.c.h.b16 %v4619
  %v4788 = vunpack.c.l.b16 %v4620
  %v4789 = vunpack.c.h.b16 %v4620
  %v4790 = vunpack.c.l.b16 %v4621
  %v4791 = vunpack.c.h.b16 %v4621
  %v4792 = vunpack.c.l.b16 %v4622
  %v4793 = vunpack.c.h.b16 %v4622
  %v4794 = vunpack.c.l.b16 %v4623
  %v4795 = vunpack.c.h.b16 %v4623
  %v4796 = vunpack.c.l.b16 %v4624
  %v4797 = vunpack.c.h.b16 %v4624
  %v4798 = vunpack.c.l.b16 %v4625
  %v4799 = vunpack.c.h.b16 %v4625
  %v4800 = vunpack.c.l.b16 %v4626
  %v4801 = vunpack.c.h.b16 %v4626
  %v4802 = vunpack.c.l.b16 %v4627
  %v4803 = vunpack.c.h.b16 %v4627
  %v4804 = vunpack.c.l.b16 %v4628
  %v4805 = vunpack.c.h.b16 %v4628
  %v4806 = vunpack.c.l.b16 %v4629
  %v4807 = vunpack.c.h.b16 %v4629
  %v4808 = vunpack.c.l.b16 %v4630
  %v4809 = vunpack.c.h.b16 %v4630
  %v4810 = vunpack.c.l.b16 %v4631
  %v4811 = vunpack.c.h.b16 %v4631
  %v4812 = vunpack.c.l.b16 %v4632
  %v4813 = vunpack.c.h.b16 %v4632
  %v4814 = vunpack.c.l.b16 %v4633
  %v4815 = vunpack.c.h.b16 %v4633
  %v4816 = vunpack.c.l.b16 %v4634
  %v4817 = vunpack.c.h.b16 %v4634
  %v4818 = vunpack.c.l.b16 %v4635
  %v4819 = vunpack.c.h.b16 %v4635
  %v4820 = vunpack.c.l.b16 %v4636
  %v4821 = vunpack.c.h.b16 %v4636
  %v4822 = vunpack.c.l.b16 %v4637
  %v4823 = vunpack.c.h.b16 %v4637
  %v4824 = vunpack.c.l.b16 %v4638
  %v4825 = vunpack.c.h.b16 %v4638
  %v4826 = vunpack.c.l.b16 %v4639
  %v4827 = vunpack.c.h.b16 %v4639
  %v4828 = vunpack.c.l.b16 %v4640
  %v4829 = vunpack.c.h.b16 %v4640
  %v4830 = vunpack.c.l.b16 %v4641
  %v4831 = vunpack.c.h.b16 %v4641
  %v4832 = vunpack.c.l.b16 %v4642
  %v4833 = vunpack.c.h.b16 %v4642
  %v4834 = vunpack.c.l.b16 %v4643
  %v4835 = vunpack.c.h.b16 %v4643
  %v4836 = vunpack.c.l.b16 %v4644
  %v4837 = vunpack.c.h.b16 %v4644
  %v4838 = vunpack.c.l.b16 %v4645
  %v4839 = vunpack.c.h.b16 %v4645
  %v4840 = vunpack.c.l.b16 %v4646
  %v4841 = vunpack.c.h.b16 %v4646
  %v4842 = vunpack.c.l.b16 %v4647
  %v4843 = vunpack.c.h.b16 %v4647
  %v4844 = vunpack.c.l.b16 %v4648
  %v4845 = vunpack.c.h.b16 %v4648
  %v4846 = vunpack.c.l.b16 %v4649
  %v4847 = vunpack.c.h.b16 %v4649
  %v4848 = vunpack.c.l.b16 %v4650
  %v4849 = vunpack.c.h.b16 %v4650
  %v4850 = vunpack.c.l.b16 %v4651
  %v4851 = vunpack.c.h.b16 %v4651
  %v4852 = vunpack.c.l.b16 %v4652
  %v4853 = vunpack.c.h.b16 %v4652
  %v4854 = vunpack.c.l.b16 %v4653
  %v4855 = vunpack.c.h.b16 %v4653
  %v4856 = vpack.c.b16 %v4732, %v4728
  %v4857 = vpack.c.b16 %v4733, %v4729
  %v4858 = vpack.c.b16 %v4734, %v4730
  %v4859 = vpack.c.b16 %v4735, %v4731
  %v4860 = vpack.c.b16 %v4740, %v4736
  %v4861 = vpack.c.b16 %v4741, %v4737
  %v4862 = vpack.c.b16 %v4742, %v4738
  %v4863 = vpack.c.b16 %v4743, %v4739
  %v4864 = vpack.c.b16 %v4748, %v4744
  %v4865 = vpack.c.b16 %v4749, %v4745
  %v4866 = vpack.c.b16 %v4750, %v4746
  %v4867 = vpack.c.b16 %v4751, %v4747
  %v4868 = vpack.c.b16 %v4756, %v4752
  %v4869 = vpack.c.b16 %v4757, %v4753
  %v4870 = vpack.c.b16 %v4758, %v4754
  %v4871 = vpack.c.b16 %v4759, %v4755
  %v4872 = vpack.c.b16 %v4764, %v4760
  %v4873 = vpack.c.b16 %v4765, %v4761
  %v4874 = vpack.c.b16 %v4766, %v4762
  %v4875 = vpack.c.b16 %v4767, %v4763
  %v4876 = vpack.c.b16 %v4772, %v4768
  %v4877 = vpack.c.b16 %v4773, %v4769
  %v4878 = vpack.c.b16 %v4774, %v4770
  %v4879 = vpack.c.b16 %v4775, %v4771
  %v4880 = vpack.c.b16 %v4780, %v4776
  %v4881 = vpack.c.b16 %v4781, %v4777
  %v4882 = vpack.c.b16 %v4782, %v4778
  %v4883 = vpack.c.b16 %v4783, %v4779
  %v4884 = vpack.c.b16 %v4788, %v4784
  %v4885 = vpack.c.b16 %v4789, %v4785
  %v4886 = vpack.c.b16 %v4790, %v4786
  %v4887 = vpack.c.b16 %v4791, %v4787
  %v4888 = vpack.c.b16 %v4796, %v4792
  %v4889 = vpack.c.b16 %v4797, %v4793
  %v4890 = vpack.c.b16 %v4798, %v4794
  %v4891 = vpack.c.b16 %v4799, %v4795
  %v4892 = vpack.c.b16 %v4804, %v4800
  %v4893 = vpack.c.b16 %v4805, %v4801
  %v4894 = vpack.c.b16 %v4806, %v4802
  %v4895 = vpack.c.b16 %v4807, %v4803
  %v4896 = vpack.c.b16 %v4812, %v4808
  %v4897 = vpack.c.b16 %v4813, %v4809
  %v4898 = vpack.c.b16 %v4814, %v4810
  %v4899 = vpack.c.b16 %v4815, %v4811
  %v4900 = vpack.c.b16 %v4820, %v4816
  %v4901 = vpack.c.b16 %v4821, %v4817
  %v4902 = vpack.c.b16 %v4822, %v4818
  %v4903 = vpack.c.b16 %v4823, %v4819
  %v4904 = vpack.c.b16 %v4828, %v4824
  %v4905 = vpack.c.b16 %v4829, %v4825
  %v4906 = vpack.c.b16 %v4830, %v4826
  %v4907 = vpack.c.b16 %v4831, %v4827
  %v4908 = vpack.c.b16 %v4836, %v4832
  %v4909 = vpack.c.b16 %v4837, %v4833
  %v4910 = vpack.c.b16 %v4838, %v4834
  %v4911 = vpack.c.b16 %v4839, %v4835
  %v4912 = vpack.c.b16 %v4844, %v4840
  %v4913 = vpack.c.b16 %v4845, %v4841
  %v4914 = vpack.c.b16 %v4846, %v4842
  %v4915 = vpack.c.b16 %v4847, %v4843
  %v4916 = vpack.c.b16 %v4852, %v4848
  %v4917 = vpack.c.b16 %v4853, %v4849
  %v4918 = vpack.c.b16 %v4854, %v4850
  %v4919 = vpack.c.b16 %v4855, %v4851
  %4984 = vmatpush.bf16.msra.mxu0 %v4884
  %4985 = vmatpush.bf16.msra.mxu0 %v4880
  %4986 = vmatpush.bf16.msra.mxu0 %v4876
  %4987 = vmatpush.bf16.msra.mxu0 %v4872
  %4988 = vmatpush.bf16.msra.mxu0 %v4868
  %4989 = vmatpush.bf16.msra.mxu0 %v4864
  %4990 = vmatpush.bf16.msra.mxu0 %v4860
  %4991 = vmatpush.bf16.msra.mxu0 %v4856
  %4992 = vmatmul.bf16.gmra.mxu0 %v4588
  %v4993 = vpop.f32.mrf.mxu0
  %v4994 = vadd.f32 %v4656, %v4993
  %v4995 = vpop.f32.mrf.mxu0
  %v4996 = vadd.f32 %v4656, %v4995
  %4997 = vdwg.mxu0
  %4998 = vmatpush.bf16.msra.mxu0 %v4916
  %4999 = vmatpush.bf16.msra.mxu0 %v4912
  %5000 = vmatpush.bf16.msra.mxu0 %v4908
  %5001 = vmatpush.bf16.msra.mxu0 %v4904
  %5002 = vmatpush.bf16.msra.mxu0 %v4900
  %5003 = vmatpush.bf16.msra.mxu0 %v4896
  %5004 = vmatpush.bf16.msra.mxu0 %v4892
  %5005 = vmatpush.bf16.msra.mxu0 %v4888
  %5006 = vmatmul.bf16.gmra.mxu0 %v4589
  %v5007 = vpop.f32.mrf.mxu0
  %v5008 = vadd.f32 %v4994, %v5007
  %v5009 = vpop.f32.mrf.mxu0
  %v5010 = vadd.f32 %v4996, %v5009
  %5011 = vdwg.mxu0
  %5012 = vmatpush.bf16.msra.mxu0 %v4885
  %5013 = vmatpush.bf16.msra.mxu0 %v4881
  %5014 = vmatpush.bf16.msra.mxu0 %v4877
  %5015 = vmatpush.bf16.msra.mxu0 %v4873
  %5016 = vmatpush.bf16.msra.mxu0 %v4869
  %5017 = vmatpush.bf16.msra.mxu0 %v4865
  %5018 = vmatpush.bf16.msra.mxu0 %v4861
  %5019 = vmatpush.bf16.msra.mxu0 %v4857
  %5020 = vmatmul.bf16.gmra.mxu0 %v4588
  %v5021 = vpop.f32.mrf.mxu0
  %v5022 = vadd.f32 %v4657, %v5021
  %v5023 = vpop.f32.mrf.mxu0
  %v5024 = vadd.f32 %v4657, %v5023
  %5025 = vdwg.mxu0
  %5026 = vmatpush.bf16.msra.mxu0 %v4917
  %5027 = vmatpush.bf16.msra.mxu0 %v4913
  %5028 = vmatpush.bf16.msra.mxu0 %v4909
  %5029 = vmatpush.bf16.msra.mxu0 %v4905
  %5030 = vmatpush.bf16.msra.mxu0 %v4901
  %5031 = vmatpush.bf16.msra.mxu0 %v4897
  %5032 = vmatpush.bf16.msra.mxu0 %v4893
  %5033 = vmatpush.bf16.msra.mxu0 %v4889
  %5034 = vmatmul.bf16.gmra.mxu0 %v4589
  %v5035 = vpop.f32.mrf.mxu0
  %v5036 = vadd.f32 %v5022, %v5035
  %v5037 = vpop.f32.mrf.mxu0
  %v5038 = vadd.f32 %v5024, %v5037
  %5039 = vdwg.mxu0
  %5040 = vmatpush.bf16.msra.mxu0 %v4886
  %5041 = vmatpush.bf16.msra.mxu0 %v4882
  %5042 = vmatpush.bf16.msra.mxu0 %v4878
  %5043 = vmatpush.bf16.msra.mxu0 %v4874
  %5044 = vmatpush.bf16.msra.mxu0 %v4870
  %5045 = vmatpush.bf16.msra.mxu0 %v4866
  %5046 = vmatpush.bf16.msra.mxu0 %v4862
  %5047 = vmatpush.bf16.msra.mxu0 %v4858
  %5048 = vmatmul.bf16.gmra.mxu0 %v4588
  %v5049 = vpop.f32.mrf.mxu0
  %v5050 = vadd.f32 %v4658, %v5049
  %v5051 = vpop.f32.mrf.mxu0
  %v5052 = vadd.f32 %v4658, %v5051
  %5053 = vdwg.mxu0
  %5054 = vmatpush.bf16.msra.mxu0 %v4918
  %5055 = vmatpush.bf16.msra.mxu0 %v4914
  %5056 = vmatpush.bf16.msra.mxu0 %v4910
  %5057 = vmatpush.bf16.msra.mxu0 %v4906
  %5058 = vmatpush.bf16.msra.mxu0 %v4902
  %5059 = vmatpush.bf16.msra.mxu0 %v4898
  %5060 = vmatpush.bf16.msra.mxu0 %v4894
  %5061 = vmatpush.bf16.msra.mxu0 %v4890
  %5062 = vmatmul.bf16.gmra.mxu0 %v4589
  %v5063 = vpop.f32.mrf.mxu0
  %v5064 = vadd.f32 %v5050, %v5063
  %v5065 = vpop.f32.mrf.mxu0
  %v5066 = vadd.f32 %v5052, %v5065
  %5067 = vdwg.mxu0
  %5068 = vmatpush.bf16.msra.mxu0 %v4887
  %5069 = vmatpush.bf16.msra.mxu0 %v4883
  %5070 = vmatpush.bf16.msra.mxu0 %v4879
  %5071 = vmatpush.bf16.msra.mxu0 %v4875
  %5072 = vmatpush.bf16.msra.mxu0 %v4871
  %5073 = vmatpush.bf16.msra.mxu0 %v4867
  %5074 = vmatpush.bf16.msra.mxu0 %v4863
  %5075 = vmatpush.bf16.msra.mxu0 %v4859
  %5076 = vmatmul.bf16.gmra.mxu0 %v4588
  %v5077 = vpop.f32.mrf.mxu0
  %v5078 = vadd.f32 %v4659, %v5077
  %v5079 = vpop.f32.mrf.mxu0
  %v5080 = vadd.f32 %v4659, %v5079
  %5081 = vdwg.mxu0
  %5082 = vmatpush.bf16.msra.mxu0 %v4919
  %5083 = vmatpush.bf16.msra.mxu0 %v4915
  %5084 = vmatpush.bf16.msra.mxu0 %v4911
  %5085 = vmatpush.bf16.msra.mxu0 %v4907
  %5086 = vmatpush.bf16.msra.mxu0 %v4903
  %5087 = vmatpush.bf16.msra.mxu0 %v4899
  %5088 = vmatpush.bf16.msra.mxu0 %v4895
  %5089 = vmatpush.bf16.msra.mxu0 %v4891
  %5090 = vmatmul.bf16.gmra.mxu0 %v4589
  %v5091 = vpop.f32.mrf.mxu0
  %v5092 = vadd.f32 %v5078, %v5091
  %v5093 = vpop.f32.mrf.mxu0
  %v5094 = vadd.f32 %v5080, %v5093
  %5095 = vdwg.mxu0
  %v5096 = vld [vmem:[#allocation17] sm:$0xff]
  %v5097 = vld [vmem:[#allocation17 + $0x8] sm:$0xff]
  %v5098 = vld [vmem:[#allocation17 + $0x10] sm:$0xff]
  %v5099 = vld [vmem:[#allocation17 + $0x18] sm:$0xff]
  %v5100 = vld [vmem:[#allocation17 + $0x20] sm:$0xff]
  %v5101 = vld [vmem:[#allocation17 + $0x28] sm:$0xff]
  %v5102 = vld [vmem:[#allocation17 + $0x30] sm:$0xff]
  %v5103 = vld [vmem:[#allocation17 + $0x38] sm:$0xff]
  %v5104 = vld [vmem:[#allocation17 + $0x40] sm:$0xff]
  %v5105 = vld [vmem:[#allocation17 + $0x48] sm:$0xff]
  %v5106 = vld [vmem:[#allocation17 + $0x50] sm:$0xff]
  %v5107 = vld [vmem:[#allocation17 + $0x58] sm:$0xff]
  %v5108 = vld [vmem:[#allocation17 + $0x60] sm:$0xff]
  %v5109 = vld [vmem:[#allocation17 + $0x68] sm:$0xff]
  %v5110 = vld [vmem:[#allocation17 + $0x70] sm:$0xff]
  %v5111 = vld [vmem:[#allocation17 + $0x78] sm:$0xff]
  %v5112 = vld [vmem:[#allocation17 + $0x80] sm:$0xff]
  %v5113 = vld [vmem:[#allocation17 + $0x88] sm:$0xff]
  %v5114 = vld [vmem:[#allocation17 + $0x90] sm:$0xff]
  %v5115 = vld [vmem:[#allocation17 + $0x98] sm:$0xff]
  %v5116 = vld [vmem:[#allocation17 + $0xa0] sm:$0xff]
  %v5117 = vld [vmem:[#allocation17 + $0xa8] sm:$0xff]
  %v5118 = vld [vmem:[#allocation17 + $0xb0] sm:$0xff]
  %v5119 = vld [vmem:[#allocation17 + $0xb8] sm:$0xff]
  %v5120 = vld [vmem:[#allocation17 + $0xc0] sm:$0xff]
  %v5121 = vld [vmem:[#allocation17 + $0xc8] sm:$0xff]
  %v5122 = vld [vmem:[#allocation17 + $0xd0] sm:$0xff]
  %v5123 = vld [vmem:[#allocation17 + $0xd8] sm:$0xff]
  %v5124 = vld [vmem:[#allocation17 + $0xe0] sm:$0xff]
  %v5125 = vld [vmem:[#allocation17 + $0xe8] sm:$0xff]
  %v5126 = vld [vmem:[#allocation17 + $0xf0] sm:$0xff]
  %v5127 = vld [vmem:[#allocation17 + $0xf8] sm:$0xff]
  %v5128 = vld [vmem:[#allocation17 + $0x100] sm:$0xff]
  %v5129 = vld [vmem:[#allocation17 + $0x108] sm:$0xff]
  %v5130 = vld [vmem:[#allocation17 + $0x110] sm:$0xff]
  %v5131 = vld [vmem:[#allocation17 + $0x118] sm:$0xff]
  %v5132 = vld [vmem:[#allocation17 + $0x120] sm:$0xff]
  %v5133 = vld [vmem:[#allocation17 + $0x128] sm:$0xff]
  %v5134 = vld [vmem:[#allocation17 + $0x130] sm:$0xff]
  %v5135 = vld [vmem:[#allocation17 + $0x138] sm:$0xff]
  %v5136 = vld [vmem:[#allocation17 + $0x140] sm:$0xff]
  %v5137 = vld [vmem:[#allocation17 + $0x148] sm:$0xff]
  %v5138 = vld [vmem:[#allocation17 + $0x150] sm:$0xff]
  %v5139 = vld [vmem:[#allocation17 + $0x158] sm:$0xff]
  %v5140 = vld [vmem:[#allocation17 + $0x160] sm:$0xff]
  %v5141 = vld [vmem:[#allocation17 + $0x168] sm:$0xff]
  %v5142 = vld [vmem:[#allocation17 + $0x170] sm:$0xff]
  %v5143 = vld [vmem:[#allocation17 + $0x178] sm:$0xff]
  %v5144 = vld [vmem:[#allocation17 + $0x180] sm:$0xff]
  %v5145 = vld [vmem:[#allocation17 + $0x188] sm:$0xff]
  %v5146 = vld [vmem:[#allocation17 + $0x190] sm:$0xff]
  %v5147 = vld [vmem:[#allocation17 + $0x198] sm:$0xff]
  %v5148 = vld [vmem:[#allocation17 + $0x1a0] sm:$0xff]
  %v5149 = vld [vmem:[#allocation17 + $0x1a8] sm:$0xff]
  %v5150 = vld [vmem:[#allocation17 + $0x1b0] sm:$0xff]
  %v5151 = vld [vmem:[#allocation17 + $0x1b8] sm:$0xff]
  %v5152 = vld [vmem:[#allocation17 + $0x1c0] sm:$0xff]
  %v5153 = vld [vmem:[#allocation17 + $0x1c8] sm:$0xff]
  %v5154 = vld [vmem:[#allocation17 + $0x1d0] sm:$0xff]
  %v5155 = vld [vmem:[#allocation17 + $0x1d8] sm:$0xff]
  %v5156 = vld [vmem:[#allocation17 + $0x1e0] sm:$0xff]
  %v5157 = vld [vmem:[#allocation17 + $0x1e8] sm:$0xff]
  %v5158 = vld [vmem:[#allocation17 + $0x1f0] sm:$0xff]
  %v5159 = vld [vmem:[#allocation17 + $0x1f8] sm:$0xff]
  %v5160 = vld [vmem:[%s33] sm:$0xf]
  %v5162 = vperm.slane %v5160, 0
  %v5163 = vperm.slane %v5160, 1
  %v5164 = vperm.slane %v5160, 2
  %v5165 = vperm.slane %v5160, 3
  %v5234 = vunpack.c.l.b16 %v5096
  %v5235 = vunpack.c.h.b16 %v5096
  %v5236 = vunpack.c.l.b16 %v5097
  %v5237 = vunpack.c.h.b16 %v5097
  %v5238 = vunpack.c.l.b16 %v5098
  %v5239 = vunpack.c.h.b16 %v5098
  %v5240 = vunpack.c.l.b16 %v5099
  %v5241 = vunpack.c.h.b16 %v5099
  %v5242 = vunpack.c.l.b16 %v5100
  %v5243 = vunpack.c.h.b16 %v5100
  %v5244 = vunpack.c.l.b16 %v5101
  %v5245 = vunpack.c.h.b16 %v5101
  %v5246 = vunpack.c.l.b16 %v5102
  %v5247 = vunpack.c.h.b16 %v5102
  %v5248 = vunpack.c.l.b16 %v5103
  %v5249 = vunpack.c.h.b16 %v5103
  %v5250 = vunpack.c.l.b16 %v5104
  %v5251 = vunpack.c.h.b16 %v5104
  %v5252 = vunpack.c.l.b16 %v5105
  %v5253 = vunpack.c.h.b16 %v5105
  %v5254 = vunpack.c.l.b16 %v5106
  %v5255 = vunpack.c.h.b16 %v5106
  %v5256 = vunpack.c.l.b16 %v5107
  %v5257 = vunpack.c.h.b16 %v5107
  %v5258 = vunpack.c.l.b16 %v5108
  %v5259 = vunpack.c.h.b16 %v5108
  %v5260 = vunpack.c.l.b16 %v5109
  %v5261 = vunpack.c.h.b16 %v5109
  %v5262 = vunpack.c.l.b16 %v5110
  %v5263 = vunpack.c.h.b16 %v5110
  %v5264 = vunpack.c.l.b16 %v5111
  %v5265 = vunpack.c.h.b16 %v5111
  %v5266 = vunpack.c.l.b16 %v5112
  %v5267 = vunpack.c.h.b16 %v5112
  %v5268 = vunpack.c.l.b16 %v5113
  %v5269 = vunpack.c.h.b16 %v5113
  %v5270 = vunpack.c.l.b16 %v5114
  %v5271 = vunpack.c.h.b16 %v5114
  %v5272 = vunpack.c.l.b16 %v5115
  %v5273 = vunpack.c.h.b16 %v5115
  %v5274 = vunpack.c.l.b16 %v5116
  %v5275 = vunpack.c.h.b16 %v5116
  %v5276 = vunpack.c.l.b16 %v5117
  %v5277 = vunpack.c.h.b16 %v5117
  %v5278 = vunpack.c.l.b16 %v5118
  %v5279 = vunpack.c.h.b16 %v5118
  %v5280 = vunpack.c.l.b16 %v5119
  %v5281 = vunpack.c.h.b16 %v5119
  %v5282 = vunpack.c.l.b16 %v5120
  %v5283 = vunpack.c.h.b16 %v5120
  %v5284 = vunpack.c.l.b16 %v5121
  %v5285 = vunpack.c.h.b16 %v5121
  %v5286 = vunpack.c.l.b16 %v5122
  %v5287 = vunpack.c.h.b16 %v5122
  %v5288 = vunpack.c.l.b16 %v5123
  %v5289 = vunpack.c.h.b16 %v5123
  %v5290 = vunpack.c.l.b16 %v5124
  %v5291 = vunpack.c.h.b16 %v5124
  %v5292 = vunpack.c.l.b16 %v5125
  %v5293 = vunpack.c.h.b16 %v5125
  %v5294 = vunpack.c.l.b16 %v5126
  %v5295 = vunpack.c.h.b16 %v5126
  %v5296 = vunpack.c.l.b16 %v5127
  %v5297 = vunpack.c.h.b16 %v5127
  %v5298 = vunpack.c.l.b16 %v5128
  %v5299 = vunpack.c.h.b16 %v5128
  %v5300 = vunpack.c.l.b16 %v5129
  %v5301 = vunpack.c.h.b16 %v5129
  %v5302 = vunpack.c.l.b16 %v5130
  %v5303 = vunpack.c.h.b16 %v5130
  %v5304 = vunpack.c.l.b16 %v5131
  %v5305 = vunpack.c.h.b16 %v5131
  %v5306 = vunpack.c.l.b16 %v5132
  %v5307 = vunpack.c.h.b16 %v5132
  %v5308 = vunpack.c.l.b16 %v5133
  %v5309 = vunpack.c.h.b16 %v5133
  %v5310 = vunpack.c.l.b16 %v5134
  %v5311 = vunpack.c.h.b16 %v5134
  %v5312 = vunpack.c.l.b16 %v5135
  %v5313 = vunpack.c.h.b16 %v5135
  %v5314 = vunpack.c.l.b16 %v5136
  %v5315 = vunpack.c.h.b16 %v5136
  %v5316 = vunpack.c.l.b16 %v5137
  %v5317 = vunpack.c.h.b16 %v5137
  %v5318 = vunpack.c.l.b16 %v5138
  %v5319 = vunpack.c.h.b16 %v5138
  %v5320 = vunpack.c.l.b16 %v5139
  %v5321 = vunpack.c.h.b16 %v5139
  %v5322 = vunpack.c.l.b16 %v5140
  %v5323 = vunpack.c.h.b16 %v5140
  %v5324 = vunpack.c.l.b16 %v5141
  %v5325 = vunpack.c.h.b16 %v5141
  %v5326 = vunpack.c.l.b16 %v5142
  %v5327 = vunpack.c.h.b16 %v5142
  %v5328 = vunpack.c.l.b16 %v5143
  %v5329 = vunpack.c.h.b16 %v5143
  %v5330 = vunpack.c.l.b16 %v5144
  %v5331 = vunpack.c.h.b16 %v5144
  %v5332 = vunpack.c.l.b16 %v5145
  %v5333 = vunpack.c.h.b16 %v5145
  %v5334 = vunpack.c.l.b16 %v5146
  %v5335 = vunpack.c.h.b16 %v5146
  %v5336 = vunpack.c.l.b16 %v5147
  %v5337 = vunpack.c.h.b16 %v5147
  %v5338 = vunpack.c.l.b16 %v5148
  %v5339 = vunpack.c.h.b16 %v5148
  %v5340 = vunpack.c.l.b16 %v5149
  %v5341 = vunpack.c.h.b16 %v5149
  %v5342 = vunpack.c.l.b16 %v5150
  %v5343 = vunpack.c.h.b16 %v5150
  %v5344 = vunpack.c.l.b16 %v5151
  %v5345 = vunpack.c.h.b16 %v5151
  %v5346 = vunpack.c.l.b16 %v5152
  %v5347 = vunpack.c.h.b16 %v5152
  %v5348 = vunpack.c.l.b16 %v5153
  %v5349 = vunpack.c.h.b16 %v5153
  %v5350 = vunpack.c.l.b16 %v5154
  %v5351 = vunpack.c.h.b16 %v5154
  %v5352 = vunpack.c.l.b16 %v5155
  %v5353 = vunpack.c.h.b16 %v5155
  %v5354 = vunpack.c.l.b16 %v5156
  %v5355 = vunpack.c.h.b16 %v5156
  %v5356 = vunpack.c.l.b16 %v5157
  %v5357 = vunpack.c.h.b16 %v5157
  %v5358 = vunpack.c.l.b16 %v5158
  %v5359 = vunpack.c.h.b16 %v5158
  %v5360 = vunpack.c.l.b16 %v5159
  %v5361 = vunpack.c.h.b16 %v5159
  %v5362 = vpack.c.b16 %v5238, %v5234
  %v5363 = vpack.c.b16 %v5239, %v5235
  %v5364 = vpack.c.b16 %v5240, %v5236
  %v5365 = vpack.c.b16 %v5241, %v5237
  %v5366 = vpack.c.b16 %v5246, %v5242
  %v5367 = vpack.c.b16 %v5247, %v5243
  %v5368 = vpack.c.b16 %v5248, %v5244
  %v5369 = vpack.c.b16 %v5249, %v5245
  %v5370 = vpack.c.b16 %v5254, %v5250
  %v5371 = vpack.c.b16 %v5255, %v5251
  %v5372 = vpack.c.b16 %v5256, %v5252
  %v5373 = vpack.c.b16 %v5257, %v5253
  %v5374 = vpack.c.b16 %v5262, %v5258
  %v5375 = vpack.c.b16 %v5263, %v5259
  %v5376 = vpack.c.b16 %v5264, %v5260
  %v5377 = vpack.c.b16 %v5265, %v5261
  %v5378 = vpack.c.b16 %v5270, %v5266
  %v5379 = vpack.c.b16 %v5271, %v5267
  %v5380 = vpack.c.b16 %v5272, %v5268
  %v5381 = vpack.c.b16 %v5273, %v5269
  %v5382 = vpack.c.b16 %v5278, %v5274
  %v5383 = vpack.c.b16 %v5279, %v5275
  %v5384 = vpack.c.b16 %v5280, %v5276
  %v5385 = vpack.c.b16 %v5281, %v5277
  %v5386 = vpack.c.b16 %v5286, %v5282
  %v5387 = vpack.c.b16 %v5287, %v5283
  %v5388 = vpack.c.b16 %v5288, %v5284
  %v5389 = vpack.c.b16 %v5289, %v5285
  %v5390 = vpack.c.b16 %v5294, %v5290
  %v5391 = vpack.c.b16 %v5295, %v5291
  %v5392 = vpack.c.b16 %v5296, %v5292
  %v5393 = vpack.c.b16 %v5297, %v5293
  %v5394 = vpack.c.b16 %v5302, %v5298
  %v5395 = vpack.c.b16 %v5303, %v5299
  %v5396 = vpack.c.b16 %v5304, %v5300
  %v5397 = vpack.c.b16 %v5305, %v5301
  %v5398 = vpack.c.b16 %v5310, %v5306
  %v5399 = vpack.c.b16 %v5311, %v5307
  %v5400 = vpack.c.b16 %v5312, %v5308
  %v5401 = vpack.c.b16 %v5313, %v5309
  %v5402 = vpack.c.b16 %v5318, %v5314
  %v5403 = vpack.c.b16 %v5319, %v5315
  %v5404 = vpack.c.b16 %v5320, %v5316
  %v5405 = vpack.c.b16 %v5321, %v5317
  %v5406 = vpack.c.b16 %v5326, %v5322
  %v5407 = vpack.c.b16 %v5327, %v5323
  %v5408 = vpack.c.b16 %v5328, %v5324
  %v5409 = vpack.c.b16 %v5329, %v5325
  %v5410 = vpack.c.b16 %v5334, %v5330
  %v5411 = vpack.c.b16 %v5335, %v5331
  %v5412 = vpack.c.b16 %v5336, %v5332
  %v5413 = vpack.c.b16 %v5337, %v5333
  %v5414 = vpack.c.b16 %v5342, %v5338
  %v5415 = vpack.c.b16 %v5343, %v5339
  %v5416 = vpack.c.b16 %v5344, %v5340
  %v5417 = vpack.c.b16 %v5345, %v5341
  %v5418 = vpack.c.b16 %v5350, %v5346
  %v5419 = vpack.c.b16 %v5351, %v5347
  %v5420 = vpack.c.b16 %v5352, %v5348
  %v5421 = vpack.c.b16 %v5353, %v5349
  %v5422 = vpack.c.b16 %v5358, %v5354
  %v5423 = vpack.c.b16 %v5359, %v5355
  %v5424 = vpack.c.b16 %v5360, %v5356
  %v5425 = vpack.c.b16 %v5361, %v5357
  %5490 = vmatpush.bf16.msra.mxu0 %v5390
  %5491 = vmatpush.bf16.msra.mxu0 %v5386
  %5492 = vmatpush.bf16.msra.mxu0 %v5382
  %5493 = vmatpush.bf16.msra.mxu0 %v5378
  %5494 = vmatpush.bf16.msra.mxu0 %v5374
  %5495 = vmatpush.bf16.msra.mxu0 %v5370
  %5496 = vmatpush.bf16.msra.mxu0 %v5366
  %5497 = vmatpush.bf16.msra.mxu0 %v5362
  %5498 = vmatmul.bf16.gmra.mxu0 %v4588
  %v5499 = vpop.f32.mrf.mxu0
  %v5500 = vadd.f32 %v5162, %v5499
  %v5501 = vpop.f32.mrf.mxu0
  %v5502 = vadd.f32 %v5162, %v5501
  %5503 = vdwg.mxu0
  %5504 = vmatpush.bf16.msra.mxu0 %v5422
  %5505 = vmatpush.bf16.msra.mxu0 %v5418
  %5506 = vmatpush.bf16.msra.mxu0 %v5414
  %5507 = vmatpush.bf16.msra.mxu0 %v5410
  %5508 = vmatpush.bf16.msra.mxu0 %v5406
  %5509 = vmatpush.bf16.msra.mxu0 %v5402
  %5510 = vmatpush.bf16.msra.mxu0 %v5398
  %5511 = vmatpush.bf16.msra.mxu0 %v5394
  %5512 = vmatmul.bf16.gmra.mxu0 %v4589
  %v5513 = vpop.f32.mrf.mxu0
  %v5514 = vadd.f32 %v5500, %v5513
  %v5515 = vpop.f32.mrf.mxu0
  %v5516 = vadd.f32 %v5502, %v5515
  %5517 = vdwg.mxu0
  %5518 = vmatpush.bf16.msra.mxu0 %v5391
  %5519 = vmatpush.bf16.msra.mxu0 %v5387
  %5520 = vmatpush.bf16.msra.mxu0 %v5383
  %5521 = vmatpush.bf16.msra.mxu0 %v5379
  %5522 = vmatpush.bf16.msra.mxu0 %v5375
  %5523 = vmatpush.bf16.msra.mxu0 %v5371
  %5524 = vmatpush.bf16.msra.mxu0 %v5367
  %5525 = vmatpush.bf16.msra.mxu0 %v5363
  %5526 = vmatmul.bf16.gmra.mxu0 %v4588
  %v5527 = vpop.f32.mrf.mxu0
  %v5528 = vadd.f32 %v5163, %v5527
  %v5529 = vpop.f32.mrf.mxu0
  %v5530 = vadd.f32 %v5163, %v5529
  %5531 = vdwg.mxu0
  %5532 = vmatpush.bf16.msra.mxu0 %v5423
  %5533 = vmatpush.bf16.msra.mxu0 %v5419
  %5534 = vmatpush.bf16.msra.mxu0 %v5415
  %5535 = vmatpush.bf16.msra.mxu0 %v5411
  %5536 = vmatpush.bf16.msra.mxu0 %v5407
  %5537 = vmatpush.bf16.msra.mxu0 %v5403
  %5538 = vmatpush.bf16.msra.mxu0 %v5399
  %5539 = vmatpush.bf16.msra.mxu0 %v5395
  %5540 = vmatmul.bf16.gmra.mxu0 %v4589
  %v5541 = vpop.f32.mrf.mxu0
  %v5542 = vadd.f32 %v5528, %v5541
  %v5543 = vpop.f32.mrf.mxu0
  %v5544 = vadd.f32 %v5530, %v5543
  %5545 = vdwg.mxu0
  %5546 = vmatpush.bf16.msra.mxu0 %v5392
  %5547 = vmatpush.bf16.msra.mxu0 %v5388
  %5548 = vmatpush.bf16.msra.mxu0 %v5384
  %5549 = vmatpush.bf16.msra.mxu0 %v5380
  %5550 = vmatpush.bf16.msra.mxu0 %v5376
  %5551 = vmatpush.bf16.msra.mxu0 %v5372
  %5552 = vmatpush.bf16.msra.mxu0 %v5368
  %5553 = vmatpush.bf16.msra.mxu0 %v5364
  %5554 = vmatmul.bf16.gmra.mxu0 %v4588
  %v5555 = vpop.f32.mrf.mxu0
  %v5556 = vadd.f32 %v5164, %v5555
  %v5557 = vpop.f32.mrf.mxu0
  %v5558 = vadd.f32 %v5164, %v5557
  %5559 = vdwg.mxu0
  %5560 = vmatpush.bf16.msra.mxu0 %v5424
  %5561 = vmatpush.bf16.msra.mxu0 %v5420
  %5562 = vmatpush.bf16.msra.mxu0 %v5416
  %5563 = vmatpush.bf16.msra.mxu0 %v5412
  %5564 = vmatpush.bf16.msra.mxu0 %v5408
  %5565 = vmatpush.bf16.msra.mxu0 %v5404
  %5566 = vmatpush.bf16.msra.mxu0 %v5400
  %5567 = vmatpush.bf16.msra.mxu0 %v5396
  %5568 = vmatmul.bf16.gmra.mxu0 %v4589
  %v5569 = vpop.f32.mrf.mxu0
  %v5570 = vadd.f32 %v5556, %v5569
  %v5571 = vpop.f32.mrf.mxu0
  %v5572 = vadd.f32 %v5558, %v5571
  %5573 = vdwg.mxu0
  %5574 = vmatpush.bf16.msra.mxu0 %v5393
  %5575 = vmatpush.bf16.msra.mxu0 %v5389
  %5576 = vmatpush.bf16.msra.mxu0 %v5385
  %5577 = vmatpush.bf16.msra.mxu0 %v5381
  %5578 = vmatpush.bf16.msra.mxu0 %v5377
  %5579 = vmatpush.bf16.msra.mxu0 %v5373
  %5580 = vmatpush.bf16.msra.mxu0 %v5369
  %5581 = vmatpush.bf16.msra.mxu0 %v5365
  %5582 = vmatmul.bf16.gmra.mxu0 %v4588
  %v5583 = vpop.f32.mrf.mxu0
  %v5584 = vadd.f32 %v5165, %v5583
  %v5585 = vpop.f32.mrf.mxu0
  %v5586 = vadd.f32 %v5165, %v5585
  %5587 = vdwg.mxu0
  %5588 = vmatpush.bf16.msra.mxu0 %v5425
  %5589 = vmatpush.bf16.msra.mxu0 %v5421
  %5590 = vmatpush.bf16.msra.mxu0 %v5417
  %5591 = vmatpush.bf16.msra.mxu0 %v5413
  %5592 = vmatpush.bf16.msra.mxu0 %v5409
  %5593 = vmatpush.bf16.msra.mxu0 %v5405
  %5594 = vmatpush.bf16.msra.mxu0 %v5401
  %5595 = vmatpush.bf16.msra.mxu0 %v5397
  %5596 = vmatmul.bf16.gmra.mxu0 %v4589
  %v5597 = vpop.f32.mrf.mxu0
  %v5598 = vadd.f32 %v5584, %v5597
  %v5599 = vpop.f32.mrf.mxu0
  %v5600 = vadd.f32 %v5586, %v5599
  %5601 = vdwg.mxu0
  %v5602 = vmax.f32 %v5514, 0.0
  %v5603 = vmax.f32 %v5542, 0.0
  %v5604 = vmax.f32 %v5570, 0.0
  %v5605 = vmax.f32 %v5598, 0.0
  %v5606 = vmax.f32 %v5516, 0.0
  %v5607 = vmax.f32 %v5544, 0.0
  %v5608 = vmax.f32 %v5572, 0.0
  %v5609 = vmax.f32 %v5600, 0.0
  %v5610 = vpack.c.bf16 %v5606, %v5602
  %v5611 = vpack.c.bf16 %v5607, %v5603
  %v5612 = vpack.c.bf16 %v5608, %v5604
  %v5613 = vpack.c.bf16 %v5609, %v5605
  %v5614 = vld [vmem:[#allocation18] sm:$0xff]
  %v5615 = vld [vmem:[#allocation18 + $0x8] sm:$0xff]
  %v5616 = vld [vmem:[#allocation18 + $0x10] sm:$0xff]
  %v5617 = vld [vmem:[#allocation18 + $0x18] sm:$0xff]
  %v5618 = vld [vmem:[#allocation18 + $0x20] sm:$0xff]
  %v5619 = vld [vmem:[#allocation18 + $0x28] sm:$0xff]
  %v5620 = vld [vmem:[#allocation18 + $0x30] sm:$0xff]
  %v5621 = vld [vmem:[#allocation18 + $0x38] sm:$0xff]
  %v5622 = vld [vmem:[#allocation18 + $0x40] sm:$0xff]
  %v5623 = vld [vmem:[#allocation18 + $0x48] sm:$0xff]
  %v5624 = vld [vmem:[#allocation18 + $0x50] sm:$0xff]
  %v5625 = vld [vmem:[#allocation18 + $0x58] sm:$0xff]
  %v5626 = vld [vmem:[#allocation18 + $0x60] sm:$0xff]
  %v5627 = vld [vmem:[#allocation18 + $0x68] sm:$0xff]
  %v5628 = vld [vmem:[#allocation18 + $0x70] sm:$0xff]
  %v5629 = vld [vmem:[#allocation18 + $0x78] sm:$0xff]
  %v5630 = vld [vmem:[#allocation18 + $0x80] sm:$0xff]
  %v5631 = vld [vmem:[#allocation18 + $0x88] sm:$0xff]
  %v5632 = vld [vmem:[#allocation18 + $0x90] sm:$0xff]
  %v5633 = vld [vmem:[#allocation18 + $0x98] sm:$0xff]
  %v5634 = vld [vmem:[#allocation18 + $0xa0] sm:$0xff]
  %v5635 = vld [vmem:[#allocation18 + $0xa8] sm:$0xff]
  %v5636 = vld [vmem:[#allocation18 + $0xb0] sm:$0xff]
  %v5637 = vld [vmem:[#allocation18 + $0xb8] sm:$0xff]
  %v5638 = vld [vmem:[#allocation18 + $0xc0] sm:$0xff]
  %v5639 = vld [vmem:[#allocation18 + $0xc8] sm:$0xff]
  %v5640 = vld [vmem:[#allocation18 + $0xd0] sm:$0xff]
  %v5641 = vld [vmem:[#allocation18 + $0xd8] sm:$0xff]
  %v5642 = vld [vmem:[#allocation18 + $0xe0] sm:$0xff]
  %v5643 = vld [vmem:[#allocation18 + $0xe8] sm:$0xff]
  %v5644 = vld [vmem:[#allocation18 + $0xf0] sm:$0xff]
  %v5645 = vld [vmem:[#allocation18 + $0xf8] sm:$0xff]
  %v5646 = vld [vmem:[#allocation18 + $0x100] sm:$0xff]
  %v5647 = vld [vmem:[#allocation18 + $0x108] sm:$0xff]
  %v5648 = vld [vmem:[#allocation18 + $0x110] sm:$0xff]
  %v5649 = vld [vmem:[#allocation18 + $0x118] sm:$0xff]
  %v5650 = vld [vmem:[#allocation18 + $0x120] sm:$0xff]
  %v5651 = vld [vmem:[#allocation18 + $0x128] sm:$0xff]
  %v5652 = vld [vmem:[#allocation18 + $0x130] sm:$0xff]
  %v5653 = vld [vmem:[#allocation18 + $0x138] sm:$0xff]
  %v5654 = vld [vmem:[#allocation18 + $0x140] sm:$0xff]
  %v5655 = vld [vmem:[#allocation18 + $0x148] sm:$0xff]
  %v5656 = vld [vmem:[#allocation18 + $0x150] sm:$0xff]
  %v5657 = vld [vmem:[#allocation18 + $0x158] sm:$0xff]
  %v5658 = vld [vmem:[#allocation18 + $0x160] sm:$0xff]
  %v5659 = vld [vmem:[#allocation18 + $0x168] sm:$0xff]
  %v5660 = vld [vmem:[#allocation18 + $0x170] sm:$0xff]
  %v5661 = vld [vmem:[#allocation18 + $0x178] sm:$0xff]
  %v5662 = vld [vmem:[#allocation18 + $0x180] sm:$0xff]
  %v5663 = vld [vmem:[#allocation18 + $0x188] sm:$0xff]
  %v5664 = vld [vmem:[#allocation18 + $0x190] sm:$0xff]
  %v5665 = vld [vmem:[#allocation18 + $0x198] sm:$0xff]
  %v5666 = vld [vmem:[#allocation18 + $0x1a0] sm:$0xff]
  %v5667 = vld [vmem:[#allocation18 + $0x1a8] sm:$0xff]
  %v5668 = vld [vmem:[#allocation18 + $0x1b0] sm:$0xff]
  %v5669 = vld [vmem:[#allocation18 + $0x1b8] sm:$0xff]
  %v5670 = vld [vmem:[#allocation18 + $0x1c0] sm:$0xff]
  %v5671 = vld [vmem:[#allocation18 + $0x1c8] sm:$0xff]
  %v5672 = vld [vmem:[#allocation18 + $0x1d0] sm:$0xff]
  %v5673 = vld [vmem:[#allocation18 + $0x1d8] sm:$0xff]
  %v5674 = vld [vmem:[#allocation18 + $0x1e0] sm:$0xff]
  %v5675 = vld [vmem:[#allocation18 + $0x1e8] sm:$0xff]
  %v5676 = vld [vmem:[#allocation18 + $0x1f0] sm:$0xff]
  %v5677 = vld [vmem:[#allocation18 + $0x1f8] sm:$0xff]
  %v5678 = vld [vmem:[#allocation18 + $0x200] sm:$0xff]
  %v5679 = vld [vmem:[#allocation18 + $0x208] sm:$0xff]
  %v5680 = vld [vmem:[#allocation18 + $0x210] sm:$0xff]
  %v5681 = vld [vmem:[#allocation18 + $0x218] sm:$0xff]
  %v5682 = vld [vmem:[#allocation18 + $0x220] sm:$0xff]
  %v5683 = vld [vmem:[#allocation18 + $0x228] sm:$0xff]
  %v5684 = vld [vmem:[#allocation18 + $0x230] sm:$0xff]
  %v5685 = vld [vmem:[#allocation18 + $0x238] sm:$0xff]
  %v5686 = vld [vmem:[#allocation18 + $0x240] sm:$0xff]
  %v5687 = vld [vmem:[#allocation18 + $0x248] sm:$0xff]
  %v5688 = vld [vmem:[#allocation18 + $0x250] sm:$0xff]
  %v5689 = vld [vmem:[#allocation18 + $0x258] sm:$0xff]
  %v5690 = vld [vmem:[#allocation18 + $0x260] sm:$0xff]
  %v5691 = vld [vmem:[#allocation18 + $0x268] sm:$0xff]
  %v5692 = vld [vmem:[#allocation18 + $0x270] sm:$0xff]
  %v5693 = vld [vmem:[#allocation18 + $0x278] sm:$0xff]
  %v5694 = vld [vmem:[#allocation18 + $0x280] sm:$0xff]
  %v5695 = vld [vmem:[#allocation18 + $0x288] sm:$0xff]
  %v5696 = vld [vmem:[#allocation18 + $0x290] sm:$0xff]
  %v5697 = vld [vmem:[#allocation18 + $0x298] sm:$0xff]
  %v5698 = vld [vmem:[#allocation18 + $0x2a0] sm:$0xff]
  %v5699 = vld [vmem:[#allocation18 + $0x2a8] sm:$0xff]
  %v5700 = vld [vmem:[#allocation18 + $0x2b0] sm:$0xff]
  %v5701 = vld [vmem:[#allocation18 + $0x2b8] sm:$0xff]
  %v5702 = vld [vmem:[#allocation18 + $0x2c0] sm:$0xff]
  %v5703 = vld [vmem:[#allocation18 + $0x2c8] sm:$0xff]
  %v5704 = vld [vmem:[#allocation18 + $0x2d0] sm:$0xff]
  %v5705 = vld [vmem:[#allocation18 + $0x2d8] sm:$0xff]
  %v5706 = vld [vmem:[#allocation18 + $0x2e0] sm:$0xff]
  %v5707 = vld [vmem:[#allocation18 + $0x2e8] sm:$0xff]
  %v5708 = vld [vmem:[#allocation18 + $0x2f0] sm:$0xff]
  %v5709 = vld [vmem:[#allocation18 + $0x2f8] sm:$0xff]
  %v5710 = vld [vmem:[#allocation18 + $0x300] sm:$0xff]
  %v5711 = vld [vmem:[#allocation18 + $0x308] sm:$0xff]
  %v5712 = vld [vmem:[#allocation18 + $0x310] sm:$0xff]
  %v5713 = vld [vmem:[#allocation18 + $0x318] sm:$0xff]
  %v5714 = vld [vmem:[#allocation18 + $0x320] sm:$0xff]
  %v5715 = vld [vmem:[#allocation18 + $0x328] sm:$0xff]
  %v5716 = vld [vmem:[#allocation18 + $0x330] sm:$0xff]
  %v5717 = vld [vmem:[#allocation18 + $0x338] sm:$0xff]
  %v5718 = vld [vmem:[#allocation18 + $0x340] sm:$0xff]
  %v5719 = vld [vmem:[#allocation18 + $0x348] sm:$0xff]
  %v5720 = vld [vmem:[#allocation18 + $0x350] sm:$0xff]
  %v5721 = vld [vmem:[#allocation18 + $0x358] sm:$0xff]
  %v5722 = vld [vmem:[#allocation18 + $0x360] sm:$0xff]
  %v5723 = vld [vmem:[#allocation18 + $0x368] sm:$0xff]
  %v5724 = vld [vmem:[#allocation18 + $0x370] sm:$0xff]
  %v5725 = vld [vmem:[#allocation18 + $0x378] sm:$0xff]
  %v5726 = vld [vmem:[#allocation18 + $0x380] sm:$0xff]
  %v5727 = vld [vmem:[#allocation18 + $0x388] sm:$0xff]
  %v5728 = vld [vmem:[#allocation18 + $0x390] sm:$0xff]
  %v5729 = vld [vmem:[#allocation18 + $0x398] sm:$0xff]
  %v5730 = vld [vmem:[#allocation18 + $0x3a0] sm:$0xff]
  %v5731 = vld [vmem:[#allocation18 + $0x3a8] sm:$0xff]
  %v5732 = vld [vmem:[#allocation18 + $0x3b0] sm:$0xff]
  %v5733 = vld [vmem:[#allocation18 + $0x3b8] sm:$0xff]
  %v5734 = vld [vmem:[#allocation18 + $0x3c0] sm:$0xff]
  %v5735 = vld [vmem:[#allocation18 + $0x3c8] sm:$0xff]
  %v5736 = vld [vmem:[#allocation18 + $0x3d0] sm:$0xff]
  %v5737 = vld [vmem:[#allocation18 + $0x3d8] sm:$0xff]
  %v5738 = vld [vmem:[#allocation18 + $0x3e0] sm:$0xff]
  %v5739 = vld [vmem:[#allocation18 + $0x3e8] sm:$0xff]
  %v5740 = vld [vmem:[#allocation18 + $0x3f0] sm:$0xff]
  %v5741 = vld [vmem:[#allocation18 + $0x3f8] sm:$0xff]
  %v5742 = vld [vmem:[%s35] sm:$0xf]
  %v5744 = vperm.slane %v5742, 0
  %v5745 = vperm.slane %v5742, 1
  %v5746 = vperm.slane %v5742, 2
  %v5747 = vperm.slane %v5742, 3
  %v5880 = vunpack.c.l.b16 %v5614
  %v5881 = vunpack.c.h.b16 %v5614
  %v5882 = vunpack.c.l.b16 %v5615
  %v5883 = vunpack.c.h.b16 %v5615
  %v5884 = vunpack.c.l.b16 %v5616
  %v5885 = vunpack.c.h.b16 %v5616
  %v5886 = vunpack.c.l.b16 %v5617
  %v5887 = vunpack.c.h.b16 %v5617
  %v5888 = vunpack.c.l.b16 %v5618
  %v5889 = vunpack.c.h.b16 %v5618
  %v5890 = vunpack.c.l.b16 %v5619
  %v5891 = vunpack.c.h.b16 %v5619
  %v5892 = vunpack.c.l.b16 %v5620
  %v5893 = vunpack.c.h.b16 %v5620
  %v5894 = vunpack.c.l.b16 %v5621
  %v5895 = vunpack.c.h.b16 %v5621
  %v5896 = vunpack.c.l.b16 %v5622
  %v5897 = vunpack.c.h.b16 %v5622
  %v5898 = vunpack.c.l.b16 %v5623
  %v5899 = vunpack.c.h.b16 %v5623
  %v5900 = vunpack.c.l.b16 %v5624
  %v5901 = vunpack.c.h.b16 %v5624
  %v5902 = vunpack.c.l.b16 %v5625
  %v5903 = vunpack.c.h.b16 %v5625
  %v5904 = vunpack.c.l.b16 %v5626
  %v5905 = vunpack.c.h.b16 %v5626
  %v5906 = vunpack.c.l.b16 %v5627
  %v5907 = vunpack.c.h.b16 %v5627
  %v5908 = vunpack.c.l.b16 %v5628
  %v5909 = vunpack.c.h.b16 %v5628
  %v5910 = vunpack.c.l.b16 %v5629
  %v5911 = vunpack.c.h.b16 %v5629
  %v5912 = vunpack.c.l.b16 %v5630
  %v5913 = vunpack.c.h.b16 %v5630
  %v5914 = vunpack.c.l.b16 %v5631
  %v5915 = vunpack.c.h.b16 %v5631
  %v5916 = vunpack.c.l.b16 %v5632
  %v5917 = vunpack.c.h.b16 %v5632
  %v5918 = vunpack.c.l.b16 %v5633
  %v5919 = vunpack.c.h.b16 %v5633
  %v5920 = vunpack.c.l.b16 %v5634
  %v5921 = vunpack.c.h.b16 %v5634
  %v5922 = vunpack.c.l.b16 %v5635
  %v5923 = vunpack.c.h.b16 %v5635
  %v5924 = vunpack.c.l.b16 %v5636
  %v5925 = vunpack.c.h.b16 %v5636
  %v5926 = vunpack.c.l.b16 %v5637
  %v5927 = vunpack.c.h.b16 %v5637
  %v5928 = vunpack.c.l.b16 %v5638
  %v5929 = vunpack.c.h.b16 %v5638
  %v5930 = vunpack.c.l.b16 %v5639
  %v5931 = vunpack.c.h.b16 %v5639
  %v5932 = vunpack.c.l.b16 %v5640
  %v5933 = vunpack.c.h.b16 %v5640
  %v5934 = vunpack.c.l.b16 %v5641
  %v5935 = vunpack.c.h.b16 %v5641
  %v5936 = vunpack.c.l.b16 %v5642
  %v5937 = vunpack.c.h.b16 %v5642
  %v5938 = vunpack.c.l.b16 %v5643
  %v5939 = vunpack.c.h.b16 %v5643
  %v5940 = vunpack.c.l.b16 %v5644
  %v5941 = vunpack.c.h.b16 %v5644
  %v5942 = vunpack.c.l.b16 %v5645
  %v5943 = vunpack.c.h.b16 %v5645
  %v5944 = vunpack.c.l.b16 %v5646
  %v5945 = vunpack.c.h.b16 %v5646
  %v5946 = vunpack.c.l.b16 %v5647
  %v5947 = vunpack.c.h.b16 %v5647
  %v5948 = vunpack.c.l.b16 %v5648
  %v5949 = vunpack.c.h.b16 %v5648
  %v5950 = vunpack.c.l.b16 %v5649
  %v5951 = vunpack.c.h.b16 %v5649
  %v5952 = vunpack.c.l.b16 %v5650
  %v5953 = vunpack.c.h.b16 %v5650
  %v5954 = vunpack.c.l.b16 %v5651
  %v5955 = vunpack.c.h.b16 %v5651
  %v5956 = vunpack.c.l.b16 %v5652
  %v5957 = vunpack.c.h.b16 %v5652
  %v5958 = vunpack.c.l.b16 %v5653
  %v5959 = vunpack.c.h.b16 %v5653
  %v5960 = vunpack.c.l.b16 %v5654
  %v5961 = vunpack.c.h.b16 %v5654
  %v5962 = vunpack.c.l.b16 %v5655
  %v5963 = vunpack.c.h.b16 %v5655
  %v5964 = vunpack.c.l.b16 %v5656
  %v5965 = vunpack.c.h.b16 %v5656
  %v5966 = vunpack.c.l.b16 %v5657
  %v5967 = vunpack.c.h.b16 %v5657
  %v5968 = vunpack.c.l.b16 %v5658
  %v5969 = vunpack.c.h.b16 %v5658
  %v5970 = vunpack.c.l.b16 %v5659
  %v5971 = vunpack.c.h.b16 %v5659
  %v5972 = vunpack.c.l.b16 %v5660
  %v5973 = vunpack.c.h.b16 %v5660
  %v5974 = vunpack.c.l.b16 %v5661
  %v5975 = vunpack.c.h.b16 %v5661
  %v5976 = vunpack.c.l.b16 %v5662
  %v5977 = vunpack.c.h.b16 %v5662
  %v5978 = vunpack.c.l.b16 %v5663
  %v5979 = vunpack.c.h.b16 %v5663
  %v5980 = vunpack.c.l.b16 %v5664
  %v5981 = vunpack.c.h.b16 %v5664
  %v5982 = vunpack.c.l.b16 %v5665
  %v5983 = vunpack.c.h.b16 %v5665
  %v5984 = vunpack.c.l.b16 %v5666
  %v5985 = vunpack.c.h.b16 %v5666
  %v5986 = vunpack.c.l.b16 %v5667
  %v5987 = vunpack.c.h.b16 %v5667
  %v5988 = vunpack.c.l.b16 %v5668
  %v5989 = vunpack.c.h.b16 %v5668
  %v5990 = vunpack.c.l.b16 %v5669
  %v5991 = vunpack.c.h.b16 %v5669
  %v5992 = vunpack.c.l.b16 %v5670
  %v5993 = vunpack.c.h.b16 %v5670
  %v5994 = vunpack.c.l.b16 %v5671
  %v5995 = vunpack.c.h.b16 %v5671
  %v5996 = vunpack.c.l.b16 %v5672
  %v5997 = vunpack.c.h.b16 %v5672
  %v5998 = vunpack.c.l.b16 %v5673
  %v5999 = vunpack.c.h.b16 %v5673
  %v6000 = vunpack.c.l.b16 %v5674
  %v6001 = vunpack.c.h.b16 %v5674
  %v6002 = vunpack.c.l.b16 %v5675
  %v6003 = vunpack.c.h.b16 %v5675
  %v6004 = vunpack.c.l.b16 %v5676
  %v6005 = vunpack.c.h.b16 %v5676
  %v6006 = vunpack.c.l.b16 %v5677
  %v6007 = vunpack.c.h.b16 %v5677
  %v6008 = vunpack.c.l.b16 %v5678
  %v6009 = vunpack.c.h.b16 %v5678
  %v6010 = vunpack.c.l.b16 %v5679
  %v6011 = vunpack.c.h.b16 %v5679
  %v6012 = vunpack.c.l.b16 %v5680
  %v6013 = vunpack.c.h.b16 %v5680
  %v6014 = vunpack.c.l.b16 %v5681
  %v6015 = vunpack.c.h.b16 %v5681
  %v6016 = vunpack.c.l.b16 %v5682
  %v6017 = vunpack.c.h.b16 %v5682
  %v6018 = vunpack.c.l.b16 %v5683
  %v6019 = vunpack.c.h.b16 %v5683
  %v6020 = vunpack.c.l.b16 %v5684
  %v6021 = vunpack.c.h.b16 %v5684
  %v6022 = vunpack.c.l.b16 %v5685
  %v6023 = vunpack.c.h.b16 %v5685
  %v6024 = vunpack.c.l.b16 %v5686
  %v6025 = vunpack.c.h.b16 %v5686
  %v6026 = vunpack.c.l.b16 %v5687
  %v6027 = vunpack.c.h.b16 %v5687
  %v6028 = vunpack.c.l.b16 %v5688
  %v6029 = vunpack.c.h.b16 %v5688
  %v6030 = vunpack.c.l.b16 %v5689
  %v6031 = vunpack.c.h.b16 %v5689
  %v6032 = vunpack.c.l.b16 %v5690
  %v6033 = vunpack.c.h.b16 %v5690
  %v6034 = vunpack.c.l.b16 %v5691
  %v6035 = vunpack.c.h.b16 %v5691
  %v6036 = vunpack.c.l.b16 %v5692
  %v6037 = vunpack.c.h.b16 %v5692
  %v6038 = vunpack.c.l.b16 %v5693
  %v6039 = vunpack.c.h.b16 %v5693
  %v6040 = vunpack.c.l.b16 %v5694
  %v6041 = vunpack.c.h.b16 %v5694
  %v6042 = vunpack.c.l.b16 %v5695
  %v6043 = vunpack.c.h.b16 %v5695
  %v6044 = vunpack.c.l.b16 %v5696
  %v6045 = vunpack.c.h.b16 %v5696
  %v6046 = vunpack.c.l.b16 %v5697
  %v6047 = vunpack.c.h.b16 %v5697
  %v6048 = vunpack.c.l.b16 %v5698
  %v6049 = vunpack.c.h.b16 %v5698
  %v6050 = vunpack.c.l.b16 %v5699
  %v6051 = vunpack.c.h.b16 %v5699
  %v6052 = vunpack.c.l.b16 %v5700
  %v6053 = vunpack.c.h.b16 %v5700
  %v6054 = vunpack.c.l.b16 %v5701
  %v6055 = vunpack.c.h.b16 %v5701
  %v6056 = vunpack.c.l.b16 %v5702
  %v6057 = vunpack.c.h.b16 %v5702
  %v6058 = vunpack.c.l.b16 %v5703
  %v6059 = vunpack.c.h.b16 %v5703
  %v6060 = vunpack.c.l.b16 %v5704
  %v6061 = vunpack.c.h.b16 %v5704
  %v6062 = vunpack.c.l.b16 %v5705
  %v6063 = vunpack.c.h.b16 %v5705
  %v6064 = vunpack.c.l.b16 %v5706
  %v6065 = vunpack.c.h.b16 %v5706
  %v6066 = vunpack.c.l.b16 %v5707
  %v6067 = vunpack.c.h.b16 %v5707
  %v6068 = vunpack.c.l.b16 %v5708
  %v6069 = vunpack.c.h.b16 %v5708
  %v6070 = vunpack.c.l.b16 %v5709
  %v6071 = vunpack.c.h.b16 %v5709
  %v6072 = vunpack.c.l.b16 %v5710
  %v6073 = vunpack.c.h.b16 %v5710
  %v6074 = vunpack.c.l.b16 %v5711
  %v6075 = vunpack.c.h.b16 %v5711
  %v6076 = vunpack.c.l.b16 %v5712
  %v6077 = vunpack.c.h.b16 %v5712
  %v6078 = vunpack.c.l.b16 %v5713
  %v6079 = vunpack.c.h.b16 %v5713
  %v6080 = vunpack.c.l.b16 %v5714
  %v6081 = vunpack.c.h.b16 %v5714
  %v6082 = vunpack.c.l.b16 %v5715
  %v6083 = vunpack.c.h.b16 %v5715
  %v6084 = vunpack.c.l.b16 %v5716
  %v6085 = vunpack.c.h.b16 %v5716
  %v6086 = vunpack.c.l.b16 %v5717
  %v6087 = vunpack.c.h.b16 %v5717
  %v6088 = vunpack.c.l.b16 %v5718
  %v6089 = vunpack.c.h.b16 %v5718
  %v6090 = vunpack.c.l.b16 %v5719
  %v6091 = vunpack.c.h.b16 %v5719
  %v6092 = vunpack.c.l.b16 %v5720
  %v6093 = vunpack.c.h.b16 %v5720
  %v6094 = vunpack.c.l.b16 %v5721
  %v6095 = vunpack.c.h.b16 %v5721
  %v6096 = vunpack.c.l.b16 %v5722
  %v6097 = vunpack.c.h.b16 %v5722
  %v6098 = vunpack.c.l.b16 %v5723
  %v6099 = vunpack.c.h.b16 %v5723
  %v6100 = vunpack.c.l.b16 %v5724
  %v6101 = vunpack.c.h.b16 %v5724
  %v6102 = vunpack.c.l.b16 %v5725
  %v6103 = vunpack.c.h.b16 %v5725
  %v6104 = vunpack.c.l.b16 %v5726
  %v6105 = vunpack.c.h.b16 %v5726
  %v6106 = vunpack.c.l.b16 %v5727
  %v6107 = vunpack.c.h.b16 %v5727
  %v6108 = vunpack.c.l.b16 %v5728
  %v6109 = vunpack.c.h.b16 %v5728
  %v6110 = vunpack.c.l.b16 %v5729
  %v6111 = vunpack.c.h.b16 %v5729
  %v6112 = vunpack.c.l.b16 %v5730
  %v6113 = vunpack.c.h.b16 %v5730
  %v6114 = vunpack.c.l.b16 %v5731
  %v6115 = vunpack.c.h.b16 %v5731
  %v6116 = vunpack.c.l.b16 %v5732
  %v6117 = vunpack.c.h.b16 %v5732
  %v6118 = vunpack.c.l.b16 %v5733
  %v6119 = vunpack.c.h.b16 %v5733
  %v6120 = vunpack.c.l.b16 %v5734
  %v6121 = vunpack.c.h.b16 %v5734
  %v6122 = vunpack.c.l.b16 %v5735
  %v6123 = vunpack.c.h.b16 %v5735
  %v6124 = vunpack.c.l.b16 %v5736
  %v6125 = vunpack.c.h.b16 %v5736
  %v6126 = vunpack.c.l.b16 %v5737
  %v6127 = vunpack.c.h.b16 %v5737
  %v6128 = vunpack.c.l.b16 %v5738
  %v6129 = vunpack.c.h.b16 %v5738
  %v6130 = vunpack.c.l.b16 %v5739
  %v6131 = vunpack.c.h.b16 %v5739
  %v6132 = vunpack.c.l.b16 %v5740
  %v6133 = vunpack.c.h.b16 %v5740
  %v6134 = vunpack.c.l.b16 %v5741
  %v6135 = vunpack.c.h.b16 %v5741
  %v6136 = vpack.c.b16 %v5884, %v5880
  %v6137 = vpack.c.b16 %v5885, %v5881
  %v6138 = vpack.c.b16 %v5886, %v5882
  %v6139 = vpack.c.b16 %v5887, %v5883
  %v6140 = vpack.c.b16 %v5892, %v5888
  %v6141 = vpack.c.b16 %v5893, %v5889
  %v6142 = vpack.c.b16 %v5894, %v5890
  %v6143 = vpack.c.b16 %v5895, %v5891
  %v6144 = vpack.c.b16 %v5900, %v5896
  %v6145 = vpack.c.b16 %v5901, %v5897
  %v6146 = vpack.c.b16 %v5902, %v5898
  %v6147 = vpack.c.b16 %v5903, %v5899
  %v6148 = vpack.c.b16 %v5908, %v5904
  %v6149 = vpack.c.b16 %v5909, %v5905
  %v6150 = vpack.c.b16 %v5910, %v5906
  %v6151 = vpack.c.b16 %v5911, %v5907
  %v6152 = vpack.c.b16 %v5916, %v5912
  %v6153 = vpack.c.b16 %v5917, %v5913
  %v6154 = vpack.c.b16 %v5918, %v5914
  %v6155 = vpack.c.b16 %v5919, %v5915
  %v6156 = vpack.c.b16 %v5924, %v5920
  %v6157 = vpack.c.b16 %v5925, %v5921
  %v6158 = vpack.c.b16 %v5926, %v5922
  %v6159 = vpack.c.b16 %v5927, %v5923
  %v6160 = vpack.c.b16 %v5932, %v5928
  %v6161 = vpack.c.b16 %v5933, %v5929
  %v6162 = vpack.c.b16 %v5934, %v5930
  %v6163 = vpack.c.b16 %v5935, %v5931
  %v6164 = vpack.c.b16 %v5940, %v5936
  %v6165 = vpack.c.b16 %v5941, %v5937
  %v6166 = vpack.c.b16 %v5942, %v5938
  %v6167 = vpack.c.b16 %v5943, %v5939
  %v6168 = vpack.c.b16 %v5948, %v5944
  %v6169 = vpack.c.b16 %v5949, %v5945
  %v6170 = vpack.c.b16 %v5950, %v5946
  %v6171 = vpack.c.b16 %v5951, %v5947
  %v6172 = vpack.c.b16 %v5956, %v5952
  %v6173 = vpack.c.b16 %v5957, %v5953
  %v6174 = vpack.c.b16 %v5958, %v5954
  %v6175 = vpack.c.b16 %v5959, %v5955
  %v6176 = vpack.c.b16 %v5964, %v5960
  %v6177 = vpack.c.b16 %v5965, %v5961
  %v6178 = vpack.c.b16 %v5966, %v5962
  %v6179 = vpack.c.b16 %v5967, %v5963
  %v6180 = vpack.c.b16 %v5972, %v5968
  %v6181 = vpack.c.b16 %v5973, %v5969
  %v6182 = vpack.c.b16 %v5974, %v5970
  %v6183 = vpack.c.b16 %v5975, %v5971
  %v6184 = vpack.c.b16 %v5980, %v5976
  %v6185 = vpack.c.b16 %v5981, %v5977
  %v6186 = vpack.c.b16 %v5982, %v5978
  %v6187 = vpack.c.b16 %v5983, %v5979
  %v6188 = vpack.c.b16 %v5988, %v5984
  %v6189 = vpack.c.b16 %v5989, %v5985
  %v6190 = vpack.c.b16 %v5990, %v5986
  %v6191 = vpack.c.b16 %v5991, %v5987
  %v6192 = vpack.c.b16 %v5996, %v5992
  %v6193 = vpack.c.b16 %v5997, %v5993
  %v6194 = vpack.c.b16 %v5998, %v5994
  %v6195 = vpack.c.b16 %v5999, %v5995
  %v6196 = vpack.c.b16 %v6004, %v6000
  %v6197 = vpack.c.b16 %v6005, %v6001
  %v6198 = vpack.c.b16 %v6006, %v6002
  %v6199 = vpack.c.b16 %v6007, %v6003
  %v6200 = vpack.c.b16 %v6012, %v6008
  %v6201 = vpack.c.b16 %v6013, %v6009
  %v6202 = vpack.c.b16 %v6014, %v6010
  %v6203 = vpack.c.b16 %v6015, %v6011
  %v6204 = vpack.c.b16 %v6020, %v6016
  %v6205 = vpack.c.b16 %v6021, %v6017
  %v6206 = vpack.c.b16 %v6022, %v6018
  %v6207 = vpack.c.b16 %v6023, %v6019
  %v6208 = vpack.c.b16 %v6028, %v6024
  %v6209 = vpack.c.b16 %v6029, %v6025
  %v6210 = vpack.c.b16 %v6030, %v6026
  %v6211 = vpack.c.b16 %v6031, %v6027
  %v6212 = vpack.c.b16 %v6036, %v6032
  %v6213 = vpack.c.b16 %v6037, %v6033
  %v6214 = vpack.c.b16 %v6038, %v6034
  %v6215 = vpack.c.b16 %v6039, %v6035
  %v6216 = vpack.c.b16 %v6044, %v6040
  %v6217 = vpack.c.b16 %v6045, %v6041
  %v6218 = vpack.c.b16 %v6046, %v6042
  %v6219 = vpack.c.b16 %v6047, %v6043
  %v6220 = vpack.c.b16 %v6052, %v6048
  %v6221 = vpack.c.b16 %v6053, %v6049
  %v6222 = vpack.c.b16 %v6054, %v6050
  %v6223 = vpack.c.b16 %v6055, %v6051
  %v6224 = vpack.c.b16 %v6060, %v6056
  %v6225 = vpack.c.b16 %v6061, %v6057
  %v6226 = vpack.c.b16 %v6062, %v6058
  %v6227 = vpack.c.b16 %v6063, %v6059
  %v6228 = vpack.c.b16 %v6068, %v6064
  %v6229 = vpack.c.b16 %v6069, %v6065
  %v6230 = vpack.c.b16 %v6070, %v6066
  %v6231 = vpack.c.b16 %v6071, %v6067
  %v6232 = vpack.c.b16 %v6076, %v6072
  %v6233 = vpack.c.b16 %v6077, %v6073
  %v6234 = vpack.c.b16 %v6078, %v6074
  %v6235 = vpack.c.b16 %v6079, %v6075
  %v6236 = vpack.c.b16 %v6084, %v6080
  %v6237 = vpack.c.b16 %v6085, %v6081
  %v6238 = vpack.c.b16 %v6086, %v6082
  %v6239 = vpack.c.b16 %v6087, %v6083
  %v6240 = vpack.c.b16 %v6092, %v6088
  %v6241 = vpack.c.b16 %v6093, %v6089
  %v6242 = vpack.c.b16 %v6094, %v6090
  %v6243 = vpack.c.b16 %v6095, %v6091
  %v6244 = vpack.c.b16 %v6100, %v6096
  %v6245 = vpack.c.b16 %v6101, %v6097
  %v6246 = vpack.c.b16 %v6102, %v6098
  %v6247 = vpack.c.b16 %v6103, %v6099
  %v6248 = vpack.c.b16 %v6108, %v6104
  %v6249 = vpack.c.b16 %v6109, %v6105
  %v6250 = vpack.c.b16 %v6110, %v6106
  %v6251 = vpack.c.b16 %v6111, %v6107
  %v6252 = vpack.c.b16 %v6116, %v6112
  %v6253 = vpack.c.b16 %v6117, %v6113
  %v6254 = vpack.c.b16 %v6118, %v6114
  %v6255 = vpack.c.b16 %v6119, %v6115
  %v6256 = vpack.c.b16 %v6124, %v6120
  %v6257 = vpack.c.b16 %v6125, %v6121
  %v6258 = vpack.c.b16 %v6126, %v6122
  %v6259 = vpack.c.b16 %v6127, %v6123
  %v6260 = vpack.c.b16 %v6132, %v6128
  %v6261 = vpack.c.b16 %v6133, %v6129
  %v6262 = vpack.c.b16 %v6134, %v6130
  %v6263 = vpack.c.b16 %v6135, %v6131
  %6392 = vmatpush.bf16.msra.mxu0 %v6164
  %6393 = vmatpush.bf16.msra.mxu0 %v6160
  %6394 = vmatpush.bf16.msra.mxu0 %v6156
  %6395 = vmatpush.bf16.msra.mxu0 %v6152
  %6396 = vmatpush.bf16.msra.mxu0 %v6148
  %6397 = vmatpush.bf16.msra.mxu0 %v6144
  %6398 = vmatpush.bf16.msra.mxu0 %v6140
  %6399 = vmatpush.bf16.msra.mxu0 %v6136
  %6400 = vmatmul.bf16.gmra.mxu0 %v5610
  %v6401 = vpop.f32.mrf.mxu0
  %v6402 = vadd.f32 %v5744, %v6401
  %v6403 = vpop.f32.mrf.mxu0
  %v6404 = vadd.f32 %v5744, %v6403
  %6405 = vdwg.mxu0
  %6406 = vmatpush.bf16.msra.mxu0 %v6196
  %6407 = vmatpush.bf16.msra.mxu0 %v6192
  %6408 = vmatpush.bf16.msra.mxu0 %v6188
  %6409 = vmatpush.bf16.msra.mxu0 %v6184
  %6410 = vmatpush.bf16.msra.mxu0 %v6180
  %6411 = vmatpush.bf16.msra.mxu0 %v6176
  %6412 = vmatpush.bf16.msra.mxu0 %v6172
  %6413 = vmatpush.bf16.msra.mxu0 %v6168
  %6414 = vmatmul.bf16.gmra.mxu0 %v5611
  %v6415 = vpop.f32.mrf.mxu0
  %v6416 = vadd.f32 %v6402, %v6415
  %v6417 = vpop.f32.mrf.mxu0
  %v6418 = vadd.f32 %v6404, %v6417
  %6419 = vdwg.mxu0
  %6420 = vmatpush.bf16.msra.mxu0 %v6228
  %6421 = vmatpush.bf16.msra.mxu0 %v6224
  %6422 = vmatpush.bf16.msra.mxu0 %v6220
  %6423 = vmatpush.bf16.msra.mxu0 %v6216
  %6424 = vmatpush.bf16.msra.mxu0 %v6212
  %6425 = vmatpush.bf16.msra.mxu0 %v6208
  %6426 = vmatpush.bf16.msra.mxu0 %v6204
  %6427 = vmatpush.bf16.msra.mxu0 %v6200
  %6428 = vmatmul.bf16.gmra.mxu0 %v5612
  %v6429 = vpop.f32.mrf.mxu0
  %v6430 = vadd.f32 %v6416, %v6429
  %v6431 = vpop.f32.mrf.mxu0
  %v6432 = vadd.f32 %v6418, %v6431
  %6433 = vdwg.mxu0
  %6434 = vmatpush.bf16.msra.mxu0 %v6260
  %6435 = vmatpush.bf16.msra.mxu0 %v6256
  %6436 = vmatpush.bf16.msra.mxu0 %v6252
  %6437 = vmatpush.bf16.msra.mxu0 %v6248
  %6438 = vmatpush.bf16.msra.mxu0 %v6244
  %6439 = vmatpush.bf16.msra.mxu0 %v6240
  %6440 = vmatpush.bf16.msra.mxu0 %v6236
  %6441 = vmatpush.bf16.msra.mxu0 %v6232
  %6442 = vmatmul.bf16.gmra.mxu0 %v5613
  %v6443 = vpop.f32.mrf.mxu0
  %v6444 = vadd.f32 %v6430, %v6443
  %v6445 = vpop.f32.mrf.mxu0
  %v6446 = vadd.f32 %v6432, %v6445
  %6447 = vdwg.mxu0
  %6448 = vmatpush.bf16.msra.mxu0 %v6165
  %6449 = vmatpush.bf16.msra.mxu0 %v6161
  %6450 = vmatpush.bf16.msra.mxu0 %v6157
  %6451 = vmatpush.bf16.msra.mxu0 %v6153
  %6452 = vmatpush.bf16.msra.mxu0 %v6149
  %6453 = vmatpush.bf16.msra.mxu0 %v6145
  %6454 = vmatpush.bf16.msra.mxu0 %v6141
  %6455 = vmatpush.bf16.msra.mxu0 %v6137
  %6456 = vmatmul.bf16.gmra.mxu0 %v5610
  %v6457 = vpop.f32.mrf.mxu0
  %v6458 = vadd.f32 %v5745, %v6457
  %v6459 = vpop.f32.mrf.mxu0
  %v6460 = vadd.f32 %v5745, %v6459
  %6461 = vdwg.mxu0
  %6462 = vmatpush.bf16.msra.mxu0 %v6197
  %6463 = vmatpush.bf16.msra.mxu0 %v6193
  %6464 = vmatpush.bf16.msra.mxu0 %v6189
  %6465 = vmatpush.bf16.msra.mxu0 %v6185
  %6466 = vmatpush.bf16.msra.mxu0 %v6181
  %6467 = vmatpush.bf16.msra.mxu0 %v6177
  %6468 = vmatpush.bf16.msra.mxu0 %v6173
  %6469 = vmatpush.bf16.msra.mxu0 %v6169
  %6470 = vmatmul.bf16.gmra.mxu0 %v5611
  %v6471 = vpop.f32.mrf.mxu0
  %v6472 = vadd.f32 %v6458, %v6471
  %v6473 = vpop.f32.mrf.mxu0
  %v6474 = vadd.f32 %v6460, %v6473
  %6475 = vdwg.mxu0
  %6476 = vmatpush.bf16.msra.mxu0 %v6229
  %6477 = vmatpush.bf16.msra.mxu0 %v6225
  %6478 = vmatpush.bf16.msra.mxu0 %v6221
  %6479 = vmatpush.bf16.msra.mxu0 %v6217
  %6480 = vmatpush.bf16.msra.mxu0 %v6213
  %6481 = vmatpush.bf16.msra.mxu0 %v6209
  %6482 = vmatpush.bf16.msra.mxu0 %v6205
  %6483 = vmatpush.bf16.msra.mxu0 %v6201
  %6484 = vmatmul.bf16.gmra.mxu0 %v5612
  %v6485 = vpop.f32.mrf.mxu0
  %v6486 = vadd.f32 %v6472, %v6485
  %v6487 = vpop.f32.mrf.mxu0
  %v6488 = vadd.f32 %v6474, %v6487
  %6489 = vdwg.mxu0
  %6490 = vmatpush.bf16.msra.mxu0 %v6261
  %6491 = vmatpush.bf16.msra.mxu0 %v6257
  %6492 = vmatpush.bf16.msra.mxu0 %v6253
  %6493 = vmatpush.bf16.msra.mxu0 %v6249
  %6494 = vmatpush.bf16.msra.mxu0 %v6245
  %6495 = vmatpush.bf16.msra.mxu0 %v6241
  %6496 = vmatpush.bf16.msra.mxu0 %v6237
  %6497 = vmatpush.bf16.msra.mxu0 %v6233
  %6498 = vmatmul.bf16.gmra.mxu0 %v5613
  %v6499 = vpop.f32.mrf.mxu0
  %v6500 = vadd.f32 %v6486, %v6499
  %v6501 = vpop.f32.mrf.mxu0
  %v6502 = vadd.f32 %v6488, %v6501
  %6503 = vdwg.mxu0
  %6504 = vmatpush.bf16.msra.mxu0 %v6166
  %6505 = vmatpush.bf16.msra.mxu0 %v6162
  %6506 = vmatpush.bf16.msra.mxu0 %v6158
  %6507 = vmatpush.bf16.msra.mxu0 %v6154
  %6508 = vmatpush.bf16.msra.mxu0 %v6150
  %6509 = vmatpush.bf16.msra.mxu0 %v6146
  %6510 = vmatpush.bf16.msra.mxu0 %v6142
  %6511 = vmatpush.bf16.msra.mxu0 %v6138
  %6512 = vmatmul.bf16.gmra.mxu0 %v5610
  %v6513 = vpop.f32.mrf.mxu0
  %v6514 = vadd.f32 %v5746, %v6513
  %v6515 = vpop.f32.mrf.mxu0
  %v6516 = vadd.f32 %v5746, %v6515
  %6517 = vdwg.mxu0
  %6518 = vmatpush.bf16.msra.mxu0 %v6198
  %6519 = vmatpush.bf16.msra.mxu0 %v6194
  %6520 = vmatpush.bf16.msra.mxu0 %v6190
  %6521 = vmatpush.bf16.msra.mxu0 %v6186
  %6522 = vmatpush.bf16.msra.mxu0 %v6182
  %6523 = vmatpush.bf16.msra.mxu0 %v6178
  %6524 = vmatpush.bf16.msra.mxu0 %v6174
  %6525 = vmatpush.bf16.msra.mxu0 %v6170
  %6526 = vmatmul.bf16.gmra.mxu0 %v5611
  %v6527 = vpop.f32.mrf.mxu0
  %v6528 = vadd.f32 %v6514, %v6527
  %v6529 = vpop.f32.mrf.mxu0
  %v6530 = vadd.f32 %v6516, %v6529
  %6531 = vdwg.mxu0
  %6532 = vmatpush.bf16.msra.mxu0 %v6230
  %6533 = vmatpush.bf16.msra.mxu0 %v6226
  %6534 = vmatpush.bf16.msra.mxu0 %v6222
  %6535 = vmatpush.bf16.msra.mxu0 %v6218
  %6536 = vmatpush.bf16.msra.mxu0 %v6214
  %6537 = vmatpush.bf16.msra.mxu0 %v6210
  %6538 = vmatpush.bf16.msra.mxu0 %v6206
  %6539 = vmatpush.bf16.msra.mxu0 %v6202
  %6540 = vmatmul.bf16.gmra.mxu0 %v5612
  %v6541 = vpop.f32.mrf.mxu0
  %v6542 = vadd.f32 %v6528, %v6541
  %v6543 = vpop.f32.mrf.mxu0
  %v6544 = vadd.f32 %v6530, %v6543
  %6545 = vdwg.mxu0
  %6546 = vmatpush.bf16.msra.mxu0 %v6262
  %6547 = vmatpush.bf16.msra.mxu0 %v6258
  %6548 = vmatpush.bf16.msra.mxu0 %v6254
  %6549 = vmatpush.bf16.msra.mxu0 %v6250
  %6550 = vmatpush.bf16.msra.mxu0 %v6246
  %6551 = vmatpush.bf16.msra.mxu0 %v6242
  %6552 = vmatpush.bf16.msra.mxu0 %v6238
  %6553 = vmatpush.bf16.msra.mxu0 %v6234
  %6554 = vmatmul.bf16.gmra.mxu0 %v5613
  %v6555 = vpop.f32.mrf.mxu0
  %v6556 = vadd.f32 %v6542, %v6555
  %v6557 = vpop.f32.mrf.mxu0
  %v6558 = vadd.f32 %v6544, %v6557
  %6559 = vdwg.mxu0
  %6560 = vmatpush.bf16.msra.mxu0 %v6167
  %6561 = vmatpush.bf16.msra.mxu0 %v6163
  %6562 = vmatpush.bf16.msra.mxu0 %v6159
  %6563 = vmatpush.bf16.msra.mxu0 %v6155
  %6564 = vmatpush.bf16.msra.mxu0 %v6151
  %6565 = vmatpush.bf16.msra.mxu0 %v6147
  %6566 = vmatpush.bf16.msra.mxu0 %v6143
  %6567 = vmatpush.bf16.msra.mxu0 %v6139
  %6568 = vmatmul.bf16.gmra.mxu0 %v5610
  %v6569 = vpop.f32.mrf.mxu0
  %v6570 = vadd.f32 %v5747, %v6569
  %v6571 = vpop.f32.mrf.mxu0
  %v6572 = vadd.f32 %v5747, %v6571
  %6573 = vdwg.mxu0
  %6574 = vmatpush.bf16.msra.mxu0 %v6199
  %6575 = vmatpush.bf16.msra.mxu0 %v6195
  %6576 = vmatpush.bf16.msra.mxu0 %v6191
  %6577 = vmatpush.bf16.msra.mxu0 %v6187
  %6578 = vmatpush.bf16.msra.mxu0 %v6183
  %6579 = vmatpush.bf16.msra.mxu0 %v6179
  %6580 = vmatpush.bf16.msra.mxu0 %v6175
  %6581 = vmatpush.bf16.msra.mxu0 %v6171
  %6582 = vmatmul.bf16.gmra.mxu0 %v5611
  %v6583 = vpop.f32.mrf.mxu0
  %v6584 = vadd.f32 %v6570, %v6583
  %v6585 = vpop.f32.mrf.mxu0
  %v6586 = vadd.f32 %v6572, %v6585
  %6587 = vdwg.mxu0
  %6588 = vmatpush.bf16.msra.mxu0 %v6231
  %6589 = vmatpush.bf16.msra.mxu0 %v6227
  %6590 = vmatpush.bf16.msra.mxu0 %v6223
  %6591 = vmatpush.bf16.msra.mxu0 %v6219
  %6592 = vmatpush.bf16.msra.mxu0 %v6215
  %6593 = vmatpush.bf16.msra.mxu0 %v6211
  %6594 = vmatpush.bf16.msra.mxu0 %v6207
  %6595 = vmatpush.bf16.msra.mxu0 %v6203
  %6596 = vmatmul.bf16.gmra.mxu0 %v5612
  %v6597 = vpop.f32.mrf.mxu0
  %v6598 = vadd.f32 %v6584, %v6597
  %v6599 = vpop.f32.mrf.mxu0
  %v6600 = vadd.f32 %v6586, %v6599
  %6601 = vdwg.mxu0
  %6602 = vmatpush.bf16.msra.mxu0 %v6263
  %6603 = vmatpush.bf16.msra.mxu0 %v6259
  %6604 = vmatpush.bf16.msra.mxu0 %v6255
  %6605 = vmatpush.bf16.msra.mxu0 %v6251
  %6606 = vmatpush.bf16.msra.mxu0 %v6247
  %6607 = vmatpush.bf16.msra.mxu0 %v6243
  %6608 = vmatpush.bf16.msra.mxu0 %v6239
  %6609 = vmatpush.bf16.msra.mxu0 %v6235
  %6610 = vmatmul.bf16.gmra.mxu0 %v5613
  %v6611 = vpop.f32.mrf.mxu0
  %v6612 = vadd.f32 %v6598, %v6611
  %v6613 = vpop.f32.mrf.mxu0
  %v6614 = vadd.f32 %v6600, %v6613
  %6615 = vdwg.mxu0
  %v6616 = vadd.f32 %v6444, %v5008
  %v6617 = vadd.f32 %v6500, %v5036
  %v6618 = vadd.f32 %v6556, %v5064
  %v6619 = vadd.f32 %v6612, %v5092
  %v6620 = vadd.f32 %v6446, %v5010
  %v6621 = vadd.f32 %v6502, %v5038
  %v6622 = vadd.f32 %v6558, %v5066
  %v6623 = vadd.f32 %v6614, %v5094
  %v6624 = vmax.f32 %v6616, 0.0
  %v6625 = vmax.f32 %v6617, 0.0
  %v6626 = vmax.f32 %v6618, 0.0
  %v6627 = vmax.f32 %v6619, 0.0
  %v6628 = vmax.f32 %v6620, 0.0
  %v6629 = vmax.f32 %v6621, 0.0
  %v6630 = vmax.f32 %v6622, 0.0
  %v6631 = vmax.f32 %v6623, 0.0
  %s6632 = sshll.u32 %s4583, 4
  %6633 = dma.done %s4537, %s6632
  %s6634 = sshll.u32 %s4583, 4
  %6635 = dma.done %s4551, %s6634
  %s6636 = smul.u32 %s4582, 1
  %s6637 = sshll.u32 %s6636, 4
  %6638 = dma.done %s4565, %s6637
  %v6639 = vpack.c.bf16 %v6628, %v6624
  %v6640 = vpack.c.bf16 %v6629, %v6625
  %v6641 = vpack.c.bf16 %v6630, %v6626
  %v6642 = vpack.c.bf16 %v6631, %v6627
  %v6643 = vld [vmem:[#allocation20] sm:$0xff]
  %v6644 = vld [vmem:[#allocation20 + $0x8] sm:$0xff]
  %v6645 = vld [vmem:[#allocation20 + $0x10] sm:$0xff]
  %v6646 = vld [vmem:[#allocation20 + $0x18] sm:$0xff]
  %v6647 = vld [vmem:[#allocation20 + $0x20] sm:$0xff]
  %v6648 = vld [vmem:[#allocation20 + $0x28] sm:$0xff]
  %v6649 = vld [vmem:[#allocation20 + $0x30] sm:$0xff]
  %v6650 = vld [vmem:[#allocation20 + $0x38] sm:$0xff]
  %v6651 = vld [vmem:[#allocation20 + $0x40] sm:$0xff]
  %v6652 = vld [vmem:[#allocation20 + $0x48] sm:$0xff]
  %v6653 = vld [vmem:[#allocation20 + $0x50] sm:$0xff]
  %v6654 = vld [vmem:[#allocation20 + $0x58] sm:$0xff]
  %v6655 = vld [vmem:[#allocation20 + $0x60] sm:$0xff]
  %v6656 = vld [vmem:[#allocation20 + $0x68] sm:$0xff]
  %v6657 = vld [vmem:[#allocation20 + $0x70] sm:$0xff]
  %v6658 = vld [vmem:[#allocation20 + $0x78] sm:$0xff]
  %v6659 = vld [vmem:[#allocation20 + $0x80] sm:$0xff]
  %v6660 = vld [vmem:[#allocation20 + $0x88] sm:$0xff]
  %v6661 = vld [vmem:[#allocation20 + $0x90] sm:$0xff]
  %v6662 = vld [vmem:[#allocation20 + $0x98] sm:$0xff]
  %v6663 = vld [vmem:[#allocation20 + $0xa0] sm:$0xff]
  %v6664 = vld [vmem:[#allocation20 + $0xa8] sm:$0xff]
  %v6665 = vld [vmem:[#allocation20 + $0xb0] sm:$0xff]
  %v6666 = vld [vmem:[#allocation20 + $0xb8] sm:$0xff]
  %v6667 = vld [vmem:[#allocation20 + $0xc0] sm:$0xff]
  %v6668 = vld [vmem:[#allocation20 + $0xc8] sm:$0xff]
  %v6669 = vld [vmem:[#allocation20 + $0xd0] sm:$0xff]
  %v6670 = vld [vmem:[#allocation20 + $0xd8] sm:$0xff]
  %v6671 = vld [vmem:[#allocation20 + $0xe0] sm:$0xff]
  %v6672 = vld [vmem:[#allocation20 + $0xe8] sm:$0xff]
  %v6673 = vld [vmem:[#allocation20 + $0xf0] sm:$0xff]
  %v6674 = vld [vmem:[#allocation20 + $0xf8] sm:$0xff]
  %v6675 = vld [vmem:[#allocation20 + $0x100] sm:$0xff]
  %v6676 = vld [vmem:[#allocation20 + $0x108] sm:$0xff]
  %v6677 = vld [vmem:[#allocation20 + $0x110] sm:$0xff]
  %v6678 = vld [vmem:[#allocation20 + $0x118] sm:$0xff]
  %v6679 = vld [vmem:[#allocation20 + $0x120] sm:$0xff]
  %v6680 = vld [vmem:[#allocation20 + $0x128] sm:$0xff]
  %v6681 = vld [vmem:[#allocation20 + $0x130] sm:$0xff]
  %v6682 = vld [vmem:[#allocation20 + $0x138] sm:$0xff]
  %v6683 = vld [vmem:[#allocation20 + $0x140] sm:$0xff]
  %v6684 = vld [vmem:[#allocation20 + $0x148] sm:$0xff]
  %v6685 = vld [vmem:[#allocation20 + $0x150] sm:$0xff]
  %v6686 = vld [vmem:[#allocation20 + $0x158] sm:$0xff]
  %v6687 = vld [vmem:[#allocation20 + $0x160] sm:$0xff]
  %v6688 = vld [vmem:[#allocation20 + $0x168] sm:$0xff]
  %v6689 = vld [vmem:[#allocation20 + $0x170] sm:$0xff]
  %v6690 = vld [vmem:[#allocation20 + $0x178] sm:$0xff]
  %v6691 = vld [vmem:[#allocation20 + $0x180] sm:$0xff]
  %v6692 = vld [vmem:[#allocation20 + $0x188] sm:$0xff]
  %v6693 = vld [vmem:[#allocation20 + $0x190] sm:$0xff]
  %v6694 = vld [vmem:[#allocation20 + $0x198] sm:$0xff]
  %v6695 = vld [vmem:[#allocation20 + $0x1a0] sm:$0xff]
  %v6696 = vld [vmem:[#allocation20 + $0x1a8] sm:$0xff]
  %v6697 = vld [vmem:[#allocation20 + $0x1b0] sm:$0xff]
  %v6698 = vld [vmem:[#allocation20 + $0x1b8] sm:$0xff]
  %v6699 = vld [vmem:[#allocation20 + $0x1c0] sm:$0xff]
  %v6700 = vld [vmem:[#allocation20 + $0x1c8] sm:$0xff]
  %v6701 = vld [vmem:[#allocation20 + $0x1d0] sm:$0xff]
  %v6702 = vld [vmem:[#allocation20 + $0x1d8] sm:$0xff]
  %v6703 = vld [vmem:[#allocation20 + $0x1e0] sm:$0xff]
  %v6704 = vld [vmem:[#allocation20 + $0x1e8] sm:$0xff]
  %v6705 = vld [vmem:[#allocation20 + $0x1f0] sm:$0xff]
  %v6706 = vld [vmem:[#allocation20 + $0x1f8] sm:$0xff]
  %v6707 = vld [vmem:[#allocation20 + $0x200] sm:$0xff]
  %v6708 = vld [vmem:[#allocation20 + $0x208] sm:$0xff]
  %v6709 = vld [vmem:[#allocation20 + $0x210] sm:$0xff]
  %v6710 = vld [vmem:[#allocation20 + $0x218] sm:$0xff]
  %v6711 = vld [vmem:[#allocation20 + $0x220] sm:$0xff]
  %v6712 = vld [vmem:[#allocation20 + $0x228] sm:$0xff]
  %v6713 = vld [vmem:[#allocation20 + $0x230] sm:$0xff]
  %v6714 = vld [vmem:[#allocation20 + $0x238] sm:$0xff]
  %v6715 = vld [vmem:[#allocation20 + $0x240] sm:$0xff]
  %v6716 = vld [vmem:[#allocation20 + $0x248] sm:$0xff]
  %v6717 = vld [vmem:[#allocation20 + $0x250] sm:$0xff]
  %v6718 = vld [vmem:[#allocation20 + $0x258] sm:$0xff]
  %v6719 = vld [vmem:[#allocation20 + $0x260] sm:$0xff]
  %v6720 = vld [vmem:[#allocation20 + $0x268] sm:$0xff]
  %v6721 = vld [vmem:[#allocation20 + $0x270] sm:$0xff]
  %v6722 = vld [vmem:[#allocation20 + $0x278] sm:$0xff]
  %v6723 = vld [vmem:[#allocation20 + $0x280] sm:$0xff]
  %v6724 = vld [vmem:[#allocation20 + $0x288] sm:$0xff]
  %v6725 = vld [vmem:[#allocation20 + $0x290] sm:$0xff]
  %v6726 = vld [vmem:[#allocation20 + $0x298] sm:$0xff]
  %v6727 = vld [vmem:[#allocation20 + $0x2a0] sm:$0xff]
  %v6728 = vld [vmem:[#allocation20 + $0x2a8] sm:$0xff]
  %v6729 = vld [vmem:[#allocation20 + $0x2b0] sm:$0xff]
  %v6730 = vld [vmem:[#allocation20 + $0x2b8] sm:$0xff]
  %v6731 = vld [vmem:[#allocation20 + $0x2c0] sm:$0xff]
  %v6732 = vld [vmem:[#allocation20 + $0x2c8] sm:$0xff]
  %v6733 = vld [vmem:[#allocation20 + $0x2d0] sm:$0xff]
  %v6734 = vld [vmem:[#allocation20 + $0x2d8] sm:$0xff]
  %v6735 = vld [vmem:[#allocation20 + $0x2e0] sm:$0xff]
  %v6736 = vld [vmem:[#allocation20 + $0x2e8] sm:$0xff]
  %v6737 = vld [vmem:[#allocation20 + $0x2f0] sm:$0xff]
  %v6738 = vld [vmem:[#allocation20 + $0x2f8] sm:$0xff]
  %v6739 = vld [vmem:[#allocation20 + $0x300] sm:$0xff]
  %v6740 = vld [vmem:[#allocation20 + $0x308] sm:$0xff]
  %v6741 = vld [vmem:[#allocation20 + $0x310] sm:$0xff]
  %v6742 = vld [vmem:[#allocation20 + $0x318] sm:$0xff]
  %v6743 = vld [vmem:[#allocation20 + $0x320] sm:$0xff]
  %v6744 = vld [vmem:[#allocation20 + $0x328] sm:$0xff]
  %v6745 = vld [vmem:[#allocation20 + $0x330] sm:$0xff]
  %v6746 = vld [vmem:[#allocation20 + $0x338] sm:$0xff]
  %v6747 = vld [vmem:[#allocation20 + $0x340] sm:$0xff]
  %v6748 = vld [vmem:[#allocation20 + $0x348] sm:$0xff]
  %v6749 = vld [vmem:[#allocation20 + $0x350] sm:$0xff]
  %v6750 = vld [vmem:[#allocation20 + $0x358] sm:$0xff]
  %v6751 = vld [vmem:[#allocation20 + $0x360] sm:$0xff]
  %v6752 = vld [vmem:[#allocation20 + $0x368] sm:$0xff]
  %v6753 = vld [vmem:[#allocation20 + $0x370] sm:$0xff]
  %v6754 = vld [vmem:[#allocation20 + $0x378] sm:$0xff]
  %v6755 = vld [vmem:[#allocation20 + $0x380] sm:$0xff]
  %v6756 = vld [vmem:[#allocation20 + $0x388] sm:$0xff]
  %v6757 = vld [vmem:[#allocation20 + $0x390] sm:$0xff]
  %v6758 = vld [vmem:[#allocation20 + $0x398] sm:$0xff]
  %v6759 = vld [vmem:[#allocation20 + $0x3a0] sm:$0xff]
  %v6760 = vld [vmem:[#allocation20 + $0x3a8] sm:$0xff]
  %v6761 = vld [vmem:[#allocation20 + $0x3b0] sm:$0xff]
  %v6762 = vld [vmem:[#allocation20 + $0x3b8] sm:$0xff]
  %v6763 = vld [vmem:[#allocation20 + $0x3c0] sm:$0xff]
  %v6764 = vld [vmem:[#allocation20 + $0x3c8] sm:$0xff]
  %v6765 = vld [vmem:[#allocation20 + $0x3d0] sm:$0xff]
  %v6766 = vld [vmem:[#allocation20 + $0x3d8] sm:$0xff]
  %v6767 = vld [vmem:[#allocation20 + $0x3e0] sm:$0xff]
  %v6768 = vld [vmem:[#allocation20 + $0x3e8] sm:$0xff]
  %v6769 = vld [vmem:[#allocation20 + $0x3f0] sm:$0xff]
  %v6770 = vld [vmem:[#allocation20 + $0x3f8] sm:$0xff]
  %v6771 = vld [vmem:[%s39] sm:$0xf]
  %v6773 = vperm.slane %v6771, 0
  %v6774 = vperm.slane %v6771, 1
  %v6775 = vperm.slane %v6771, 2
  %v6776 = vperm.slane %v6771, 3
  %v6909 = vunpack.c.l.b16 %v6643
  %v6910 = vunpack.c.h.b16 %v6643
  %v6911 = vunpack.c.l.b16 %v6644
  %v6912 = vunpack.c.h.b16 %v6644
  %v6913 = vunpack.c.l.b16 %v6645
  %v6914 = vunpack.c.h.b16 %v6645
  %v6915 = vunpack.c.l.b16 %v6646
  %v6916 = vunpack.c.h.b16 %v6646
  %v6917 = vunpack.c.l.b16 %v6647
  %v6918 = vunpack.c.h.b16 %v6647
  %v6919 = vunpack.c.l.b16 %v6648
  %v6920 = vunpack.c.h.b16 %v6648
  %v6921 = vunpack.c.l.b16 %v6649
  %v6922 = vunpack.c.h.b16 %v6649
  %v6923 = vunpack.c.l.b16 %v6650
  %v6924 = vunpack.c.h.b16 %v6650
  %v6925 = vunpack.c.l.b16 %v6651
  %v6926 = vunpack.c.h.b16 %v6651
  %v6927 = vunpack.c.l.b16 %v6652
  %v6928 = vunpack.c.h.b16 %v6652
  %v6929 = vunpack.c.l.b16 %v6653
  %v6930 = vunpack.c.h.b16 %v6653
  %v6931 = vunpack.c.l.b16 %v6654
  %v6932 = vunpack.c.h.b16 %v6654
  %v6933 = vunpack.c.l.b16 %v6655
  %v6934 = vunpack.c.h.b16 %v6655
  %v6935 = vunpack.c.l.b16 %v6656
  %v6936 = vunpack.c.h.b16 %v6656
  %v6937 = vunpack.c.l.b16 %v6657
  %v6938 = vunpack.c.h.b16 %v6657
  %v6939 = vunpack.c.l.b16 %v6658
  %v6940 = vunpack.c.h.b16 %v6658
  %v6941 = vunpack.c.l.b16 %v6659
  %v6942 = vunpack.c.h.b16 %v6659
  %v6943 = vunpack.c.l.b16 %v6660
  %v6944 = vunpack.c.h.b16 %v6660
  %v6945 = vunpack.c.l.b16 %v6661
  %v6946 = vunpack.c.h.b16 %v6661
  %v6947 = vunpack.c.l.b16 %v6662
  %v6948 = vunpack.c.h.b16 %v6662
  %v6949 = vunpack.c.l.b16 %v6663
  %v6950 = vunpack.c.h.b16 %v6663
  %v6951 = vunpack.c.l.b16 %v6664
  %v6952 = vunpack.c.h.b16 %v6664
  %v6953 = vunpack.c.l.b16 %v6665
  %v6954 = vunpack.c.h.b16 %v6665
  %v6955 = vunpack.c.l.b16 %v6666
  %v6956 = vunpack.c.h.b16 %v6666
  %v6957 = vunpack.c.l.b16 %v6667
  %v6958 = vunpack.c.h.b16 %v6667
  %v6959 = vunpack.c.l.b16 %v6668
  %v6960 = vunpack.c.h.b16 %v6668
  %v6961 = vunpack.c.l.b16 %v6669
  %v6962 = vunpack.c.h.b16 %v6669
  %v6963 = vunpack.c.l.b16 %v6670
  %v6964 = vunpack.c.h.b16 %v6670
  %v6965 = vunpack.c.l.b16 %v6671
  %v6966 = vunpack.c.h.b16 %v6671
  %v6967 = vunpack.c.l.b16 %v6672
  %v6968 = vunpack.c.h.b16 %v6672
  %v6969 = vunpack.c.l.b16 %v6673
  %v6970 = vunpack.c.h.b16 %v6673
  %v6971 = vunpack.c.l.b16 %v6674
  %v6972 = vunpack.c.h.b16 %v6674
  %v6973 = vunpack.c.l.b16 %v6675
  %v6974 = vunpack.c.h.b16 %v6675
  %v6975 = vunpack.c.l.b16 %v6676
  %v6976 = vunpack.c.h.b16 %v6676
  %v6977 = vunpack.c.l.b16 %v6677
  %v6978 = vunpack.c.h.b16 %v6677
  %v6979 = vunpack.c.l.b16 %v6678
  %v6980 = vunpack.c.h.b16 %v6678
  %v6981 = vunpack.c.l.b16 %v6679
  %v6982 = vunpack.c.h.b16 %v6679
  %v6983 = vunpack.c.l.b16 %v6680
  %v6984 = vunpack.c.h.b16 %v6680
  %v6985 = vunpack.c.l.b16 %v6681
  %v6986 = vunpack.c.h.b16 %v6681
  %v6987 = vunpack.c.l.b16 %v6682
  %v6988 = vunpack.c.h.b16 %v6682
  %v6989 = vunpack.c.l.b16 %v6683
  %v6990 = vunpack.c.h.b16 %v6683
  %v6991 = vunpack.c.l.b16 %v6684
  %v6992 = vunpack.c.h.b16 %v6684
  %v6993 = vunpack.c.l.b16 %v6685
  %v6994 = vunpack.c.h.b16 %v6685
  %v6995 = vunpack.c.l.b16 %v6686
  %v6996 = vunpack.c.h.b16 %v6686
  %v6997 = vunpack.c.l.b16 %v6687
  %v6998 = vunpack.c.h.b16 %v6687
  %v6999 = vunpack.c.l.b16 %v6688
  %v7000 = vunpack.c.h.b16 %v6688
  %v7001 = vunpack.c.l.b16 %v6689
  %v7002 = vunpack.c.h.b16 %v6689
  %v7003 = vunpack.c.l.b16 %v6690
  %v7004 = vunpack.c.h.b16 %v6690
  %v7005 = vunpack.c.l.b16 %v6691
  %v7006 = vunpack.c.h.b16 %v6691
  %v7007 = vunpack.c.l.b16 %v6692
  %v7008 = vunpack.c.h.b16 %v6692
  %v7009 = vunpack.c.l.b16 %v6693
  %v7010 = vunpack.c.h.b16 %v6693
  %v7011 = vunpack.c.l.b16 %v6694
  %v7012 = vunpack.c.h.b16 %v6694
  %v7013 = vunpack.c.l.b16 %v6695
  %v7014 = vunpack.c.h.b16 %v6695
  %v7015 = vunpack.c.l.b16 %v6696
  %v7016 = vunpack.c.h.b16 %v6696
  %v7017 = vunpack.c.l.b16 %v6697
  %v7018 = vunpack.c.h.b16 %v6697
  %v7019 = vunpack.c.l.b16 %v6698
  %v7020 = vunpack.c.h.b16 %v6698
  %v7021 = vunpack.c.l.b16 %v6699
  %v7022 = vunpack.c.h.b16 %v6699
  %v7023 = vunpack.c.l.b16 %v6700
  %v7024 = vunpack.c.h.b16 %v6700
  %v7025 = vunpack.c.l.b16 %v6701
  %v7026 = vunpack.c.h.b16 %v6701
  %v7027 = vunpack.c.l.b16 %v6702
  %v7028 = vunpack.c.h.b16 %v6702
  %v7029 = vunpack.c.l.b16 %v6703
  %v7030 = vunpack.c.h.b16 %v6703
  %v7031 = vunpack.c.l.b16 %v6704
  %v7032 = vunpack.c.h.b16 %v6704
  %v7033 = vunpack.c.l.b16 %v6705
  %v7034 = vunpack.c.h.b16 %v6705
  %v7035 = vunpack.c.l.b16 %v6706
  %v7036 = vunpack.c.h.b16 %v6706
  %v7037 = vunpack.c.l.b16 %v6707
  %v7038 = vunpack.c.h.b16 %v6707
  %v7039 = vunpack.c.l.b16 %v6708
  %v7040 = vunpack.c.h.b16 %v6708
  %v7041 = vunpack.c.l.b16 %v6709
  %v7042 = vunpack.c.h.b16 %v6709
  %v7043 = vunpack.c.l.b16 %v6710
  %v7044 = vunpack.c.h.b16 %v6710
  %v7045 = vunpack.c.l.b16 %v6711
  %v7046 = vunpack.c.h.b16 %v6711
  %v7047 = vunpack.c.l.b16 %v6712
  %v7048 = vunpack.c.h.b16 %v6712
  %v7049 = vunpack.c.l.b16 %v6713
  %v7050 = vunpack.c.h.b16 %v6713
  %v7051 = vunpack.c.l.b16 %v6714
  %v7052 = vunpack.c.h.b16 %v6714
  %v7053 = vunpack.c.l.b16 %v6715
  %v7054 = vunpack.c.h.b16 %v6715
  %v7055 = vunpack.c.l.b16 %v6716
  %v7056 = vunpack.c.h.b16 %v6716
  %v7057 = vunpack.c.l.b16 %v6717
  %v7058 = vunpack.c.h.b16 %v6717
  %v7059 = vunpack.c.l.b16 %v6718
  %v7060 = vunpack.c.h.b16 %v6718
  %v7061 = vunpack.c.l.b16 %v6719
  %v7062 = vunpack.c.h.b16 %v6719
  %v7063 = vunpack.c.l.b16 %v6720
  %v7064 = vunpack.c.h.b16 %v6720
  %v7065 = vunpack.c.l.b16 %v6721
  %v7066 = vunpack.c.h.b16 %v6721
  %v7067 = vunpack.c.l.b16 %v6722
  %v7068 = vunpack.c.h.b16 %v6722
  %v7069 = vunpack.c.l.b16 %v6723
  %v7070 = vunpack.c.h.b16 %v6723
  %v7071 = vunpack.c.l.b16 %v6724
  %v7072 = vunpack.c.h.b16 %v6724
  %v7073 = vunpack.c.l.b16 %v6725
  %v7074 = vunpack.c.h.b16 %v6725
  %v7075 = vunpack.c.l.b16 %v6726
  %v7076 = vunpack.c.h.b16 %v6726
  %v7077 = vunpack.c.l.b16 %v6727
  %v7078 = vunpack.c.h.b16 %v6727
  %v7079 = vunpack.c.l.b16 %v6728
  %v7080 = vunpack.c.h.b16 %v6728
  %v7081 = vunpack.c.l.b16 %v6729
  %v7082 = vunpack.c.h.b16 %v6729
  %v7083 = vunpack.c.l.b16 %v6730
  %v7084 = vunpack.c.h.b16 %v6730
  %v7085 = vunpack.c.l.b16 %v6731
  %v7086 = vunpack.c.h.b16 %v6731
  %v7087 = vunpack.c.l.b16 %v6732
  %v7088 = vunpack.c.h.b16 %v6732
  %v7089 = vunpack.c.l.b16 %v6733
  %v7090 = vunpack.c.h.b16 %v6733
  %v7091 = vunpack.c.l.b16 %v6734
  %v7092 = vunpack.c.h.b16 %v6734
  %v7093 = vunpack.c.l.b16 %v6735
  %v7094 = vunpack.c.h.b16 %v6735
  %v7095 = vunpack.c.l.b16 %v6736
  %v7096 = vunpack.c.h.b16 %v6736
  %v7097 = vunpack.c.l.b16 %v6737
  %v7098 = vunpack.c.h.b16 %v6737
  %v7099 = vunpack.c.l.b16 %v6738
  %v7100 = vunpack.c.h.b16 %v6738
  %v7101 = vunpack.c.l.b16 %v6739
  %v7102 = vunpack.c.h.b16 %v6739
  %v7103 = vunpack.c.l.b16 %v6740
  %v7104 = vunpack.c.h.b16 %v6740
  %v7105 = vunpack.c.l.b16 %v6741
  %v7106 = vunpack.c.h.b16 %v6741
  %v7107 = vunpack.c.l.b16 %v6742
  %v7108 = vunpack.c.h.b16 %v6742
  %v7109 = vunpack.c.l.b16 %v6743
  %v7110 = vunpack.c.h.b16 %v6743
  %v7111 = vunpack.c.l.b16 %v6744
  %v7112 = vunpack.c.h.b16 %v6744
  %v7113 = vunpack.c.l.b16 %v6745
  %v7114 = vunpack.c.h.b16 %v6745
  %v7115 = vunpack.c.l.b16 %v6746
  %v7116 = vunpack.c.h.b16 %v6746
  %v7117 = vunpack.c.l.b16 %v6747
  %v7118 = vunpack.c.h.b16 %v6747
  %v7119 = vunpack.c.l.b16 %v6748
  %v7120 = vunpack.c.h.b16 %v6748
  %v7121 = vunpack.c.l.b16 %v6749
  %v7122 = vunpack.c.h.b16 %v6749
  %v7123 = vunpack.c.l.b16 %v6750
  %v7124 = vunpack.c.h.b16 %v6750
  %v7125 = vunpack.c.l.b16 %v6751
  %v7126 = vunpack.c.h.b16 %v6751
  %v7127 = vunpack.c.l.b16 %v6752
  %v7128 = vunpack.c.h.b16 %v6752
  %v7129 = vunpack.c.l.b16 %v6753
  %v7130 = vunpack.c.h.b16 %v6753
  %v7131 = vunpack.c.l.b16 %v6754
  %v7132 = vunpack.c.h.b16 %v6754
  %v7133 = vunpack.c.l.b16 %v6755
  %v7134 = vunpack.c.h.b16 %v6755
  %v7135 = vunpack.c.l.b16 %v6756
  %v7136 = vunpack.c.h.b16 %v6756
  %v7137 = vunpack.c.l.b16 %v6757
  %v7138 = vunpack.c.h.b16 %v6757
  %v7139 = vunpack.c.l.b16 %v6758
  %v7140 = vunpack.c.h.b16 %v6758
  %v7141 = vunpack.c.l.b16 %v6759
  %v7142 = vunpack.c.h.b16 %v6759
  %v7143 = vunpack.c.l.b16 %v6760
  %v7144 = vunpack.c.h.b16 %v6760
  %v7145 = vunpack.c.l.b16 %v6761
  %v7146 = vunpack.c.h.b16 %v6761
  %v7147 = vunpack.c.l.b16 %v6762
  %v7148 = vunpack.c.h.b16 %v6762
  %v7149 = vunpack.c.l.b16 %v6763
  %v7150 = vunpack.c.h.b16 %v6763
  %v7151 = vunpack.c.l.b16 %v6764
  %v7152 = vunpack.c.h.b16 %v6764
  %v7153 = vunpack.c.l.b16 %v6765
  %v7154 = vunpack.c.h.b16 %v6765
  %v7155 = vunpack.c.l.b16 %v6766
  %v7156 = vunpack.c.h.b16 %v6766
  %v7157 = vunpack.c.l.b16 %v6767
  %v7158 = vunpack.c.h.b16 %v6767
  %v7159 = vunpack.c.l.b16 %v6768
  %v7160 = vunpack.c.h.b16 %v6768
  %v7161 = vunpack.c.l.b16 %v6769
  %v7162 = vunpack.c.h.b16 %v6769
  %v7163 = vunpack.c.l.b16 %v6770
  %v7164 = vunpack.c.h.b16 %v6770
  %v7165 = vpack.c.b16 %v6913, %v6909
  %v7166 = vpack.c.b16 %v6914, %v6910
  %v7167 = vpack.c.b16 %v6915, %v6911
  %v7168 = vpack.c.b16 %v6916, %v6912
  %v7169 = vpack.c.b16 %v6921, %v6917
  %v7170 = vpack.c.b16 %v6922, %v6918
  %v7171 = vpack.c.b16 %v6923, %v6919
  %v7172 = vpack.c.b16 %v6924, %v6920
  %v7173 = vpack.c.b16 %v6929, %v6925
  %v7174 = vpack.c.b16 %v6930, %v6926
  %v7175 = vpack.c.b16 %v6931, %v6927
  %v7176 = vpack.c.b16 %v6932, %v6928
  %v7177 = vpack.c.b16 %v6937, %v6933
  %v7178 = vpack.c.b16 %v6938, %v6934
  %v7179 = vpack.c.b16 %v6939, %v6935
  %v7180 = vpack.c.b16 %v6940, %v6936
  %v7181 = vpack.c.b16 %v6945, %v6941
  %v7182 = vpack.c.b16 %v6946, %v6942
  %v7183 = vpack.c.b16 %v6947, %v6943
  %v7184 = vpack.c.b16 %v6948, %v6944
  %v7185 = vpack.c.b16 %v6953, %v6949
  %v7186 = vpack.c.b16 %v6954, %v6950
  %v7187 = vpack.c.b16 %v6955, %v6951
  %v7188 = vpack.c.b16 %v6956, %v6952
  %v7189 = vpack.c.b16 %v6961, %v6957
  %v7190 = vpack.c.b16 %v6962, %v6958
  %v7191 = vpack.c.b16 %v6963, %v6959
  %v7192 = vpack.c.b16 %v6964, %v6960
  %v7193 = vpack.c.b16 %v6969, %v6965
  %v7194 = vpack.c.b16 %v6970, %v6966
  %v7195 = vpack.c.b16 %v6971, %v6967
  %v7196 = vpack.c.b16 %v6972, %v6968
  %v7197 = vpack.c.b16 %v6977, %v6973
  %v7198 = vpack.c.b16 %v6978, %v6974
  %v7199 = vpack.c.b16 %v6979, %v6975
  %v7200 = vpack.c.b16 %v6980, %v6976
  %v7201 = vpack.c.b16 %v6985, %v6981
  %v7202 = vpack.c.b16 %v6986, %v6982
  %v7203 = vpack.c.b16 %v6987, %v6983
  %v7204 = vpack.c.b16 %v6988, %v6984
  %v7205 = vpack.c.b16 %v6993, %v6989
  %v7206 = vpack.c.b16 %v6994, %v6990
  %v7207 = vpack.c.b16 %v6995, %v6991
  %v7208 = vpack.c.b16 %v6996, %v6992
  %v7209 = vpack.c.b16 %v7001, %v6997
  %v7210 = vpack.c.b16 %v7002, %v6998
  %v7211 = vpack.c.b16 %v7003, %v6999
  %v7212 = vpack.c.b16 %v7004, %v7000
  %v7213 = vpack.c.b16 %v7009, %v7005
  %v7214 = vpack.c.b16 %v7010, %v7006
  %v7215 = vpack.c.b16 %v7011, %v7007
  %v7216 = vpack.c.b16 %v7012, %v7008
  %v7217 = vpack.c.b16 %v7017, %v7013
  %v7218 = vpack.c.b16 %v7018, %v7014
  %v7219 = vpack.c.b16 %v7019, %v7015
  %v7220 = vpack.c.b16 %v7020, %v7016
  %v7221 = vpack.c.b16 %v7025, %v7021
  %v7222 = vpack.c.b16 %v7026, %v7022
  %v7223 = vpack.c.b16 %v7027, %v7023
  %v7224 = vpack.c.b16 %v7028, %v7024
  %v7225 = vpack.c.b16 %v7033, %v7029
  %v7226 = vpack.c.b16 %v7034, %v7030
  %v7227 = vpack.c.b16 %v7035, %v7031
  %v7228 = vpack.c.b16 %v7036, %v7032
  %v7229 = vpack.c.b16 %v7041, %v7037
  %v7230 = vpack.c.b16 %v7042, %v7038
  %v7231 = vpack.c.b16 %v7043, %v7039
  %v7232 = vpack.c.b16 %v7044, %v7040
  %v7233 = vpack.c.b16 %v7049, %v7045
  %v7234 = vpack.c.b16 %v7050, %v7046
  %v7235 = vpack.c.b16 %v7051, %v7047
  %v7236 = vpack.c.b16 %v7052, %v7048
  %v7237 = vpack.c.b16 %v7057, %v7053
  %v7238 = vpack.c.b16 %v7058, %v7054
  %v7239 = vpack.c.b16 %v7059, %v7055
  %v7240 = vpack.c.b16 %v7060, %v7056
  %v7241 = vpack.c.b16 %v7065, %v7061
  %v7242 = vpack.c.b16 %v7066, %v7062
  %v7243 = vpack.c.b16 %v7067, %v7063
  %v7244 = vpack.c.b16 %v7068, %v7064
  %v7245 = vpack.c.b16 %v7073, %v7069
  %v7246 = vpack.c.b16 %v7074, %v7070
  %v7247 = vpack.c.b16 %v7075, %v7071
  %v7248 = vpack.c.b16 %v7076, %v7072
  %v7249 = vpack.c.b16 %v7081, %v7077
  %v7250 = vpack.c.b16 %v7082, %v7078
  %v7251 = vpack.c.b16 %v7083, %v7079
  %v7252 = vpack.c.b16 %v7084, %v7080
  %v7253 = vpack.c.b16 %v7089, %v7085
  %v7254 = vpack.c.b16 %v7090, %v7086
  %v7255 = vpack.c.b16 %v7091, %v7087
  %v7256 = vpack.c.b16 %v7092, %v7088
  %v7257 = vpack.c.b16 %v7097, %v7093
  %v7258 = vpack.c.b16 %v7098, %v7094
  %v7259 = vpack.c.b16 %v7099, %v7095
  %v7260 = vpack.c.b16 %v7100, %v7096
  %v7261 = vpack.c.b16 %v7105, %v7101
  %v7262 = vpack.c.b16 %v7106, %v7102
  %v7263 = vpack.c.b16 %v7107, %v7103
  %v7264 = vpack.c.b16 %v7108, %v7104
  %v7265 = vpack.c.b16 %v7113, %v7109
  %v7266 = vpack.c.b16 %v7114, %v7110
  %v7267 = vpack.c.b16 %v7115, %v7111
  %v7268 = vpack.c.b16 %v7116, %v7112
  %v7269 = vpack.c.b16 %v7121, %v7117
  %v7270 = vpack.c.b16 %v7122, %v7118
  %v7271 = vpack.c.b16 %v7123, %v7119
  %v7272 = vpack.c.b16 %v7124, %v7120
  %v7273 = vpack.c.b16 %v7129, %v7125
  %v7274 = vpack.c.b16 %v7130, %v7126
  %v7275 = vpack.c.b16 %v7131, %v7127
  %v7276 = vpack.c.b16 %v7132, %v7128
  %v7277 = vpack.c.b16 %v7137, %v7133
  %v7278 = vpack.c.b16 %v7138, %v7134
  %v7279 = vpack.c.b16 %v7139, %v7135
  %v7280 = vpack.c.b16 %v7140, %v7136
  %v7281 = vpack.c.b16 %v7145, %v7141
  %v7282 = vpack.c.b16 %v7146, %v7142
  %v7283 = vpack.c.b16 %v7147, %v7143
  %v7284 = vpack.c.b16 %v7148, %v7144
  %v7285 = vpack.c.b16 %v7153, %v7149
  %v7286 = vpack.c.b16 %v7154, %v7150
  %v7287 = vpack.c.b16 %v7155, %v7151
  %v7288 = vpack.c.b16 %v7156, %v7152
  %v7289 = vpack.c.b16 %v7161, %v7157
  %v7290 = vpack.c.b16 %v7162, %v7158
  %v7291 = vpack.c.b16 %v7163, %v7159
  %v7292 = vpack.c.b16 %v7164, %v7160
  %7421 = vmatpush.bf16.msra.mxu0 %v7193
  %7422 = vmatpush.bf16.msra.mxu0 %v7189
  %7423 = vmatpush.bf16.msra.mxu0 %v7185
  %7424 = vmatpush.bf16.msra.mxu0 %v7181
  %7425 = vmatpush.bf16.msra.mxu0 %v7177
  %7426 = vmatpush.bf16.msra.mxu0 %v7173
  %7427 = vmatpush.bf16.msra.mxu0 %v7169
  %7428 = vmatpush.bf16.msra.mxu0 %v7165
  %7429 = vmatmul.bf16.gmra.mxu0 %v6639
  %v7430 = vpop.f32.mrf.mxu0
  %v7431 = vadd.f32 %v6773, %v7430
  %v7432 = vpop.f32.mrf.mxu0
  %v7433 = vadd.f32 %v6773, %v7432
  %7434 = vdwg.mxu0
  %7435 = vmatpush.bf16.msra.mxu0 %v7225
  %7436 = vmatpush.bf16.msra.mxu0 %v7221
  %7437 = vmatpush.bf16.msra.mxu0 %v7217
  %7438 = vmatpush.bf16.msra.mxu0 %v7213
  %7439 = vmatpush.bf16.msra.mxu0 %v7209
  %7440 = vmatpush.bf16.msra.mxu0 %v7205
  %7441 = vmatpush.bf16.msra.mxu0 %v7201
  %7442 = vmatpush.bf16.msra.mxu0 %v7197
  %7443 = vmatmul.bf16.gmra.mxu0 %v6640
  %v7444 = vpop.f32.mrf.mxu0
  %v7445 = vadd.f32 %v7431, %v7444
  %v7446 = vpop.f32.mrf.mxu0
  %v7447 = vadd.f32 %v7433, %v7446
  %7448 = vdwg.mxu0
  %7449 = vmatpush.bf16.msra.mxu0 %v7257
  %7450 = vmatpush.bf16.msra.mxu0 %v7253
  %7451 = vmatpush.bf16.msra.mxu0 %v7249
  %7452 = vmatpush.bf16.msra.mxu0 %v7245
  %7453 = vmatpush.bf16.msra.mxu0 %v7241
  %7454 = vmatpush.bf16.msra.mxu0 %v7237
  %7455 = vmatpush.bf16.msra.mxu0 %v7233
  %7456 = vmatpush.bf16.msra.mxu0 %v7229
  %7457 = vmatmul.bf16.gmra.mxu0 %v6641
  %v7458 = vpop.f32.mrf.mxu0
  %v7459 = vadd.f32 %v7445, %v7458
  %v7460 = vpop.f32.mrf.mxu0
  %v7461 = vadd.f32 %v7447, %v7460
  %7462 = vdwg.mxu0
  %7463 = vmatpush.bf16.msra.mxu0 %v7289
  %7464 = vmatpush.bf16.msra.mxu0 %v7285
  %7465 = vmatpush.bf16.msra.mxu0 %v7281
  %7466 = vmatpush.bf16.msra.mxu0 %v7277
  %7467 = vmatpush.bf16.msra.mxu0 %v7273
  %7468 = vmatpush.bf16.msra.mxu0 %v7269
  %7469 = vmatpush.bf16.msra.mxu0 %v7265
  %7470 = vmatpush.bf16.msra.mxu0 %v7261
  %7471 = vmatmul.bf16.gmra.mxu0 %v6642
  %v7472 = vpop.f32.mrf.mxu0
  %v7473 = vadd.f32 %v7459, %v7472
  %v7474 = vpop.f32.mrf.mxu0
  %v7475 = vadd.f32 %v7461, %v7474
  %7476 = vdwg.mxu0
  %7477 = vmatpush.bf16.msra.mxu0 %v7194
  %7478 = vmatpush.bf16.msra.mxu0 %v7190
  %7479 = vmatpush.bf16.msra.mxu0 %v7186
  %7480 = vmatpush.bf16.msra.mxu0 %v7182
  %7481 = vmatpush.bf16.msra.mxu0 %v7178
  %7482 = vmatpush.bf16.msra.mxu0 %v7174
  %7483 = vmatpush.bf16.msra.mxu0 %v7170
  %7484 = vmatpush.bf16.msra.mxu0 %v7166
  %7485 = vmatmul.bf16.gmra.mxu0 %v6639
  %v7486 = vpop.f32.mrf.mxu0
  %v7487 = vadd.f32 %v6774, %v7486
  %v7488 = vpop.f32.mrf.mxu0
  %v7489 = vadd.f32 %v6774, %v7488
  %7490 = vdwg.mxu0
  %7491 = vmatpush.bf16.msra.mxu0 %v7226
  %7492 = vmatpush.bf16.msra.mxu0 %v7222
  %7493 = vmatpush.bf16.msra.mxu0 %v7218
  %7494 = vmatpush.bf16.msra.mxu0 %v7214
  %7495 = vmatpush.bf16.msra.mxu0 %v7210
  %7496 = vmatpush.bf16.msra.mxu0 %v7206
  %7497 = vmatpush.bf16.msra.mxu0 %v7202
  %7498 = vmatpush.bf16.msra.mxu0 %v7198
  %7499 = vmatmul.bf16.gmra.mxu0 %v6640
  %v7500 = vpop.f32.mrf.mxu0
  %v7501 = vadd.f32 %v7487, %v7500
  %v7502 = vpop.f32.mrf.mxu0
  %v7503 = vadd.f32 %v7489, %v7502
  %7504 = vdwg.mxu0
  %7505 = vmatpush.bf16.msra.mxu0 %v7258
  %7506 = vmatpush.bf16.msra.mxu0 %v7254
  %7507 = vmatpush.bf16.msra.mxu0 %v7250
  %7508 = vmatpush.bf16.msra.mxu0 %v7246
  %7509 = vmatpush.bf16.msra.mxu0 %v7242
  %7510 = vmatpush.bf16.msra.mxu0 %v7238
  %7511 = vmatpush.bf16.msra.mxu0 %v7234
  %7512 = vmatpush.bf16.msra.mxu0 %v7230
  %7513 = vmatmul.bf16.gmra.mxu0 %v6641
  %v7514 = vpop.f32.mrf.mxu0
  %v7515 = vadd.f32 %v7501, %v7514
  %v7516 = vpop.f32.mrf.mxu0
  %v7517 = vadd.f32 %v7503, %v7516
  %7518 = vdwg.mxu0
  %7519 = vmatpush.bf16.msra.mxu0 %v7290
  %7520 = vmatpush.bf16.msra.mxu0 %v7286
  %7521 = vmatpush.bf16.msra.mxu0 %v7282
  %7522 = vmatpush.bf16.msra.mxu0 %v7278
  %7523 = vmatpush.bf16.msra.mxu0 %v7274
  %7524 = vmatpush.bf16.msra.mxu0 %v7270
  %7525 = vmatpush.bf16.msra.mxu0 %v7266
  %7526 = vmatpush.bf16.msra.mxu0 %v7262
  %7527 = vmatmul.bf16.gmra.mxu0 %v6642
  %v7528 = vpop.f32.mrf.mxu0
  %v7529 = vadd.f32 %v7515, %v7528
  %v7530 = vpop.f32.mrf.mxu0
  %v7531 = vadd.f32 %v7517, %v7530
  %7532 = vdwg.mxu0
  %7533 = vmatpush.bf16.msra.mxu0 %v7195
  %7534 = vmatpush.bf16.msra.mxu0 %v7191
  %7535 = vmatpush.bf16.msra.mxu0 %v7187
  %7536 = vmatpush.bf16.msra.mxu0 %v7183
  %7537 = vmatpush.bf16.msra.mxu0 %v7179
  %7538 = vmatpush.bf16.msra.mxu0 %v7175
  %7539 = vmatpush.bf16.msra.mxu0 %v7171
  %7540 = vmatpush.bf16.msra.mxu0 %v7167
  %7541 = vmatmul.bf16.gmra.mxu0 %v6639
  %v7542 = vpop.f32.mrf.mxu0
  %v7543 = vadd.f32 %v6775, %v7542
  %v7544 = vpop.f32.mrf.mxu0
  %v7545 = vadd.f32 %v6775, %v7544
  %7546 = vdwg.mxu0
  %7547 = vmatpush.bf16.msra.mxu0 %v7227
  %7548 = vmatpush.bf16.msra.mxu0 %v7223
  %7549 = vmatpush.bf16.msra.mxu0 %v7219
  %7550 = vmatpush.bf16.msra.mxu0 %v7215
  %7551 = vmatpush.bf16.msra.mxu0 %v7211
  %7552 = vmatpush.bf16.msra.mxu0 %v7207
  %7553 = vmatpush.bf16.msra.mxu0 %v7203
  %7554 = vmatpush.bf16.msra.mxu0 %v7199
  %7555 = vmatmul.bf16.gmra.mxu0 %v6640
  %v7556 = vpop.f32.mrf.mxu0
  %v7557 = vadd.f32 %v7543, %v7556
  %v7558 = vpop.f32.mrf.mxu0
  %v7559 = vadd.f32 %v7545, %v7558
  %7560 = vdwg.mxu0
  %7561 = vmatpush.bf16.msra.mxu0 %v7259
  %7562 = vmatpush.bf16.msra.mxu0 %v7255
  %7563 = vmatpush.bf16.msra.mxu0 %v7251
  %7564 = vmatpush.bf16.msra.mxu0 %v7247
  %7565 = vmatpush.bf16.msra.mxu0 %v7243
  %7566 = vmatpush.bf16.msra.mxu0 %v7239
  %7567 = vmatpush.bf16.msra.mxu0 %v7235
  %7568 = vmatpush.bf16.msra.mxu0 %v7231
  %7569 = vmatmul.bf16.gmra.mxu0 %v6641
  %v7570 = vpop.f32.mrf.mxu0
  %v7571 = vadd.f32 %v7557, %v7570
  %v7572 = vpop.f32.mrf.mxu0
  %v7573 = vadd.f32 %v7559, %v7572
  %7574 = vdwg.mxu0
  %7575 = vmatpush.bf16.msra.mxu0 %v7291
  %7576 = vmatpush.bf16.msra.mxu0 %v7287
  %7577 = vmatpush.bf16.msra.mxu0 %v7283
  %7578 = vmatpush.bf16.msra.mxu0 %v7279
  %7579 = vmatpush.bf16.msra.mxu0 %v7275
  %7580 = vmatpush.bf16.msra.mxu0 %v7271
  %7581 = vmatpush.bf16.msra.mxu0 %v7267
  %7582 = vmatpush.bf16.msra.mxu0 %v7263
  %7583 = vmatmul.bf16.gmra.mxu0 %v6642
  %v7584 = vpop.f32.mrf.mxu0
  %v7585 = vadd.f32 %v7571, %v7584
  %v7586 = vpop.f32.mrf.mxu0
  %v7587 = vadd.f32 %v7573, %v7586
  %7588 = vdwg.mxu0
  %7589 = vmatpush.bf16.msra.mxu0 %v7196
  %7590 = vmatpush.bf16.msra.mxu0 %v7192
  %7591 = vmatpush.bf16.msra.mxu0 %v7188
  %7592 = vmatpush.bf16.msra.mxu0 %v7184
  %7593 = vmatpush.bf16.msra.mxu0 %v7180
  %7594 = vmatpush.bf16.msra.mxu0 %v7176
  %7595 = vmatpush.bf16.msra.mxu0 %v7172
  %7596 = vmatpush.bf16.msra.mxu0 %v7168
  %7597 = vmatmul.bf16.gmra.mxu0 %v6639
  %v7598 = vpop.f32.mrf.mxu0
  %v7599 = vadd.f32 %v6776, %v7598
  %v7600 = vpop.f32.mrf.mxu0
  %v7601 = vadd.f32 %v6776, %v7600
  %7602 = vdwg.mxu0
  %7603 = vmatpush.bf16.msra.mxu0 %v7228
  %7604 = vmatpush.bf16.msra.mxu0 %v7224
  %7605 = vmatpush.bf16.msra.mxu0 %v7220
  %7606 = vmatpush.bf16.msra.mxu0 %v7216
  %7607 = vmatpush.bf16.msra.mxu0 %v7212
  %7608 = vmatpush.bf16.msra.mxu0 %v7208
  %7609 = vmatpush.bf16.msra.mxu0 %v7204
  %7610 = vmatpush.bf16.msra.mxu0 %v7200
  %7611 = vmatmul.bf16.gmra.mxu0 %v6640
  %v7612 = vpop.f32.mrf.mxu0
  %v7613 = vadd.f32 %v7599, %v7612
  %v7614 = vpop.f32.mrf.mxu0
  %v7615 = vadd.f32 %v7601, %v7614
  %7616 = vdwg.mxu0
  %7617 = vmatpush.bf16.msra.mxu0 %v7260
  %7618 = vmatpush.bf16.msra.mxu0 %v7256
  %7619 = vmatpush.bf16.msra.mxu0 %v7252
  %7620 = vmatpush.bf16.msra.mxu0 %v7248
  %7621 = vmatpush.bf16.msra.mxu0 %v7244
  %7622 = vmatpush.bf16.msra.mxu0 %v7240
  %7623 = vmatpush.bf16.msra.mxu0 %v7236
  %7624 = vmatpush.bf16.msra.mxu0 %v7232
  %7625 = vmatmul.bf16.gmra.mxu0 %v6641
  %v7626 = vpop.f32.mrf.mxu0
  %v7627 = vadd.f32 %v7613, %v7626
  %v7628 = vpop.f32.mrf.mxu0
  %v7629 = vadd.f32 %v7615, %v7628
  %7630 = vdwg.mxu0
  %7631 = vmatpush.bf16.msra.mxu0 %v7292
  %7632 = vmatpush.bf16.msra.mxu0 %v7288
  %7633 = vmatpush.bf16.msra.mxu0 %v7284
  %7634 = vmatpush.bf16.msra.mxu0 %v7280
  %7635 = vmatpush.bf16.msra.mxu0 %v7276
  %7636 = vmatpush.bf16.msra.mxu0 %v7272
  %7637 = vmatpush.bf16.msra.mxu0 %v7268
  %7638 = vmatpush.bf16.msra.mxu0 %v7264
  %7639 = vmatmul.bf16.gmra.mxu0 %v6642
  %v7640 = vpop.f32.mrf.mxu0
  %v7641 = vadd.f32 %v7627, %v7640
  %v7642 = vpop.f32.mrf.mxu0
  %v7643 = vadd.f32 %v7629, %v7642
  %7644 = vdwg.mxu0
  %v7645 = vmax.f32 %v7473, 0.0
  %v7646 = vmax.f32 %v7529, 0.0
  %v7647 = vmax.f32 %v7585, 0.0
  %v7648 = vmax.f32 %v7641, 0.0
  %v7649 = vmax.f32 %v7475, 0.0
  %v7650 = vmax.f32 %v7531, 0.0
  %v7651 = vmax.f32 %v7587, 0.0
  %v7652 = vmax.f32 %v7643, 0.0
  %v7653 = vpack.c.bf16 %v7649, %v7645
  %v7654 = vpack.c.bf16 %v7650, %v7646
  %v7655 = vpack.c.bf16 %v7651, %v7647
  %v7656 = vpack.c.bf16 %v7652, %v7648
  %v7657 = vld [vmem:[#allocation21] sm:$0xff]
  %v7658 = vld [vmem:[#allocation21 + $0x8] sm:$0xff]
  %v7659 = vld [vmem:[#allocation21 + $0x10] sm:$0xff]
  %v7660 = vld [vmem:[#allocation21 + $0x18] sm:$0xff]
  %v7661 = vld [vmem:[#allocation21 + $0x20] sm:$0xff]
  %v7662 = vld [vmem:[#allocation21 + $0x28] sm:$0xff]
  %v7663 = vld [vmem:[#allocation21 + $0x30] sm:$0xff]
  %v7664 = vld [vmem:[#allocation21 + $0x38] sm:$0xff]
  %v7665 = vld [vmem:[#allocation21 + $0x40] sm:$0xff]
  %v7666 = vld [vmem:[#allocation21 + $0x48] sm:$0xff]
  %v7667 = vld [vmem:[#allocation21 + $0x50] sm:$0xff]
  %v7668 = vld [vmem:[#allocation21 + $0x58] sm:$0xff]
  %v7669 = vld [vmem:[#allocation21 + $0x60] sm:$0xff]
  %v7670 = vld [vmem:[#allocation21 + $0x68] sm:$0xff]
  %v7671 = vld [vmem:[#allocation21 + $0x70] sm:$0xff]
  %v7672 = vld [vmem:[#allocation21 + $0x78] sm:$0xff]
  %v7673 = vld [vmem:[#allocation21 + $0x80] sm:$0xff]
  %v7674 = vld [vmem:[#allocation21 + $0x88] sm:$0xff]
  %v7675 = vld [vmem:[#allocation21 + $0x90] sm:$0xff]
  %v7676 = vld [vmem:[#allocation21 + $0x98] sm:$0xff]
  %v7677 = vld [vmem:[#allocation21 + $0xa0] sm:$0xff]
  %v7678 = vld [vmem:[#allocation21 + $0xa8] sm:$0xff]
  %v7679 = vld [vmem:[#allocation21 + $0xb0] sm:$0xff]
  %v7680 = vld [vmem:[#allocation21 + $0xb8] sm:$0xff]
  %v7681 = vld [vmem:[#allocation21 + $0xc0] sm:$0xff]
  %v7682 = vld [vmem:[#allocation21 + $0xc8] sm:$0xff]
  %v7683 = vld [vmem:[#allocation21 + $0xd0] sm:$0xff]
  %v7684 = vld [vmem:[#allocation21 + $0xd8] sm:$0xff]
  %v7685 = vld [vmem:[#allocation21 + $0xe0] sm:$0xff]
  %v7686 = vld [vmem:[#allocation21 + $0xe8] sm:$0xff]
  %v7687 = vld [vmem:[#allocation21 + $0xf0] sm:$0xff]
  %v7688 = vld [vmem:[#allocation21 + $0xf8] sm:$0xff]
  %v7689 = vld [vmem:[#allocation21 + $0x100] sm:$0xff]
  %v7690 = vld [vmem:[#allocation21 + $0x108] sm:$0xff]
  %v7691 = vld [vmem:[#allocation21 + $0x110] sm:$0xff]
  %v7692 = vld [vmem:[#allocation21 + $0x118] sm:$0xff]
  %v7693 = vld [vmem:[#allocation21 + $0x120] sm:$0xff]
  %v7694 = vld [vmem:[#allocation21 + $0x128] sm:$0xff]
  %v7695 = vld [vmem:[#allocation21 + $0x130] sm:$0xff]
  %v7696 = vld [vmem:[#allocation21 + $0x138] sm:$0xff]
  %v7697 = vld [vmem:[#allocation21 + $0x140] sm:$0xff]
  %v7698 = vld [vmem:[#allocation21 + $0x148] sm:$0xff]
  %v7699 = vld [vmem:[#allocation21 + $0x150] sm:$0xff]
  %v7700 = vld [vmem:[#allocation21 + $0x158] sm:$0xff]
  %v7701 = vld [vmem:[#allocation21 + $0x160] sm:$0xff]
  %v7702 = vld [vmem:[#allocation21 + $0x168] sm:$0xff]
  %v7703 = vld [vmem:[#allocation21 + $0x170] sm:$0xff]
  %v7704 = vld [vmem:[#allocation21 + $0x178] sm:$0xff]
  %v7705 = vld [vmem:[#allocation21 + $0x180] sm:$0xff]
  %v7706 = vld [vmem:[#allocation21 + $0x188] sm:$0xff]
  %v7707 = vld [vmem:[#allocation21 + $0x190] sm:$0xff]
  %v7708 = vld [vmem:[#allocation21 + $0x198] sm:$0xff]
  %v7709 = vld [vmem:[#allocation21 + $0x1a0] sm:$0xff]
  %v7710 = vld [vmem:[#allocation21 + $0x1a8] sm:$0xff]
  %v7711 = vld [vmem:[#allocation21 + $0x1b0] sm:$0xff]
  %v7712 = vld [vmem:[#allocation21 + $0x1b8] sm:$0xff]
  %v7713 = vld [vmem:[#allocation21 + $0x1c0] sm:$0xff]
  %v7714 = vld [vmem:[#allocation21 + $0x1c8] sm:$0xff]
  %v7715 = vld [vmem:[#allocation21 + $0x1d0] sm:$0xff]
  %v7716 = vld [vmem:[#allocation21 + $0x1d8] sm:$0xff]
  %v7717 = vld [vmem:[#allocation21 + $0x1e0] sm:$0xff]
  %v7718 = vld [vmem:[#allocation21 + $0x1e8] sm:$0xff]
  %v7719 = vld [vmem:[#allocation21 + $0x1f0] sm:$0xff]
  %v7720 = vld [vmem:[#allocation21 + $0x1f8] sm:$0xff]
  %v7721 = vld [vmem:[#allocation21 + $0x200] sm:$0xff]
  %v7722 = vld [vmem:[#allocation21 + $0x208] sm:$0xff]
  %v7723 = vld [vmem:[#allocation21 + $0x210] sm:$0xff]
  %v7724 = vld [vmem:[#allocation21 + $0x218] sm:$0xff]
  %v7725 = vld [vmem:[#allocation21 + $0x220] sm:$0xff]
  %v7726 = vld [vmem:[#allocation21 + $0x228] sm:$0xff]
  %v7727 = vld [vmem:[#allocation21 + $0x230] sm:$0xff]
  %v7728 = vld [vmem:[#allocation21 + $0x238] sm:$0xff]
  %v7729 = vld [vmem:[#allocation21 + $0x240] sm:$0xff]
  %v7730 = vld [vmem:[#allocation21 + $0x248] sm:$0xff]
  %v7731 = vld [vmem:[#allocation21 + $0x250] sm:$0xff]
  %v7732 = vld [vmem:[#allocation21 + $0x258] sm:$0xff]
  %v7733 = vld [vmem:[#allocation21 + $0x260] sm:$0xff]
  %v7734 = vld [vmem:[#allocation21 + $0x268] sm:$0xff]
  %v7735 = vld [vmem:[#allocation21 + $0x270] sm:$0xff]
  %v7736 = vld [vmem:[#allocation21 + $0x278] sm:$0xff]
  %v7737 = vld [vmem:[#allocation21 + $0x280] sm:$0xff]
  %v7738 = vld [vmem:[#allocation21 + $0x288] sm:$0xff]
  %v7739 = vld [vmem:[#allocation21 + $0x290] sm:$0xff]
  %v7740 = vld [vmem:[#allocation21 + $0x298] sm:$0xff]
  %v7741 = vld [vmem:[#allocation21 + $0x2a0] sm:$0xff]
  %v7742 = vld [vmem:[#allocation21 + $0x2a8] sm:$0xff]
  %v7743 = vld [vmem:[#allocation21 + $0x2b0] sm:$0xff]
  %v7744 = vld [vmem:[#allocation21 + $0x2b8] sm:$0xff]
  %v7745 = vld [vmem:[#allocation21 + $0x2c0] sm:$0xff]
  %v7746 = vld [vmem:[#allocation21 + $0x2c8] sm:$0xff]
  %v7747 = vld [vmem:[#allocation21 + $0x2d0] sm:$0xff]
  %v7748 = vld [vmem:[#allocation21 + $0x2d8] sm:$0xff]
  %v7749 = vld [vmem:[#allocation21 + $0x2e0] sm:$0xff]
  %v7750 = vld [vmem:[#allocation21 + $0x2e8] sm:$0xff]
  %v7751 = vld [vmem:[#allocation21 + $0x2f0] sm:$0xff]
  %v7752 = vld [vmem:[#allocation21 + $0x2f8] sm:$0xff]
  %v7753 = vld [vmem:[#allocation21 + $0x300] sm:$0xff]
  %v7754 = vld [vmem:[#allocation21 + $0x308] sm:$0xff]
  %v7755 = vld [vmem:[#allocation21 + $0x310] sm:$0xff]
  %v7756 = vld [vmem:[#allocation21 + $0x318] sm:$0xff]
  %v7757 = vld [vmem:[#allocation21 + $0x320] sm:$0xff]
  %v7758 = vld [vmem:[#allocation21 + $0x328] sm:$0xff]
  %v7759 = vld [vmem:[#allocation21 + $0x330] sm:$0xff]
  %v7760 = vld [vmem:[#allocation21 + $0x338] sm:$0xff]
  %v7761 = vld [vmem:[#allocation21 + $0x340] sm:$0xff]
  %v7762 = vld [vmem:[#allocation21 + $0x348] sm:$0xff]
  %v7763 = vld [vmem:[#allocation21 + $0x350] sm:$0xff]
  %v7764 = vld [vmem:[#allocation21 + $0x358] sm:$0xff]
  %v7765 = vld [vmem:[#allocation21 + $0x360] sm:$0xff]
  %v7766 = vld [vmem:[#allocation21 + $0x368] sm:$0xff]
  %v7767 = vld [vmem:[#allocation21 + $0x370] sm:$0xff]
  %v7768 = vld [vmem:[#allocation21 + $0x378] sm:$0xff]
  %v7769 = vld [vmem:[#allocation21 + $0x380] sm:$0xff]
  %v7770 = vld [vmem:[#allocation21 + $0x388] sm:$0xff]
  %v7771 = vld [vmem:[#allocation21 + $0x390] sm:$0xff]
  %v7772 = vld [vmem:[#allocation21 + $0x398] sm:$0xff]
  %v7773 = vld [vmem:[#allocation21 + $0x3a0] sm:$0xff]
  %v7774 = vld [vmem:[#allocation21 + $0x3a8] sm:$0xff]
  %v7775 = vld [vmem:[#allocation21 + $0x3b0] sm:$0xff]
  %v7776 = vld [vmem:[#allocation21 + $0x3b8] sm:$0xff]
  %v7777 = vld [vmem:[#allocation21 + $0x3c0] sm:$0xff]
  %v7778 = vld [vmem:[#allocation21 + $0x3c8] sm:$0xff]
  %v7779 = vld [vmem:[#allocation21 + $0x3d0] sm:$0xff]
  %v7780 = vld [vmem:[#allocation21 + $0x3d8] sm:$0xff]
  %v7781 = vld [vmem:[#allocation21 + $0x3e0] sm:$0xff]
  %v7782 = vld [vmem:[#allocation21 + $0x3e8] sm:$0xff]
  %v7783 = vld [vmem:[#allocation21 + $0x3f0] sm:$0xff]
  %v7784 = vld [vmem:[#allocation21 + $0x3f8] sm:$0xff]
  %v7785 = vld [vmem:[%s41] sm:$0xf]
  %v7787 = vperm.slane %v7785, 0
  %v7788 = vperm.slane %v7785, 1
  %v7789 = vperm.slane %v7785, 2
  %v7790 = vperm.slane %v7785, 3
  %v7923 = vunpack.c.l.b16 %v7657
  %v7924 = vunpack.c.h.b16 %v7657
  %v7925 = vunpack.c.l.b16 %v7658
  %v7926 = vunpack.c.h.b16 %v7658
  %v7927 = vunpack.c.l.b16 %v7659
  %v7928 = vunpack.c.h.b16 %v7659
  %v7929 = vunpack.c.l.b16 %v7660
  %v7930 = vunpack.c.h.b16 %v7660
  %v7931 = vunpack.c.l.b16 %v7661
  %v7932 = vunpack.c.h.b16 %v7661
  %v7933 = vunpack.c.l.b16 %v7662
  %v7934 = vunpack.c.h.b16 %v7662
  %v7935 = vunpack.c.l.b16 %v7663
  %v7936 = vunpack.c.h.b16 %v7663
  %v7937 = vunpack.c.l.b16 %v7664
  %v7938 = vunpack.c.h.b16 %v7664
  %v7939 = vunpack.c.l.b16 %v7665
  %v7940 = vunpack.c.h.b16 %v7665
  %v7941 = vunpack.c.l.b16 %v7666
  %v7942 = vunpack.c.h.b16 %v7666
  %v7943 = vunpack.c.l.b16 %v7667
  %v7944 = vunpack.c.h.b16 %v7667
  %v7945 = vunpack.c.l.b16 %v7668
  %v7946 = vunpack.c.h.b16 %v7668
  %v7947 = vunpack.c.l.b16 %v7669
  %v7948 = vunpack.c.h.b16 %v7669
  %v7949 = vunpack.c.l.b16 %v7670
  %v7950 = vunpack.c.h.b16 %v7670
  %v7951 = vunpack.c.l.b16 %v7671
  %v7952 = vunpack.c.h.b16 %v7671
  %v7953 = vunpack.c.l.b16 %v7672
  %v7954 = vunpack.c.h.b16 %v7672
  %v7955 = vunpack.c.l.b16 %v7673
  %v7956 = vunpack.c.h.b16 %v7673
  %v7957 = vunpack.c.l.b16 %v7674
  %v7958 = vunpack.c.h.b16 %v7674
  %v7959 = vunpack.c.l.b16 %v7675
  %v7960 = vunpack.c.h.b16 %v7675
  %v7961 = vunpack.c.l.b16 %v7676
  %v7962 = vunpack.c.h.b16 %v7676
  %v7963 = vunpack.c.l.b16 %v7677
  %v7964 = vunpack.c.h.b16 %v7677
  %v7965 = vunpack.c.l.b16 %v7678
  %v7966 = vunpack.c.h.b16 %v7678
  %v7967 = vunpack.c.l.b16 %v7679
  %v7968 = vunpack.c.h.b16 %v7679
  %v7969 = vunpack.c.l.b16 %v7680
  %v7970 = vunpack.c.h.b16 %v7680
  %v7971 = vunpack.c.l.b16 %v7681
  %v7972 = vunpack.c.h.b16 %v7681
  %v7973 = vunpack.c.l.b16 %v7682
  %v7974 = vunpack.c.h.b16 %v7682
  %v7975 = vunpack.c.l.b16 %v7683
  %v7976 = vunpack.c.h.b16 %v7683
  %v7977 = vunpack.c.l.b16 %v7684
  %v7978 = vunpack.c.h.b16 %v7684
  %v7979 = vunpack.c.l.b16 %v7685
  %v7980 = vunpack.c.h.b16 %v7685
  %v7981 = vunpack.c.l.b16 %v7686
  %v7982 = vunpack.c.h.b16 %v7686
  %v7983 = vunpack.c.l.b16 %v7687
  %v7984 = vunpack.c.h.b16 %v7687
  %v7985 = vunpack.c.l.b16 %v7688
  %v7986 = vunpack.c.h.b16 %v7688
  %v7987 = vunpack.c.l.b16 %v7689
  %v7988 = vunpack.c.h.b16 %v7689
  %v7989 = vunpack.c.l.b16 %v7690
  %v7990 = vunpack.c.h.b16 %v7690
  %v7991 = vunpack.c.l.b16 %v7691
  %v7992 = vunpack.c.h.b16 %v7691
  %v7993 = vunpack.c.l.b16 %v7692
  %v7994 = vunpack.c.h.b16 %v7692
  %v7995 = vunpack.c.l.b16 %v7693
  %v7996 = vunpack.c.h.b16 %v7693
  %v7997 = vunpack.c.l.b16 %v7694
  %v7998 = vunpack.c.h.b16 %v7694
  %v7999 = vunpack.c.l.b16 %v7695
  %v8000 = vunpack.c.h.b16 %v7695
  %v8001 = vunpack.c.l.b16 %v7696
  %v8002 = vunpack.c.h.b16 %v7696
  %v8003 = vunpack.c.l.b16 %v7697
  %v8004 = vunpack.c.h.b16 %v7697
  %v8005 = vunpack.c.l.b16 %v7698
  %v8006 = vunpack.c.h.b16 %v7698
  %v8007 = vunpack.c.l.b16 %v7699
  %v8008 = vunpack.c.h.b16 %v7699
  %v8009 = vunpack.c.l.b16 %v7700
  %v8010 = vunpack.c.h.b16 %v7700
  %v8011 = vunpack.c.l.b16 %v7701
  %v8012 = vunpack.c.h.b16 %v7701
  %v8013 = vunpack.c.l.b16 %v7702
  %v8014 = vunpack.c.h.b16 %v7702
  %v8015 = vunpack.c.l.b16 %v7703
  %v8016 = vunpack.c.h.b16 %v7703
  %v8017 = vunpack.c.l.b16 %v7704
  %v8018 = vunpack.c.h.b16 %v7704
  %v8019 = vunpack.c.l.b16 %v7705
  %v8020 = vunpack.c.h.b16 %v7705
  %v8021 = vunpack.c.l.b16 %v7706
  %v8022 = vunpack.c.h.b16 %v7706
  %v8023 = vunpack.c.l.b16 %v7707
  %v8024 = vunpack.c.h.b16 %v7707
  %v8025 = vunpack.c.l.b16 %v7708
  %v8026 = vunpack.c.h.b16 %v7708
  %v8027 = vunpack.c.l.b16 %v7709
  %v8028 = vunpack.c.h.b16 %v7709
  %v8029 = vunpack.c.l.b16 %v7710
  %v8030 = vunpack.c.h.b16 %v7710
  %v8031 = vunpack.c.l.b16 %v7711
  %v8032 = vunpack.c.h.b16 %v7711
  %v8033 = vunpack.c.l.b16 %v7712
  %v8034 = vunpack.c.h.b16 %v7712
  %v8035 = vunpack.c.l.b16 %v7713
  %v8036 = vunpack.c.h.b16 %v7713
  %v8037 = vunpack.c.l.b16 %v7714
  %v8038 = vunpack.c.h.b16 %v7714
  %v8039 = vunpack.c.l.b16 %v7715
  %v8040 = vunpack.c.h.b16 %v7715
  %v8041 = vunpack.c.l.b16 %v7716
  %v8042 = vunpack.c.h.b16 %v7716
  %v8043 = vunpack.c.l.b16 %v7717
  %v8044 = vunpack.c.h.b16 %v7717
  %v8045 = vunpack.c.l.b16 %v7718
  %v8046 = vunpack.c.h.b16 %v7718
  %v8047 = vunpack.c.l.b16 %v7719
  %v8048 = vunpack.c.h.b16 %v7719
  %v8049 = vunpack.c.l.b16 %v7720
  %v8050 = vunpack.c.h.b16 %v7720
  %v8051 = vunpack.c.l.b16 %v7721
  %v8052 = vunpack.c.h.b16 %v7721
  %v8053 = vunpack.c.l.b16 %v7722
  %v8054 = vunpack.c.h.b16 %v7722
  %v8055 = vunpack.c.l.b16 %v7723
  %v8056 = vunpack.c.h.b16 %v7723
  %v8057 = vunpack.c.l.b16 %v7724
  %v8058 = vunpack.c.h.b16 %v7724
  %v8059 = vunpack.c.l.b16 %v7725
  %v8060 = vunpack.c.h.b16 %v7725
  %v8061 = vunpack.c.l.b16 %v7726
  %v8062 = vunpack.c.h.b16 %v7726
  %v8063 = vunpack.c.l.b16 %v7727
  %v8064 = vunpack.c.h.b16 %v7727
  %v8065 = vunpack.c.l.b16 %v7728
  %v8066 = vunpack.c.h.b16 %v7728
  %v8067 = vunpack.c.l.b16 %v7729
  %v8068 = vunpack.c.h.b16 %v7729
  %v8069 = vunpack.c.l.b16 %v7730
  %v8070 = vunpack.c.h.b16 %v7730
  %v8071 = vunpack.c.l.b16 %v7731
  %v8072 = vunpack.c.h.b16 %v7731
  %v8073 = vunpack.c.l.b16 %v7732
  %v8074 = vunpack.c.h.b16 %v7732
  %v8075 = vunpack.c.l.b16 %v7733
  %v8076 = vunpack.c.h.b16 %v7733
  %v8077 = vunpack.c.l.b16 %v7734
  %v8078 = vunpack.c.h.b16 %v7734
  %v8079 = vunpack.c.l.b16 %v7735
  %v8080 = vunpack.c.h.b16 %v7735
  %v8081 = vunpack.c.l.b16 %v7736
  %v8082 = vunpack.c.h.b16 %v7736
  %v8083 = vunpack.c.l.b16 %v7737
  %v8084 = vunpack.c.h.b16 %v7737
  %v8085 = vunpack.c.l.b16 %v7738
  %v8086 = vunpack.c.h.b16 %v7738
  %v8087 = vunpack.c.l.b16 %v7739
  %v8088 = vunpack.c.h.b16 %v7739
  %v8089 = vunpack.c.l.b16 %v7740
  %v8090 = vunpack.c.h.b16 %v7740
  %v8091 = vunpack.c.l.b16 %v7741
  %v8092 = vunpack.c.h.b16 %v7741
  %v8093 = vunpack.c.l.b16 %v7742
  %v8094 = vunpack.c.h.b16 %v7742
  %v8095 = vunpack.c.l.b16 %v7743
  %v8096 = vunpack.c.h.b16 %v7743
  %v8097 = vunpack.c.l.b16 %v7744
  %v8098 = vunpack.c.h.b16 %v7744
  %v8099 = vunpack.c.l.b16 %v7745
  %v8100 = vunpack.c.h.b16 %v7745
  %v8101 = vunpack.c.l.b16 %v7746
  %v8102 = vunpack.c.h.b16 %v7746
  %v8103 = vunpack.c.l.b16 %v7747
  %v8104 = vunpack.c.h.b16 %v7747
  %v8105 = vunpack.c.l.b16 %v7748
  %v8106 = vunpack.c.h.b16 %v7748
  %v8107 = vunpack.c.l.b16 %v7749
  %v8108 = vunpack.c.h.b16 %v7749
  %v8109 = vunpack.c.l.b16 %v7750
  %v8110 = vunpack.c.h.b16 %v7750
  %v8111 = vunpack.c.l.b16 %v7751
  %v8112 = vunpack.c.h.b16 %v7751
  %v8113 = vunpack.c.l.b16 %v7752
  %v8114 = vunpack.c.h.b16 %v7752
  %v8115 = vunpack.c.l.b16 %v7753
  %v8116 = vunpack.c.h.b16 %v7753
  %v8117 = vunpack.c.l.b16 %v7754
  %v8118 = vunpack.c.h.b16 %v7754
  %v8119 = vunpack.c.l.b16 %v7755
  %v8120 = vunpack.c.h.b16 %v7755
  %v8121 = vunpack.c.l.b16 %v7756
  %v8122 = vunpack.c.h.b16 %v7756
  %v8123 = vunpack.c.l.b16 %v7757
  %v8124 = vunpack.c.h.b16 %v7757
  %v8125 = vunpack.c.l.b16 %v7758
  %v8126 = vunpack.c.h.b16 %v7758
  %v8127 = vunpack.c.l.b16 %v7759
  %v8128 = vunpack.c.h.b16 %v7759
  %v8129 = vunpack.c.l.b16 %v7760
  %v8130 = vunpack.c.h.b16 %v7760
  %v8131 = vunpack.c.l.b16 %v7761
  %v8132 = vunpack.c.h.b16 %v7761
  %v8133 = vunpack.c.l.b16 %v7762
  %v8134 = vunpack.c.h.b16 %v7762
  %v8135 = vunpack.c.l.b16 %v7763
  %v8136 = vunpack.c.h.b16 %v7763
  %v8137 = vunpack.c.l.b16 %v7764
  %v8138 = vunpack.c.h.b16 %v7764
  %v8139 = vunpack.c.l.b16 %v7765
  %v8140 = vunpack.c.h.b16 %v7765
  %v8141 = vunpack.c.l.b16 %v7766
  %v8142 = vunpack.c.h.b16 %v7766
  %v8143 = vunpack.c.l.b16 %v7767
  %v8144 = vunpack.c.h.b16 %v7767
  %v8145 = vunpack.c.l.b16 %v7768
  %v8146 = vunpack.c.h.b16 %v7768
  %v8147 = vunpack.c.l.b16 %v7769
  %v8148 = vunpack.c.h.b16 %v7769
  %v8149 = vunpack.c.l.b16 %v7770
  %v8150 = vunpack.c.h.b16 %v7770
  %v8151 = vunpack.c.l.b16 %v7771
  %v8152 = vunpack.c.h.b16 %v7771
  %v8153 = vunpack.c.l.b16 %v7772
  %v8154 = vunpack.c.h.b16 %v7772
  %v8155 = vunpack.c.l.b16 %v7773
  %v8156 = vunpack.c.h.b16 %v7773
  %v8157 = vunpack.c.l.b16 %v7774
  %v8158 = vunpack.c.h.b16 %v7774
  %v8159 = vunpack.c.l.b16 %v7775
  %v8160 = vunpack.c.h.b16 %v7775
  %v8161 = vunpack.c.l.b16 %v7776
  %v8162 = vunpack.c.h.b16 %v7776
  %v8163 = vunpack.c.l.b16 %v7777
  %v8164 = vunpack.c.h.b16 %v7777
  %v8165 = vunpack.c.l.b16 %v7778
  %v8166 = vunpack.c.h.b16 %v7778
  %v8167 = vunpack.c.l.b16 %v7779
  %v8168 = vunpack.c.h.b16 %v7779
  %v8169 = vunpack.c.l.b16 %v7780
  %v8170 = vunpack.c.h.b16 %v7780
  %v8171 = vunpack.c.l.b16 %v7781
  %v8172 = vunpack.c.h.b16 %v7781
  %v8173 = vunpack.c.l.b16 %v7782
  %v8174 = vunpack.c.h.b16 %v7782
  %v8175 = vunpack.c.l.b16 %v7783
  %v8176 = vunpack.c.h.b16 %v7783
  %v8177 = vunpack.c.l.b16 %v7784
  %v8178 = vunpack.c.h.b16 %v7784
  %v8179 = vpack.c.b16 %v7927, %v7923
  %v8180 = vpack.c.b16 %v7928, %v7924
  %v8181 = vpack.c.b16 %v7929, %v7925
  %v8182 = vpack.c.b16 %v7930, %v7926
  %v8183 = vpack.c.b16 %v7935, %v7931
  %v8184 = vpack.c.b16 %v7936, %v7932
  %v8185 = vpack.c.b16 %v7937, %v7933
  %v8186 = vpack.c.b16 %v7938, %v7934
  %v8187 = vpack.c.b16 %v7943, %v7939
  %v8188 = vpack.c.b16 %v7944, %v7940
  %v8189 = vpack.c.b16 %v7945, %v7941
  %v8190 = vpack.c.b16 %v7946, %v7942
  %v8191 = vpack.c.b16 %v7951, %v7947
  %v8192 = vpack.c.b16 %v7952, %v7948
  %v8193 = vpack.c.b16 %v7953, %v7949
  %v8194 = vpack.c.b16 %v7954, %v7950
  %v8195 = vpack.c.b16 %v7959, %v7955
  %v8196 = vpack.c.b16 %v7960, %v7956
  %v8197 = vpack.c.b16 %v7961, %v7957
  %v8198 = vpack.c.b16 %v7962, %v7958
  %v8199 = vpack.c.b16 %v7967, %v7963
  %v8200 = vpack.c.b16 %v7968, %v7964
  %v8201 = vpack.c.b16 %v7969, %v7965
  %v8202 = vpack.c.b16 %v7970, %v7966
  %v8203 = vpack.c.b16 %v7975, %v7971
  %v8204 = vpack.c.b16 %v7976, %v7972
  %v8205 = vpack.c.b16 %v7977, %v7973
  %v8206 = vpack.c.b16 %v7978, %v7974
  %v8207 = vpack.c.b16 %v7983, %v7979
  %v8208 = vpack.c.b16 %v7984, %v7980
  %v8209 = vpack.c.b16 %v7985, %v7981
  %v8210 = vpack.c.b16 %v7986, %v7982
  %v8211 = vpack.c.b16 %v7991, %v7987
  %v8212 = vpack.c.b16 %v7992, %v7988
  %v8213 = vpack.c.b16 %v7993, %v7989
  %v8214 = vpack.c.b16 %v7994, %v7990
  %v8215 = vpack.c.b16 %v7999, %v7995
  %v8216 = vpack.c.b16 %v8000, %v7996
  %v8217 = vpack.c.b16 %v8001, %v7997
  %v8218 = vpack.c.b16 %v8002, %v7998
  %v8219 = vpack.c.b16 %v8007, %v8003
  %v8220 = vpack.c.b16 %v8008, %v8004
  %v8221 = vpack.c.b16 %v8009, %v8005
  %v8222 = vpack.c.b16 %v8010, %v8006
  %v8223 = vpack.c.b16 %v8015, %v8011
  %v8224 = vpack.c.b16 %v8016, %v8012
  %v8225 = vpack.c.b16 %v8017, %v8013
  %v8226 = vpack.c.b16 %v8018, %v8014
  %v8227 = vpack.c.b16 %v8023, %v8019
  %v8228 = vpack.c.b16 %v8024, %v8020
  %v8229 = vpack.c.b16 %v8025, %v8021
  %v8230 = vpack.c.b16 %v8026, %v8022
  %v8231 = vpack.c.b16 %v8031, %v8027
  %v8232 = vpack.c.b16 %v8032, %v8028
  %v8233 = vpack.c.b16 %v8033, %v8029
  %v8234 = vpack.c.b16 %v8034, %v8030
  %v8235 = vpack.c.b16 %v8039, %v8035
  %v8236 = vpack.c.b16 %v8040, %v8036
  %v8237 = vpack.c.b16 %v8041, %v8037
  %v8238 = vpack.c.b16 %v8042, %v8038
  %v8239 = vpack.c.b16 %v8047, %v8043
  %v8240 = vpack.c.b16 %v8048, %v8044
  %v8241 = vpack.c.b16 %v8049, %v8045
  %v8242 = vpack.c.b16 %v8050, %v8046
  %v8243 = vpack.c.b16 %v8055, %v8051
  %v8244 = vpack.c.b16 %v8056, %v8052
  %v8245 = vpack.c.b16 %v8057, %v8053
  %v8246 = vpack.c.b16 %v8058, %v8054
  %v8247 = vpack.c.b16 %v8063, %v8059
  %v8248 = vpack.c.b16 %v8064, %v8060
  %v8249 = vpack.c.b16 %v8065, %v8061
  %v8250 = vpack.c.b16 %v8066, %v8062
  %v8251 = vpack.c.b16 %v8071, %v8067
  %v8252 = vpack.c.b16 %v8072, %v8068
  %v8253 = vpack.c.b16 %v8073, %v8069
  %v8254 = vpack.c.b16 %v8074, %v8070
  %v8255 = vpack.c.b16 %v8079, %v8075
  %v8256 = vpack.c.b16 %v8080, %v8076
  %v8257 = vpack.c.b16 %v8081, %v8077
  %v8258 = vpack.c.b16 %v8082, %v8078
  %v8259 = vpack.c.b16 %v8087, %v8083
  %v8260 = vpack.c.b16 %v8088, %v8084
  %v8261 = vpack.c.b16 %v8089, %v8085
  %v8262 = vpack.c.b16 %v8090, %v8086
  %v8263 = vpack.c.b16 %v8095, %v8091
  %v8264 = vpack.c.b16 %v8096, %v8092
  %v8265 = vpack.c.b16 %v8097, %v8093
  %v8266 = vpack.c.b16 %v8098, %v8094
  %v8267 = vpack.c.b16 %v8103, %v8099
  %v8268 = vpack.c.b16 %v8104, %v8100
  %v8269 = vpack.c.b16 %v8105, %v8101
  %v8270 = vpack.c.b16 %v8106, %v8102
  %v8271 = vpack.c.b16 %v8111, %v8107
  %v8272 = vpack.c.b16 %v8112, %v8108
  %v8273 = vpack.c.b16 %v8113, %v8109
  %v8274 = vpack.c.b16 %v8114, %v8110
  %v8275 = vpack.c.b16 %v8119, %v8115
  %v8276 = vpack.c.b16 %v8120, %v8116
  %v8277 = vpack.c.b16 %v8121, %v8117
  %v8278 = vpack.c.b16 %v8122, %v8118
  %v8279 = vpack.c.b16 %v8127, %v8123
  %v8280 = vpack.c.b16 %v8128, %v8124
  %v8281 = vpack.c.b16 %v8129, %v8125
  %v8282 = vpack.c.b16 %v8130, %v8126
  %v8283 = vpack.c.b16 %v8135, %v8131
  %v8284 = vpack.c.b16 %v8136, %v8132
  %v8285 = vpack.c.b16 %v8137, %v8133
  %v8286 = vpack.c.b16 %v8138, %v8134
  %v8287 = vpack.c.b16 %v8143, %v8139
  %v8288 = vpack.c.b16 %v8144, %v8140
  %v8289 = vpack.c.b16 %v8145, %v8141
  %v8290 = vpack.c.b16 %v8146, %v8142
  %v8291 = vpack.c.b16 %v8151, %v8147
  %v8292 = vpack.c.b16 %v8152, %v8148
  %v8293 = vpack.c.b16 %v8153, %v8149
  %v8294 = vpack.c.b16 %v8154, %v8150
  %v8295 = vpack.c.b16 %v8159, %v8155
  %v8296 = vpack.c.b16 %v8160, %v8156
  %v8297 = vpack.c.b16 %v8161, %v8157
  %v8298 = vpack.c.b16 %v8162, %v8158
  %v8299 = vpack.c.b16 %v8167, %v8163
  %v8300 = vpack.c.b16 %v8168, %v8164
  %v8301 = vpack.c.b16 %v8169, %v8165
  %v8302 = vpack.c.b16 %v8170, %v8166
  %v8303 = vpack.c.b16 %v8175, %v8171
  %v8304 = vpack.c.b16 %v8176, %v8172
  %v8305 = vpack.c.b16 %v8177, %v8173
  %v8306 = vpack.c.b16 %v8178, %v8174
  %8435 = vmatpush.bf16.msra.mxu0 %v8207
  %8436 = vmatpush.bf16.msra.mxu0 %v8203
  %8437 = vmatpush.bf16.msra.mxu0 %v8199
  %8438 = vmatpush.bf16.msra.mxu0 %v8195
  %8439 = vmatpush.bf16.msra.mxu0 %v8191
  %8440 = vmatpush.bf16.msra.mxu0 %v8187
  %8441 = vmatpush.bf16.msra.mxu0 %v8183
  %8442 = vmatpush.bf16.msra.mxu0 %v8179
  %8443 = vmatmul.bf16.gmra.mxu0 %v7653
  %v8444 = vpop.f32.mrf.mxu0
  %v8445 = vadd.f32 %v7787, %v8444
  %v8446 = vpop.f32.mrf.mxu0
  %v8447 = vadd.f32 %v7787, %v8446
  %8448 = vdwg.mxu0
  %8449 = vmatpush.bf16.msra.mxu0 %v8239
  %8450 = vmatpush.bf16.msra.mxu0 %v8235
  %8451 = vmatpush.bf16.msra.mxu0 %v8231
  %8452 = vmatpush.bf16.msra.mxu0 %v8227
  %8453 = vmatpush.bf16.msra.mxu0 %v8223
  %8454 = vmatpush.bf16.msra.mxu0 %v8219
  %8455 = vmatpush.bf16.msra.mxu0 %v8215
  %8456 = vmatpush.bf16.msra.mxu0 %v8211
  %8457 = vmatmul.bf16.gmra.mxu0 %v7654
  %v8458 = vpop.f32.mrf.mxu0
  %v8459 = vadd.f32 %v8445, %v8458
  %v8460 = vpop.f32.mrf.mxu0
  %v8461 = vadd.f32 %v8447, %v8460
  %8462 = vdwg.mxu0
  %8463 = vmatpush.bf16.msra.mxu0 %v8271
  %8464 = vmatpush.bf16.msra.mxu0 %v8267
  %8465 = vmatpush.bf16.msra.mxu0 %v8263
  %8466 = vmatpush.bf16.msra.mxu0 %v8259
  %8467 = vmatpush.bf16.msra.mxu0 %v8255
  %8468 = vmatpush.bf16.msra.mxu0 %v8251
  %8469 = vmatpush.bf16.msra.mxu0 %v8247
  %8470 = vmatpush.bf16.msra.mxu0 %v8243
  %8471 = vmatmul.bf16.gmra.mxu0 %v7655
  %v8472 = vpop.f32.mrf.mxu0
  %v8473 = vadd.f32 %v8459, %v8472
  %v8474 = vpop.f32.mrf.mxu0
  %v8475 = vadd.f32 %v8461, %v8474
  %8476 = vdwg.mxu0
  %8477 = vmatpush.bf16.msra.mxu0 %v8303
  %8478 = vmatpush.bf16.msra.mxu0 %v8299
  %8479 = vmatpush.bf16.msra.mxu0 %v8295
  %8480 = vmatpush.bf16.msra.mxu0 %v8291
  %8481 = vmatpush.bf16.msra.mxu0 %v8287
  %8482 = vmatpush.bf16.msra.mxu0 %v8283
  %8483 = vmatpush.bf16.msra.mxu0 %v8279
  %8484 = vmatpush.bf16.msra.mxu0 %v8275
  %8485 = vmatmul.bf16.gmra.mxu0 %v7656
  %v8486 = vpop.f32.mrf.mxu0
  %v8487 = vadd.f32 %v8473, %v8486
  %v8488 = vpop.f32.mrf.mxu0
  %v8489 = vadd.f32 %v8475, %v8488
  %8490 = vdwg.mxu0
  %8491 = vmatpush.bf16.msra.mxu0 %v8208
  %8492 = vmatpush.bf16.msra.mxu0 %v8204
  %8493 = vmatpush.bf16.msra.mxu0 %v8200
  %8494 = vmatpush.bf16.msra.mxu0 %v8196
  %8495 = vmatpush.bf16.msra.mxu0 %v8192
  %8496 = vmatpush.bf16.msra.mxu0 %v8188
  %8497 = vmatpush.bf16.msra.mxu0 %v8184
  %8498 = vmatpush.bf16.msra.mxu0 %v8180
  %8499 = vmatmul.bf16.gmra.mxu0 %v7653
  %v8500 = vpop.f32.mrf.mxu0
  %v8501 = vadd.f32 %v7788, %v8500
  %v8502 = vpop.f32.mrf.mxu0
  %v8503 = vadd.f32 %v7788, %v8502
  %8504 = vdwg.mxu0
  %8505 = vmatpush.bf16.msra.mxu0 %v8240
  %8506 = vmatpush.bf16.msra.mxu0 %v8236
  %8507 = vmatpush.bf16.msra.mxu0 %v8232
  %8508 = vmatpush.bf16.msra.mxu0 %v8228
  %8509 = vmatpush.bf16.msra.mxu0 %v8224
  %8510 = vmatpush.bf16.msra.mxu0 %v8220
  %8511 = vmatpush.bf16.msra.mxu0 %v8216
  %8512 = vmatpush.bf16.msra.mxu0 %v8212
  %8513 = vmatmul.bf16.gmra.mxu0 %v7654
  %v8514 = vpop.f32.mrf.mxu0
  %v8515 = vadd.f32 %v8501, %v8514
  %v8516 = vpop.f32.mrf.mxu0
  %v8517 = vadd.f32 %v8503, %v8516
  %8518 = vdwg.mxu0
  %8519 = vmatpush.bf16.msra.mxu0 %v8272
  %8520 = vmatpush.bf16.msra.mxu0 %v8268
  %8521 = vmatpush.bf16.msra.mxu0 %v8264
  %8522 = vmatpush.bf16.msra.mxu0 %v8260
  %8523 = vmatpush.bf16.msra.mxu0 %v8256
  %8524 = vmatpush.bf16.msra.mxu0 %v8252
  %8525 = vmatpush.bf16.msra.mxu0 %v8248
  %8526 = vmatpush.bf16.msra.mxu0 %v8244
  %8527 = vmatmul.bf16.gmra.mxu0 %v7655
  %v8528 = vpop.f32.mrf.mxu0
  %v8529 = vadd.f32 %v8515, %v8528
  %v8530 = vpop.f32.mrf.mxu0
  %v8531 = vadd.f32 %v8517, %v8530
  %8532 = vdwg.mxu0
  %8533 = vmatpush.bf16.msra.mxu0 %v8304
  %8534 = vmatpush.bf16.msra.mxu0 %v8300
  %8535 = vmatpush.bf16.msra.mxu0 %v8296
  %8536 = vmatpush.bf16.msra.mxu0 %v8292
  %8537 = vmatpush.bf16.msra.mxu0 %v8288
  %8538 = vmatpush.bf16.msra.mxu0 %v8284
  %8539 = vmatpush.bf16.msra.mxu0 %v8280
  %8540 = vmatpush.bf16.msra.mxu0 %v8276
  %8541 = vmatmul.bf16.gmra.mxu0 %v7656
  %v8542 = vpop.f32.mrf.mxu0
  %v8543 = vadd.f32 %v8529, %v8542
  %v8544 = vpop.f32.mrf.mxu0
  %v8545 = vadd.f32 %v8531, %v8544
  %8546 = vdwg.mxu0
  %8547 = vmatpush.bf16.msra.mxu0 %v8209
  %8548 = vmatpush.bf16.msra.mxu0 %v8205
  %8549 = vmatpush.bf16.msra.mxu0 %v8201
  %8550 = vmatpush.bf16.msra.mxu0 %v8197
  %8551 = vmatpush.bf16.msra.mxu0 %v8193
  %8552 = vmatpush.bf16.msra.mxu0 %v8189
  %8553 = vmatpush.bf16.msra.mxu0 %v8185
  %8554 = vmatpush.bf16.msra.mxu0 %v8181
  %8555 = vmatmul.bf16.gmra.mxu0 %v7653
  %v8556 = vpop.f32.mrf.mxu0
  %v8557 = vadd.f32 %v7789, %v8556
  %v8558 = vpop.f32.mrf.mxu0
  %v8559 = vadd.f32 %v7789, %v8558
  %8560 = vdwg.mxu0
  %8561 = vmatpush.bf16.msra.mxu0 %v8241
  %8562 = vmatpush.bf16.msra.mxu0 %v8237
  %8563 = vmatpush.bf16.msra.mxu0 %v8233
  %8564 = vmatpush.bf16.msra.mxu0 %v8229
  %8565 = vmatpush.bf16.msra.mxu0 %v8225
  %8566 = vmatpush.bf16.msra.mxu0 %v8221
  %8567 = vmatpush.bf16.msra.mxu0 %v8217
  %8568 = vmatpush.bf16.msra.mxu0 %v8213
  %8569 = vmatmul.bf16.gmra.mxu0 %v7654
  %v8570 = vpop.f32.mrf.mxu0
  %v8571 = vadd.f32 %v8557, %v8570
  %v8572 = vpop.f32.mrf.mxu0
  %v8573 = vadd.f32 %v8559, %v8572
  %8574 = vdwg.mxu0
  %8575 = vmatpush.bf16.msra.mxu0 %v8273
  %8576 = vmatpush.bf16.msra.mxu0 %v8269
  %8577 = vmatpush.bf16.msra.mxu0 %v8265
  %8578 = vmatpush.bf16.msra.mxu0 %v8261
  %8579 = vmatpush.bf16.msra.mxu0 %v8257
  %8580 = vmatpush.bf16.msra.mxu0 %v8253
  %8581 = vmatpush.bf16.msra.mxu0 %v8249
  %8582 = vmatpush.bf16.msra.mxu0 %v8245
  %8583 = vmatmul.bf16.gmra.mxu0 %v7655
  %v8584 = vpop.f32.mrf.mxu0
  %v8585 = vadd.f32 %v8571, %v8584
  %v8586 = vpop.f32.mrf.mxu0
  %v8587 = vadd.f32 %v8573, %v8586
  %8588 = vdwg.mxu0
  %8589 = vmatpush.bf16.msra.mxu0 %v8305
  %8590 = vmatpush.bf16.msra.mxu0 %v8301
  %8591 = vmatpush.bf16.msra.mxu0 %v8297
  %8592 = vmatpush.bf16.msra.mxu0 %v8293
  %8593 = vmatpush.bf16.msra.mxu0 %v8289
  %8594 = vmatpush.bf16.msra.mxu0 %v8285
  %8595 = vmatpush.bf16.msra.mxu0 %v8281
  %8596 = vmatpush.bf16.msra.mxu0 %v8277
  %8597 = vmatmul.bf16.gmra.mxu0 %v7656
  %v8598 = vpop.f32.mrf.mxu0
  %v8599 = vadd.f32 %v8585, %v8598
  %v8600 = vpop.f32.mrf.mxu0
  %v8601 = vadd.f32 %v8587, %v8600
  %8602 = vdwg.mxu0
  %8603 = vmatpush.bf16.msra.mxu0 %v8210
  %8604 = vmatpush.bf16.msra.mxu0 %v8206
  %8605 = vmatpush.bf16.msra.mxu0 %v8202
  %8606 = vmatpush.bf16.msra.mxu0 %v8198
  %8607 = vmatpush.bf16.msra.mxu0 %v8194
  %8608 = vmatpush.bf16.msra.mxu0 %v8190
  %8609 = vmatpush.bf16.msra.mxu0 %v8186
  %8610 = vmatpush.bf16.msra.mxu0 %v8182
  %8611 = vmatmul.bf16.gmra.mxu0 %v7653
  %v8612 = vpop.f32.mrf.mxu0
  %v8613 = vadd.f32 %v7790, %v8612
  %v8614 = vpop.f32.mrf.mxu0
  %v8615 = vadd.f32 %v7790, %v8614
  %8616 = vdwg.mxu0
  %8617 = vmatpush.bf16.msra.mxu0 %v8242
  %8618 = vmatpush.bf16.msra.mxu0 %v8238
  %8619 = vmatpush.bf16.msra.mxu0 %v8234
  %8620 = vmatpush.bf16.msra.mxu0 %v8230
  %8621 = vmatpush.bf16.msra.mxu0 %v8226
  %8622 = vmatpush.bf16.msra.mxu0 %v8222
  %8623 = vmatpush.bf16.msra.mxu0 %v8218
  %8624 = vmatpush.bf16.msra.mxu0 %v8214
  %8625 = vmatmul.bf16.gmra.mxu0 %v7654
  %v8626 = vpop.f32.mrf.mxu0
  %v8627 = vadd.f32 %v8613, %v8626
  %v8628 = vpop.f32.mrf.mxu0
  %v8629 = vadd.f32 %v8615, %v8628
  %8630 = vdwg.mxu0
  %8631 = vmatpush.bf16.msra.mxu0 %v8274
  %8632 = vmatpush.bf16.msra.mxu0 %v8270
  %8633 = vmatpush.bf16.msra.mxu0 %v8266
  %8634 = vmatpush.bf16.msra.mxu0 %v8262
  %8635 = vmatpush.bf16.msra.mxu0 %v8258
  %8636 = vmatpush.bf16.msra.mxu0 %v8254
  %8637 = vmatpush.bf16.msra.mxu0 %v8250
  %8638 = vmatpush.bf16.msra.mxu0 %v8246
  %8639 = vmatmul.bf16.gmra.mxu0 %v7655
  %v8640 = vpop.f32.mrf.mxu0
  %v8641 = vadd.f32 %v8627, %v8640
  %v8642 = vpop.f32.mrf.mxu0
  %v8643 = vadd.f32 %v8629, %v8642
  %8644 = vdwg.mxu0
  %8645 = vmatpush.bf16.msra.mxu0 %v8306
  %8646 = vmatpush.bf16.msra.mxu0 %v8302
  %8647 = vmatpush.bf16.msra.mxu0 %v8298
  %8648 = vmatpush.bf16.msra.mxu0 %v8294
  %8649 = vmatpush.bf16.msra.mxu0 %v8290
  %8650 = vmatpush.bf16.msra.mxu0 %v8286
  %8651 = vmatpush.bf16.msra.mxu0 %v8282
  %8652 = vmatpush.bf16.msra.mxu0 %v8278
  %8653 = vmatmul.bf16.gmra.mxu0 %v7656
  %v8654 = vpop.f32.mrf.mxu0
  %v8655 = vadd.f32 %v8641, %v8654
  %v8656 = vpop.f32.mrf.mxu0
  %v8657 = vadd.f32 %v8643, %v8656
  %8658 = vdwg.mxu0
  %v8659 = vadd.f32 %v8487, %v6624
  %v8660 = vadd.f32 %v8543, %v6625
  %v8661 = vadd.f32 %v8599, %v6626
  %v8662 = vadd.f32 %v8655, %v6627
  %v8663 = vadd.f32 %v8489, %v6628
  %v8664 = vadd.f32 %v8545, %v6629
  %v8665 = vadd.f32 %v8601, %v6630
  %v8666 = vadd.f32 %v8657, %v6631
  %v8667 = vmax.f32 %v8659, 0.0
  %v8668 = vmax.f32 %v8660, 0.0
  %v8669 = vmax.f32 %v8661, 0.0
  %v8670 = vmax.f32 %v8662, 0.0
  %v8671 = vmax.f32 %v8663, 0.0
  %v8672 = vmax.f32 %v8664, 0.0
  %v8673 = vmax.f32 %v8665, 0.0
  %v8674 = vmax.f32 %v8666, 0.0
  %v8675 = vpack.c.bf16 %v8671, %v8667
  %v8676 = vpack.c.bf16 %v8672, %v8668
  %v8677 = vpack.c.bf16 %v8673, %v8669
  %v8678 = vpack.c.bf16 %v8674, %v8670
  %v8679 = vld [vmem:[#allocation22] sm:$0xf]
  %v8680 = vld [vmem:[#allocation22 + $0x4] sm:$0xf]
  %v8681 = vld [vmem:[#allocation22 + $0x8] sm:$0xf]
  %v8682 = vld [vmem:[#allocation22 + $0xc] sm:$0xf]
  %v8683 = vld [vmem:[#allocation22 + $0x10] sm:$0xf]
  %v8684 = vld [vmem:[#allocation22 + $0x14] sm:$0xf]
  %v8685 = vld [vmem:[#allocation22 + $0x18] sm:$0xf]
  %v8686 = vld [vmem:[#allocation22 + $0x1c] sm:$0xf]
  %v8687 = vld [vmem:[#allocation22 + $0x20] sm:$0xf]
  %v8688 = vld [vmem:[#allocation22 + $0x24] sm:$0xf]
  %v8689 = vld [vmem:[#allocation22 + $0x28] sm:$0xf]
  %v8690 = vld [vmem:[#allocation22 + $0x2c] sm:$0xf]
  %v8691 = vld [vmem:[#allocation22 + $0x30] sm:$0xf]
  %v8692 = vld [vmem:[#allocation22 + $0x34] sm:$0xf]
  %v8693 = vld [vmem:[#allocation22 + $0x38] sm:$0xf]
  %v8694 = vld [vmem:[#allocation22 + $0x3c] sm:$0xf]
  %v8695 = vld [vmem:[#allocation22 + $0x40] sm:$0xf]
  %v8696 = vld [vmem:[#allocation22 + $0x44] sm:$0xf]
  %v8697 = vld [vmem:[#allocation22 + $0x48] sm:$0xf]
  %v8698 = vld [vmem:[#allocation22 + $0x4c] sm:$0xf]
  %v8699 = vld [vmem:[#allocation22 + $0x50] sm:$0xf]
  %v8700 = vld [vmem:[#allocation22 + $0x54] sm:$0xf]
  %v8701 = vld [vmem:[#allocation22 + $0x58] sm:$0xf]
  %v8702 = vld [vmem:[#allocation22 + $0x5c] sm:$0xf]
  %v8703 = vld [vmem:[#allocation22 + $0x60] sm:$0xf]
  %v8704 = vld [vmem:[#allocation22 + $0x64] sm:$0xf]
  %v8705 = vld [vmem:[#allocation22 + $0x68] sm:$0xf]
  %v8706 = vld [vmem:[#allocation22 + $0x6c] sm:$0xf]
  %v8707 = vld [vmem:[#allocation22 + $0x70] sm:$0xf]
  %v8708 = vld [vmem:[#allocation22 + $0x74] sm:$0xf]
  %v8709 = vld [vmem:[#allocation22 + $0x78] sm:$0xf]
  %v8710 = vld [vmem:[#allocation22 + $0x7c] sm:$0xf]
  %v8711 = vld [vmem:[#allocation22 + $0x80] sm:$0xf]
  %v8712 = vld [vmem:[#allocation22 + $0x84] sm:$0xf]
  %v8713 = vld [vmem:[#allocation22 + $0x88] sm:$0xf]
  %v8714 = vld [vmem:[#allocation22 + $0x8c] sm:$0xf]
  %v8715 = vld [vmem:[#allocation22 + $0x90] sm:$0xf]
  %v8716 = vld [vmem:[#allocation22 + $0x94] sm:$0xf]
  %v8717 = vld [vmem:[#allocation22 + $0x98] sm:$0xf]
  %v8718 = vld [vmem:[#allocation22 + $0x9c] sm:$0xf]
  %v8719 = vld [vmem:[#allocation22 + $0xa0] sm:$0xf]
  %v8720 = vld [vmem:[#allocation22 + $0xa4] sm:$0xf]
  %v8721 = vld [vmem:[#allocation22 + $0xa8] sm:$0xf]
  %v8722 = vld [vmem:[#allocation22 + $0xac] sm:$0xf]
  %v8723 = vld [vmem:[#allocation22 + $0xb0] sm:$0xf]
  %v8724 = vld [vmem:[#allocation22 + $0xb4] sm:$0xf]
  %v8725 = vld [vmem:[#allocation22 + $0xb8] sm:$0xf]
  %v8726 = vld [vmem:[#allocation22 + $0xbc] sm:$0xf]
  %v8727 = vld [vmem:[#allocation22 + $0xc0] sm:$0xf]
  %v8728 = vld [vmem:[#allocation22 + $0xc4] sm:$0xf]
  %v8729 = vld [vmem:[#allocation22 + $0xc8] sm:$0xf]
  %v8730 = vld [vmem:[#allocation22 + $0xcc] sm:$0xf]
  %v8731 = vld [vmem:[#allocation22 + $0xd0] sm:$0xf]
  %v8732 = vld [vmem:[#allocation22 + $0xd4] sm:$0xf]
  %v8733 = vld [vmem:[#allocation22 + $0xd8] sm:$0xf]
  %v8734 = vld [vmem:[#allocation22 + $0xdc] sm:$0xf]
  %v8735 = vld [vmem:[#allocation22 + $0xe0] sm:$0xf]
  %v8736 = vld [vmem:[#allocation22 + $0xe4] sm:$0xf]
  %v8737 = vld [vmem:[#allocation22 + $0xe8] sm:$0xf]
  %v8738 = vld [vmem:[#allocation22 + $0xec] sm:$0xf]
  %v8739 = vld [vmem:[#allocation22 + $0xf0] sm:$0xf]
  %v8740 = vld [vmem:[#allocation22 + $0xf4] sm:$0xf]
  %v8741 = vld [vmem:[#allocation22 + $0xf8] sm:$0xf]
  %v8742 = vld [vmem:[#allocation22 + $0xfc] sm:$0xf]
  %v8743 = vld [vmem:[%s43] sm:$0x1]
  %v8745 = vperm.slane %v8743, 0
  %v8811 = vunpack.c.l.b16 %v8679
  %v8812 = vunpack.c.l.b16 %v8680
  %v8813 = vunpack.c.l.b16 %v8681
  %v8814 = vunpack.c.l.b16 %v8682
  %v8815 = vunpack.c.l.b16 %v8683
  %v8816 = vunpack.c.l.b16 %v8684
  %v8817 = vunpack.c.l.b16 %v8685
  %v8818 = vunpack.c.l.b16 %v8686
  %v8819 = vunpack.c.l.b16 %v8687
  %v8820 = vunpack.c.l.b16 %v8688
  %v8821 = vunpack.c.l.b16 %v8689
  %v8822 = vunpack.c.l.b16 %v8690
  %v8823 = vunpack.c.l.b16 %v8691
  %v8824 = vunpack.c.l.b16 %v8692
  %v8825 = vunpack.c.l.b16 %v8693
  %v8826 = vunpack.c.l.b16 %v8694
  %v8827 = vunpack.c.l.b16 %v8695
  %v8828 = vunpack.c.l.b16 %v8696
  %v8829 = vunpack.c.l.b16 %v8697
  %v8830 = vunpack.c.l.b16 %v8698
  %v8831 = vunpack.c.l.b16 %v8699
  %v8832 = vunpack.c.l.b16 %v8700
  %v8833 = vunpack.c.l.b16 %v8701
  %v8834 = vunpack.c.l.b16 %v8702
  %v8835 = vunpack.c.l.b16 %v8703
  %v8836 = vunpack.c.l.b16 %v8704
  %v8837 = vunpack.c.l.b16 %v8705
  %v8838 = vunpack.c.l.b16 %v8706
  %v8839 = vunpack.c.l.b16 %v8707
  %v8840 = vunpack.c.l.b16 %v8708
  %v8841 = vunpack.c.l.b16 %v8709
  %v8842 = vunpack.c.l.b16 %v8710
  %v8843 = vunpack.c.l.b16 %v8711
  %v8844 = vunpack.c.l.b16 %v8712
  %v8845 = vunpack.c.l.b16 %v8713
  %v8846 = vunpack.c.l.b16 %v8714
  %v8847 = vunpack.c.l.b16 %v8715
  %v8848 = vunpack.c.l.b16 %v8716
  %v8849 = vunpack.c.l.b16 %v8717
  %v8850 = vunpack.c.l.b16 %v8718
  %v8851 = vunpack.c.l.b16 %v8719
  %v8852 = vunpack.c.l.b16 %v8720
  %v8853 = vunpack.c.l.b16 %v8721
  %v8854 = vunpack.c.l.b16 %v8722
  %v8855 = vunpack.c.l.b16 %v8723
  %v8856 = vunpack.c.l.b16 %v8724
  %v8857 = vunpack.c.l.b16 %v8725
  %v8858 = vunpack.c.l.b16 %v8726
  %v8859 = vunpack.c.l.b16 %v8727
  %v8860 = vunpack.c.l.b16 %v8728
  %v8861 = vunpack.c.l.b16 %v8729
  %v8862 = vunpack.c.l.b16 %v8730
  %v8863 = vunpack.c.l.b16 %v8731
  %v8864 = vunpack.c.l.b16 %v8732
  %v8865 = vunpack.c.l.b16 %v8733
  %v8866 = vunpack.c.l.b16 %v8734
  %v8867 = vunpack.c.l.b16 %v8735
  %v8868 = vunpack.c.l.b16 %v8736
  %v8869 = vunpack.c.l.b16 %v8737
  %v8870 = vunpack.c.l.b16 %v8738
  %v8871 = vunpack.c.l.b16 %v8739
  %v8872 = vunpack.c.l.b16 %v8740
  %v8873 = vunpack.c.l.b16 %v8741
  %v8874 = vunpack.c.l.b16 %v8742
  %v8875 = vpack.c.b16 %v8812, %v8811
  %v8876 = vpack.c.b16 %v8814, %v8813
  %v8877 = vpack.c.b16 %v8816, %v8815
  %v8878 = vpack.c.b16 %v8818, %v8817
  %v8879 = vpack.c.b16 %v8820, %v8819
  %v8880 = vpack.c.b16 %v8822, %v8821
  %v8881 = vpack.c.b16 %v8824, %v8823
  %v8882 = vpack.c.b16 %v8826, %v8825
  %v8883 = vpack.c.b16 %v8828, %v8827
  %v8884 = vpack.c.b16 %v8830, %v8829
  %v8885 = vpack.c.b16 %v8832, %v8831
  %v8886 = vpack.c.b16 %v8834, %v8833
  %v8887 = vpack.c.b16 %v8836, %v8835
  %v8888 = vpack.c.b16 %v8838, %v8837
  %v8889 = vpack.c.b16 %v8840, %v8839
  %v8890 = vpack.c.b16 %v8842, %v8841
  %v8891 = vpack.c.b16 %v8844, %v8843
  %v8892 = vpack.c.b16 %v8846, %v8845
  %v8893 = vpack.c.b16 %v8848, %v8847
  %v8894 = vpack.c.b16 %v8850, %v8849
  %v8895 = vpack.c.b16 %v8852, %v8851
  %v8896 = vpack.c.b16 %v8854, %v8853
  %v8897 = vpack.c.b16 %v8856, %v8855
  %v8898 = vpack.c.b16 %v8858, %v8857
  %v8899 = vpack.c.b16 %v8860, %v8859
  %v8900 = vpack.c.b16 %v8862, %v8861
  %v8901 = vpack.c.b16 %v8864, %v8863
  %v8902 = vpack.c.b16 %v8866, %v8865
  %v8903 = vpack.c.b16 %v8868, %v8867
  %v8904 = vpack.c.b16 %v8870, %v8869
  %v8905 = vpack.c.b16 %v8872, %v8871
  %v8906 = vpack.c.b16 %v8874, %v8873
  %8939 = vmatpush.bf16.msra.mxu0 %v8882
  %8940 = vmatpush.bf16.msra.mxu0 %v8881
  %8941 = vmatpush.bf16.msra.mxu0 %v8880
  %8942 = vmatpush.bf16.msra.mxu0 %v8879
  %8943 = vmatpush.bf16.msra.mxu0 %v8878
  %8944 = vmatpush.bf16.msra.mxu0 %v8877
  %8945 = vmatpush.bf16.msra.mxu0 %v8876
  %8946 = vmatpush.bf16.msra.mxu0 %v8875
  %8947 = vmatmul.bf16.gmra.mxu0 %v8675
  %v8948 = vpop.f32.mrf.mxu0
  %v8949 = vadd.f32 %v8745, %v8948
  %v8950 = vpop.f32.mrf.mxu0
  %v8951 = vadd.f32 %v8745, %v8950
  %8952 = vdwg.mxu0
  %8953 = vmatpush.bf16.msra.mxu0 %v8890
  %8954 = vmatpush.bf16.msra.mxu0 %v8889
  %8955 = vmatpush.bf16.msra.mxu0 %v8888
  %8956 = vmatpush.bf16.msra.mxu0 %v8887
  %8957 = vmatpush.bf16.msra.mxu0 %v8886
  %8958 = vmatpush.bf16.msra.mxu0 %v8885
  %8959 = vmatpush.bf16.msra.mxu0 %v8884
  %8960 = vmatpush.bf16.msra.mxu0 %v8883
  %8961 = vmatmul.bf16.gmra.mxu0 %v8676
  %v8962 = vpop.f32.mrf.mxu0
  %v8963 = vadd.f32 %v8949, %v8962
  %v8964 = vpop.f32.mrf.mxu0
  %v8965 = vadd.f32 %v8951, %v8964
  %8966 = vdwg.mxu0
  %8967 = vmatpush.bf16.msra.mxu0 %v8898
  %8968 = vmatpush.bf16.msra.mxu0 %v8897
  %8969 = vmatpush.bf16.msra.mxu0 %v8896
  %8970 = vmatpush.bf16.msra.mxu0 %v8895
  %8971 = vmatpush.bf16.msra.mxu0 %v8894
  %8972 = vmatpush.bf16.msra.mxu0 %v8893
  %8973 = vmatpush.bf16.msra.mxu0 %v8892
  %8974 = vmatpush.bf16.msra.mxu0 %v8891
  %8975 = vmatmul.bf16.gmra.mxu0 %v8677
  %v8976 = vpop.f32.mrf.mxu0
  %v8977 = vadd.f32 %v8963, %v8976
  %v8978 = vpop.f32.mrf.mxu0
  %v8979 = vadd.f32 %v8965, %v8978
  %8980 = vdwg.mxu0
  %8981 = vmatpush.bf16.msra.mxu0 %v8906
  %8982 = vmatpush.bf16.msra.mxu0 %v8905
  %8983 = vmatpush.bf16.msra.mxu0 %v8904
  %8984 = vmatpush.bf16.msra.mxu0 %v8903
  %8985 = vmatpush.bf16.msra.mxu0 %v8902
  %8986 = vmatpush.bf16.msra.mxu0 %v8901
  %8987 = vmatpush.bf16.msra.mxu0 %v8900
  %8988 = vmatpush.bf16.msra.mxu0 %v8899
  %8989 = vmatmul.bf16.gmra.mxu0 %v8678
  %v8990 = vpop.f32.mrf.mxu0
  %v8991 = vadd.f32 %v8977, %v8990
  %v8992 = vpop.f32.mrf.mxu0
  %v8993 = vadd.f32 %v8979, %v8992
  %8994 = vdwg.mxu0
  %8995 = vst [vmem:[%s87] sm:$0xff] %v8991
  %8996 = vst [vmem:[%s87 + $0x8] sm:$0xff] %v8993
  // Predicated region
  $region189: #{image_inertial_encoder_forward.1} parent=0 // pred_check
    _
  $region190: #{image_inertial_encoder_forward.1} parent=0 // pred_check_branch
    %8998 = sbr.rel (0) target = $region192
  $region191: #{image_inertial_encoder_forward.1} parent=0 // pred_region
    _
  $region192: #{image_inertial_encoder_forward.1} parent=0 // pred_fallthru
    _
  // Predicated region
  $region193: #{image_inertial_encoder_forward.1} parent=0 // pred_check
    _
  $region194: #{image_inertial_encoder_forward.1} parent=0 // pred_check_branch
    %9000 = sbr.rel (0) target = $region196
  $region195: #{image_inertial_encoder_forward.1} parent=0 // pred_region
    _
  $region196: #{image_inertial_encoder_forward.1} parent=0 // pred_fallthru
    _
  %9001 = vsyncmov [#allocation23]
  %s9002 = vpop.sfrf %9001
  %p9003 = scmp.eq.s32.totalorder %s9002, 0
  %p9004 = pneg %p9003
  %9006 = shalt.err (%p9004)
  %s9007 = scalar_lea.sflag [#allocation23], 1
  %9008 = vsyncmov %s9007
  %s9009 = vpop.sfrf %9008
  %p9010 = scmp.eq.s32.totalorder %s9009, 0
  %p9011 = pneg %p9010
  %9013 = shalt.err (%p9011)
  %s9014 = scalar_lea.sflag [#allocation23], 2
  %9015 = vsyncmov %s9014
  %s9016 = vpop.sfrf %9015
  %p9017 = scmp.eq.s32.totalorder %s9016, 0
  %p9018 = pneg %p9017
  %9020 = shalt.err (%p9018)
  %s9021 = scalar_lea.sflag [#allocation23], 3
  %9022 = vsyncmov %s9021
  %s9023 = vpop.sfrf %9022
  %p9024 = scmp.eq.s32.totalorder %s9023, 0
  %p9025 = pneg %p9024
  %9027 = shalt.err (%p9025)
  %s9028 = scalar_lea.sflag [#allocation23], 4
  %9029 = vsyncmov %s9028
  %s9030 = vpop.sfrf %9029
  %p9031 = scmp.eq.s32.totalorder %s9030, 0
  %p9032 = pneg %p9031
  %9034 = shalt.err (%p9032)
  %s9035 = scalar_lea.sflag [#allocation23], 5
  %9036 = vsyncmov %s9035
  %s9037 = vpop.sfrf %9036
  %p9038 = scmp.eq.s32.totalorder %s9037, 0
  %p9039 = pneg %p9038
  %9041 = shalt.err (%p9039)
  %s9042 = scalar_lea.sflag [#allocation23], 6
  %9043 = vsyncmov %s9042
  %s9044 = vpop.sfrf %9043
  %p9045 = scmp.eq.s32.totalorder %s9044, 0
  %p9046 = pneg %p9045
  %9048 = shalt.err (%p9046)
  %s9049 = scalar_lea.sflag [#allocation23], 7
  %9050 = vsyncmov %s9049
  %s9051 = vpop.sfrf %9050
  %p9052 = scmp.eq.s32.totalorder %s9051, 0
  %p9053 = pneg %p9052
  %9055 = shalt.err (%p9053)
  %s9056 = scalar_lea.sflag [#allocation23], 8
  %9057 = vsyncmov %s9056
  %s9058 = vpop.sfrf %9057
  %p9059 = scmp.eq.s32.totalorder %s9058, 0
  %p9060 = pneg %p9059
  %9062 = shalt.err (%p9060)
  %s9063 = scalar_lea.sflag [#allocation23], 9
  %9064 = vsyncmov %s9063
  %s9065 = vpop.sfrf %9064
  %p9066 = scmp.eq.s32.totalorder %s9065, 0
  %p9067 = pneg %p9066
  %9069 = shalt.err (%p9067)
  %s9070 = scalar_lea.sflag [#allocation23], 10
  %9071 = vsyncmov %s9070
  %s9072 = vpop.sfrf %9071
  %p9073 = scmp.eq.s32.totalorder %s9072, 0
  %p9074 = pneg %p9073
  %9076 = shalt.err (%p9074)
  %s9077 = scalar_lea.sflag [#allocation23], 11
  %9078 = vsyncmov %s9077
  %s9079 = vpop.sfrf %9078
  %p9080 = scmp.eq.s32.totalorder %s9079, 0
  %p9081 = pneg %p9080
  %9083 = shalt.err (%p9081)
  %s9084 = scalar_lea.sflag [#allocation23], 12
  %9085 = vsyncmov %s9084
  %s9086 = vpop.sfrf %9085
  %p9087 = scmp.eq.s32.totalorder %s9086, 0
  %p9088 = pneg %p9087
  %9090 = shalt.err (%p9088)
  %s9091 = scalar_lea.sflag [#allocation23], 13
  %9092 = vsyncmov %s9091
  %s9093 = vpop.sfrf %9092
  %p9094 = scmp.eq.s32.totalorder %s9093, 0
  %p9095 = pneg %p9094
  %9097 = shalt.err (%p9095)
  %s9098 = scalar_lea.sflag [#allocation23], 14
  %9099 = vsyncmov %s9098
  %s9100 = vpop.sfrf %9099
  %p9101 = scmp.eq.s32.totalorder %s9100, 0
  %p9102 = pneg %p9101
  %9104 = shalt.err (%p9102)
  %s9105 = scalar_lea.sflag [#allocation23], 15
  %9106 = vsyncmov %s9105
  %s9107 = vpop.sfrf %9106
  %p9108 = scmp.eq.s32.totalorder %s9107, 0
  %p9109 = pneg %p9108
  %9111 = shalt.err (%p9109)
  %s9112 = scalar_lea.sflag [#allocation23], 16
  %9113 = vsyncmov %s9112
  %s9114 = vpop.sfrf %9113
  %p9115 = scmp.eq.s32.totalorder %s9114, 0
  %p9116 = pneg %p9115
  %9118 = shalt.err (%p9116)
  %s9119 = scalar_lea.sflag [#allocation23], 17
  %9120 = vsyncmov %s9119
  %s9121 = vpop.sfrf %9120
  %p9122 = scmp.eq.s32.totalorder %s9121, 0
  %p9123 = pneg %p9122
  %9125 = shalt.err (%p9123)
  %s9126 = scalar_lea.sflag [#allocation23], 18
  %9127 = vsyncmov %s9126
  %s9128 = vpop.sfrf %9127
  %p9129 = scmp.eq.s32.totalorder %s9128, 0
  %p9130 = pneg %p9129
  %9132 = shalt.err (%p9130)
  %s9133 = scalar_lea.sflag [#allocation23], 19
  %9134 = vsyncmov %s9133
  %s9135 = vpop.sfrf %9134
  %p9136 = scmp.eq.s32.totalorder %s9135, 0
  %p9137 = pneg %p9136
  %9139 = shalt.err (%p9137)
  %s9140 = scalar_lea.sflag [#allocation23], 20
  %9141 = vsyncmov %s9140
  %s9142 = vpop.sfrf %9141
  %p9143 = scmp.eq.s32.totalorder %s9142, 0
  %p9144 = pneg %p9143
  %9146 = shalt.err (%p9144)

</llo_original>
